<compile_context>
chip_gen: v7x
topology: tpu7x:2x2x1
jax: 0.10.0
libtpu: 0.0.40
codegen_flags: <defaults>
</compile_context>

<pallas_src>
import functools

import numpy as np
import jax
import jax.numpy as jnp
from jax.experimental import pallas as pl
from jax.experimental.pallas import tpu as pltpu

NUM_CLASSES = 4
FLAT_FEATURES = 16 * 7 * 60  # 6720


def _round_up(a, b):
    return (a + b - 1) // b * b


# ----------------------------- Pallas kernels -----------------------------

def matmul_bias_act_kernel(x_ref, w_ref, b_ref, o_ref, *, relu):
    """One-shot (tm, K) @ (K, N) + bias, optional ReLU. bf16 in, f32 out."""
    y = jnp.dot(x_ref[...], w_ref[...], preferred_element_type=jnp.float32)
    y = y + b_ref[...]
    if relu:
        y = jnp.maximum(y, 0.0)
    o_ref[...] = y.astype(o_ref.dtype)


def pool_max4_kernel(a_ref, b_ref, c_ref, d_ref, o_ref):
    """Elementwise max of the four 2x2-window taps (ReLU already fused into
    the conv epilogue; max and ReLU commute)."""
    o_ref[...] = jnp.maximum(jnp.maximum(a_ref[...], b_ref[...]),
                             jnp.maximum(c_ref[...], d_ref[...]))


def dense_stack_kernel(x_ref, w1_ref, b1_ref, w2_ref, b2_ref, w3_ref, b3_ref,
                       o_ref):
    """Fused relu(fc1) -> relu(fc2) -> fc3; activations never leave VMEM."""
    h = jnp.dot(x_ref[...], w1_ref[...], preferred_element_type=jnp.float32)
    h = jnp.maximum(h + b1_ref[...], 0.0)
    h = jnp.dot(h.astype(jnp.bfloat16), w2_ref[...],
                preferred_element_type=jnp.float32)
    h = jnp.maximum(h + b2_ref[...], 0.0)
    y = jnp.dot(h.astype(jnp.bfloat16), w3_ref[...],
                preferred_element_type=jnp.float32)
    o_ref[...] = y + b3_ref[...]


# ------------------------------- Wrappers ---------------------------------

def pallas_matmul_bias_relu(x, w, b, *, tm, relu=True):
    """y = relu(x @ w + b).  x:(M,K) bf16, w:(K,N) bf16, b:(1,N) f32.

    Grid only over M ("parallel" for v7x megacore); K fits a single block so
    there is no K loop and no accumulator scratch."""
    M, K = x.shape
    Kw, N = w.shape
    assert K == Kw
    tm = min(tm, _round_up(M, 8))
    Mp = _round_up(M, tm)
    if Mp != M:
        x = jnp.pad(x, ((0, Mp - M), (0, 0)))

    out = pl.pallas_call(
        functools.partial(matmul_bias_act_kernel, relu=relu),
        out_shape=jax.ShapeDtypeStruct((Mp, N), jnp.float32),
        grid_spec=pltpu.PrefetchScalarGridSpec(
            num_scalar_prefetch=0,
            grid=(Mp // tm,),
            in_specs=[
                pl.BlockSpec((tm, K), lambda i: (i, 0)),
                pl.BlockSpec((K, N), lambda i: (0, 0)),
                pl.BlockSpec((1, N), lambda i: (0, 0)),
            ],
            out_specs=pl.BlockSpec((tm, N), lambda i: (i, 0)),
        ),
        compiler_params=pltpu.CompilerParams(
            dimension_semantics=("parallel",)),
    )(x, w, b)
    return out[:M] if Mp != M else out


def im2col(x, kh, kw):
    """(N, H, W, C) -> (N, OH, OW, kh*kw*C); feature order (kh, kw, C)."""
    Nb, H, W, C = x.shape
    OH, OW = H - kh + 1, W - kw + 1
    cols = [x[:, i:i + OH, j:j + OW, :] for i in range(kh) for j in range(kw)]
    return jnp.concatenate(cols, axis=-1)


def conv2d_relu(x, w, b, *, kh, kw, tm):
    """Valid conv (stride 1) + bias + ReLU via im2col + Pallas MXU matmul.
    x: (N, H, W, Cin);  w: (kh*kw*Cin, Cout) bf16;  b: (1, Cout) f32."""
    x = x.astype(jnp.bfloat16)
    Nb, H, W, Cin = x.shape
    OH, OW = H - kh + 1, W - kw + 1
    patches = im2col(x, kh, kw).reshape(Nb * OH * OW, kh * kw * Cin)
    y = pallas_matmul_bias_relu(patches, w, b, tm=tm, relu=True)
    return y.reshape(Nb, OH, OW, w.shape[1])


def max_pool_2x2(x):
    """2x2 max-pool, stride 2 (floor), NHWC.  The four window taps are
    presented to the Pallas kernel as lane-dense 2D slabs (Nb*PH, PW*C)."""
    Nb, H, W, C = x.shape
    PH, PW = H // 2, W // 2

    def tap(di, dj):
        return x[:, di:di + 2 * PH:2, dj:dj + 2 * PW:2, :].reshape(
            Nb * PH, PW * C)

    out = pl.pallas_call(
        pool_max4_kernel,
        out_shape=jax.ShapeDtypeStruct((Nb * PH, PW * C), x.dtype),
    )(tap(0, 0), tap(0, 1), tap(1, 0), tap(1, 1))
    return out.reshape(Nb, PH, PW, C)


def dense_stack(feats, p):
    """Fused fc1/fc2/fc3 (single Pallas launch); returns (M, NUM_CLASSES)."""
    M, K = feats.shape
    Mp = _round_up(M, 8)
    x = feats.astype(jnp.bfloat16)
    if Mp != M:
        x = jnp.pad(x, ((0, Mp - M), (0, 0)))
    out = pl.pallas_call(
        dense_stack_kernel,
        out_shape=jax.ShapeDtypeStruct((Mp, p['fw3'].shape[1]), jnp.float32),
    )(x, p['fw1'], p['fb1'], p['fw2'], p['fb2'], p['fw3'], p['fb3'])
    return out[:M, :NUM_CLASSES]


# ------------------------------- Forward -----------------------------------

def forward(params, x_nchw):
    p = params
    # NCHW -> NHWC (done once).
    x = jnp.transpose(x_nchw, (0, 2, 3, 1))                    # (N, 50, 250, 4)

    # Conv2d(4->6, (7,3)) + ReLU (fused), then 2x2 max-pool.
    y = conv2d_relu(x, p['w1'], p['b1'], kh=7, kw=3, tm=1984)  # (N, 44, 248, 6)
    y = max_pool_2x2(y)                                        # (N, 22, 124, 6)

    # Conv2d(6->16, (9,5)) + ReLU (fused), then 2x2 max-pool.
    y = conv2d_relu(y, p['w2'], p['b2'], kh=9, kw=5, tm=1680)  # (N, 14, 120, 16)
    y = max_pool_2x2(y)                                        # (N, 7, 60, 16)

    # Flatten exactly like torch .view(-1, 16*7*60) on an NCHW tensor.
    Nb = y.shape[0]
    feats = jnp.transpose(y, (0, 3, 1, 2)).reshape(Nb, FLAT_FEATURES)

    # relu(fc1) -> relu(fc2) -> fc3, one fused Pallas kernel.
    return dense_stack(feats, p)


# -------------------------- Deterministic params ---------------------------

def init_params(key):
    keys = jax.random.split(key, 16)
    it = iter(keys)

    def conv(kh, kw, cin, cout):
        std = 1.0 / np.sqrt(kh * kw * cin)
        w = jax.random.normal(next(it), (kh * kw * cin, cout), jnp.float32) * std
        b = jax.random.normal(next(it), (1, cout), jnp.float32) * 0.01
        return w.astype(jnp.bfloat16), b

    def lin(cin, cout, cin_pad, cout_pad):
        std = 1.0 / np.sqrt(cin)
        w = jax.random.normal(next(it), (cin, cout), jnp.float32) * std
        b = jax.random.normal(next(it), (1, cout), jnp.float32) * 0.01
        # Pad once at init to 128-lane multiples; zero padding keeps the math
        # exact and padded lanes are sliced off after the last layer.
        w = jnp.pad(w, ((0, cin_pad - cin), (0, cout_pad - cout)))
        b = jnp.pad(b, ((0, 0), (0, cout_pad - cout)))
        return w.astype(jnp.bfloat16), b

    p = {}
    p['w1'], p['b1'] = conv(7, 3, 4, 6)          # (84, 6)
    p['w2'], p['b2'] = conv(9, 5, 6, 16)         # (270, 16)
    p['fw1'], p['fb1'] = lin(FLAT_FEATURES, 120, FLAT_FEATURES, 128)
    p['fw2'], p['fb2'] = lin(120, 84, 128, 128)
    p['fw3'], p['fb3'] = lin(84, NUM_CLASSES, 128, 128)
    return p


if __name__ == "__main__":
    key = jax.random.PRNGKey(0)
    pkey, xkey = jax.random.split(key)
    params = init_params(pkey)
    # Spatial size is dictated by the architecture: fc1 expects 16*7*60 flat
    # features, which requires an input of (N, 4, 50, 250).  Batch kept small.
    x = jax.random.normal(xkey, (2, 4, 50, 250), jnp.float32)
    out = jax.block_until_ready(jax.jit(forward)(params, x))
    assert out.shape == (2, NUM_CLASSES), out.shape
    assert bool(jnp.all(jnp.isfinite(out)))
    print("KERNEL_OK")
</pallas_src>

<mosaic_0001>
module attributes {stable_mosaic.version = 11 : i64} {
  func.func @matmul_bias_act_kernel(%arg0: i32, %arg1: memref<1984x84xbf16, #tpu.memory_space<vmem>>, %arg2: memref<84x6xbf16, #tpu.memory_space<vmem>>, %arg3: memref<1x6xf32, #tpu.memory_space<vmem>>, %arg4: memref<1984x6xf32, #tpu.memory_space<vmem>>) attributes {dimension_semantics = [#tpu.dimension_semantics<parallel>], iteration_bounds = array<i64: 11>, scalar_prefetch = 0 : i64, scratch_operands = 0 : i64, tpu.core_type = #tpu.core_type<tc>, window_params = [{transform_indices = @transform_0, window_bounds = array<i64: 1984, 84>}, {pipeline_mode = #tpu.pipeline_mode<synchronous>, transform_indices = @transform_1, window_bounds = array<i64: 84, 6>}, {pipeline_mode = #tpu.pipeline_mode<synchronous>, transform_indices = @transform_2, window_bounds = array<i64: 1, 6>}, {transform_indices = @transform_3, window_bounds = array<i64: 1984, 6>}]} {
    %c0 = arith.constant 0 : index
    %c0_0 = arith.constant 0 : index
    %0 = vector.load %arg1[%c0, %c0_0] : memref<1984x84xbf16, #tpu.memory_space<vmem>>, vector<1984x84xbf16>
    %c0_1 = arith.constant 0 : index
    %c0_2 = arith.constant 0 : index
    %1 = vector.load %arg2[%c0_1, %c0_2] : memref<84x6xbf16, #tpu.memory_space<vmem>>, vector<84x6xbf16>
    %cst = arith.constant dense<0.000000e+00> : vector<1984x6xf32>
    %2 = tpu.matmul %0, %1, %cst {dimension_numbers = #tpu.dot_dimension_numbers<[1], [0], [0], [1], [0, 0, 1, 1], [], []>} : vector<1984x84xbf16>, vector<84x6xbf16>, vector<1984x6xf32> -> vector<1984x6xf32>
    %c0_3 = arith.constant 0 : index
    %c0_4 = arith.constant 0 : index
    %3 = vector.load %arg3[%c0_3, %c0_4] : memref<1x6xf32, #tpu.memory_space<vmem>>, vector<1x6xf32>
    %4 = vector.broadcast %3 : vector<1x6xf32> to vector<1984x6xf32>
    %5 = arith.addf %2, %4 : vector<1984x6xf32>
    %cst_5 = arith.constant 0.000000e+00 : f32
    %6 = vector.broadcast %cst_5 : f32 to vector<1984x6xf32>
    %7 = arith.maximumf %5, %6 : vector<1984x6xf32>
    %c0_6 = arith.constant 0 : index
    %c0_7 = arith.constant 0 : index
    %8 = vector.load %arg4[%c0_6, %c0_7] : memref<1984x6xf32, #tpu.memory_space<vmem>>, vector<1984x6xf32>
    tpu.vector_store %arg4[%c0_6, %c0_7], %7 {strides = array<i32>} : memref<1984x6xf32, #tpu.memory_space<vmem>>, vector<1984x6xf32>,
    return
  }
  func.func @transform_0(%arg0: i32) -> (i32, i32) {
    %c0_i32 = arith.constant 0 : i32
    %c0_i32_0 = arith.constant 0 : i32
    return %arg0, %c0_i32 : i32, i32
  }
  func.func @transform_1(%arg0: i32) -> (i32, i32) {
    %c0_i32 = arith.constant 0 : i32
    %c0_i32_0 = arith.constant 0 : i32
    %c0_i32_1 = arith.constant 0 : i32
    return %c0_i32, %c0_i32_0 : i32, i32
  }
  func.func @transform_2(%arg0: i32) -> (i32, i32) {
    %c0_i32 = arith.constant 0 : i32
    %c0_i32_0 = arith.constant 0 : i32
    %c0_i32_1 = arith.constant 0 : i32
    return %c0_i32, %c0_i32_0 : i32, i32
  }
  func.func @transform_3(%arg0: i32) -> (i32, i32) {
    %c0_i32 = arith.constant 0 : i32
    %c0_i32_0 = arith.constant 0 : i32
    return %arg0, %c0_i32 : i32, i32
  }
}

module attributes {stable_mosaic.version = 11 : i64} {
  func.func @pool_max4_kernel(%arg0: memref<44x744xf32, #tpu.memory_space<vmem>>, %arg1: memref<44x744xf32, #tpu.memory_space<vmem>>, %arg2: memref<44x744xf32, #tpu.memory_space<vmem>>, %arg3: memref<44x744xf32, #tpu.memory_space<vmem>>, %arg4: memref<44x744xf32, #tpu.memory_space<vmem>>) attributes {dimension_semantics = [], scalar_prefetch = 0 : i64, scratch_operands = 0 : i64, tpu.core_type = #tpu.core_type<tc>} {
    %c0 = arith.constant 0 : index
    %c0_0 = arith.constant 0 : index
    %0 = vector.load %arg0[%c0, %c0_0] : memref<44x744xf32, #tpu.memory_space<vmem>>, vector<44x744xf32>
    %c0_1 = arith.constant 0 : index
    %c0_2 = arith.constant 0 : index
    %1 = vector.load %arg1[%c0_1, %c0_2] : memref<44x744xf32, #tpu.memory_space<vmem>>, vector<44x744xf32>
    %2 = arith.maximumf %0, %1 : vector<44x744xf32>
    %c0_3 = arith.constant 0 : index
    %c0_4 = arith.constant 0 : index
    %3 = vector.load %arg2[%c0_3, %c0_4] : memref<44x744xf32, #tpu.memory_space<vmem>>, vector<44x744xf32>
    %c0_5 = arith.constant 0 : index
    %c0_6 = arith.constant 0 : index
    %4 = vector.load %arg3[%c0_5, %c0_6] : memref<44x744xf32, #tpu.memory_space<vmem>>, vector<44x744xf32>
    %5 = arith.maximumf %3, %4 : vector<44x744xf32>
    %6 = arith.maximumf %2, %5 : vector<44x744xf32>
    %c0_7 = arith.constant 0 : index
    %c0_8 = arith.constant 0 : index
    %7 = vector.load %arg4[%c0_7, %c0_8] : memref<44x744xf32, #tpu.memory_space<vmem>>, vector<44x744xf32>
    tpu.vector_store %arg4[%c0_7, %c0_8], %6 {strides = array<i32>} : memref<44x744xf32, #tpu.memory_space<vmem>>, vector<44x744xf32>,
    return
  }
}

module attributes {stable_mosaic.version = 11 : i64} {
  func.func @matmul_bias_act_kernel(%arg0: i32, %arg1: memref<1680x270xbf16, #tpu.memory_space<vmem>>, %arg2: memref<270x16xbf16, #tpu.memory_space<vmem>>, %arg3: memref<1x16xf32, #tpu.memory_space<vmem>>, %arg4: memref<1680x16xf32, #tpu.memory_space<vmem>>) attributes {dimension_semantics = [#tpu.dimension_semantics<parallel>], iteration_bounds = array<i64: 2>, scalar_prefetch = 0 : i64, scratch_operands = 0 : i64, tpu.core_type = #tpu.core_type<tc>, window_params = [{transform_indices = @transform_0, window_bounds = array<i64: 1680, 270>}, {pipeline_mode = #tpu.pipeline_mode<synchronous>, transform_indices = @transform_1, window_bounds = array<i64: 270, 16>}, {pipeline_mode = #tpu.pipeline_mode<synchronous>, transform_indices = @transform_2, window_bounds = array<i64: 1, 16>}, {transform_indices = @transform_3, window_bounds = array<i64: 1680, 16>}]} {
    %c0 = arith.constant 0 : index
    %c0_0 = arith.constant 0 : index
    %0 = vector.load %arg1[%c0, %c0_0] : memref<1680x270xbf16, #tpu.memory_space<vmem>>, vector<1680x270xbf16>
    %c0_1 = arith.constant 0 : index
    %c0_2 = arith.constant 0 : index
    %1 = vector.load %arg2[%c0_1, %c0_2] : memref<270x16xbf16, #tpu.memory_space<vmem>>, vector<270x16xbf16>
    %cst = arith.constant dense<0.000000e+00> : vector<1680x16xf32>
    %2 = tpu.matmul %0, %1, %cst {dimension_numbers = #tpu.dot_dimension_numbers<[1], [0], [0], [1], [0, 0, 1, 1], [], []>} : vector<1680x270xbf16>, vector<270x16xbf16>, vector<1680x16xf32> -> vector<1680x16xf32>
    %c0_3 = arith.constant 0 : index
    %c0_4 = arith.constant 0 : index
    %3 = vector.load %arg3[%c0_3, %c0_4] : memref<1x16xf32, #tpu.memory_space<vmem>>, vector<1x16xf32>
    %4 = vector.broadcast %3 : vector<1x16xf32> to vector<1680x16xf32>
    %5 = arith.addf %2, %4 : vector<1680x16xf32>
    %cst_5 = arith.constant 0.000000e+00 : f32
    %6 = vector.broadcast %cst_5 : f32 to vector<1680x16xf32>
    %7 = arith.maximumf %5, %6 : vector<1680x16xf32>
    %c0_6 = arith.constant 0 : index
    %c0_7 = arith.constant 0 : index
    %8 = vector.load %arg4[%c0_6, %c0_7] : memref<1680x16xf32, #tpu.memory_space<vmem>>, vector<1680x16xf32>
    tpu.vector_store %arg4[%c0_6, %c0_7], %7 {strides = array<i32>} : memref<1680x16xf32, #tpu.memory_space<vmem>>, vector<1680x16xf32>,
    return
  }
  func.func @transform_0(%arg0: i32) -> (i32, i32) {
    %c0_i32 = arith.constant 0 : i32
    %c0_i32_0 = arith.constant 0 : i32
    return %arg0, %c0_i32 : i32, i32
  }
  func.func @transform_1(%arg0: i32) -> (i32, i32) {
    %c0_i32 = arith.constant 0 : i32
    %c0_i32_0 = arith.constant 0 : i32
    %c0_i32_1 = arith.constant 0 : i32
    return %c0_i32, %c0_i32_0 : i32, i32
  }
  func.func @transform_2(%arg0: i32) -> (i32, i32) {
    %c0_i32 = arith.constant 0 : i32
    %c0_i32_0 = arith.constant 0 : i32
    %c0_i32_1 = arith.constant 0 : i32
    return %c0_i32, %c0_i32_0 : i32, i32
  }
  func.func @transform_3(%arg0: i32) -> (i32, i32) {
    %c0_i32 = arith.constant 0 : i32
    %c0_i32_0 = arith.constant 0 : i32
    return %arg0, %c0_i32 : i32, i32
  }
}

module attributes {stable_mosaic.version = 11 : i64} {
  func.func @pool_max4_kernel(%arg0: memref<14x960xf32, #tpu.memory_space<vmem>>, %arg1: memref<14x960xf32, #tpu.memory_space<vmem>>, %arg2: memref<14x960xf32, #tpu.memory_space<vmem>>, %arg3: memref<14x960xf32, #tpu.memory_space<vmem>>, %arg4: memref<14x960xf32, #tpu.memory_space<vmem>>) attributes {dimension_semantics = [], scalar_prefetch = 0 : i64, scratch_operands = 0 : i64, tpu.core_type = #tpu.core_type<tc>} {
    %c0 = arith.constant 0 : index
    %c0_0 = arith.constant 0 : index
    %0 = vector.load %arg0[%c0, %c0_0] : memref<14x960xf32, #tpu.memory_space<vmem>>, vector<14x960xf32>
    %c0_1 = arith.constant 0 : index
    %c0_2 = arith.constant 0 : index
    %1 = vector.load %arg1[%c0_1, %c0_2] : memref<14x960xf32, #tpu.memory_space<vmem>>, vector<14x960xf32>
    %2 = arith.maximumf %0, %1 : vector<14x960xf32>
    %c0_3 = arith.constant 0 : index
    %c0_4 = arith.constant 0 : index
    %3 = vector.load %arg2[%c0_3, %c0_4] : memref<14x960xf32, #tpu.memory_space<vmem>>, vector<14x960xf32>
    %c0_5 = arith.constant 0 : index
    %c0_6 = arith.constant 0 : index
    %4 = vector.load %arg3[%c0_5, %c0_6] : memref<14x960xf32, #tpu.memory_space<vmem>>, vector<14x960xf32>
    %5 = arith.maximumf %3, %4 : vector<14x960xf32>
    %6 = arith.maximumf %2, %5 : vector<14x960xf32>
    %c0_7 = arith.constant 0 : index
    %c0_8 = arith.constant 0 : index
    %7 = vector.load %arg4[%c0_7, %c0_8] : memref<14x960xf32, #tpu.memory_space<vmem>>, vector<14x960xf32>
    tpu.vector_store %arg4[%c0_7, %c0_8], %6 {strides = array<i32>} : memref<14x960xf32, #tpu.memory_space<vmem>>, vector<14x960xf32>,
    return
  }
}

module attributes {stable_mosaic.version = 11 : i64} {
  func.func @dense_stack_kernel(%arg0: memref<8x6720xbf16, #tpu.memory_space<vmem>>, %arg1: memref<6720x128xbf16, #tpu.memory_space<vmem>>, %arg2: memref<1x128xf32, #tpu.memory_space<vmem>>, %arg3: memref<128x128xbf16, #tpu.memory_space<vmem>>, %arg4: memref<1x128xf32, #tpu.memory_space<vmem>>, %arg5: memref<128x128xbf16, #tpu.memory_space<vmem>>, %arg6: memref<1x128xf32, #tpu.memory_space<vmem>>, %arg7: memref<8x128xf32, #tpu.memory_space<vmem>>) attributes {dimension_semantics = [], scalar_prefetch = 0 : i64, scratch_operands = 0 : i64, tpu.core_type = #tpu.core_type<tc>} {
    %c0 = arith.constant 0 : index
    %c0_0 = arith.constant 0 : index
    %0 = vector.load %arg0[%c0, %c0_0] : memref<8x6720xbf16, #tpu.memory_space<vmem>>, vector<8x6720xbf16>
    %c0_1 = arith.constant 0 : index
    %c0_2 = arith.constant 0 : index
    %1 = vector.load %arg1[%c0_1, %c0_2] : memref<6720x128xbf16, #tpu.memory_space<vmem>>, vector<6720x128xbf16>
    %cst = arith.constant dense<0.000000e+00> : vector<8x128xf32>
    %2 = tpu.matmul %0, %1, %cst {dimension_numbers = #tpu.dot_dimension_numbers<[1], [0], [0], [1], [0, 0, 1, 1], [], []>} : vector<8x6720xbf16>, vector<6720x128xbf16>, vector<8x128xf32> -> vector<8x128xf32>
    %c0_3 = arith.constant 0 : index
    %c0_4 = arith.constant 0 : index
    %3 = vector.load %arg2[%c0_3, %c0_4] : memref<1x128xf32, #tpu.memory_space<vmem>>, vector<1x128xf32>
    %4 = vector.broadcast %3 : vector<1x128xf32> to vector<8x128xf32>
    %5 = arith.addf %2, %4 : vector<8x128xf32>
    %cst_5 = arith.constant 0.000000e+00 : f32
    %6 = vector.broadcast %cst_5 : f32 to vector<8x128xf32>
    %7 = arith.maximumf %5, %6 : vector<8x128xf32>
    %8 = arith.truncf %7 : vector<8x128xf32> to vector<8x128xbf16>
    %c0_6 = arith.constant 0 : index
    %c0_7 = arith.constant 0 : index
    %9 = vector.load %arg3[%c0_6, %c0_7] : memref<128x128xbf16, #tpu.memory_space<vmem>>, vector<128x128xbf16>
    %cst_8 = arith.constant dense<0.000000e+00> : vector<8x128xf32>
    %10 = tpu.matmul %8, %9, %cst_8 {dimension_numbers = #tpu.dot_dimension_numbers<[1], [0], [0], [1], [0, 0, 1, 1], [], []>} : vector<8x128xbf16>, vector<128x128xbf16>, vector<8x128xf32> -> vector<8x128xf32>
    %c0_9 = arith.constant 0 : index
    %c0_10 = arith.constant 0 : index
    %11 = vector.load %arg4[%c0_9, %c0_10] : memref<1x128xf32, #tpu.memory_space<vmem>>, vector<1x128xf32>
    %12 = vector.broadcast %11 : vector<1x128xf32> to vector<8x128xf32>
    %13 = arith.addf %10, %12 : vector<8x128xf32>
    %cst_11 = arith.constant 0.000000e+00 : f32
    %14 = vector.broadcast %cst_11 : f32 to vector<8x128xf32>
    %15 = arith.maximumf %13, %14 : vector<8x128xf32>
    %16 = arith.truncf %15 : vector<8x128xf32> to vector<8x128xbf16>
    %c0_12 = arith.constant 0 : index
    %c0_13 = arith.constant 0 : index
    %17 = vector.load %arg5[%c0_12, %c0_13] : memref<128x128xbf16, #tpu.memory_space<vmem>>, vector<128x128xbf16>
    %cst_14 = arith.constant dense<0.000000e+00> : vector<8x128xf32>
    %18 = tpu.matmul %16, %17, %cst_14 {dimension_numbers = #tpu.dot_dimension_numbers<[1], [0], [0], [1], [0, 0, 1, 1], [], []>} : vector<8x128xbf16>, vector<128x128xbf16>, vector<8x128xf32> -> vector<8x128xf32>
    %c0_15 = arith.constant 0 : index
    %c0_16 = arith.constant 0 : index
    %19 = vector.load %arg6[%c0_15, %c0_16] : memref<1x128xf32, #tpu.memory_space<vmem>>, vector<1x128xf32>
    %20 = vector.broadcast %19 : vector<1x128xf32> to vector<8x128xf32>
    %21 = arith.addf %18, %20 : vector<8x128xf32>
    %c0_17 = arith.constant 0 : index
    %c0_18 = arith.constant 0 : index
    %22 = vector.load %arg7[%c0_17, %c0_18] : memref<8x128xf32, #tpu.memory_space<vmem>>, vector<8x128xf32>
    tpu.vector_store %arg7[%c0_17, %c0_18], %21 {strides = array<i32>} : memref<8x128xf32, #tpu.memory_space<vmem>>, vector<8x128xf32>,
    return
  }
}

</mosaic_0001>

<llo_original>
// kernel: forward.5
$region0: #{forward.5}
  #allocation0 [shape = 'u32[]', space=smem, size = 0x4, offset = 0x4, fixed_abs, tag = 'smem constant byte address 0x4 - core index']
  #allocation1 [shape = 'u32[144,128]{1,0:T(1,128)}', space=vmem, size = 0x12000, scoped, tag = 'internal scratch']
  %s0 = inlined_call_operand.vmem [shape: bf16[21824,84], index: 0, kind: input, shape index: {}]
  %s1 = inlined_call_operand.vmem [shape: bf16[84,6], index: 1, kind: input, shape index: {}]
  %s2 = inlined_call_operand.vmem [shape: f32[1,6], index: 2, kind: input, shape index: {}]
  %s3 = inlined_call_operand.vmem [shape: f32[21824,6], index: 3, kind: output, shape index: {}]
  %s4 = sld [smem:[#allocation0]]
  $region45: #{forward.5} parent=0
    _
  %s6 = ssub.s32 1, %s4
  %s7 = scalar_select 0, %s6, %s4
  loop: start=0, step=1, limit=13
  $region2: #{forward.5} parent=0 // loop_pre_header
    _
  $region3: #{forward.5} parent=0 // loop_header
    %s9 = sphi 0, %s13
    %p10 = scmp.ge.s32.totalorder %s9, 13
    %s19 = sphi 0, %s21
    %s22 = sphi 0, %s19
    %s23 = sphi 0, %s22
    %s39 = sphi 0, %s23
    %s43 = sphi 0, %s43
    %s45 = sphi 0, %s43
    %s46 = sphi 0, %s45
    %s60 = sphi 0, %s46
    %s64 = sphi 0, %s64
    %s66 = sphi 0, %s64
    %s67 = sphi 0, %s66
    %s81 = sphi 0, %s67
    %s87 = sphi 0, %s89
    %s90 = sphi 0, %s87
    %s91 = sphi 0, %s90
    %s107 = sphi 0, %s91
  $region4: #{forward.5} parent=0 // loop_header_branch
    %12 = sbr.rel (%p10) target = $region8
  $region5: #{forward.5} parent=0 // loop_body
    %s14 = ssub.s32 %s9, 1
    %s15 = ssub.s32 %s9, 2
    %s16 = sadd.s32 %s9, 1
    %s17 = ssub.s32 %s9, %s16
    %p18 = scmp.eq.s32.totalorder %s17, 0
    %s20 = sadd.s32 %s19, 1
    %s21 = scalar_select %p18, %s19, %s20
    %p24 = pneg %p18
    %p25 = scmp.eq.s32.totalorder %s9, 10
    %p26 = por %p24, %p25
    %p27 = scmp.ne.s32.totalorder %s19, %s22
    %p28 = scmp.eq.s32.totalorder %s9, 0
    %p29 = por %p27, %p28
    %p30 = scmp.ne.s32.totalorder %s19, %s22
    %p31 = scmp.eq.s32.totalorder %s14, 10
    %p32 = por %p30, %p31
    %p33 = scmp.ne.s32.totalorder %s22, %s23
    %p34 = scmp.eq.s32.totalorder %s14, 0
    %p35 = por %p33, %p34
    %p36 = scmp.ne.s32.totalorder %s22, %s23
    %p37 = scmp.eq.s32.totalorder %s15, 10
    %p38 = por %p36, %p37
    %p40 = scmp.ne.s32.totalorder %s23, %s39
    %p41 = scmp.eq.s32.totalorder %s15, 0
    %p42 = por %p40, %p41
    %s44 = sadd.s32 %s43, 1
    %p47 = scmp.eq.s32.totalorder %s9, 10
    %p48 = scmp.ne.s32.totalorder %s43, %s45
    %p49 = scmp.eq.s32.totalorder %s9, 0
    %p50 = por %p48, %p49
    %p51 = scmp.ne.s32.totalorder %s43, %s45
    %p52 = scmp.eq.s32.totalorder %s14, 10
    %p53 = por %p51, %p52
    %p54 = scmp.ne.s32.totalorder %s45, %s46
    %p55 = scmp.eq.s32.totalorder %s14, 0
    %p56 = por %p54, %p55
    %p57 = scmp.ne.s32.totalorder %s45, %s46
    %p58 = scmp.eq.s32.totalorder %s15, 10
    %p59 = por %p57, %p58
    %p61 = scmp.ne.s32.totalorder %s46, %s60
    %p62 = scmp.eq.s32.totalorder %s15, 0
    %p63 = por %p61, %p62
    %s65 = sadd.s32 %s64, 1
    %p68 = scmp.eq.s32.totalorder %s9, 10
    %p69 = scmp.ne.s32.totalorder %s64, %s66
    %p70 = scmp.eq.s32.totalorder %s9, 0
    %p71 = por %p69, %p70
    %p72 = scmp.ne.s32.totalorder %s64, %s66
    %p73 = scmp.eq.s32.totalorder %s14, 10
    %p74 = por %p72, %p73
    %p75 = scmp.ne.s32.totalorder %s66, %s67
    %p76 = scmp.eq.s32.totalorder %s14, 0
    %p77 = por %p75, %p76
    %p78 = scmp.ne.s32.totalorder %s66, %s67
    %p79 = scmp.eq.s32.totalorder %s15, 10
    %p80 = por %p78, %p79
    %p82 = scmp.ne.s32.totalorder %s67, %s81
    %p83 = scmp.eq.s32.totalorder %s15, 0
    %p84 = por %p82, %p83
    %s85 = ssub.s32 %s9, %s16
    %p86 = scmp.eq.s32.totalorder %s85, 0
    %s88 = sadd.s32 %s87, 1
    %s89 = scalar_select %p86, %s87, %s88
    %p92 = pneg %p86
    %p93 = scmp.eq.s32.totalorder %s9, 10
    %p94 = por %p92, %p93
    %p95 = scmp.ne.s32.totalorder %s87, %s90
    %p96 = scmp.eq.s32.totalorder %s9, 0
    %p97 = por %p95, %p96
    %p98 = scmp.ne.s32.totalorder %s87, %s90
    %p99 = scmp.eq.s32.totalorder %s14, 10
    %p100 = por %p98, %p99
    %p101 = scmp.ne.s32.totalorder %s90, %s91
    %p102 = scmp.eq.s32.totalorder %s14, 0
    %p103 = por %p101, %p102
    %p104 = scmp.ne.s32.totalorder %s90, %s91
    %p105 = scmp.eq.s32.totalorder %s15, 10
    %p106 = por %p104, %p105
    %p108 = scmp.ne.s32.totalorder %s91, %s107
    %p109 = scmp.eq.s32.totalorder %s15, 0
    %p110 = por %p108, %p109
    %p111 = scmp.le.s32.totalorder 1, %s9
    %p112 = scmp.lt.s32.totalorder %s9, 12
    %p113 = pnand %p111, %p112
    %p114 = pneg %p113
    // Predicated region
    $region9: #{forward.5} parent=5 // pred_check
      _
    $region10: #{forward.5} parent=5 // pred_check_branch
      %116 = sbr.rel (%p113) target = $region12
    $region11: #{forward.5} parent=5 // pred_region
      %s117 = ssub.s32 %s9, 1
      // Predicated region
      $region13: #{forward.5} parent=11 // pred_check
        %p118 = pneg %p56
      $region14: #{forward.5} parent=11 // pred_check_branch
        %120 = sbr.rel (%p118) target = $region16
      $region15: #{forward.5} parent=11 // pred_region
        _
      $region16: #{forward.5} parent=11 // pred_fallthru
        _
      // Predicated region
      $region17: #{forward.5} parent=11 // pred_check
        %p121 = pneg %p77
      $region18: #{forward.5} parent=11 // pred_check_branch
        %123 = sbr.rel (%p121) target = $region20
      $region19: #{forward.5} parent=11 // pred_region
        _
      $region20: #{forward.5} parent=11 // pred_fallthru
        _
    $region12: #{forward.5} parent=5 // pred_fallthru
      _
    %p124 = scmp.lt.s32.totalorder %s9, 11
    // Predicated region
    $region21: #{forward.5} parent=5 // pred_check
      %p125 = pneg %p124
    $region22: #{forward.5} parent=5 // pred_check_branch
      %127 = sbr.rel (%p125) target = $region24
    $region23: #{forward.5} parent=5 // pred_region
      // Predicated region
      $region25: #{forward.5} parent=23 // pred_check
        %p128 = pneg %p29
      $region26: #{forward.5} parent=23 // pred_check_branch
        %130 = sbr.rel (%p128) target = $region28
      $region27: #{forward.5} parent=23 // pred_region
        %s131 = smul.u32 248, %s9
        %p132 = scmp.lt.s32.totalorder %s131, 2727
        %s133 = scalar_select %p132, %s131, 2727
        %s134 = smul.addr %s133, 4
        %s135 = scalar_lea.vmem %s0, %s134
        %s136 = smul.u32 248, %s9
      $region28: #{forward.5} parent=23 // pred_fallthru
        _
    $region24: #{forward.5} parent=5 // pred_fallthru
      _
    %p137 = scmp.le.s32.totalorder 1, %s9
    %p138 = scmp.lt.s32.totalorder %s9, 12
    %p139 = pnand %p137, %p138
    %p140 = pneg %p139
    // Predicated region
    $region29: #{forward.5} parent=5 // pred_check
      _
    $region30: #{forward.5} parent=5 // pred_check_branch
      %142 = sbr.rel (%p139) target = $region32
    $region31: #{forward.5} parent=5 // pred_region
      %s143 = ssub.s32 %s9, 1
      %s144 = smul.u32 248, %s14
      %p145 = scmp.lt.s32.totalorder %s144, 2727
      %s146 = scalar_select %p145, %s144, 2727
      %s147 = smul.addr %s146, 4
      %s148 = scalar_lea.vmem %s0, %s147
      %p149 = pneg %p35
      %p150 = pneg %p32
      %p151 = pneg %p56
      %p152 = pneg %p53
      %p153 = pneg %p77
      %p154 = pneg %p74
      %p155 = pneg %p103
      %p156 = pneg %p100
      %s157 = smul.u32 248, %s14
      %p158 = scmp.lt.s32.totalorder %s157, 2727
      %s159 = scalar_select %p158, %s157, 2727
      %s160 = smul.addr %s159, 8
      %s161 = scalar_lea.vmem %s3, %s160
      %s162 = smul.u32 248, %s14
      %p163 = scmp.lt.s32.totalorder %s162, 2727
      %s164 = scalar_select %p163, %s162, 2727
      %s165 = smul.addr %s164, 4
      %s166 = scalar_lea.vmem %s0, %s165
      %s167 = smul.u32 248, %s14
      %s168 = smul.u32 248, %s14
      %p169 = scmp.lt.s32.totalorder %s168, 2727
      %s170 = scalar_select %p169, %s168, 2727
      %s171 = smul.addr %s170, 8
      %s172 = scalar_lea.vmem %s3, %s171
      %s173 = smul.u32 248, %s14
      %v175 = vld [vmem:[%s166] sm:$0xf]
      %v176 = vld [vmem:[%s166 + $0x4] sm:$0xf]
      %v177 = vld [vmem:[%s166 + $0x8] sm:$0xf]
      %v178 = vld [vmem:[%s166 + $0xc] sm:$0xf]
      %v179 = vld [vmem:[%s166 + $0x10] sm:$0xf]
      %v180 = vld [vmem:[%s166 + $0x14] sm:$0xf]
      %v181 = vld [vmem:[%s166 + $0x18] sm:$0xf]
      %v182 = vld [vmem:[%s166 + $0x1c] sm:$0xf]
      %v183 = vld [vmem:[%s166 + $0x20] sm:$0xf]
      %v184 = vld [vmem:[%s166 + $0x24] sm:$0xf]
      %v185 = vld [vmem:[%s166 + $0x28] sm:$0xf]
      %v186 = vld [vmem:[%s166 + $0x2c] sm:$0xf]
      %v187 = vld [vmem:[%s166 + $0x30] sm:$0xf]
      %v188 = vld [vmem:[%s166 + $0x34] sm:$0xf]
      %v189 = vld [vmem:[%s166 + $0x38] sm:$0xf]
      %v190 = vld [vmem:[%s166 + $0x3c] sm:$0xf]
      %v191 = vld [vmem:[%s166 + $0x40] sm:$0xf]
      %v192 = vld [vmem:[%s166 + $0x44] sm:$0xf]
      %v193 = vld [vmem:[%s166 + $0x48] sm:$0xf]
      %v194 = vld [vmem:[%s166 + $0x4c] sm:$0xf]
      %v195 = vld [vmem:[%s166 + $0x50] sm:$0xf]
      %v196 = vld [vmem:[%s166 + $0x54] sm:$0xf]
      %v197 = vld [vmem:[%s166 + $0x58] sm:$0xf]
      %v198 = vld [vmem:[%s166 + $0x5c] sm:$0xf]
      %v199 = vld [vmem:[%s166 + $0x60] sm:$0xf]
      %v200 = vld [vmem:[%s166 + $0x64] sm:$0xf]
      %v201 = vld [vmem:[%s166 + $0x68] sm:$0xf]
      %v202 = vld [vmem:[%s166 + $0x6c] sm:$0xf]
      %v203 = vld [vmem:[%s166 + $0x70] sm:$0xf]
      %v204 = vld [vmem:[%s166 + $0x74] sm:$0xf]
      %v205 = vld [vmem:[%s166 + $0x78] sm:$0xf]
      %v206 = vld [vmem:[%s166 + $0x7c] sm:$0xf]
      %v207 = vld [vmem:[%s166 + $0x80] sm:$0xf]
      %v208 = vld [vmem:[%s166 + $0x84] sm:$0xf]
      %v209 = vld [vmem:[%s166 + $0x88] sm:$0xf]
      %v210 = vld [vmem:[%s166 + $0x8c] sm:$0xf]
      %v211 = vld [vmem:[%s166 + $0x90] sm:$0xf]
      %v212 = vld [vmem:[%s166 + $0x94] sm:$0xf]
      %v213 = vld [vmem:[%s166 + $0x98] sm:$0xf]
      %v214 = vld [vmem:[%s166 + $0x9c] sm:$0xf]
      %v215 = vld [vmem:[%s166 + $0xa0] sm:$0xf]
      %v216 = vld [vmem:[%s166 + $0xa4] sm:$0xf]
      %v217 = vld [vmem:[%s166 + $0xa8] sm:$0xf]
      %v218 = vld [vmem:[%s166 + $0xac] sm:$0xf]
      %v219 = vld [vmem:[%s166 + $0xb0] sm:$0xf]
      %v220 = vld [vmem:[%s166 + $0xb4] sm:$0xf]
      %v221 = vld [vmem:[%s166 + $0xb8] sm:$0xf]
      %v222 = vld [vmem:[%s166 + $0xbc] sm:$0xf]
      %v223 = vld [vmem:[%s166 + $0xc0] sm:$0xf]
      %v224 = vld [vmem:[%s166 + $0xc4] sm:$0xf]
      %v225 = vld [vmem:[%s166 + $0xc8] sm:$0xf]
      %v226 = vld [vmem:[%s166 + $0xcc] sm:$0xf]
      %v227 = vld [vmem:[%s166 + $0xd0] sm:$0xf]
      %v228 = vld [vmem:[%s166 + $0xd4] sm:$0xf]
      %v229 = vld [vmem:[%s166 + $0xd8] sm:$0xf]
      %v230 = vld [vmem:[%s166 + $0xdc] sm:$0xf]
      %v231 = vld [vmem:[%s166 + $0xe0] sm:$0xf]
      %v232 = vld [vmem:[%s166 + $0xe4] sm:$0xf]
      %v233 = vld [vmem:[%s166 + $0xe8] sm:$0xf]
      %v234 = vld [vmem:[%s166 + $0xec] sm:$0xf]
      %v235 = vld [vmem:[%s166 + $0xf0] sm:$0xf]
      %v236 = vld [vmem:[%s166 + $0xf4] sm:$0xf]
      %v237 = vld [vmem:[%s166 + $0xf8] sm:$0xf]
      %v238 = vld [vmem:[%s166 + $0xfc] sm:$0xf]
      %v239 = vld [vmem:[%s166 + $0x100] sm:$0xf]
      %v240 = vld [vmem:[%s166 + $0x104] sm:$0xf]
      %v241 = vld [vmem:[%s166 + $0x108] sm:$0xf]
      %v242 = vld [vmem:[%s166 + $0x10c] sm:$0xf]
      %v243 = vld [vmem:[%s166 + $0x110] sm:$0xf]
      %v244 = vld [vmem:[%s166 + $0x114] sm:$0xf]
      %v245 = vld [vmem:[%s166 + $0x118] sm:$0xf]
      %v246 = vld [vmem:[%s166 + $0x11c] sm:$0xf]
      %v247 = vld [vmem:[%s166 + $0x120] sm:$0xf]
      %v248 = vld [vmem:[%s166 + $0x124] sm:$0xf]
      %v249 = vld [vmem:[%s166 + $0x128] sm:$0xf]
      %v250 = vld [vmem:[%s166 + $0x12c] sm:$0xf]
      %v251 = vld [vmem:[%s166 + $0x130] sm:$0xf]
      %v252 = vld [vmem:[%s166 + $0x134] sm:$0xf]
      %v253 = vld [vmem:[%s166 + $0x138] sm:$0xf]
      %v254 = vld [vmem:[%s166 + $0x13c] sm:$0xf]
      %v255 = vld [vmem:[%s166 + $0x140] sm:$0xf]
      %v256 = vld [vmem:[%s166 + $0x144] sm:$0xf]
      %v257 = vld [vmem:[%s166 + $0x148] sm:$0xf]
      %v258 = vld [vmem:[%s166 + $0x14c] sm:$0xf]
      %v259 = vld [vmem:[%s166 + $0x150] sm:$0xf]
      %v260 = vld [vmem:[%s166 + $0x154] sm:$0xf]
      %v261 = vld [vmem:[%s166 + $0x158] sm:$0xf]
      %v262 = vld [vmem:[%s166 + $0x15c] sm:$0xf]
      %v263 = vld [vmem:[%s166 + $0x160] sm:$0xf]
      %v264 = vld [vmem:[%s166 + $0x164] sm:$0xf]
      %v265 = vld [vmem:[%s166 + $0x168] sm:$0xf]
      %v266 = vld [vmem:[%s166 + $0x16c] sm:$0xf]
      %v267 = vld [vmem:[%s166 + $0x170] sm:$0xf]
      %v268 = vld [vmem:[%s166 + $0x174] sm:$0xf]
      %v269 = vld [vmem:[%s166 + $0x178] sm:$0xf]
      %v270 = vld [vmem:[%s166 + $0x17c] sm:$0xf]
      %v271 = vld [vmem:[%s166 + $0x180] sm:$0xf]
      %v272 = vld [vmem:[%s166 + $0x184] sm:$0xf]
      %v273 = vld [vmem:[%s166 + $0x188] sm:$0xf]
      %v274 = vld [vmem:[%s166 + $0x18c] sm:$0xf]
      %v275 = vld [vmem:[%s166 + $0x190] sm:$0xf]
      %v276 = vld [vmem:[%s166 + $0x194] sm:$0xf]
      %v277 = vld [vmem:[%s166 + $0x198] sm:$0xf]
      %v278 = vld [vmem:[%s166 + $0x19c] sm:$0xf]
      %v279 = vld [vmem:[%s166 + $0x1a0] sm:$0xf]
      %v280 = vld [vmem:[%s166 + $0x1a4] sm:$0xf]
      %v281 = vld [vmem:[%s166 + $0x1a8] sm:$0xf]
      %v282 = vld [vmem:[%s166 + $0x1ac] sm:$0xf]
      %v283 = vld [vmem:[%s166 + $0x1b0] sm:$0xf]
      %v284 = vld [vmem:[%s166 + $0x1b4] sm:$0xf]
      %v285 = vld [vmem:[%s166 + $0x1b8] sm:$0xf]
      %v286 = vld [vmem:[%s166 + $0x1bc] sm:$0xf]
      %v287 = vld [vmem:[%s166 + $0x1c0] sm:$0xf]
      %v288 = vld [vmem:[%s166 + $0x1c4] sm:$0xf]
      %v289 = vld [vmem:[%s166 + $0x1c8] sm:$0xf]
      %v290 = vld [vmem:[%s166 + $0x1cc] sm:$0xf]
      %v291 = vld [vmem:[%s166 + $0x1d0] sm:$0xf]
      %v292 = vld [vmem:[%s166 + $0x1d4] sm:$0xf]
      %v293 = vld [vmem:[%s166 + $0x1d8] sm:$0xf]
      %v294 = vld [vmem:[%s166 + $0x1dc] sm:$0xf]
      %v295 = vld [vmem:[%s166 + $0x1e0] sm:$0xf]
      %v296 = vld [vmem:[%s166 + $0x1e4] sm:$0xf]
      %v297 = vld [vmem:[%s166 + $0x1e8] sm:$0xf]
      %v298 = vld [vmem:[%s166 + $0x1ec] sm:$0xf]
      %v299 = vld [vmem:[%s166 + $0x1f0] sm:$0xf]
      %v300 = vld [vmem:[%s166 + $0x1f4] sm:$0xf]
      %v301 = vld [vmem:[%s166 + $0x1f8] sm:$0xf]
      %v302 = vld [vmem:[%s166 + $0x1fc] sm:$0xf]
      %v303 = vld [vmem:[%s166 + $0x200] sm:$0xf]
      %v304 = vld [vmem:[%s166 + $0x204] sm:$0xf]
      %v305 = vld [vmem:[%s166 + $0x208] sm:$0xf]
      %v306 = vld [vmem:[%s166 + $0x20c] sm:$0xf]
      %v307 = vld [vmem:[%s166 + $0x210] sm:$0xf]
      %v308 = vld [vmem:[%s166 + $0x214] sm:$0xf]
      %v309 = vld [vmem:[%s166 + $0x218] sm:$0xf]
      %v310 = vld [vmem:[%s166 + $0x21c] sm:$0xf]
      %v311 = vld [vmem:[%s166 + $0x220] sm:$0xf]
      %v312 = vld [vmem:[%s166 + $0x224] sm:$0xf]
      %v313 = vld [vmem:[%s166 + $0x228] sm:$0xf]
      %v314 = vld [vmem:[%s166 + $0x22c] sm:$0xf]
      %v315 = vld [vmem:[%s166 + $0x230] sm:$0xf]
      %v316 = vld [vmem:[%s166 + $0x234] sm:$0xf]
      %v317 = vld [vmem:[%s166 + $0x238] sm:$0xf]
      %v318 = vld [vmem:[%s166 + $0x23c] sm:$0xf]
      %v319 = vld [vmem:[%s166 + $0x240] sm:$0xf]
      %v320 = vld [vmem:[%s166 + $0x244] sm:$0xf]
      %v321 = vld [vmem:[%s166 + $0x248] sm:$0xf]
      %v322 = vld [vmem:[%s166 + $0x24c] sm:$0xf]
      %v323 = vld [vmem:[%s166 + $0x250] sm:$0xf]
      %v324 = vld [vmem:[%s166 + $0x254] sm:$0xf]
      %v325 = vld [vmem:[%s166 + $0x258] sm:$0xf]
      %v326 = vld [vmem:[%s166 + $0x25c] sm:$0xf]
      %v327 = vld [vmem:[%s166 + $0x260] sm:$0xf]
      %v328 = vld [vmem:[%s166 + $0x264] sm:$0xf]
      %v329 = vld [vmem:[%s166 + $0x268] sm:$0xf]
      %v330 = vld [vmem:[%s166 + $0x26c] sm:$0xf]
      %v331 = vld [vmem:[%s166 + $0x270] sm:$0xf]
      %v332 = vld [vmem:[%s166 + $0x274] sm:$0xf]
      %v333 = vld [vmem:[%s166 + $0x278] sm:$0xf]
      %v334 = vld [vmem:[%s166 + $0x27c] sm:$0xf]
      %v335 = vld [vmem:[%s166 + $0x280] sm:$0xf]
      %v336 = vld [vmem:[%s166 + $0x284] sm:$0xf]
      %v337 = vld [vmem:[%s166 + $0x288] sm:$0xf]
      %v338 = vld [vmem:[%s166 + $0x28c] sm:$0xf]
      %v339 = vld [vmem:[%s166 + $0x290] sm:$0xf]
      %v340 = vld [vmem:[%s166 + $0x294] sm:$0xf]
      %v341 = vld [vmem:[%s166 + $0x298] sm:$0xf]
      %v342 = vld [vmem:[%s166 + $0x29c] sm:$0xf]
      %v343 = vld [vmem:[%s166 + $0x2a0] sm:$0xf]
      %v344 = vld [vmem:[%s166 + $0x2a4] sm:$0xf]
      %v345 = vld [vmem:[%s166 + $0x2a8] sm:$0xf]
      %v346 = vld [vmem:[%s166 + $0x2ac] sm:$0xf]
      %v347 = vld [vmem:[%s166 + $0x2b0] sm:$0xf]
      %v348 = vld [vmem:[%s166 + $0x2b4] sm:$0xf]
      %v349 = vld [vmem:[%s166 + $0x2b8] sm:$0xf]
      %v350 = vld [vmem:[%s166 + $0x2bc] sm:$0xf]
      %v351 = vld [vmem:[%s166 + $0x2c0] sm:$0xf]
      %v352 = vld [vmem:[%s166 + $0x2c4] sm:$0xf]
      %v353 = vld [vmem:[%s166 + $0x2c8] sm:$0xf]
      %v354 = vld [vmem:[%s166 + $0x2cc] sm:$0xf]
      %v355 = vld [vmem:[%s166 + $0x2d0] sm:$0xf]
      %v356 = vld [vmem:[%s166 + $0x2d4] sm:$0xf]
      %v357 = vld [vmem:[%s166 + $0x2d8] sm:$0xf]
      %v358 = vld [vmem:[%s166 + $0x2dc] sm:$0xf]
      %v359 = vld [vmem:[%s166 + $0x2e0] sm:$0xf]
      %v360 = vld [vmem:[%s166 + $0x2e4] sm:$0xf]
      %v361 = vld [vmem:[%s166 + $0x2e8] sm:$0xf]
      %v362 = vld [vmem:[%s166 + $0x2ec] sm:$0xf]
      %v363 = vld [vmem:[%s166 + $0x2f0] sm:$0xf]
      %v364 = vld [vmem:[%s166 + $0x2f4] sm:$0xf]
      %v365 = vld [vmem:[%s166 + $0x2f8] sm:$0xf]
      %v366 = vld [vmem:[%s166 + $0x2fc] sm:$0xf]
      %v367 = vld [vmem:[%s166 + $0x300] sm:$0xf]
      %v368 = vld [vmem:[%s166 + $0x304] sm:$0xf]
      %v369 = vld [vmem:[%s166 + $0x308] sm:$0xf]
      %v370 = vld [vmem:[%s166 + $0x30c] sm:$0xf]
      %v371 = vld [vmem:[%s166 + $0x310] sm:$0xf]
      %v372 = vld [vmem:[%s166 + $0x314] sm:$0xf]
      %v373 = vld [vmem:[%s166 + $0x318] sm:$0xf]
      %v374 = vld [vmem:[%s166 + $0x31c] sm:$0xf]
      %v375 = vld [vmem:[%s166 + $0x320] sm:$0xf]
      %v376 = vld [vmem:[%s166 + $0x324] sm:$0xf]
      %v377 = vld [vmem:[%s166 + $0x328] sm:$0xf]
      %v378 = vld [vmem:[%s166 + $0x32c] sm:$0xf]
      %v379 = vld [vmem:[%s166 + $0x330] sm:$0xf]
      %v380 = vld [vmem:[%s166 + $0x334] sm:$0xf]
      %v381 = vld [vmem:[%s166 + $0x338] sm:$0xf]
      %v382 = vld [vmem:[%s166 + $0x33c] sm:$0xf]
      %v383 = vld [vmem:[%s166 + $0x340] sm:$0xf]
      %v384 = vld [vmem:[%s166 + $0x344] sm:$0xf]
      %v385 = vld [vmem:[%s166 + $0x348] sm:$0xf]
      %v386 = vld [vmem:[%s166 + $0x34c] sm:$0xf]
      %v387 = vld [vmem:[%s166 + $0x350] sm:$0xf]
      %v388 = vld [vmem:[%s166 + $0x354] sm:$0xf]
      %v389 = vld [vmem:[%s166 + $0x358] sm:$0xf]
      %v390 = vld [vmem:[%s166 + $0x35c] sm:$0xf]
      %v391 = vld [vmem:[%s166 + $0x360] sm:$0xf]
      %v392 = vld [vmem:[%s166 + $0x364] sm:$0xf]
      %v393 = vld [vmem:[%s166 + $0x368] sm:$0xf]
      %v394 = vld [vmem:[%s166 + $0x36c] sm:$0xf]
      %v395 = vld [vmem:[%s166 + $0x370] sm:$0xf]
      %v396 = vld [vmem:[%s166 + $0x374] sm:$0xf]
      %v397 = vld [vmem:[%s166 + $0x378] sm:$0xf]
      %v398 = vld [vmem:[%s166 + $0x37c] sm:$0xf]
      %v399 = vld [vmem:[%s166 + $0x380] sm:$0xf]
      %v400 = vld [vmem:[%s166 + $0x384] sm:$0xf]
      %v401 = vld [vmem:[%s166 + $0x388] sm:$0xf]
      %v402 = vld [vmem:[%s166 + $0x38c] sm:$0xf]
      %v403 = vld [vmem:[%s166 + $0x390] sm:$0xf]
      %v404 = vld [vmem:[%s166 + $0x394] sm:$0xf]
      %v405 = vld [vmem:[%s166 + $0x398] sm:$0xf]
      %v406 = vld [vmem:[%s166 + $0x39c] sm:$0xf]
      %v407 = vld [vmem:[%s166 + $0x3a0] sm:$0xf]
      %v408 = vld [vmem:[%s166 + $0x3a4] sm:$0xf]
      %v409 = vld [vmem:[%s166 + $0x3a8] sm:$0xf]
      %v410 = vld [vmem:[%s166 + $0x3ac] sm:$0xf]
      %v411 = vld [vmem:[%s166 + $0x3b0] sm:$0xf]
      %v412 = vld [vmem:[%s166 + $0x3b4] sm:$0xf]
      %v413 = vld [vmem:[%s166 + $0x3b8] sm:$0xf]
      %v414 = vld [vmem:[%s166 + $0x3bc] sm:$0xf]
      %v415 = vld [vmem:[%s166 + $0x3c0] sm:$0xf]
      %v416 = vld [vmem:[%s166 + $0x3c4] sm:$0xf]
      %v417 = vld [vmem:[%s166 + $0x3c8] sm:$0xf]
      %v418 = vld [vmem:[%s166 + $0x3cc] sm:$0xf]
      %v419 = vld [vmem:[%s166 + $0x3d0] sm:$0xf]
      %v420 = vld [vmem:[%s166 + $0x3d4] sm:$0xf]
      %v421 = vld [vmem:[%s166 + $0x3d8] sm:$0xf]
      %v422 = vld [vmem:[%s166 + $0x3dc] sm:$0xf]
      %v423 = vld [vmem:[%s1] sm:$0xf]
      %v424 = vld [vmem:[%s1 + $0x4] sm:$0xf]
      %v425 = vld [vmem:[%s1 + $0x8] sm:$0xf]
      %v426 = vld [vmem:[%s1 + $0xc] sm:$0xf]
      %v427 = vld [vmem:[%s1 + $0x10] sm:$0xf]
      %v428 = vld [vmem:[%s1 + $0x14] sm:$0xf]
      %v429 = vld [vmem:[%s1 + $0x18] sm:$0xf]
      %v430 = vld [vmem:[%s1 + $0x1c] sm:$0xf]
      %v431 = vld [vmem:[%s1 + $0x20] sm:$0xf]
      %v432 = vld [vmem:[%s1 + $0x24] sm:$0xf]
      %v433 = vld [vmem:[%s1 + $0x28] sm:$0x3]
      %v434 = vld [vmem:[%s2] sm:$0x1]
      %v436 = vlaneseq
      %v437 = vshrl.u32 %v436, 7
      %v438 = vsub.s32 0, %v437
      %v439 = vrot.slane %v434, %v438
      %v689 = vunpack.c.l.b16 %v175
      %v690 = vunpack.c.l.b16 %v176
      %v691 = vunpack.c.l.b16 %v177
      %v692 = vunpack.c.l.b16 %v178
      %v693 = vunpack.c.l.b16 %v179
      %v694 = vunpack.c.l.b16 %v180
      %v695 = vunpack.c.l.b16 %v181
      %v696 = vunpack.c.l.b16 %v182
      %v697 = vunpack.c.l.b16 %v183
      %v698 = vunpack.c.l.b16 %v184
      %v699 = vunpack.c.l.b16 %v185
      %v700 = vunpack.c.l.b16 %v186
      %v701 = vunpack.c.l.b16 %v187
      %v702 = vunpack.c.l.b16 %v188
      %v703 = vunpack.c.l.b16 %v189
      %v704 = vunpack.c.l.b16 %v190
      %v705 = vunpack.c.l.b16 %v191
      %v706 = vunpack.c.l.b16 %v192
      %v707 = vunpack.c.l.b16 %v193
      %v708 = vunpack.c.l.b16 %v194
      %v709 = vunpack.c.l.b16 %v195
      %v710 = vunpack.c.l.b16 %v196
      %v711 = vunpack.c.l.b16 %v197
      %v712 = vunpack.c.l.b16 %v198
      %v713 = vunpack.c.l.b16 %v199
      %v714 = vunpack.c.l.b16 %v200
      %v715 = vunpack.c.l.b16 %v201
      %v716 = vunpack.c.l.b16 %v202
      %v717 = vunpack.c.l.b16 %v203
      %v718 = vunpack.c.l.b16 %v204
      %v719 = vunpack.c.l.b16 %v205
      %v720 = vunpack.c.l.b16 %v206
      %v721 = vunpack.c.l.b16 %v207
      %v722 = vunpack.c.l.b16 %v208
      %v723 = vunpack.c.l.b16 %v209
      %v724 = vunpack.c.l.b16 %v210
      %v725 = vunpack.c.l.b16 %v211
      %v726 = vunpack.c.l.b16 %v212
      %v727 = vunpack.c.l.b16 %v213
      %v728 = vunpack.c.l.b16 %v214
      %v729 = vunpack.c.l.b16 %v215
      %v730 = vunpack.c.l.b16 %v216
      %v731 = vunpack.c.l.b16 %v217
      %v732 = vunpack.c.l.b16 %v218
      %v733 = vunpack.c.l.b16 %v219
      %v734 = vunpack.c.l.b16 %v220
      %v735 = vunpack.c.l.b16 %v221
      %v736 = vunpack.c.l.b16 %v222
      %v737 = vunpack.c.l.b16 %v223
      %v738 = vunpack.c.l.b16 %v224
      %v739 = vunpack.c.l.b16 %v225
      %v740 = vunpack.c.l.b16 %v226
      %v741 = vunpack.c.l.b16 %v227
      %v742 = vunpack.c.l.b16 %v228
      %v743 = vunpack.c.l.b16 %v229
      %v744 = vunpack.c.l.b16 %v230
      %v745 = vunpack.c.l.b16 %v231
      %v746 = vunpack.c.l.b16 %v232
      %v747 = vunpack.c.l.b16 %v233
      %v748 = vunpack.c.l.b16 %v234
      %v749 = vunpack.c.l.b16 %v235
      %v750 = vunpack.c.l.b16 %v236
      %v751 = vunpack.c.l.b16 %v237
      %v752 = vunpack.c.l.b16 %v238
      %v753 = vunpack.c.l.b16 %v239
      %v754 = vunpack.c.l.b16 %v240
      %v755 = vunpack.c.l.b16 %v241
      %v756 = vunpack.c.l.b16 %v242
      %v757 = vunpack.c.l.b16 %v243
      %v758 = vunpack.c.l.b16 %v244
      %v759 = vunpack.c.l.b16 %v245
      %v760 = vunpack.c.l.b16 %v246
      %v761 = vunpack.c.l.b16 %v247
      %v762 = vunpack.c.l.b16 %v248
      %v763 = vunpack.c.l.b16 %v249
      %v764 = vunpack.c.l.b16 %v250
      %v765 = vunpack.c.l.b16 %v251
      %v766 = vunpack.c.l.b16 %v252
      %v767 = vunpack.c.l.b16 %v253
      %v768 = vunpack.c.l.b16 %v254
      %v769 = vunpack.c.l.b16 %v255
      %v770 = vunpack.c.l.b16 %v256
      %v771 = vunpack.c.l.b16 %v257
      %v772 = vunpack.c.l.b16 %v258
      %v773 = vunpack.c.l.b16 %v259
      %v774 = vunpack.c.l.b16 %v260
      %v775 = vunpack.c.l.b16 %v261
      %v776 = vunpack.c.l.b16 %v262
      %v777 = vunpack.c.l.b16 %v263
      %v778 = vunpack.c.l.b16 %v264
      %v779 = vunpack.c.l.b16 %v265
      %v780 = vunpack.c.l.b16 %v266
      %v781 = vunpack.c.l.b16 %v267
      %v782 = vunpack.c.l.b16 %v268
      %v783 = vunpack.c.l.b16 %v269
      %v784 = vunpack.c.l.b16 %v270
      %v785 = vunpack.c.l.b16 %v271
      %v786 = vunpack.c.l.b16 %v272
      %v787 = vunpack.c.l.b16 %v273
      %v788 = vunpack.c.l.b16 %v274
      %v789 = vunpack.c.l.b16 %v275
      %v790 = vunpack.c.l.b16 %v276
      %v791 = vunpack.c.l.b16 %v277
      %v792 = vunpack.c.l.b16 %v278
      %v793 = vunpack.c.l.b16 %v279
      %v794 = vunpack.c.l.b16 %v280
      %v795 = vunpack.c.l.b16 %v281
      %v796 = vunpack.c.l.b16 %v282
      %v797 = vunpack.c.l.b16 %v283
      %v798 = vunpack.c.l.b16 %v284
      %v799 = vunpack.c.l.b16 %v285
      %v800 = vunpack.c.l.b16 %v286
      %v801 = vunpack.c.l.b16 %v287
      %v802 = vunpack.c.l.b16 %v288
      %v803 = vunpack.c.l.b16 %v289
      %v804 = vunpack.c.l.b16 %v290
      %v805 = vunpack.c.l.b16 %v291
      %v806 = vunpack.c.l.b16 %v292
      %v807 = vunpack.c.l.b16 %v293
      %v808 = vunpack.c.l.b16 %v294
      %v809 = vunpack.c.l.b16 %v295
      %v810 = vunpack.c.l.b16 %v296
      %v811 = vunpack.c.l.b16 %v297
      %v812 = vunpack.c.l.b16 %v298
      %v813 = vunpack.c.l.b16 %v299
      %v814 = vunpack.c.l.b16 %v300
      %v815 = vunpack.c.l.b16 %v301
      %v816 = vunpack.c.l.b16 %v302
      %v817 = vunpack.c.l.b16 %v303
      %v818 = vunpack.c.l.b16 %v304
      %v819 = vunpack.c.l.b16 %v305
      %v820 = vunpack.c.l.b16 %v306
      %v821 = vunpack.c.l.b16 %v307
      %v822 = vunpack.c.l.b16 %v308
      %v823 = vunpack.c.l.b16 %v309
      %v824 = vunpack.c.l.b16 %v310
      %v825 = vunpack.c.l.b16 %v311
      %v826 = vunpack.c.l.b16 %v312
      %v827 = vunpack.c.l.b16 %v313
      %v828 = vunpack.c.l.b16 %v314
      %v829 = vunpack.c.l.b16 %v315
      %v830 = vunpack.c.l.b16 %v316
      %v831 = vunpack.c.l.b16 %v317
      %v832 = vunpack.c.l.b16 %v318
      %v833 = vunpack.c.l.b16 %v319
      %v834 = vunpack.c.l.b16 %v320
      %v835 = vunpack.c.l.b16 %v321
      %v836 = vunpack.c.l.b16 %v322
      %v837 = vunpack.c.l.b16 %v323
      %v838 = vunpack.c.l.b16 %v324
      %v839 = vunpack.c.l.b16 %v325
      %v840 = vunpack.c.l.b16 %v326
      %v841 = vunpack.c.l.b16 %v327
      %v842 = vunpack.c.l.b16 %v328
      %v843 = vunpack.c.l.b16 %v329
      %v844 = vunpack.c.l.b16 %v330
      %v845 = vunpack.c.l.b16 %v331
      %v846 = vunpack.c.l.b16 %v332
      %v847 = vunpack.c.l.b16 %v333
      %v848 = vunpack.c.l.b16 %v334
      %v849 = vunpack.c.l.b16 %v335
      %v850 = vunpack.c.l.b16 %v336
      %v851 = vunpack.c.l.b16 %v337
      %v852 = vunpack.c.l.b16 %v338
      %v853 = vunpack.c.l.b16 %v339
      %v854 = vunpack.c.l.b16 %v340
      %v855 = vunpack.c.l.b16 %v341
      %v856 = vunpack.c.l.b16 %v342
      %v857 = vunpack.c.l.b16 %v343
      %v858 = vunpack.c.l.b16 %v344
      %v859 = vunpack.c.l.b16 %v345
      %v860 = vunpack.c.l.b16 %v346
      %v861 = vunpack.c.l.b16 %v347
      %v862 = vunpack.c.l.b16 %v348
      %v863 = vunpack.c.l.b16 %v349
      %v864 = vunpack.c.l.b16 %v350
      %v865 = vunpack.c.l.b16 %v351
      %v866 = vunpack.c.l.b16 %v352
      %v867 = vunpack.c.l.b16 %v353
      %v868 = vunpack.c.l.b16 %v354
      %v869 = vunpack.c.l.b16 %v355
      %v870 = vunpack.c.l.b16 %v356
      %v871 = vunpack.c.l.b16 %v357
      %v872 = vunpack.c.l.b16 %v358
      %v873 = vunpack.c.l.b16 %v359
      %v874 = vunpack.c.l.b16 %v360
      %v875 = vunpack.c.l.b16 %v361
      %v876 = vunpack.c.l.b16 %v362
      %v877 = vunpack.c.l.b16 %v363
      %v878 = vunpack.c.l.b16 %v364
      %v879 = vunpack.c.l.b16 %v365
      %v880 = vunpack.c.l.b16 %v366
      %v881 = vunpack.c.l.b16 %v367
      %v882 = vunpack.c.l.b16 %v368
      %v883 = vunpack.c.l.b16 %v369
      %v884 = vunpack.c.l.b16 %v370
      %v885 = vunpack.c.l.b16 %v371
      %v886 = vunpack.c.l.b16 %v372
      %v887 = vunpack.c.l.b16 %v373
      %v888 = vunpack.c.l.b16 %v374
      %v889 = vunpack.c.l.b16 %v375
      %v890 = vunpack.c.l.b16 %v376
      %v891 = vunpack.c.l.b16 %v377
      %v892 = vunpack.c.l.b16 %v378
      %v893 = vunpack.c.l.b16 %v379
      %v894 = vunpack.c.l.b16 %v380
      %v895 = vunpack.c.l.b16 %v381
      %v896 = vunpack.c.l.b16 %v382
      %v897 = vunpack.c.l.b16 %v383
      %v898 = vunpack.c.l.b16 %v384
      %v899 = vunpack.c.l.b16 %v385
      %v900 = vunpack.c.l.b16 %v386
      %v901 = vunpack.c.l.b16 %v387
      %v902 = vunpack.c.l.b16 %v388
      %v903 = vunpack.c.l.b16 %v389
      %v904 = vunpack.c.l.b16 %v390
      %v905 = vunpack.c.l.b16 %v391
      %v906 = vunpack.c.l.b16 %v392
      %v907 = vunpack.c.l.b16 %v393
      %v908 = vunpack.c.l.b16 %v394
      %v909 = vunpack.c.l.b16 %v395
      %v910 = vunpack.c.l.b16 %v396
      %v911 = vunpack.c.l.b16 %v397
      %v912 = vunpack.c.l.b16 %v398
      %v913 = vunpack.c.l.b16 %v399
      %v914 = vunpack.c.l.b16 %v400
      %v915 = vunpack.c.l.b16 %v401
      %v916 = vunpack.c.l.b16 %v402
      %v917 = vunpack.c.l.b16 %v403
      %v918 = vunpack.c.l.b16 %v404
      %v919 = vunpack.c.l.b16 %v405
      %v920 = vunpack.c.l.b16 %v406
      %v921 = vunpack.c.l.b16 %v407
      %v922 = vunpack.c.l.b16 %v408
      %v923 = vunpack.c.l.b16 %v409
      %v924 = vunpack.c.l.b16 %v410
      %v925 = vunpack.c.l.b16 %v411
      %v926 = vunpack.c.l.b16 %v412
      %v927 = vunpack.c.l.b16 %v413
      %v928 = vunpack.c.l.b16 %v414
      %v929 = vunpack.c.l.b16 %v415
      %v930 = vunpack.c.l.b16 %v416
      %v931 = vunpack.c.l.b16 %v417
      %v932 = vunpack.c.l.b16 %v418
      %v933 = vunpack.c.l.b16 %v419
      %v934 = vunpack.c.l.b16 %v420
      %v935 = vunpack.c.l.b16 %v421
      %v936 = vunpack.c.l.b16 %v422
      %v937 = vpack.c.b16 %v690, %v689
      %v938 = vpack.c.b16 %v692, %v691
      %v939 = vpack.c.b16 %v694, %v693
      %v940 = vpack.c.b16 %v696, %v695
      %v941 = vpack.c.b16 %v698, %v697
      %v942 = vpack.c.b16 %v700, %v699
      %v943 = vpack.c.b16 %v702, %v701
      %v944 = vpack.c.b16 %v704, %v703
      %v945 = vpack.c.b16 %v706, %v705
      %v946 = vpack.c.b16 %v708, %v707
      %v947 = vpack.c.b16 %v710, %v709
      %v948 = vpack.c.b16 %v712, %v711
      %v949 = vpack.c.b16 %v714, %v713
      %v950 = vpack.c.b16 %v716, %v715
      %v951 = vpack.c.b16 %v718, %v717
      %v952 = vpack.c.b16 %v720, %v719
      %v953 = vpack.c.b16 %v722, %v721
      %v954 = vpack.c.b16 %v724, %v723
      %v955 = vpack.c.b16 %v726, %v725
      %v956 = vpack.c.b16 %v728, %v727
      %v957 = vpack.c.b16 %v730, %v729
      %v958 = vpack.c.b16 %v732, %v731
      %v959 = vpack.c.b16 %v734, %v733
      %v960 = vpack.c.b16 %v736, %v735
      %v961 = vpack.c.b16 %v738, %v737
      %v962 = vpack.c.b16 %v740, %v739
      %v963 = vpack.c.b16 %v742, %v741
      %v964 = vpack.c.b16 %v744, %v743
      %v965 = vpack.c.b16 %v746, %v745
      %v966 = vpack.c.b16 %v748, %v747
      %v967 = vpack.c.b16 %v750, %v749
      %v968 = vpack.c.b16 %v752, %v751
      %v969 = vpack.c.b16 %v754, %v753
      %v970 = vpack.c.b16 %v756, %v755
      %v971 = vpack.c.b16 %v758, %v757
      %v972 = vpack.c.b16 %v760, %v759
      %v973 = vpack.c.b16 %v762, %v761
      %v974 = vpack.c.b16 %v764, %v763
      %v975 = vpack.c.b16 %v766, %v765
      %v976 = vpack.c.b16 %v768, %v767
      %v977 = vpack.c.b16 %v770, %v769
      %v978 = vpack.c.b16 %v772, %v771
      %v979 = vpack.c.b16 %v774, %v773
      %v980 = vpack.c.b16 %v776, %v775
      %v981 = vpack.c.b16 %v778, %v777
      %v982 = vpack.c.b16 %v780, %v779
      %v983 = vpack.c.b16 %v782, %v781
      %v984 = vpack.c.b16 %v784, %v783
      %v985 = vpack.c.b16 %v786, %v785
      %v986 = vpack.c.b16 %v788, %v787
      %v987 = vpack.c.b16 %v790, %v789
      %v988 = vpack.c.b16 %v792, %v791
      %v989 = vpack.c.b16 %v794, %v793
      %v990 = vpack.c.b16 %v796, %v795
      %v991 = vpack.c.b16 %v798, %v797
      %v992 = vpack.c.b16 %v800, %v799
      %v993 = vpack.c.b16 %v802, %v801
      %v994 = vpack.c.b16 %v804, %v803
      %v995 = vpack.c.b16 %v806, %v805
      %v996 = vpack.c.b16 %v808, %v807
      %v997 = vpack.c.b16 %v810, %v809
      %v998 = vpack.c.b16 %v812, %v811
      %v999 = vpack.c.b16 %v814, %v813
      %v1000 = vpack.c.b16 %v816, %v815
      %v1001 = vpack.c.b16 %v818, %v817
      %v1002 = vpack.c.b16 %v820, %v819
      %v1003 = vpack.c.b16 %v822, %v821
      %v1004 = vpack.c.b16 %v824, %v823
      %v1005 = vpack.c.b16 %v826, %v825
      %v1006 = vpack.c.b16 %v828, %v827
      %v1007 = vpack.c.b16 %v830, %v829
      %v1008 = vpack.c.b16 %v832, %v831
      %v1009 = vpack.c.b16 %v834, %v833
      %v1010 = vpack.c.b16 %v836, %v835
      %v1011 = vpack.c.b16 %v838, %v837
      %v1012 = vpack.c.b16 %v840, %v839
      %v1013 = vpack.c.b16 %v842, %v841
      %v1014 = vpack.c.b16 %v844, %v843
      %v1015 = vpack.c.b16 %v846, %v845
      %v1016 = vpack.c.b16 %v848, %v847
      %v1017 = vpack.c.b16 %v850, %v849
      %v1018 = vpack.c.b16 %v852, %v851
      %v1019 = vpack.c.b16 %v854, %v853
      %v1020 = vpack.c.b16 %v856, %v855
      %v1021 = vpack.c.b16 %v858, %v857
      %v1022 = vpack.c.b16 %v860, %v859
      %v1023 = vpack.c.b16 %v862, %v861
      %v1024 = vpack.c.b16 %v864, %v863
      %v1025 = vpack.c.b16 %v866, %v865
      %v1026 = vpack.c.b16 %v868, %v867
      %v1027 = vpack.c.b16 %v870, %v869
      %v1028 = vpack.c.b16 %v872, %v871
      %v1029 = vpack.c.b16 %v874, %v873
      %v1030 = vpack.c.b16 %v876, %v875
      %v1031 = vpack.c.b16 %v878, %v877
      %v1032 = vpack.c.b16 %v880, %v879
      %v1033 = vpack.c.b16 %v882, %v881
      %v1034 = vpack.c.b16 %v884, %v883
      %v1035 = vpack.c.b16 %v886, %v885
      %v1036 = vpack.c.b16 %v888, %v887
      %v1037 = vpack.c.b16 %v890, %v889
      %v1038 = vpack.c.b16 %v892, %v891
      %v1039 = vpack.c.b16 %v894, %v893
      %v1040 = vpack.c.b16 %v896, %v895
      %v1041 = vpack.c.b16 %v898, %v897
      %v1042 = vpack.c.b16 %v900, %v899
      %v1043 = vpack.c.b16 %v902, %v901
      %v1044 = vpack.c.b16 %v904, %v903
      %v1045 = vpack.c.b16 %v906, %v905
      %v1046 = vpack.c.b16 %v908, %v907
      %v1047 = vpack.c.b16 %v910, %v909
      %v1048 = vpack.c.b16 %v912, %v911
      %v1049 = vpack.c.b16 %v914, %v913
      %v1050 = vpack.c.b16 %v916, %v915
      %v1051 = vpack.c.b16 %v918, %v917
      %v1052 = vpack.c.b16 %v920, %v919
      %v1053 = vpack.c.b16 %v922, %v921
      %v1054 = vpack.c.b16 %v924, %v923
      %v1055 = vpack.c.b16 %v926, %v925
      %v1056 = vpack.c.b16 %v928, %v927
      %v1057 = vpack.c.b16 %v930, %v929
      %v1058 = vpack.c.b16 %v932, %v931
      %v1059 = vpack.c.b16 %v934, %v933
      %v1060 = vpack.c.b16 %v936, %v935
      %v1072 = vunpack.c.l.b16 %v423
      %v1073 = vunpack.c.l.b16 %v424
      %v1074 = vunpack.c.l.b16 %v425
      %v1075 = vunpack.c.l.b16 %v426
      %v1076 = vunpack.c.l.b16 %v427
      %v1077 = vunpack.c.l.b16 %v428
      %v1078 = vunpack.c.l.b16 %v429
      %v1079 = vunpack.c.l.b16 %v430
      %v1080 = vunpack.c.l.b16 %v431
      %v1081 = vunpack.c.l.b16 %v432
      %v1082 = vunpack.c.l.b16 %v433
      %v1083 = vpack.c.b16 %v1073, %v1072
      %v1084 = vpack.c.b16 %v1075, %v1074
      %v1085 = vpack.c.b16 %v1077, %v1076
      %v1086 = vpack.c.b16 %v1079, %v1078
      %v1087 = vpack.c.b16 %v1081, %v1080
      %v1088 = vpack.c.b16 %v1082, %v1082
      %vm1094 = vcmask 687104
      %v1096 = vsel %vm1094, %v937, 0
      %v1099 = vsel %vm1094, %v938, 0
      %v1102 = vsel %vm1094, %v939, 0
      %v1105 = vsel %vm1094, %v940, 0
      %v1108 = vsel %vm1094, %v941, 0
      %v1111 = vsel %vm1094, %v942, 0
      %v1114 = vsel %vm1094, %v943, 0
      %v1117 = vsel %vm1094, %v944, 0
      %v1120 = vsel %vm1094, %v945, 0
      %v1123 = vsel %vm1094, %v946, 0
      %v1126 = vsel %vm1094, %v947, 0
      %v1129 = vsel %vm1094, %v948, 0
      %v1132 = vsel %vm1094, %v949, 0
      %v1135 = vsel %vm1094, %v950, 0
      %v1138 = vsel %vm1094, %v951, 0
      %v1141 = vsel %vm1094, %v952, 0
      %v1144 = vsel %vm1094, %v953, 0
      %v1147 = vsel %vm1094, %v954, 0
      %v1150 = vsel %vm1094, %v955, 0
      %v1153 = vsel %vm1094, %v956, 0
      %v1156 = vsel %vm1094, %v957, 0
      %v1159 = vsel %vm1094, %v958, 0
      %v1162 = vsel %vm1094, %v959, 0
      %v1165 = vsel %vm1094, %v960, 0
      %v1168 = vsel %vm1094, %v961, 0
      %v1171 = vsel %vm1094, %v962, 0
      %v1174 = vsel %vm1094, %v963, 0
      %v1177 = vsel %vm1094, %v964, 0
      %v1180 = vsel %vm1094, %v965, 0
      %v1183 = vsel %vm1094, %v966, 0
      %v1186 = vsel %vm1094, %v967, 0
      %v1189 = vsel %vm1094, %v968, 0
      %v1192 = vsel %vm1094, %v969, 0
      %v1195 = vsel %vm1094, %v970, 0
      %v1198 = vsel %vm1094, %v971, 0
      %v1201 = vsel %vm1094, %v972, 0
      %v1204 = vsel %vm1094, %v973, 0
      %v1207 = vsel %vm1094, %v974, 0
      %v1210 = vsel %vm1094, %v975, 0
      %v1213 = vsel %vm1094, %v976, 0
      %v1216 = vsel %vm1094, %v977, 0
      %v1219 = vsel %vm1094, %v978, 0
      %v1222 = vsel %vm1094, %v979, 0
      %v1225 = vsel %vm1094, %v980, 0
      %v1228 = vsel %vm1094, %v981, 0
      %v1231 = vsel %vm1094, %v982, 0
      %v1234 = vsel %vm1094, %v983, 0
      %v1237 = vsel %vm1094, %v984, 0
      %v1240 = vsel %vm1094, %v985, 0
      %v1243 = vsel %vm1094, %v986, 0
      %v1246 = vsel %vm1094, %v987, 0
      %v1249 = vsel %vm1094, %v988, 0
      %v1252 = vsel %vm1094, %v989, 0
      %v1255 = vsel %vm1094, %v990, 0
      %v1258 = vsel %vm1094, %v991, 0
      %v1261 = vsel %vm1094, %v992, 0
      %v1264 = vsel %vm1094, %v993, 0
      %v1267 = vsel %vm1094, %v994, 0
      %v1270 = vsel %vm1094, %v995, 0
      %v1273 = vsel %vm1094, %v996, 0
      %v1276 = vsel %vm1094, %v997, 0
      %v1279 = vsel %vm1094, %v998, 0
      %v1282 = vsel %vm1094, %v999, 0
      %v1285 = vsel %vm1094, %v1000, 0
      %v1288 = vsel %vm1094, %v1001, 0
      %v1291 = vsel %vm1094, %v1002, 0
      %v1294 = vsel %vm1094, %v1003, 0
      %v1297 = vsel %vm1094, %v1004, 0
      %v1300 = vsel %vm1094, %v1005, 0
      %v1303 = vsel %vm1094, %v1006, 0
      %v1306 = vsel %vm1094, %v1007, 0
      %v1309 = vsel %vm1094, %v1008, 0
      %v1312 = vsel %vm1094, %v1009, 0
      %v1315 = vsel %vm1094, %v1010, 0
      %v1318 = vsel %vm1094, %v1011, 0
      %v1321 = vsel %vm1094, %v1012, 0
      %v1324 = vsel %vm1094, %v1013, 0
      %v1327 = vsel %vm1094, %v1014, 0
      %v1330 = vsel %vm1094, %v1015, 0
      %v1333 = vsel %vm1094, %v1016, 0
      %v1336 = vsel %vm1094, %v1017, 0
      %v1339 = vsel %vm1094, %v1018, 0
      %v1342 = vsel %vm1094, %v1019, 0
      %v1345 = vsel %vm1094, %v1020, 0
      %v1348 = vsel %vm1094, %v1021, 0
      %v1351 = vsel %vm1094, %v1022, 0
      %v1354 = vsel %vm1094, %v1023, 0
      %v1357 = vsel %vm1094, %v1024, 0
      %v1360 = vsel %vm1094, %v1025, 0
      %v1363 = vsel %vm1094, %v1026, 0
      %v1366 = vsel %vm1094, %v1027, 0
      %v1369 = vsel %vm1094, %v1028, 0
      %v1372 = vsel %vm1094, %v1029, 0
      %v1375 = vsel %vm1094, %v1030, 0
      %v1378 = vsel %vm1094, %v1031, 0
      %v1381 = vsel %vm1094, %v1032, 0
      %v1384 = vsel %vm1094, %v1033, 0
      %v1387 = vsel %vm1094, %v1034, 0
      %v1390 = vsel %vm1094, %v1035, 0
      %v1393 = vsel %vm1094, %v1036, 0
      %v1396 = vsel %vm1094, %v1037, 0
      %v1399 = vsel %vm1094, %v1038, 0
      %v1402 = vsel %vm1094, %v1039, 0
      %v1405 = vsel %vm1094, %v1040, 0
      %v1408 = vsel %vm1094, %v1041, 0
      %v1411 = vsel %vm1094, %v1042, 0
      %v1414 = vsel %vm1094, %v1043, 0
      %v1417 = vsel %vm1094, %v1044, 0
      %v1420 = vsel %vm1094, %v1045, 0
      %v1423 = vsel %vm1094, %v1046, 0
      %v1426 = vsel %vm1094, %v1047, 0
      %v1429 = vsel %vm1094, %v1048, 0
      %v1432 = vsel %vm1094, %v1049, 0
      %v1435 = vsel %vm1094, %v1050, 0
      %v1438 = vsel %vm1094, %v1051, 0
      %v1441 = vsel %vm1094, %v1052, 0
      %v1444 = vsel %vm1094, %v1053, 0
      %v1447 = vsel %vm1094, %v1054, 0
      %v1450 = vsel %vm1094, %v1055, 0
      %v1453 = vsel %vm1094, %v1056, 0
      %v1456 = vsel %vm1094, %v1057, 0
      %v1459 = vsel %vm1094, %v1058, 0
      %v1462 = vsel %vm1094, %v1059, 0
      %v1465 = vsel %vm1094, %v1060, 0
      %vm1467 = vcmask 1041408
      %v1469 = vsel %vm1467, %v1088, 0
      %1471 = vmatprep.subr.bf16.mxu0 0
      %1472 = vmatpush1.bf16.msra.mxu0 %v1083
      %1473 = vmatprep.subr.bf16.mxu0 0
      %1474 = vmatpush1.bf16.msra.mxu0 %v1084
      %1475 = vmatprep.subr.bf16.mxu0 0
      %1476 = vmatpush1.bf16.msra.mxu0 %v1085
      %1477 = vmatprep.subr.bf16.mxu0 0
      %1478 = vmatpush1.bf16.msra.mxu0 %v1086
      %1479 = vmatprep.subr.bf16.mxu0 0
      %1480 = vmatpush1.bf16.msra.mxu0 %v1087
      %1481 = vmatprep.subr.bf16.mxu0 0
      %1482 = vmatpush1.bf16.msra.mxu0 %v1469
      %1483 = vmatprep.subr.bf16.mxu0 0
      %1484 = vmatpush1.bf16.msra.mxu0 0
      %1485 = vmatprep.subr.bf16.mxu0 0
      %1486 = vmatpush1.bf16.msra.mxu0 0
      %1487 = vmatprep.subr.bf16.mxu0 0
      %1488 = vmatpush1.bf16.msra.mxu0 0
      %1489 = vmatprep.subr.bf16.mxu0 0
      %1490 = vmatpush1.bf16.msra.mxu0 0
      %1491 = vmatprep.subr.bf16.mxu0 0
      %1492 = vmatpush1.bf16.msra.mxu0 0
      %1493 = vmatprep.subr.bf16.mxu0 0
      %1494 = vmatpush1.bf16.msra.mxu0 0
      %1495 = vmatprep.subr.bf16.mxu0 0
      %1496 = vmatpush1.bf16.msra.mxu0 0
      %1497 = vmatprep.subr.bf16.mxu0 0
      %1498 = vmatpush1.bf16.msra.mxu0 0
      %1499 = vmatprep.subr.bf16.mxu0 0
      %1500 = vmatpush1.bf16.msra.mxu0 0
      %1501 = vmatprep.subr.bf16.mxu0 0
      %1502 = vmatpush1.bf16.msra.mxu0 0
      %1503 = vmatprep.mubr.bf16.mxu0 0
      %1504 = vmatmul.mubr.bf16.gmra.mrb[0].mxu0 %v1096
      %v1505 = vpop.f32.mrb[0].mxu0
      %v1506 = vadd.f32 %v439, %v1505
      %v1507 = vpop.f32.mrb[0].mxu0
      %v1508 = vpop.f32.mrb[0].mxu0
      %v1509 = vadd.f32 %v439, %v1508
      %v1510 = vpop.f32.mrb[0].mxu0
      %1511 = vmatprep.mubr.bf16.mxu0 0
      %1512 = vmatmul.mubr.bf16.gmra.mrb[0].mxu0 %v1099
      %v1513 = vpop.f32.mrb[0].mxu0
      %v1514 = vadd.f32 %v439, %v1513
      %v1515 = vpop.f32.mrb[0].mxu0
      %v1516 = vpop.f32.mrb[0].mxu0
      %v1517 = vadd.f32 %v439, %v1516
      %v1518 = vpop.f32.mrb[0].mxu0
      %1519 = vmatprep.mubr.bf16.mxu0 0
      %1520 = vmatmul.mubr.bf16.gmra.mrb[0].mxu0 %v1102
      %v1521 = vpop.f32.mrb[0].mxu0
      %v1522 = vadd.f32 %v439, %v1521
      %v1523 = vpop.f32.mrb[0].mxu0
      %v1524 = vpop.f32.mrb[0].mxu0
      %v1525 = vadd.f32 %v439, %v1524
      %v1526 = vpop.f32.mrb[0].mxu0
      %1527 = vmatprep.mubr.bf16.mxu0 0
      %1528 = vmatmul.mubr.bf16.gmra.mrb[0].mxu0 %v1105
      %v1529 = vpop.f32.mrb[0].mxu0
      %v1530 = vadd.f32 %v439, %v1529
      %v1531 = vpop.f32.mrb[0].mxu0
      %v1532 = vpop.f32.mrb[0].mxu0
      %v1533 = vadd.f32 %v439, %v1532
      %v1534 = vpop.f32.mrb[0].mxu0
      %1535 = vmatprep.mubr.bf16.mxu0 0
      %1536 = vmatmul.mubr.bf16.gmra.mrb[0].mxu0 %v1108
      %v1537 = vpop.f32.mrb[0].mxu0
      %v1538 = vadd.f32 %v439, %v1537
      %v1539 = vpop.f32.mrb[0].mxu0
      %v1540 = vpop.f32.mrb[0].mxu0
      %v1541 = vadd.f32 %v439, %v1540
      %v1542 = vpop.f32.mrb[0].mxu0
      %1543 = vmatprep.mubr.bf16.mxu0 0
      %1544 = vmatmul.mubr.bf16.gmra.mrb[0].mxu0 %v1111
      %v1545 = vpop.f32.mrb[0].mxu0
      %v1546 = vadd.f32 %v439, %v1545
      %v1547 = vpop.f32.mrb[0].mxu0
      %v1548 = vpop.f32.mrb[0].mxu0
      %v1549 = vadd.f32 %v439, %v1548
      %v1550 = vpop.f32.mrb[0].mxu0
      %1551 = vmatprep.mubr.bf16.mxu0 0
      %1552 = vmatmul.mubr.bf16.gmra.mrb[0].mxu0 %v1114
      %v1553 = vpop.f32.mrb[0].mxu0
      %v1554 = vadd.f32 %v439, %v1553
      %v1555 = vpop.f32.mrb[0].mxu0
      %v1556 = vpop.f32.mrb[0].mxu0
      %v1557 = vadd.f32 %v439, %v1556
      %v1558 = vpop.f32.mrb[0].mxu0
      %1559 = vmatprep.mubr.bf16.mxu0 0
      %1560 = vmatmul.mubr.bf16.gmra.mrb[0].mxu0 %v1117
      %v1561 = vpop.f32.mrb[0].mxu0
      %v1562 = vadd.f32 %v439, %v1561
      %v1563 = vpop.f32.mrb[0].mxu0
      %v1564 = vpop.f32.mrb[0].mxu0
      %v1565 = vadd.f32 %v439, %v1564
      %v1566 = vpop.f32.mrb[0].mxu0
      %1567 = vmatprep.mubr.bf16.mxu0 0
      %1568 = vmatmul.mubr.bf16.gmra.mrb[0].mxu0 %v1120
      %v1569 = vpop.f32.mrb[0].mxu0
      %v1570 = vadd.f32 %v439, %v1569
      %v1571 = vpop.f32.mrb[0].mxu0
      %v1572 = vpop.f32.mrb[0].mxu0
      %v1573 = vadd.f32 %v439, %v1572
      %v1574 = vpop.f32.mrb[0].mxu0
      %1575 = vmatprep.mubr.bf16.mxu0 0
      %1576 = vmatmul.mubr.bf16.gmra.mrb[0].mxu0 %v1123
      %v1577 = vpop.f32.mrb[0].mxu0
      %v1578 = vadd.f32 %v439, %v1577
      %v1579 = vpop.f32.mrb[0].mxu0
      %v1580 = vpop.f32.mrb[0].mxu0
      %v1581 = vadd.f32 %v439, %v1580
      %v1582 = vpop.f32.mrb[0].mxu0
      %1583 = vmatprep.mubr.bf16.mxu0 0
      %1584 = vmatmul.mubr.bf16.gmra.mrb[0].mxu0 %v1126
      %v1585 = vpop.f32.mrb[0].mxu0
      %v1586 = vadd.f32 %v439, %v1585
      %v1587 = vpop.f32.mrb[0].mxu0
      %v1588 = vpop.f32.mrb[0].mxu0
      %v1589 = vadd.f32 %v439, %v1588
      %v1590 = vpop.f32.mrb[0].mxu0
      %1591 = vmatprep.mubr.bf16.mxu0 0
      %1592 = vmatmul.mubr.bf16.gmra.mrb[0].mxu0 %v1129
      %v1593 = vpop.f32.mrb[0].mxu0
      %v1594 = vadd.f32 %v439, %v1593
      %v1595 = vpop.f32.mrb[0].mxu0
      %v1596 = vpop.f32.mrb[0].mxu0
      %v1597 = vadd.f32 %v439, %v1596
      %v1598 = vpop.f32.mrb[0].mxu0
      %1599 = vmatprep.mubr.bf16.mxu0 0
      %1600 = vmatmul.mubr.bf16.gmra.mrb[0].mxu0 %v1132
      %v1601 = vpop.f32.mrb[0].mxu0
      %v1602 = vadd.f32 %v439, %v1601
      %v1603 = vpop.f32.mrb[0].mxu0
      %v1604 = vpop.f32.mrb[0].mxu0
      %v1605 = vadd.f32 %v439, %v1604
      %v1606 = vpop.f32.mrb[0].mxu0
      %1607 = vmatprep.mubr.bf16.mxu0 0
      %1608 = vmatmul.mubr.bf16.gmra.mrb[0].mxu0 %v1135
      %v1609 = vpop.f32.mrb[0].mxu0
      %v1610 = vadd.f32 %v439, %v1609
      %v1611 = vpop.f32.mrb[0].mxu0
      %v1612 = vpop.f32.mrb[0].mxu0
      %v1613 = vadd.f32 %v439, %v1612
      %v1614 = vpop.f32.mrb[0].mxu0
      %1615 = vmatprep.mubr.bf16.mxu0 0
      %1616 = vmatmul.mubr.bf16.gmra.mrb[0].mxu0 %v1138
      %v1617 = vpop.f32.mrb[0].mxu0
      %v1618 = vadd.f32 %v439, %v1617
      %v1619 = vpop.f32.mrb[0].mxu0
      %v1620 = vpop.f32.mrb[0].mxu0
      %v1621 = vadd.f32 %v439, %v1620
      %v1622 = vpop.f32.mrb[0].mxu0
      %1623 = vmatprep.mubr.bf16.mxu0 0
      %1624 = vmatmul.mubr.bf16.gmra.mrb[0].mxu0 %v1141
      %v1625 = vpop.f32.mrb[0].mxu0
      %v1626 = vadd.f32 %v439, %v1625
      %v1627 = vpop.f32.mrb[0].mxu0
      %v1628 = vpop.f32.mrb[0].mxu0
      %v1629 = vadd.f32 %v439, %v1628
      %v1630 = vpop.f32.mrb[0].mxu0
      %1631 = vmatprep.mubr.bf16.mxu0 0
      %1632 = vmatmul.mubr.bf16.gmra.mrb[0].mxu0 %v1144
      %v1633 = vpop.f32.mrb[0].mxu0
      %v1634 = vadd.f32 %v439, %v1633
      %v1635 = vpop.f32.mrb[0].mxu0
      %v1636 = vpop.f32.mrb[0].mxu0
      %v1637 = vadd.f32 %v439, %v1636
      %v1638 = vpop.f32.mrb[0].mxu0
      %1639 = vmatprep.mubr.bf16.mxu0 0
      %1640 = vmatmul.mubr.bf16.gmra.mrb[0].mxu0 %v1147
      %v1641 = vpop.f32.mrb[0].mxu0
      %v1642 = vadd.f32 %v439, %v1641
      %v1643 = vpop.f32.mrb[0].mxu0
      %v1644 = vpop.f32.mrb[0].mxu0
      %v1645 = vadd.f32 %v439, %v1644
      %v1646 = vpop.f32.mrb[0].mxu0
      %1647 = vmatprep.mubr.bf16.mxu0 0
      %1648 = vmatmul.mubr.bf16.gmra.mrb[0].mxu0 %v1150
      %v1649 = vpop.f32.mrb[0].mxu0
      %v1650 = vadd.f32 %v439, %v1649
      %v1651 = vpop.f32.mrb[0].mxu0
      %v1652 = vpop.f32.mrb[0].mxu0
      %v1653 = vadd.f32 %v439, %v1652
      %v1654 = vpop.f32.mrb[0].mxu0
      %1655 = vmatprep.mubr.bf16.mxu0 0
      %1656 = vmatmul.mubr.bf16.gmra.mrb[0].mxu0 %v1153
      %v1657 = vpop.f32.mrb[0].mxu0
      %v1658 = vadd.f32 %v439, %v1657
      %v1659 = vpop.f32.mrb[0].mxu0
      %v1660 = vpop.f32.mrb[0].mxu0
      %v1661 = vadd.f32 %v439, %v1660
      %v1662 = vpop.f32.mrb[0].mxu0
      %1663 = vmatprep.mubr.bf16.mxu0 0
      %1664 = vmatmul.mubr.bf16.gmra.mrb[0].mxu0 %v1156
      %v1665 = vpop.f32.mrb[0].mxu0
      %v1666 = vadd.f32 %v439, %v1665
      %v1667 = vpop.f32.mrb[0].mxu0
      %v1668 = vpop.f32.mrb[0].mxu0
      %v1669 = vadd.f32 %v439, %v1668
      %v1670 = vpop.f32.mrb[0].mxu0
      %1671 = vmatprep.mubr.bf16.mxu0 0
      %1672 = vmatmul.mubr.bf16.gmra.mrb[0].mxu0 %v1159
      %v1673 = vpop.f32.mrb[0].mxu0
      %v1674 = vadd.f32 %v439, %v1673
      %v1675 = vpop.f32.mrb[0].mxu0
      %v1676 = vpop.f32.mrb[0].mxu0
      %v1677 = vadd.f32 %v439, %v1676
      %v1678 = vpop.f32.mrb[0].mxu0
      %1679 = vmatprep.mubr.bf16.mxu0 0
      %1680 = vmatmul.mubr.bf16.gmra.mrb[0].mxu0 %v1162
      %v1681 = vpop.f32.mrb[0].mxu0
      %v1682 = vadd.f32 %v439, %v1681
      %v1683 = vpop.f32.mrb[0].mxu0
      %v1684 = vpop.f32.mrb[0].mxu0
      %v1685 = vadd.f32 %v439, %v1684
      %v1686 = vpop.f32.mrb[0].mxu0
      %1687 = vmatprep.mubr.bf16.mxu0 0
      %1688 = vmatmul.mubr.bf16.gmra.mrb[0].mxu0 %v1165
      %v1689 = vpop.f32.mrb[0].mxu0
      %v1690 = vadd.f32 %v439, %v1689
      %v1691 = vpop.f32.mrb[0].mxu0
      %v1692 = vpop.f32.mrb[0].mxu0
      %v1693 = vadd.f32 %v439, %v1692
      %v1694 = vpop.f32.mrb[0].mxu0
      %1695 = vmatprep.mubr.bf16.mxu0 0
      %1696 = vmatmul.mubr.bf16.gmra.mrb[0].mxu0 %v1168
      %v1697 = vpop.f32.mrb[0].mxu0
      %v1698 = vadd.f32 %v439, %v1697
      %v1699 = vpop.f32.mrb[0].mxu0
      %v1700 = vpop.f32.mrb[0].mxu0
      %v1701 = vadd.f32 %v439, %v1700
      %v1702 = vpop.f32.mrb[0].mxu0
      %1703 = vmatprep.mubr.bf16.mxu0 0
      %1704 = vmatmul.mubr.bf16.gmra.mrb[0].mxu0 %v1171
      %v1705 = vpop.f32.mrb[0].mxu0
      %v1706 = vadd.f32 %v439, %v1705
      %v1707 = vpop.f32.mrb[0].mxu0
      %v1708 = vpop.f32.mrb[0].mxu0
      %v1709 = vadd.f32 %v439, %v1708
      %v1710 = vpop.f32.mrb[0].mxu0
      %1711 = vmatprep.mubr.bf16.mxu0 0
      %1712 = vmatmul.mubr.bf16.gmra.mrb[0].mxu0 %v1174
      %v1713 = vpop.f32.mrb[0].mxu0
      %v1714 = vadd.f32 %v439, %v1713
      %v1715 = vpop.f32.mrb[0].mxu0
      %v1716 = vpop.f32.mrb[0].mxu0
      %v1717 = vadd.f32 %v439, %v1716
      %v1718 = vpop.f32.mrb[0].mxu0
      %1719 = vmatprep.mubr.bf16.mxu0 0
      %1720 = vmatmul.mubr.bf16.gmra.mrb[0].mxu0 %v1177
      %v1721 = vpop.f32.mrb[0].mxu0
      %v1722 = vadd.f32 %v439, %v1721
      %v1723 = vpop.f32.mrb[0].mxu0
      %v1724 = vpop.f32.mrb[0].mxu0
      %v1725 = vadd.f32 %v439, %v1724
      %v1726 = vpop.f32.mrb[0].mxu0
      %1727 = vmatprep.mubr.bf16.mxu0 0
      %1728 = vmatmul.mubr.bf16.gmra.mrb[0].mxu0 %v1180
      %v1729 = vpop.f32.mrb[0].mxu0
      %v1730 = vadd.f32 %v439, %v1729
      %v1731 = vpop.f32.mrb[0].mxu0
      %v1732 = vpop.f32.mrb[0].mxu0
      %v1733 = vadd.f32 %v439, %v1732
      %v1734 = vpop.f32.mrb[0].mxu0
      %1735 = vmatprep.mubr.bf16.mxu0 0
      %1736 = vmatmul.mubr.bf16.gmra.mrb[0].mxu0 %v1183
      %v1737 = vpop.f32.mrb[0].mxu0
      %v1738 = vadd.f32 %v439, %v1737
      %v1739 = vpop.f32.mrb[0].mxu0
      %v1740 = vpop.f32.mrb[0].mxu0
      %v1741 = vadd.f32 %v439, %v1740
      %v1742 = vpop.f32.mrb[0].mxu0
      %1743 = vmatprep.mubr.bf16.mxu0 0
      %1744 = vmatmul.mubr.bf16.gmra.mrb[0].mxu0 %v1186
      %v1745 = vpop.f32.mrb[0].mxu0
      %v1746 = vadd.f32 %v439, %v1745
      %v1747 = vpop.f32.mrb[0].mxu0
      %v1748 = vpop.f32.mrb[0].mxu0
      %v1749 = vadd.f32 %v439, %v1748
      %v1750 = vpop.f32.mrb[0].mxu0
      %1751 = vmatprep.mubr.bf16.mxu0 0
      %1752 = vmatmul.mubr.bf16.gmra.mrb[0].mxu0 %v1189
      %v1753 = vpop.f32.mrb[0].mxu0
      %v1754 = vadd.f32 %v439, %v1753
      %v1755 = vpop.f32.mrb[0].mxu0
      %v1756 = vpop.f32.mrb[0].mxu0
      %v1757 = vadd.f32 %v439, %v1756
      %v1758 = vpop.f32.mrb[0].mxu0
      %1759 = vmatprep.mubr.bf16.mxu0 0
      %1760 = vmatmul.mubr.bf16.gmra.mrb[0].mxu0 %v1192
      %v1761 = vpop.f32.mrb[0].mxu0
      %v1762 = vadd.f32 %v439, %v1761
      %v1763 = vpop.f32.mrb[0].mxu0
      %v1764 = vpop.f32.mrb[0].mxu0
      %v1765 = vadd.f32 %v439, %v1764
      %v1766 = vpop.f32.mrb[0].mxu0
      %1767 = vmatprep.mubr.bf16.mxu0 0
      %1768 = vmatmul.mubr.bf16.gmra.mrb[0].mxu0 %v1195
      %v1769 = vpop.f32.mrb[0].mxu0
      %v1770 = vadd.f32 %v439, %v1769
      %v1771 = vpop.f32.mrb[0].mxu0
      %v1772 = vpop.f32.mrb[0].mxu0
      %v1773 = vadd.f32 %v439, %v1772
      %v1774 = vpop.f32.mrb[0].mxu0
      %1775 = vmatprep.mubr.bf16.mxu0 0
      %1776 = vmatmul.mubr.bf16.gmra.mrb[0].mxu0 %v1198
      %v1777 = vpop.f32.mrb[0].mxu0
      %v1778 = vadd.f32 %v439, %v1777
      %v1779 = vpop.f32.mrb[0].mxu0
      %v1780 = vpop.f32.mrb[0].mxu0
      %v1781 = vadd.f32 %v439, %v1780
      %v1782 = vpop.f32.mrb[0].mxu0
      %1783 = vmatprep.mubr.bf16.mxu0 0
      %1784 = vmatmul.mubr.bf16.gmra.mrb[0].mxu0 %v1201
      %v1785 = vpop.f32.mrb[0].mxu0
      %v1786 = vadd.f32 %v439, %v1785
      %v1787 = vpop.f32.mrb[0].mxu0
      %v1788 = vpop.f32.mrb[0].mxu0
      %v1789 = vadd.f32 %v439, %v1788
      %v1790 = vpop.f32.mrb[0].mxu0
      %1791 = vmatprep.mubr.bf16.mxu0 0
      %1792 = vmatmul.mubr.bf16.gmra.mrb[0].mxu0 %v1204
      %v1793 = vpop.f32.mrb[0].mxu0
      %v1794 = vadd.f32 %v439, %v1793
      %v1795 = vpop.f32.mrb[0].mxu0
      %v1796 = vpop.f32.mrb[0].mxu0
      %v1797 = vadd.f32 %v439, %v1796
      %v1798 = vpop.f32.mrb[0].mxu0
      %1799 = vmatprep.mubr.bf16.mxu0 0
      %1800 = vmatmul.mubr.bf16.gmra.mrb[0].mxu0 %v1207
      %v1801 = vpop.f32.mrb[0].mxu0
      %v1802 = vadd.f32 %v439, %v1801
      %v1803 = vpop.f32.mrb[0].mxu0
      %v1804 = vpop.f32.mrb[0].mxu0
      %v1805 = vadd.f32 %v439, %v1804
      %v1806 = vpop.f32.mrb[0].mxu0
      %1807 = vmatprep.mubr.bf16.mxu0 0
      %1808 = vmatmul.mubr.bf16.gmra.mrb[0].mxu0 %v1210
      %v1809 = vpop.f32.mrb[0].mxu0
      %v1810 = vadd.f32 %v439, %v1809
      %v1811 = vpop.f32.mrb[0].mxu0
      %v1812 = vpop.f32.mrb[0].mxu0
      %v1813 = vadd.f32 %v439, %v1812
      %v1814 = vpop.f32.mrb[0].mxu0
      %1815 = vmatprep.mubr.bf16.mxu0 0
      %1816 = vmatmul.mubr.bf16.gmra.mrb[0].mxu0 %v1213
      %v1817 = vpop.f32.mrb[0].mxu0
      %v1818 = vadd.f32 %v439, %v1817
      %v1819 = vpop.f32.mrb[0].mxu0
      %v1820 = vpop.f32.mrb[0].mxu0
      %v1821 = vadd.f32 %v439, %v1820
      %v1822 = vpop.f32.mrb[0].mxu0
      %1823 = vmatprep.mubr.bf16.mxu0 0
      %1824 = vmatmul.mubr.bf16.gmra.mrb[0].mxu0 %v1216
      %v1825 = vpop.f32.mrb[0].mxu0
      %v1826 = vadd.f32 %v439, %v1825
      %v1827 = vpop.f32.mrb[0].mxu0
      %v1828 = vpop.f32.mrb[0].mxu0
      %v1829 = vadd.f32 %v439, %v1828
      %v1830 = vpop.f32.mrb[0].mxu0
      %1831 = vmatprep.mubr.bf16.mxu0 0
      %1832 = vmatmul.mubr.bf16.gmra.mrb[0].mxu0 %v1219
      %v1833 = vpop.f32.mrb[0].mxu0
      %v1834 = vadd.f32 %v439, %v1833
      %v1835 = vpop.f32.mrb[0].mxu0
      %v1836 = vpop.f32.mrb[0].mxu0
      %v1837 = vadd.f32 %v439, %v1836
      %v1838 = vpop.f32.mrb[0].mxu0
      %1839 = vmatprep.mubr.bf16.mxu0 0
      %1840 = vmatmul.mubr.bf16.gmra.mrb[0].mxu0 %v1222
      %v1841 = vpop.f32.mrb[0].mxu0
      %v1842 = vadd.f32 %v439, %v1841
      %v1843 = vpop.f32.mrb[0].mxu0
      %v1844 = vpop.f32.mrb[0].mxu0
      %v1845 = vadd.f32 %v439, %v1844
      %v1846 = vpop.f32.mrb[0].mxu0
      %1847 = vmatprep.mubr.bf16.mxu0 0
      %1848 = vmatmul.mubr.bf16.gmra.mrb[0].mxu0 %v1225
      %v1849 = vpop.f32.mrb[0].mxu0
      %v1850 = vadd.f32 %v439, %v1849
      %v1851 = vpop.f32.mrb[0].mxu0
      %v1852 = vpop.f32.mrb[0].mxu0
      %v1853 = vadd.f32 %v439, %v1852
      %v1854 = vpop.f32.mrb[0].mxu0
      %1855 = vmatprep.mubr.bf16.mxu0 0
      %1856 = vmatmul.mubr.bf16.gmra.mrb[0].mxu0 %v1228
      %v1857 = vpop.f32.mrb[0].mxu0
      %v1858 = vadd.f32 %v439, %v1857
      %v1859 = vpop.f32.mrb[0].mxu0
      %v1860 = vpop.f32.mrb[0].mxu0
      %v1861 = vadd.f32 %v439, %v1860
      %v1862 = vpop.f32.mrb[0].mxu0
      %1863 = vmatprep.mubr.bf16.mxu0 0
      %1864 = vmatmul.mubr.bf16.gmra.mrb[0].mxu0 %v1231
      %v1865 = vpop.f32.mrb[0].mxu0
      %v1866 = vadd.f32 %v439, %v1865
      %v1867 = vpop.f32.mrb[0].mxu0
      %v1868 = vpop.f32.mrb[0].mxu0
      %v1869 = vadd.f32 %v439, %v1868
      %v1870 = vpop.f32.mrb[0].mxu0
      %1871 = vmatprep.mubr.bf16.mxu0 0
      %1872 = vmatmul.mubr.bf16.gmra.mrb[0].mxu0 %v1234
      %v1873 = vpop.f32.mrb[0].mxu0
      %v1874 = vadd.f32 %v439, %v1873
      %v1875 = vpop.f32.mrb[0].mxu0
      %v1876 = vpop.f32.mrb[0].mxu0
      %v1877 = vadd.f32 %v439, %v1876
      %v1878 = vpop.f32.mrb[0].mxu0
      %1879 = vmatprep.mubr.bf16.mxu0 0
      %1880 = vmatmul.mubr.bf16.gmra.mrb[0].mxu0 %v1237
      %v1881 = vpop.f32.mrb[0].mxu0
      %v1882 = vadd.f32 %v439, %v1881
      %v1883 = vpop.f32.mrb[0].mxu0
      %v1884 = vpop.f32.mrb[0].mxu0
      %v1885 = vadd.f32 %v439, %v1884
      %v1886 = vpop.f32.mrb[0].mxu0
      %1887 = vmatprep.mubr.bf16.mxu0 0
      %1888 = vmatmul.mubr.bf16.gmra.mrb[0].mxu0 %v1240
      %v1889 = vpop.f32.mrb[0].mxu0
      %v1890 = vadd.f32 %v439, %v1889
      %v1891 = vpop.f32.mrb[0].mxu0
      %v1892 = vpop.f32.mrb[0].mxu0
      %v1893 = vadd.f32 %v439, %v1892
      %v1894 = vpop.f32.mrb[0].mxu0
      %1895 = vmatprep.mubr.bf16.mxu0 0
      %1896 = vmatmul.mubr.bf16.gmra.mrb[0].mxu0 %v1243
      %v1897 = vpop.f32.mrb[0].mxu0
      %v1898 = vadd.f32 %v439, %v1897
      %v1899 = vpop.f32.mrb[0].mxu0
      %v1900 = vpop.f32.mrb[0].mxu0
      %v1901 = vadd.f32 %v439, %v1900
      %v1902 = vpop.f32.mrb[0].mxu0
      %1903 = vmatprep.mubr.bf16.mxu0 0
      %1904 = vmatmul.mubr.bf16.gmra.mrb[0].mxu0 %v1246
      %v1905 = vpop.f32.mrb[0].mxu0
      %v1906 = vadd.f32 %v439, %v1905
      %v1907 = vpop.f32.mrb[0].mxu0
      %v1908 = vpop.f32.mrb[0].mxu0
      %v1909 = vadd.f32 %v439, %v1908
      %v1910 = vpop.f32.mrb[0].mxu0
      %1911 = vmatprep.mubr.bf16.mxu0 0
      %1912 = vmatmul.mubr.bf16.gmra.mrb[0].mxu0 %v1249
      %v1913 = vpop.f32.mrb[0].mxu0
      %v1914 = vadd.f32 %v439, %v1913
      %v1915 = vpop.f32.mrb[0].mxu0
      %v1916 = vpop.f32.mrb[0].mxu0
      %v1917 = vadd.f32 %v439, %v1916
      %v1918 = vpop.f32.mrb[0].mxu0
      %1919 = vmatprep.mubr.bf16.mxu0 0
      %1920 = vmatmul.mubr.bf16.gmra.mrb[0].mxu0 %v1252
      %v1921 = vpop.f32.mrb[0].mxu0
      %v1922 = vadd.f32 %v439, %v1921
      %v1923 = vpop.f32.mrb[0].mxu0
      %v1924 = vpop.f32.mrb[0].mxu0
      %v1925 = vadd.f32 %v439, %v1924
      %v1926 = vpop.f32.mrb[0].mxu0
      %1927 = vmatprep.mubr.bf16.mxu0 0
      %1928 = vmatmul.mubr.bf16.gmra.mrb[0].mxu0 %v1255
      %v1929 = vpop.f32.mrb[0].mxu0
      %v1930 = vadd.f32 %v439, %v1929
      %v1931 = vpop.f32.mrb[0].mxu0
      %v1932 = vpop.f32.mrb[0].mxu0
      %v1933 = vadd.f32 %v439, %v1932
      %v1934 = vpop.f32.mrb[0].mxu0
      %1935 = vmatprep.mubr.bf16.mxu0 0
      %1936 = vmatmul.mubr.bf16.gmra.mrb[0].mxu0 %v1258
      %v1937 = vpop.f32.mrb[0].mxu0
      %v1938 = vadd.f32 %v439, %v1937
      %v1939 = vpop.f32.mrb[0].mxu0
      %v1940 = vpop.f32.mrb[0].mxu0
      %v1941 = vadd.f32 %v439, %v1940
      %v1942 = vpop.f32.mrb[0].mxu0
      %1943 = vmatprep.mubr.bf16.mxu0 0
      %1944 = vmatmul.mubr.bf16.gmra.mrb[0].mxu0 %v1261
      %v1945 = vpop.f32.mrb[0].mxu0
      %v1946 = vadd.f32 %v439, %v1945
      %v1947 = vpop.f32.mrb[0].mxu0
      %v1948 = vpop.f32.mrb[0].mxu0
      %v1949 = vadd.f32 %v439, %v1948
      %v1950 = vpop.f32.mrb[0].mxu0
      %1951 = vmatprep.mubr.bf16.mxu0 0
      %1952 = vmatmul.mubr.bf16.gmra.mrb[0].mxu0 %v1264
      %v1953 = vpop.f32.mrb[0].mxu0
      %v1954 = vadd.f32 %v439, %v1953
      %v1955 = vpop.f32.mrb[0].mxu0
      %v1956 = vpop.f32.mrb[0].mxu0
      %v1957 = vadd.f32 %v439, %v1956
      %v1958 = vpop.f32.mrb[0].mxu0
      %1959 = vmatprep.mubr.bf16.mxu0 0
      %1960 = vmatmul.mubr.bf16.gmra.mrb[0].mxu0 %v1267
      %v1961 = vpop.f32.mrb[0].mxu0
      %v1962 = vadd.f32 %v439, %v1961
      %v1963 = vpop.f32.mrb[0].mxu0
      %v1964 = vpop.f32.mrb[0].mxu0
      %v1965 = vadd.f32 %v439, %v1964
      %v1966 = vpop.f32.mrb[0].mxu0
      %1967 = vmatprep.mubr.bf16.mxu0 0
      %1968 = vmatmul.mubr.bf16.gmra.mrb[0].mxu0 %v1270
      %v1969 = vpop.f32.mrb[0].mxu0
      %v1970 = vadd.f32 %v439, %v1969
      %v1971 = vpop.f32.mrb[0].mxu0
      %v1972 = vpop.f32.mrb[0].mxu0
      %v1973 = vadd.f32 %v439, %v1972
      %v1974 = vpop.f32.mrb[0].mxu0
      %1975 = vmatprep.mubr.bf16.mxu0 0
      %1976 = vmatmul.mubr.bf16.gmra.mrb[0].mxu0 %v1273
      %v1977 = vpop.f32.mrb[0].mxu0
      %v1978 = vadd.f32 %v439, %v1977
      %v1979 = vpop.f32.mrb[0].mxu0
      %v1980 = vpop.f32.mrb[0].mxu0
      %v1981 = vadd.f32 %v439, %v1980
      %v1982 = vpop.f32.mrb[0].mxu0
      %1983 = vmatprep.mubr.bf16.mxu0 0
      %1984 = vmatmul.mubr.bf16.gmra.mrb[0].mxu0 %v1276
      %v1985 = vpop.f32.mrb[0].mxu0
      %v1986 = vadd.f32 %v439, %v1985
      %v1987 = vpop.f32.mrb[0].mxu0
      %v1988 = vpop.f32.mrb[0].mxu0
      %v1989 = vadd.f32 %v439, %v1988
      %v1990 = vpop.f32.mrb[0].mxu0
      %1991 = vmatprep.mubr.bf16.mxu0 0
      %1992 = vmatmul.mubr.bf16.gmra.mrb[0].mxu0 %v1279
      %v1993 = vpop.f32.mrb[0].mxu0
      %v1994 = vadd.f32 %v439, %v1993
      %v1995 = vpop.f32.mrb[0].mxu0
      %v1996 = vpop.f32.mrb[0].mxu0
      %v1997 = vadd.f32 %v439, %v1996
      %v1998 = vpop.f32.mrb[0].mxu0
      %1999 = vmatprep.mubr.bf16.mxu0 0
      %2000 = vmatmul.mubr.bf16.gmra.mrb[0].mxu0 %v1282
      %v2001 = vpop.f32.mrb[0].mxu0
      %v2002 = vadd.f32 %v439, %v2001
      %v2003 = vpop.f32.mrb[0].mxu0
      %v2004 = vpop.f32.mrb[0].mxu0
      %v2005 = vadd.f32 %v439, %v2004
      %v2006 = vpop.f32.mrb[0].mxu0
      %2007 = vmatprep.mubr.bf16.mxu0 0
      %2008 = vmatmul.mubr.bf16.gmra.mrb[0].mxu0 %v1285
      %v2009 = vpop.f32.mrb[0].mxu0
      %v2010 = vadd.f32 %v439, %v2009
      %v2011 = vpop.f32.mrb[0].mxu0
      %v2012 = vpop.f32.mrb[0].mxu0
      %v2013 = vadd.f32 %v439, %v2012
      %v2014 = vpop.f32.mrb[0].mxu0
      %2015 = vmatprep.mubr.bf16.mxu0 0
      %2016 = vmatmul.mubr.bf16.gmra.mrb[0].mxu0 %v1288
      %v2017 = vpop.f32.mrb[0].mxu0
      %v2018 = vadd.f32 %v439, %v2017
      %v2019 = vpop.f32.mrb[0].mxu0
      %v2020 = vpop.f32.mrb[0].mxu0
      %v2021 = vadd.f32 %v439, %v2020
      %v2022 = vpop.f32.mrb[0].mxu0
      %2023 = vmatprep.mubr.bf16.mxu0 0
      %2024 = vmatmul.mubr.bf16.gmra.mrb[0].mxu0 %v1291
      %v2025 = vpop.f32.mrb[0].mxu0
      %v2026 = vadd.f32 %v439, %v2025
      %v2027 = vpop.f32.mrb[0].mxu0
      %v2028 = vpop.f32.mrb[0].mxu0
      %v2029 = vadd.f32 %v439, %v2028
      %v2030 = vpop.f32.mrb[0].mxu0
      %2031 = vmatprep.mubr.bf16.mxu0 0
      %2032 = vmatmul.mubr.bf16.gmra.mrb[0].mxu0 %v1294
      %v2033 = vpop.f32.mrb[0].mxu0
      %v2034 = vadd.f32 %v439, %v2033
      %v2035 = vpop.f32.mrb[0].mxu0
      %v2036 = vpop.f32.mrb[0].mxu0
      %v2037 = vadd.f32 %v439, %v2036
      %v2038 = vpop.f32.mrb[0].mxu0
      %2039 = vmatprep.mubr.bf16.mxu0 0
      %2040 = vmatmul.mubr.bf16.gmra.mrb[0].mxu0 %v1297
      %v2041 = vpop.f32.mrb[0].mxu0
      %v2042 = vadd.f32 %v439, %v2041
      %v2043 = vpop.f32.mrb[0].mxu0
      %v2044 = vpop.f32.mrb[0].mxu0
      %v2045 = vadd.f32 %v439, %v2044
      %v2046 = vpop.f32.mrb[0].mxu0
      %2047 = vmatprep.mubr.bf16.mxu0 0
      %2048 = vmatmul.mubr.bf16.gmra.mrb[0].mxu0 %v1300
      %v2049 = vpop.f32.mrb[0].mxu0
      %v2050 = vadd.f32 %v439, %v2049
      %v2051 = vpop.f32.mrb[0].mxu0
      %v2052 = vpop.f32.mrb[0].mxu0
      %v2053 = vadd.f32 %v439, %v2052
      %v2054 = vpop.f32.mrb[0].mxu0
      %2055 = vmatprep.mubr.bf16.mxu0 0
      %2056 = vmatmul.mubr.bf16.gmra.mrb[0].mxu0 %v1303
      %v2057 = vpop.f32.mrb[0].mxu0
      %v2058 = vadd.f32 %v439, %v2057
      %v2059 = vpop.f32.mrb[0].mxu0
      %v2060 = vpop.f32.mrb[0].mxu0
      %v2061 = vadd.f32 %v439, %v2060
      %v2062 = vpop.f32.mrb[0].mxu0
      %2063 = vmatprep.mubr.bf16.mxu0 0
      %2064 = vmatmul.mubr.bf16.gmra.mrb[0].mxu0 %v1306
      %v2065 = vpop.f32.mrb[0].mxu0
      %v2066 = vadd.f32 %v439, %v2065
      %v2067 = vpop.f32.mrb[0].mxu0
      %v2068 = vpop.f32.mrb[0].mxu0
      %v2069 = vadd.f32 %v439, %v2068
      %v2070 = vpop.f32.mrb[0].mxu0
      %2071 = vmatprep.mubr.bf16.mxu0 0
      %2072 = vmatmul.mubr.bf16.gmra.mrb[0].mxu0 %v1309
      %v2073 = vpop.f32.mrb[0].mxu0
      %v2074 = vadd.f32 %v439, %v2073
      %v2075 = vpop.f32.mrb[0].mxu0
      %v2076 = vpop.f32.mrb[0].mxu0
      %v2077 = vadd.f32 %v439, %v2076
      %v2078 = vpop.f32.mrb[0].mxu0
      %2079 = vmatprep.mubr.bf16.mxu0 0
      %2080 = vmatmul.mubr.bf16.gmra.mrb[0].mxu0 %v1312
      %v2081 = vpop.f32.mrb[0].mxu0
      %v2082 = vadd.f32 %v439, %v2081
      %v2083 = vpop.f32.mrb[0].mxu0
      %v2084 = vpop.f32.mrb[0].mxu0
      %v2085 = vadd.f32 %v439, %v2084
      %v2086 = vpop.f32.mrb[0].mxu0
      %2087 = vmatprep.mubr.bf16.mxu0 0
      %2088 = vmatmul.mubr.bf16.gmra.mrb[0].mxu0 %v1315
      %v2089 = vpop.f32.mrb[0].mxu0
      %v2090 = vadd.f32 %v439, %v2089
      %v2091 = vpop.f32.mrb[0].mxu0
      %v2092 = vpop.f32.mrb[0].mxu0
      %v2093 = vadd.f32 %v439, %v2092
      %v2094 = vpop.f32.mrb[0].mxu0
      %2095 = vmatprep.mubr.bf16.mxu0 0
      %2096 = vmatmul.mubr.bf16.gmra.mrb[0].mxu0 %v1318
      %v2097 = vpop.f32.mrb[0].mxu0
      %v2098 = vadd.f32 %v439, %v2097
      %v2099 = vpop.f32.mrb[0].mxu0
      %v2100 = vpop.f32.mrb[0].mxu0
      %v2101 = vadd.f32 %v439, %v2100
      %v2102 = vpop.f32.mrb[0].mxu0
      %2103 = vmatprep.mubr.bf16.mxu0 0
      %2104 = vmatmul.mubr.bf16.gmra.mrb[0].mxu0 %v1321
      %v2105 = vpop.f32.mrb[0].mxu0
      %v2106 = vadd.f32 %v439, %v2105
      %v2107 = vpop.f32.mrb[0].mxu0
      %v2108 = vpop.f32.mrb[0].mxu0
      %v2109 = vadd.f32 %v439, %v2108
      %v2110 = vpop.f32.mrb[0].mxu0
      %2111 = vmatprep.mubr.bf16.mxu0 0
      %2112 = vmatmul.mubr.bf16.gmra.mrb[0].mxu0 %v1324
      %v2113 = vpop.f32.mrb[0].mxu0
      %v2114 = vadd.f32 %v439, %v2113
      %v2115 = vpop.f32.mrb[0].mxu0
      %v2116 = vpop.f32.mrb[0].mxu0
      %v2117 = vadd.f32 %v439, %v2116
      %v2118 = vpop.f32.mrb[0].mxu0
      %2119 = vmatprep.mubr.bf16.mxu0 0
      %2120 = vmatmul.mubr.bf16.gmra.mrb[0].mxu0 %v1327
      %v2121 = vpop.f32.mrb[0].mxu0
      %v2122 = vadd.f32 %v439, %v2121
      %v2123 = vpop.f32.mrb[0].mxu0
      %v2124 = vpop.f32.mrb[0].mxu0
      %v2125 = vadd.f32 %v439, %v2124
      %v2126 = vpop.f32.mrb[0].mxu0
      %2127 = vmatprep.mubr.bf16.mxu0 0
      %2128 = vmatmul.mubr.bf16.gmra.mrb[0].mxu0 %v1330
      %v2129 = vpop.f32.mrb[0].mxu0
      %v2130 = vadd.f32 %v439, %v2129
      %v2131 = vpop.f32.mrb[0].mxu0
      %v2132 = vpop.f32.mrb[0].mxu0
      %v2133 = vadd.f32 %v439, %v2132
      %v2134 = vpop.f32.mrb[0].mxu0
      %2135 = vmatprep.mubr.bf16.mxu0 0
      %2136 = vmatmul.mubr.bf16.gmra.mrb[0].mxu0 %v1333
      %v2137 = vpop.f32.mrb[0].mxu0
      %v2138 = vadd.f32 %v439, %v2137
      %v2139 = vpop.f32.mrb[0].mxu0
      %v2140 = vpop.f32.mrb[0].mxu0
      %v2141 = vadd.f32 %v439, %v2140
      %v2142 = vpop.f32.mrb[0].mxu0
      %2143 = vmatprep.mubr.bf16.mxu0 0
      %2144 = vmatmul.mubr.bf16.gmra.mrb[0].mxu0 %v1336
      %v2145 = vpop.f32.mrb[0].mxu0
      %v2146 = vadd.f32 %v439, %v2145
      %v2147 = vpop.f32.mrb[0].mxu0
      %v2148 = vpop.f32.mrb[0].mxu0
      %v2149 = vadd.f32 %v439, %v2148
      %v2150 = vpop.f32.mrb[0].mxu0
      %2151 = vmatprep.mubr.bf16.mxu0 0
      %2152 = vmatmul.mubr.bf16.gmra.mrb[0].mxu0 %v1339
      %v2153 = vpop.f32.mrb[0].mxu0
      %v2154 = vadd.f32 %v439, %v2153
      %v2155 = vpop.f32.mrb[0].mxu0
      %v2156 = vpop.f32.mrb[0].mxu0
      %v2157 = vadd.f32 %v439, %v2156
      %v2158 = vpop.f32.mrb[0].mxu0
      %2159 = vmatprep.mubr.bf16.mxu0 0
      %2160 = vmatmul.mubr.bf16.gmra.mrb[0].mxu0 %v1342
      %v2161 = vpop.f32.mrb[0].mxu0
      %v2162 = vadd.f32 %v439, %v2161
      %v2163 = vpop.f32.mrb[0].mxu0
      %v2164 = vpop.f32.mrb[0].mxu0
      %v2165 = vadd.f32 %v439, %v2164
      %v2166 = vpop.f32.mrb[0].mxu0
      %2167 = vmatprep.mubr.bf16.mxu0 0
      %2168 = vmatmul.mubr.bf16.gmra.mrb[0].mxu0 %v1345
      %v2169 = vpop.f32.mrb[0].mxu0
      %v2170 = vadd.f32 %v439, %v2169
      %v2171 = vpop.f32.mrb[0].mxu0
      %v2172 = vpop.f32.mrb[0].mxu0
      %v2173 = vadd.f32 %v439, %v2172
      %v2174 = vpop.f32.mrb[0].mxu0
      %2175 = vmatprep.mubr.bf16.mxu0 0
      %2176 = vmatmul.mubr.bf16.gmra.mrb[0].mxu0 %v1348
      %v2177 = vpop.f32.mrb[0].mxu0
      %v2178 = vadd.f32 %v439, %v2177
      %v2179 = vpop.f32.mrb[0].mxu0
      %v2180 = vpop.f32.mrb[0].mxu0
      %v2181 = vadd.f32 %v439, %v2180
      %v2182 = vpop.f32.mrb[0].mxu0
      %2183 = vmatprep.mubr.bf16.mxu0 0
      %2184 = vmatmul.mubr.bf16.gmra.mrb[0].mxu0 %v1351
      %v2185 = vpop.f32.mrb[0].mxu0
      %v2186 = vadd.f32 %v439, %v2185
      %v2187 = vpop.f32.mrb[0].mxu0
      %v2188 = vpop.f32.mrb[0].mxu0
      %v2189 = vadd.f32 %v439, %v2188
      %v2190 = vpop.f32.mrb[0].mxu0
      %2191 = vmatprep.mubr.bf16.mxu0 0
      %2192 = vmatmul.mubr.bf16.gmra.mrb[0].mxu0 %v1354
      %v2193 = vpop.f32.mrb[0].mxu0
      %v2194 = vadd.f32 %v439, %v2193
      %v2195 = vpop.f32.mrb[0].mxu0
      %v2196 = vpop.f32.mrb[0].mxu0
      %v2197 = vadd.f32 %v439, %v2196
      %v2198 = vpop.f32.mrb[0].mxu0
      %2199 = vmatprep.mubr.bf16.mxu0 0
      %2200 = vmatmul.mubr.bf16.gmra.mrb[0].mxu0 %v1357
      %v2201 = vpop.f32.mrb[0].mxu0
      %v2202 = vadd.f32 %v439, %v2201
      %v2203 = vpop.f32.mrb[0].mxu0
      %v2204 = vpop.f32.mrb[0].mxu0
      %v2205 = vadd.f32 %v439, %v2204
      %v2206 = vpop.f32.mrb[0].mxu0
      %2207 = vmatprep.mubr.bf16.mxu0 0
      %2208 = vmatmul.mubr.bf16.gmra.mrb[0].mxu0 %v1360
      %v2209 = vpop.f32.mrb[0].mxu0
      %v2210 = vadd.f32 %v439, %v2209
      %v2211 = vpop.f32.mrb[0].mxu0
      %v2212 = vpop.f32.mrb[0].mxu0
      %v2213 = vadd.f32 %v439, %v2212
      %v2214 = vpop.f32.mrb[0].mxu0
      %2215 = vmatprep.mubr.bf16.mxu0 0
      %2216 = vmatmul.mubr.bf16.gmra.mrb[0].mxu0 %v1363
      %v2217 = vpop.f32.mrb[0].mxu0
      %v2218 = vadd.f32 %v439, %v2217
      %v2219 = vpop.f32.mrb[0].mxu0
      %v2220 = vpop.f32.mrb[0].mxu0
      %v2221 = vadd.f32 %v439, %v2220
      %v2222 = vpop.f32.mrb[0].mxu0
      %2223 = vmatprep.mubr.bf16.mxu0 0
      %2224 = vmatmul.mubr.bf16.gmra.mrb[0].mxu0 %v1366
      %v2225 = vpop.f32.mrb[0].mxu0
      %v2226 = vadd.f32 %v439, %v2225
      %v2227 = vpop.f32.mrb[0].mxu0
      %v2228 = vpop.f32.mrb[0].mxu0
      %v2229 = vadd.f32 %v439, %v2228
      %v2230 = vpop.f32.mrb[0].mxu0
      %2231 = vmatprep.mubr.bf16.mxu0 0
      %2232 = vmatmul.mubr.bf16.gmra.mrb[0].mxu0 %v1369
      %v2233 = vpop.f32.mrb[0].mxu0
      %v2234 = vadd.f32 %v439, %v2233
      %v2235 = vpop.f32.mrb[0].mxu0
      %v2236 = vpop.f32.mrb[0].mxu0
      %v2237 = vadd.f32 %v439, %v2236
      %v2238 = vpop.f32.mrb[0].mxu0
      %2239 = vmatprep.mubr.bf16.mxu0 0
      %2240 = vmatmul.mubr.bf16.gmra.mrb[0].mxu0 %v1372
      %v2241 = vpop.f32.mrb[0].mxu0
      %v2242 = vadd.f32 %v439, %v2241
      %v2243 = vpop.f32.mrb[0].mxu0
      %v2244 = vpop.f32.mrb[0].mxu0
      %v2245 = vadd.f32 %v439, %v2244
      %v2246 = vpop.f32.mrb[0].mxu0
      %2247 = vmatprep.mubr.bf16.mxu0 0
      %2248 = vmatmul.mubr.bf16.gmra.mrb[0].mxu0 %v1375
      %v2249 = vpop.f32.mrb[0].mxu0
      %v2250 = vadd.f32 %v439, %v2249
      %v2251 = vpop.f32.mrb[0].mxu0
      %v2252 = vpop.f32.mrb[0].mxu0
      %v2253 = vadd.f32 %v439, %v2252
      %v2254 = vpop.f32.mrb[0].mxu0
      %2255 = vmatprep.mubr.bf16.mxu0 0
      %2256 = vmatmul.mubr.bf16.gmra.mrb[0].mxu0 %v1378
      %v2257 = vpop.f32.mrb[0].mxu0
      %v2258 = vadd.f32 %v439, %v2257
      %v2259 = vpop.f32.mrb[0].mxu0
      %v2260 = vpop.f32.mrb[0].mxu0
      %v2261 = vadd.f32 %v439, %v2260
      %v2262 = vpop.f32.mrb[0].mxu0
      %2263 = vmatprep.mubr.bf16.mxu0 0
      %2264 = vmatmul.mubr.bf16.gmra.mrb[0].mxu0 %v1381
      %v2265 = vpop.f32.mrb[0].mxu0
      %v2266 = vadd.f32 %v439, %v2265
      %v2267 = vpop.f32.mrb[0].mxu0
      %v2268 = vpop.f32.mrb[0].mxu0
      %v2269 = vadd.f32 %v439, %v2268
      %v2270 = vpop.f32.mrb[0].mxu0
      %2271 = vmatprep.mubr.bf16.mxu0 0
      %2272 = vmatmul.mubr.bf16.gmra.mrb[0].mxu0 %v1384
      %v2273 = vpop.f32.mrb[0].mxu0
      %v2274 = vadd.f32 %v439, %v2273
      %v2275 = vpop.f32.mrb[0].mxu0
      %v2276 = vpop.f32.mrb[0].mxu0
      %v2277 = vadd.f32 %v439, %v2276
      %v2278 = vpop.f32.mrb[0].mxu0
      %2279 = vmatprep.mubr.bf16.mxu0 0
      %2280 = vmatmul.mubr.bf16.gmra.mrb[0].mxu0 %v1387
      %v2281 = vpop.f32.mrb[0].mxu0
      %v2282 = vadd.f32 %v439, %v2281
      %v2283 = vpop.f32.mrb[0].mxu0
      %v2284 = vpop.f32.mrb[0].mxu0
      %v2285 = vadd.f32 %v439, %v2284
      %v2286 = vpop.f32.mrb[0].mxu0
      %2287 = vmatprep.mubr.bf16.mxu0 0
      %2288 = vmatmul.mubr.bf16.gmra.mrb[0].mxu0 %v1390
      %v2289 = vpop.f32.mrb[0].mxu0
      %v2290 = vadd.f32 %v439, %v2289
      %v2291 = vpop.f32.mrb[0].mxu0
      %v2292 = vpop.f32.mrb[0].mxu0
      %v2293 = vadd.f32 %v439, %v2292
      %v2294 = vpop.f32.mrb[0].mxu0
      %2295 = vmatprep.mubr.bf16.mxu0 0
      %2296 = vmatmul.mubr.bf16.gmra.mrb[0].mxu0 %v1393
      %v2297 = vpop.f32.mrb[0].mxu0
      %v2298 = vadd.f32 %v439, %v2297
      %v2299 = vpop.f32.mrb[0].mxu0
      %v2300 = vpop.f32.mrb[0].mxu0
      %v2301 = vadd.f32 %v439, %v2300
      %v2302 = vpop.f32.mrb[0].mxu0
      %2303 = vmatprep.mubr.bf16.mxu0 0
      %2304 = vmatmul.mubr.bf16.gmra.mrb[0].mxu0 %v1396
      %v2305 = vpop.f32.mrb[0].mxu0
      %v2306 = vadd.f32 %v439, %v2305
      %v2307 = vpop.f32.mrb[0].mxu0
      %v2308 = vpop.f32.mrb[0].mxu0
      %v2309 = vadd.f32 %v439, %v2308
      %v2310 = vpop.f32.mrb[0].mxu0
      %2311 = vmatprep.mubr.bf16.mxu0 0
      %2312 = vmatmul.mubr.bf16.gmra.mrb[0].mxu0 %v1399
      %v2313 = vpop.f32.mrb[0].mxu0
      %v2314 = vadd.f32 %v439, %v2313
      %v2315 = vpop.f32.mrb[0].mxu0
      %v2316 = vpop.f32.mrb[0].mxu0
      %v2317 = vadd.f32 %v439, %v2316
      %v2318 = vpop.f32.mrb[0].mxu0
      %2319 = vmatprep.mubr.bf16.mxu0 0
      %2320 = vmatmul.mubr.bf16.gmra.mrb[0].mxu0 %v1402
      %v2321 = vpop.f32.mrb[0].mxu0
      %v2322 = vadd.f32 %v439, %v2321
      %v2323 = vpop.f32.mrb[0].mxu0
      %v2324 = vpop.f32.mrb[0].mxu0
      %v2325 = vadd.f32 %v439, %v2324
      %v2326 = vpop.f32.mrb[0].mxu0
      %2327 = vmatprep.mubr.bf16.mxu0 0
      %2328 = vmatmul.mubr.bf16.gmra.mrb[0].mxu0 %v1405
      %v2329 = vpop.f32.mrb[0].mxu0
      %v2330 = vadd.f32 %v439, %v2329
      %v2331 = vpop.f32.mrb[0].mxu0
      %v2332 = vpop.f32.mrb[0].mxu0
      %v2333 = vadd.f32 %v439, %v2332
      %v2334 = vpop.f32.mrb[0].mxu0
      %2335 = vmatprep.mubr.bf16.mxu0 0
      %2336 = vmatmul.mubr.bf16.gmra.mrb[0].mxu0 %v1408
      %v2337 = vpop.f32.mrb[0].mxu0
      %v2338 = vadd.f32 %v439, %v2337
      %v2339 = vpop.f32.mrb[0].mxu0
      %v2340 = vpop.f32.mrb[0].mxu0
      %v2341 = vadd.f32 %v439, %v2340
      %v2342 = vpop.f32.mrb[0].mxu0
      %2343 = vmatprep.mubr.bf16.mxu0 0
      %2344 = vmatmul.mubr.bf16.gmra.mrb[0].mxu0 %v1411
      %v2345 = vpop.f32.mrb[0].mxu0
      %v2346 = vadd.f32 %v439, %v2345
      %v2347 = vpop.f32.mrb[0].mxu0
      %v2348 = vpop.f32.mrb[0].mxu0
      %v2349 = vadd.f32 %v439, %v2348
      %v2350 = vpop.f32.mrb[0].mxu0
      %2351 = vmatprep.mubr.bf16.mxu0 0
      %2352 = vmatmul.mubr.bf16.gmra.mrb[0].mxu0 %v1414
      %v2353 = vpop.f32.mrb[0].mxu0
      %v2354 = vadd.f32 %v439, %v2353
      %v2355 = vpop.f32.mrb[0].mxu0
      %v2356 = vpop.f32.mrb[0].mxu0
      %v2357 = vadd.f32 %v439, %v2356
      %v2358 = vpop.f32.mrb[0].mxu0
      %2359 = vmatprep.mubr.bf16.mxu0 0
      %2360 = vmatmul.mubr.bf16.gmra.mrb[0].mxu0 %v1417
      %v2361 = vpop.f32.mrb[0].mxu0
      %v2362 = vadd.f32 %v439, %v2361
      %v2363 = vpop.f32.mrb[0].mxu0
      %v2364 = vpop.f32.mrb[0].mxu0
      %v2365 = vadd.f32 %v439, %v2364
      %v2366 = vpop.f32.mrb[0].mxu0
      %2367 = vmatprep.mubr.bf16.mxu0 0
      %2368 = vmatmul.mubr.bf16.gmra.mrb[0].mxu0 %v1420
      %v2369 = vpop.f32.mrb[0].mxu0
      %v2370 = vadd.f32 %v439, %v2369
      %v2371 = vpop.f32.mrb[0].mxu0
      %v2372 = vpop.f32.mrb[0].mxu0
      %v2373 = vadd.f32 %v439, %v2372
      %v2374 = vpop.f32.mrb[0].mxu0
      %2375 = vmatprep.mubr.bf16.mxu0 0
      %2376 = vmatmul.mubr.bf16.gmra.mrb[0].mxu0 %v1423
      %v2377 = vpop.f32.mrb[0].mxu0
      %v2378 = vadd.f32 %v439, %v2377
      %v2379 = vpop.f32.mrb[0].mxu0
      %v2380 = vpop.f32.mrb[0].mxu0
      %v2381 = vadd.f32 %v439, %v2380
      %v2382 = vpop.f32.mrb[0].mxu0
      %2383 = vmatprep.mubr.bf16.mxu0 0
      %2384 = vmatmul.mubr.bf16.gmra.mrb[0].mxu0 %v1426
      %v2385 = vpop.f32.mrb[0].mxu0
      %v2386 = vadd.f32 %v439, %v2385
      %v2387 = vpop.f32.mrb[0].mxu0
      %v2388 = vpop.f32.mrb[0].mxu0
      %v2389 = vadd.f32 %v439, %v2388
      %v2390 = vpop.f32.mrb[0].mxu0
      %2391 = vmatprep.mubr.bf16.mxu0 0
      %2392 = vmatmul.mubr.bf16.gmra.mrb[0].mxu0 %v1429
      %v2393 = vpop.f32.mrb[0].mxu0
      %v2394 = vadd.f32 %v439, %v2393
      %v2395 = vpop.f32.mrb[0].mxu0
      %v2396 = vpop.f32.mrb[0].mxu0
      %v2397 = vadd.f32 %v439, %v2396
      %v2398 = vpop.f32.mrb[0].mxu0
      %2399 = vmatprep.mubr.bf16.mxu0 0
      %2400 = vmatmul.mubr.bf16.gmra.mrb[0].mxu0 %v1432
      %v2401 = vpop.f32.mrb[0].mxu0
      %v2402 = vadd.f32 %v439, %v2401
      %v2403 = vpop.f32.mrb[0].mxu0
      %v2404 = vpop.f32.mrb[0].mxu0
      %v2405 = vadd.f32 %v439, %v2404
      %v2406 = vpop.f32.mrb[0].mxu0
      %2407 = vmatprep.mubr.bf16.mxu0 0
      %2408 = vmatmul.mubr.bf16.gmra.mrb[0].mxu0 %v1435
      %v2409 = vpop.f32.mrb[0].mxu0
      %v2410 = vadd.f32 %v439, %v2409
      %v2411 = vpop.f32.mrb[0].mxu0
      %v2412 = vpop.f32.mrb[0].mxu0
      %v2413 = vadd.f32 %v439, %v2412
      %v2414 = vpop.f32.mrb[0].mxu0
      %2415 = vmatprep.mubr.bf16.mxu0 0
      %2416 = vmatmul.mubr.bf16.gmra.mrb[0].mxu0 %v1438
      %v2417 = vpop.f32.mrb[0].mxu0
      %v2418 = vadd.f32 %v439, %v2417
      %v2419 = vpop.f32.mrb[0].mxu0
      %v2420 = vpop.f32.mrb[0].mxu0
      %v2421 = vadd.f32 %v439, %v2420
      %v2422 = vpop.f32.mrb[0].mxu0
      %2423 = vmatprep.mubr.bf16.mxu0 0
      %2424 = vmatmul.mubr.bf16.gmra.mrb[0].mxu0 %v1441
      %v2425 = vpop.f32.mrb[0].mxu0
      %v2426 = vadd.f32 %v439, %v2425
      %v2427 = vpop.f32.mrb[0].mxu0
      %v2428 = vpop.f32.mrb[0].mxu0
      %v2429 = vadd.f32 %v439, %v2428
      %v2430 = vpop.f32.mrb[0].mxu0
      %2431 = vmatprep.mubr.bf16.mxu0 0
      %2432 = vmatmul.mubr.bf16.gmra.mrb[0].mxu0 %v1444
      %v2433 = vpop.f32.mrb[0].mxu0
      %v2434 = vadd.f32 %v439, %v2433
      %v2435 = vpop.f32.mrb[0].mxu0
      %v2436 = vpop.f32.mrb[0].mxu0
      %v2437 = vadd.f32 %v439, %v2436
      %v2438 = vpop.f32.mrb[0].mxu0
      %2439 = vmatprep.mubr.bf16.mxu0 0
      %2440 = vmatmul.mubr.bf16.gmra.mrb[0].mxu0 %v1447
      %v2441 = vpop.f32.mrb[0].mxu0
      %v2442 = vadd.f32 %v439, %v2441
      %v2443 = vpop.f32.mrb[0].mxu0
      %v2444 = vpop.f32.mrb[0].mxu0
      %v2445 = vadd.f32 %v439, %v2444
      %v2446 = vpop.f32.mrb[0].mxu0
      %2447 = vmatprep.mubr.bf16.mxu0 0
      %2448 = vmatmul.mubr.bf16.gmra.mrb[0].mxu0 %v1450
      %v2449 = vpop.f32.mrb[0].mxu0
      %v2450 = vadd.f32 %v439, %v2449
      %v2451 = vpop.f32.mrb[0].mxu0
      %v2452 = vpop.f32.mrb[0].mxu0
      %v2453 = vadd.f32 %v439, %v2452
      %v2454 = vpop.f32.mrb[0].mxu0
      %2455 = vmatprep.mubr.bf16.mxu0 0
      %2456 = vmatmul.mubr.bf16.gmra.mrb[0].mxu0 %v1453
      %v2457 = vpop.f32.mrb[0].mxu0
      %v2458 = vadd.f32 %v439, %v2457
      %v2459 = vpop.f32.mrb[0].mxu0
      %v2460 = vpop.f32.mrb[0].mxu0
      %v2461 = vadd.f32 %v439, %v2460
      %v2462 = vpop.f32.mrb[0].mxu0
      %2463 = vmatprep.mubr.bf16.mxu0 0
      %2464 = vmatmul.mubr.bf16.gmra.mrb[0].mxu0 %v1456
      %v2465 = vpop.f32.mrb[0].mxu0
      %v2466 = vadd.f32 %v439, %v2465
      %v2467 = vpop.f32.mrb[0].mxu0
      %v2468 = vpop.f32.mrb[0].mxu0
      %v2469 = vadd.f32 %v439, %v2468
      %v2470 = vpop.f32.mrb[0].mxu0
      %2471 = vmatprep.mubr.bf16.mxu0 0
      %2472 = vmatmul.mubr.bf16.gmra.mrb[0].mxu0 %v1459
      %v2473 = vpop.f32.mrb[0].mxu0
      %v2474 = vadd.f32 %v439, %v2473
      %v2475 = vpop.f32.mrb[0].mxu0
      %v2476 = vpop.f32.mrb[0].mxu0
      %v2477 = vadd.f32 %v439, %v2476
      %v2478 = vpop.f32.mrb[0].mxu0
      %2479 = vmatprep.mubr.bf16.mxu0 0
      %2480 = vmatmul.mubr.bf16.gmra.mrb[0].mxu0 %v1462
      %v2481 = vpop.f32.mrb[0].mxu0
      %v2482 = vadd.f32 %v439, %v2481
      %v2483 = vpop.f32.mrb[0].mxu0
      %v2484 = vpop.f32.mrb[0].mxu0
      %v2485 = vadd.f32 %v439, %v2484
      %v2486 = vpop.f32.mrb[0].mxu0
      %2487 = vmatprep.mubr.bf16.mxu0 0
      %2488 = vmatmul.mubr.bf16.gmra.mrb[0].mxu0 %v1465
      %v2489 = vpop.f32.mrb[0].mxu0
      %v2490 = vadd.f32 %v439, %v2489
      %v2491 = vpop.f32.mrb[0].mxu0
      %v2492 = vpop.f32.mrb[0].mxu0
      %v2493 = vadd.f32 %v439, %v2492
      %v2494 = vpop.f32.mrb[0].mxu0
      %2495 = vdwg.mxu0
      %v2496 = vmax.f32 %v1506, 0.0
      %v2497 = vmax.f32 %v1509, 0.0
      %v2498 = vmax.f32 %v1514, 0.0
      %v2499 = vmax.f32 %v1517, 0.0
      %v2500 = vmax.f32 %v1522, 0.0
      %v2501 = vmax.f32 %v1525, 0.0
      %v2502 = vmax.f32 %v1530, 0.0
      %v2503 = vmax.f32 %v1533, 0.0
      %v2504 = vmax.f32 %v1538, 0.0
      %v2505 = vmax.f32 %v1541, 0.0
      %v2506 = vmax.f32 %v1546, 0.0
      %v2507 = vmax.f32 %v1549, 0.0
      %v2508 = vmax.f32 %v1554, 0.0
      %v2509 = vmax.f32 %v1557, 0.0
      %v2510 = vmax.f32 %v1562, 0.0
      %v2511 = vmax.f32 %v1565, 0.0
      %v2512 = vmax.f32 %v1570, 0.0
      %v2513 = vmax.f32 %v1573, 0.0
      %v2514 = vmax.f32 %v1578, 0.0
      %v2515 = vmax.f32 %v1581, 0.0
      %v2516 = vmax.f32 %v1586, 0.0
      %v2517 = vmax.f32 %v1589, 0.0
      %v2518 = vmax.f32 %v1594, 0.0
      %v2519 = vmax.f32 %v1597, 0.0
      %v2520 = vmax.f32 %v1602, 0.0
      %v2521 = vmax.f32 %v1605, 0.0
      %v2522 = vmax.f32 %v1610, 0.0
      %v2523 = vmax.f32 %v1613, 0.0
      %v2524 = vmax.f32 %v1618, 0.0
      %v2525 = vmax.f32 %v1621, 0.0
      %v2526 = vmax.f32 %v1626, 0.0
      %v2527 = vmax.f32 %v1629, 0.0
      %v2528 = vmax.f32 %v1634, 0.0
      %v2529 = vmax.f32 %v1637, 0.0
      %v2530 = vmax.f32 %v1642, 0.0
      %v2531 = vmax.f32 %v1645, 0.0
      %v2532 = vmax.f32 %v1650, 0.0
      %v2533 = vmax.f32 %v1653, 0.0
      %v2534 = vmax.f32 %v1658, 0.0
      %v2535 = vmax.f32 %v1661, 0.0
      %v2536 = vmax.f32 %v1666, 0.0
      %v2537 = vmax.f32 %v1669, 0.0
      %v2538 = vmax.f32 %v1674, 0.0
      %v2539 = vmax.f32 %v1677, 0.0
      %v2540 = vmax.f32 %v1682, 0.0
      %v2541 = vmax.f32 %v1685, 0.0
      %v2542 = vmax.f32 %v1690, 0.0
      %v2543 = vmax.f32 %v1693, 0.0
      %v2544 = vmax.f32 %v1698, 0.0
      %v2545 = vmax.f32 %v1701, 0.0
      %v2546 = vmax.f32 %v1706, 0.0
      %v2547 = vmax.f32 %v1709, 0.0
      %v2548 = vmax.f32 %v1714, 0.0
      %v2549 = vmax.f32 %v1717, 0.0
      %v2550 = vmax.f32 %v1722, 0.0
      %v2551 = vmax.f32 %v1725, 0.0
      %v2552 = vmax.f32 %v1730, 0.0
      %v2553 = vmax.f32 %v1733, 0.0
      %v2554 = vmax.f32 %v1738, 0.0
      %v2555 = vmax.f32 %v1741, 0.0
      %v2556 = vmax.f32 %v1746, 0.0
      %v2557 = vmax.f32 %v1749, 0.0
      %v2558 = vmax.f32 %v1754, 0.0
      %v2559 = vmax.f32 %v1757, 0.0
      %v2560 = vmax.f32 %v1762, 0.0
      %v2561 = vmax.f32 %v1765, 0.0
      %v2562 = vmax.f32 %v1770, 0.0
      %v2563 = vmax.f32 %v1773, 0.0
      %v2564 = vmax.f32 %v1778, 0.0
      %v2565 = vmax.f32 %v1781, 0.0
      %v2566 = vmax.f32 %v1786, 0.0
      %v2567 = vmax.f32 %v1789, 0.0
      %v2568 = vmax.f32 %v1794, 0.0
      %v2569 = vmax.f32 %v1797, 0.0
      %v2570 = vmax.f32 %v1802, 0.0
      %v2571 = vmax.f32 %v1805, 0.0
      %v2572 = vmax.f32 %v1810, 0.0
      %v2573 = vmax.f32 %v1813, 0.0
      %v2574 = vmax.f32 %v1818, 0.0
      %v2575 = vmax.f32 %v1821, 0.0
      %v2576 = vmax.f32 %v1826, 0.0
      %v2577 = vmax.f32 %v1829, 0.0
      %v2578 = vmax.f32 %v1834, 0.0
      %v2579 = vmax.f32 %v1837, 0.0
      %v2580 = vmax.f32 %v1842, 0.0
      %v2581 = vmax.f32 %v1845, 0.0
      %v2582 = vmax.f32 %v1850, 0.0
      %v2583 = vmax.f32 %v1853, 0.0
      %v2584 = vmax.f32 %v1858, 0.0
      %v2585 = vmax.f32 %v1861, 0.0
      %v2586 = vmax.f32 %v1866, 0.0
      %v2587 = vmax.f32 %v1869, 0.0
      %v2588 = vmax.f32 %v1874, 0.0
      %v2589 = vmax.f32 %v1877, 0.0
      %v2590 = vmax.f32 %v1882, 0.0
      %v2591 = vmax.f32 %v1885, 0.0
      %v2592 = vmax.f32 %v1890, 0.0
      %v2593 = vmax.f32 %v1893, 0.0
      %v2594 = vmax.f32 %v1898, 0.0
      %v2595 = vmax.f32 %v1901, 0.0
      %v2596 = vmax.f32 %v1906, 0.0
      %v2597 = vmax.f32 %v1909, 0.0
      %v2598 = vmax.f32 %v1914, 0.0
      %v2599 = vmax.f32 %v1917, 0.0
      %v2600 = vmax.f32 %v1922, 0.0
      %v2601 = vmax.f32 %v1925, 0.0
      %v2602 = vmax.f32 %v1930, 0.0
      %v2603 = vmax.f32 %v1933, 0.0
      %v2604 = vmax.f32 %v1938, 0.0
      %v2605 = vmax.f32 %v1941, 0.0
      %v2606 = vmax.f32 %v1946, 0.0
      %v2607 = vmax.f32 %v1949, 0.0
      %v2608 = vmax.f32 %v1954, 0.0
      %v2609 = vmax.f32 %v1957, 0.0
      %v2610 = vmax.f32 %v1962, 0.0
      %v2611 = vmax.f32 %v1965, 0.0
      %v2612 = vmax.f32 %v1970, 0.0
      %v2613 = vmax.f32 %v1973, 0.0
      %v2614 = vmax.f32 %v1978, 0.0
      %v2615 = vmax.f32 %v1981, 0.0
      %v2616 = vmax.f32 %v1986, 0.0
      %v2617 = vmax.f32 %v1989, 0.0
      %v2618 = vmax.f32 %v1994, 0.0
      %v2619 = vmax.f32 %v1997, 0.0
      %v2620 = vmax.f32 %v2002, 0.0
      %v2621 = vmax.f32 %v2005, 0.0
      %v2622 = vmax.f32 %v2010, 0.0
      %v2623 = vmax.f32 %v2013, 0.0
      %v2624 = vmax.f32 %v2018, 0.0
      %v2625 = vmax.f32 %v2021, 0.0
      %v2626 = vmax.f32 %v2026, 0.0
      %v2627 = vmax.f32 %v2029, 0.0
      %v2628 = vmax.f32 %v2034, 0.0
      %v2629 = vmax.f32 %v2037, 0.0
      %v2630 = vmax.f32 %v2042, 0.0
      %v2631 = vmax.f32 %v2045, 0.0
      %v2632 = vmax.f32 %v2050, 0.0
      %v2633 = vmax.f32 %v2053, 0.0
      %v2634 = vmax.f32 %v2058, 0.0
      %v2635 = vmax.f32 %v2061, 0.0
      %v2636 = vmax.f32 %v2066, 0.0
      %v2637 = vmax.f32 %v2069, 0.0
      %v2638 = vmax.f32 %v2074, 0.0
      %v2639 = vmax.f32 %v2077, 0.0
      %v2640 = vmax.f32 %v2082, 0.0
      %v2641 = vmax.f32 %v2085, 0.0
      %v2642 = vmax.f32 %v2090, 0.0
      %v2643 = vmax.f32 %v2093, 0.0
      %v2644 = vmax.f32 %v2098, 0.0
      %v2645 = vmax.f32 %v2101, 0.0
      %v2646 = vmax.f32 %v2106, 0.0
      %v2647 = vmax.f32 %v2109, 0.0
      %v2648 = vmax.f32 %v2114, 0.0
      %v2649 = vmax.f32 %v2117, 0.0
      %v2650 = vmax.f32 %v2122, 0.0
      %v2651 = vmax.f32 %v2125, 0.0
      %v2652 = vmax.f32 %v2130, 0.0
      %v2653 = vmax.f32 %v2133, 0.0
      %v2654 = vmax.f32 %v2138, 0.0
      %v2655 = vmax.f32 %v2141, 0.0
      %v2656 = vmax.f32 %v2146, 0.0
      %v2657 = vmax.f32 %v2149, 0.0
      %v2658 = vmax.f32 %v2154, 0.0
      %v2659 = vmax.f32 %v2157, 0.0
      %v2660 = vmax.f32 %v2162, 0.0
      %v2661 = vmax.f32 %v2165, 0.0
      %v2662 = vmax.f32 %v2170, 0.0
      %v2663 = vmax.f32 %v2173, 0.0
      %v2664 = vmax.f32 %v2178, 0.0
      %v2665 = vmax.f32 %v2181, 0.0
      %v2666 = vmax.f32 %v2186, 0.0
      %v2667 = vmax.f32 %v2189, 0.0
      %v2668 = vmax.f32 %v2194, 0.0
      %v2669 = vmax.f32 %v2197, 0.0
      %v2670 = vmax.f32 %v2202, 0.0
      %v2671 = vmax.f32 %v2205, 0.0
      %v2672 = vmax.f32 %v2210, 0.0
      %v2673 = vmax.f32 %v2213, 0.0
      %v2674 = vmax.f32 %v2218, 0.0
      %v2675 = vmax.f32 %v2221, 0.0
      %v2676 = vmax.f32 %v2226, 0.0
      %v2677 = vmax.f32 %v2229, 0.0
      %v2678 = vmax.f32 %v2234, 0.0
      %v2679 = vmax.f32 %v2237, 0.0
      %v2680 = vmax.f32 %v2242, 0.0
      %v2681 = vmax.f32 %v2245, 0.0
      %v2682 = vmax.f32 %v2250, 0.0
      %v2683 = vmax.f32 %v2253, 0.0
      %v2684 = vmax.f32 %v2258, 0.0
      %v2685 = vmax.f32 %v2261, 0.0
      %v2686 = vmax.f32 %v2266, 0.0
      %v2687 = vmax.f32 %v2269, 0.0
      %v2688 = vmax.f32 %v2274, 0.0
      %v2689 = vmax.f32 %v2277, 0.0
      %v2690 = vmax.f32 %v2282, 0.0
      %v2691 = vmax.f32 %v2285, 0.0
      %v2692 = vmax.f32 %v2290, 0.0
      %v2693 = vmax.f32 %v2293, 0.0
      %v2694 = vmax.f32 %v2298, 0.0
      %v2695 = vmax.f32 %v2301, 0.0
      %v2696 = vmax.f32 %v2306, 0.0
      %v2697 = vmax.f32 %v2309, 0.0
      %v2698 = vmax.f32 %v2314, 0.0
      %v2699 = vmax.f32 %v2317, 0.0
      %v2700 = vmax.f32 %v2322, 0.0
      %v2701 = vmax.f32 %v2325, 0.0
      %v2702 = vmax.f32 %v2330, 0.0
      %v2703 = vmax.f32 %v2333, 0.0
      %v2704 = vmax.f32 %v2338, 0.0
      %v2705 = vmax.f32 %v2341, 0.0
      %v2706 = vmax.f32 %v2346, 0.0
      %v2707 = vmax.f32 %v2349, 0.0
      %v2708 = vmax.f32 %v2354, 0.0
      %v2709 = vmax.f32 %v2357, 0.0
      %v2710 = vmax.f32 %v2362, 0.0
      %v2711 = vmax.f32 %v2365, 0.0
      %v2712 = vmax.f32 %v2370, 0.0
      %v2713 = vmax.f32 %v2373, 0.0
      %v2714 = vmax.f32 %v2378, 0.0
      %v2715 = vmax.f32 %v2381, 0.0
      %v2716 = vmax.f32 %v2386, 0.0
      %v2717 = vmax.f32 %v2389, 0.0
      %v2718 = vmax.f32 %v2394, 0.0
      %v2719 = vmax.f32 %v2397, 0.0
      %v2720 = vmax.f32 %v2402, 0.0
      %v2721 = vmax.f32 %v2405, 0.0
      %v2722 = vmax.f32 %v2410, 0.0
      %v2723 = vmax.f32 %v2413, 0.0
      %v2724 = vmax.f32 %v2418, 0.0
      %v2725 = vmax.f32 %v2421, 0.0
      %v2726 = vmax.f32 %v2426, 0.0
      %v2727 = vmax.f32 %v2429, 0.0
      %v2728 = vmax.f32 %v2434, 0.0
      %v2729 = vmax.f32 %v2437, 0.0
      %v2730 = vmax.f32 %v2442, 0.0
      %v2731 = vmax.f32 %v2445, 0.0
      %v2732 = vmax.f32 %v2450, 0.0
      %v2733 = vmax.f32 %v2453, 0.0
      %v2734 = vmax.f32 %v2458, 0.0
      %v2735 = vmax.f32 %v2461, 0.0
      %v2736 = vmax.f32 %v2466, 0.0
      %v2737 = vmax.f32 %v2469, 0.0
      %v2738 = vmax.f32 %v2474, 0.0
      %v2739 = vmax.f32 %v2477, 0.0
      %v2740 = vmax.f32 %v2482, 0.0
      %v2741 = vmax.f32 %v2485, 0.0
      %v2742 = vmax.f32 %v2490, 0.0
      %v2743 = vmax.f32 %v2493, 0.0
      %vm2744 = vcmask 48128
      %2745 = vst.msk [vmem:[%s172] sm:$0xff] %vm2744, %v2496
      %2746 = vst.msk [vmem:[%s172 + $0x8] sm:$0xff] %vm2744, %v2497
      %2747 = vst.msk [vmem:[%s172 + $0x10] sm:$0xff] %vm2744, %v2498
      %2748 = vst.msk [vmem:[%s172 + $0x18] sm:$0xff] %vm2744, %v2499
      %2749 = vst.msk [vmem:[%s172 + $0x20] sm:$0xff] %vm2744, %v2500
      %2750 = vst.msk [vmem:[%s172 + $0x28] sm:$0xff] %vm2744, %v2501
      %2751 = vst.msk [vmem:[%s172 + $0x30] sm:$0xff] %vm2744, %v2502
      %2752 = vst.msk [vmem:[%s172 + $0x38] sm:$0xff] %vm2744, %v2503
      %2753 = vst.msk [vmem:[%s172 + $0x40] sm:$0xff] %vm2744, %v2504
      %2754 = vst.msk [vmem:[%s172 + $0x48] sm:$0xff] %vm2744, %v2505
      %2755 = vst.msk [vmem:[%s172 + $0x50] sm:$0xff] %vm2744, %v2506
      %2756 = vst.msk [vmem:[%s172 + $0x58] sm:$0xff] %vm2744, %v2507
      %2757 = vst.msk [vmem:[%s172 + $0x60] sm:$0xff] %vm2744, %v2508
      %2758 = vst.msk [vmem:[%s172 + $0x68] sm:$0xff] %vm2744, %v2509
      %2759 = vst.msk [vmem:[%s172 + $0x70] sm:$0xff] %vm2744, %v2510
      %2760 = vst.msk [vmem:[%s172 + $0x78] sm:$0xff] %vm2744, %v2511
      %2761 = vst.msk [vmem:[%s172 + $0x80] sm:$0xff] %vm2744, %v2512
      %2762 = vst.msk [vmem:[%s172 + $0x88] sm:$0xff] %vm2744, %v2513
      %2763 = vst.msk [vmem:[%s172 + $0x90] sm:$0xff] %vm2744, %v2514
      %2764 = vst.msk [vmem:[%s172 + $0x98] sm:$0xff] %vm2744, %v2515
      %2765 = vst.msk [vmem:[%s172 + $0xa0] sm:$0xff] %vm2744, %v2516
      %2766 = vst.msk [vmem:[%s172 + $0xa8] sm:$0xff] %vm2744, %v2517
      %2767 = vst.msk [vmem:[%s172 + $0xb0] sm:$0xff] %vm2744, %v2518
      %2768 = vst.msk [vmem:[%s172 + $0xb8] sm:$0xff] %vm2744, %v2519
      %2769 = vst.msk [vmem:[%s172 + $0xc0] sm:$0xff] %vm2744, %v2520
      %2770 = vst.msk [vmem:[%s172 + $0xc8] sm:$0xff] %vm2744, %v2521
      %2771 = vst.msk [vmem:[%s172 + $0xd0] sm:$0xff] %vm2744, %v2522
      %2772 = vst.msk [vmem:[%s172 + $0xd8] sm:$0xff] %vm2744, %v2523
      %2773 = vst.msk [vmem:[%s172 + $0xe0] sm:$0xff] %vm2744, %v2524
      %2774 = vst.msk [vmem:[%s172 + $0xe8] sm:$0xff] %vm2744, %v2525
      %2775 = vst.msk [vmem:[%s172 + $0xf0] sm:$0xff] %vm2744, %v2526
      %2776 = vst.msk [vmem:[%s172 + $0xf8] sm:$0xff] %vm2744, %v2527
      %2777 = vst.msk [vmem:[%s172 + $0x100] sm:$0xff] %vm2744, %v2528
      %2778 = vst.msk [vmem:[%s172 + $0x108] sm:$0xff] %vm2744, %v2529
      %2779 = vst.msk [vmem:[%s172 + $0x110] sm:$0xff] %vm2744, %v2530
      %2780 = vst.msk [vmem:[%s172 + $0x118] sm:$0xff] %vm2744, %v2531
      %2781 = vst.msk [vmem:[%s172 + $0x120] sm:$0xff] %vm2744, %v2532
      %2782 = vst.msk [vmem:[%s172 + $0x128] sm:$0xff] %vm2744, %v2533
      %2783 = vst.msk [vmem:[%s172 + $0x130] sm:$0xff] %vm2744, %v2534
      %2784 = vst.msk [vmem:[%s172 + $0x138] sm:$0xff] %vm2744, %v2535
      %2785 = vst.msk [vmem:[%s172 + $0x140] sm:$0xff] %vm2744, %v2536
      %2786 = vst.msk [vmem:[%s172 + $0x148] sm:$0xff] %vm2744, %v2537
      %2787 = vst.msk [vmem:[%s172 + $0x150] sm:$0xff] %vm2744, %v2538
      %2788 = vst.msk [vmem:[%s172 + $0x158] sm:$0xff] %vm2744, %v2539
      %2789 = vst.msk [vmem:[%s172 + $0x160] sm:$0xff] %vm2744, %v2540
      %2790 = vst.msk [vmem:[%s172 + $0x168] sm:$0xff] %vm2744, %v2541
      %2791 = vst.msk [vmem:[%s172 + $0x170] sm:$0xff] %vm2744, %v2542
      %2792 = vst.msk [vmem:[%s172 + $0x178] sm:$0xff] %vm2744, %v2543
      %2793 = vst.msk [vmem:[%s172 + $0x180] sm:$0xff] %vm2744, %v2544
      %2794 = vst.msk [vmem:[%s172 + $0x188] sm:$0xff] %vm2744, %v2545
      %2795 = vst.msk [vmem:[%s172 + $0x190] sm:$0xff] %vm2744, %v2546
      %2796 = vst.msk [vmem:[%s172 + $0x198] sm:$0xff] %vm2744, %v2547
      %2797 = vst.msk [vmem:[%s172 + $0x1a0] sm:$0xff] %vm2744, %v2548
      %2798 = vst.msk [vmem:[%s172 + $0x1a8] sm:$0xff] %vm2744, %v2549
      %2799 = vst.msk [vmem:[%s172 + $0x1b0] sm:$0xff] %vm2744, %v2550
      %2800 = vst.msk [vmem:[%s172 + $0x1b8] sm:$0xff] %vm2744, %v2551
      %2801 = vst.msk [vmem:[%s172 + $0x1c0] sm:$0xff] %vm2744, %v2552
      %2802 = vst.msk [vmem:[%s172 + $0x1c8] sm:$0xff] %vm2744, %v2553
      %2803 = vst.msk [vmem:[%s172 + $0x1d0] sm:$0xff] %vm2744, %v2554
      %2804 = vst.msk [vmem:[%s172 + $0x1d8] sm:$0xff] %vm2744, %v2555
      %2805 = vst.msk [vmem:[%s172 + $0x1e0] sm:$0xff] %vm2744, %v2556
      %2806 = vst.msk [vmem:[%s172 + $0x1e8] sm:$0xff] %vm2744, %v2557
      %2807 = vst.msk [vmem:[%s172 + $0x1f0] sm:$0xff] %vm2744, %v2558
      %2808 = vst.msk [vmem:[%s172 + $0x1f8] sm:$0xff] %vm2744, %v2559
      %2809 = vst.msk [vmem:[%s172 + $0x200] sm:$0xff] %vm2744, %v2560
      %2810 = vst.msk [vmem:[%s172 + $0x208] sm:$0xff] %vm2744, %v2561
      %2811 = vst.msk [vmem:[%s172 + $0x210] sm:$0xff] %vm2744, %v2562
      %2812 = vst.msk [vmem:[%s172 + $0x218] sm:$0xff] %vm2744, %v2563
      %2813 = vst.msk [vmem:[%s172 + $0x220] sm:$0xff] %vm2744, %v2564
      %2814 = vst.msk [vmem:[%s172 + $0x228] sm:$0xff] %vm2744, %v2565
      %2815 = vst.msk [vmem:[%s172 + $0x230] sm:$0xff] %vm2744, %v2566
      %2816 = vst.msk [vmem:[%s172 + $0x238] sm:$0xff] %vm2744, %v2567
      %2817 = vst.msk [vmem:[%s172 + $0x240] sm:$0xff] %vm2744, %v2568
      %2818 = vst.msk [vmem:[%s172 + $0x248] sm:$0xff] %vm2744, %v2569
      %2819 = vst.msk [vmem:[%s172 + $0x250] sm:$0xff] %vm2744, %v2570
      %2820 = vst.msk [vmem:[%s172 + $0x258] sm:$0xff] %vm2744, %v2571
      %2821 = vst.msk [vmem:[%s172 + $0x260] sm:$0xff] %vm2744, %v2572
      %2822 = vst.msk [vmem:[%s172 + $0x268] sm:$0xff] %vm2744, %v2573
      %2823 = vst.msk [vmem:[%s172 + $0x270] sm:$0xff] %vm2744, %v2574
      %2824 = vst.msk [vmem:[%s172 + $0x278] sm:$0xff] %vm2744, %v2575
      %2825 = vst.msk [vmem:[%s172 + $0x280] sm:$0xff] %vm2744, %v2576
      %2826 = vst.msk [vmem:[%s172 + $0x288] sm:$0xff] %vm2744, %v2577
      %2827 = vst.msk [vmem:[%s172 + $0x290] sm:$0xff] %vm2744, %v2578
      %2828 = vst.msk [vmem:[%s172 + $0x298] sm:$0xff] %vm2744, %v2579
      %2829 = vst.msk [vmem:[%s172 + $0x2a0] sm:$0xff] %vm2744, %v2580
      %2830 = vst.msk [vmem:[%s172 + $0x2a8] sm:$0xff] %vm2744, %v2581
      %2831 = vst.msk [vmem:[%s172 + $0x2b0] sm:$0xff] %vm2744, %v2582
      %2832 = vst.msk [vmem:[%s172 + $0x2b8] sm:$0xff] %vm2744, %v2583
      %2833 = vst.msk [vmem:[%s172 + $0x2c0] sm:$0xff] %vm2744, %v2584
      %2834 = vst.msk [vmem:[%s172 + $0x2c8] sm:$0xff] %vm2744, %v2585
      %2835 = vst.msk [vmem:[%s172 + $0x2d0] sm:$0xff] %vm2744, %v2586
      %2836 = vst.msk [vmem:[%s172 + $0x2d8] sm:$0xff] %vm2744, %v2587
      %2837 = vst.msk [vmem:[%s172 + $0x2e0] sm:$0xff] %vm2744, %v2588
      %2838 = vst.msk [vmem:[%s172 + $0x2e8] sm:$0xff] %vm2744, %v2589
      %2839 = vst.msk [vmem:[%s172 + $0x2f0] sm:$0xff] %vm2744, %v2590
      %2840 = vst.msk [vmem:[%s172 + $0x2f8] sm:$0xff] %vm2744, %v2591
      %2841 = vst.msk [vmem:[%s172 + $0x300] sm:$0xff] %vm2744, %v2592
      %2842 = vst.msk [vmem:[%s172 + $0x308] sm:$0xff] %vm2744, %v2593
      %2843 = vst.msk [vmem:[%s172 + $0x310] sm:$0xff] %vm2744, %v2594
      %2844 = vst.msk [vmem:[%s172 + $0x318] sm:$0xff] %vm2744, %v2595
      %2845 = vst.msk [vmem:[%s172 + $0x320] sm:$0xff] %vm2744, %v2596
      %2846 = vst.msk [vmem:[%s172 + $0x328] sm:$0xff] %vm2744, %v2597
      %2847 = vst.msk [vmem:[%s172 + $0x330] sm:$0xff] %vm2744, %v2598
      %2848 = vst.msk [vmem:[%s172 + $0x338] sm:$0xff] %vm2744, %v2599
      %2849 = vst.msk [vmem:[%s172 + $0x340] sm:$0xff] %vm2744, %v2600
      %2850 = vst.msk [vmem:[%s172 + $0x348] sm:$0xff] %vm2744, %v2601
      %2851 = vst.msk [vmem:[%s172 + $0x350] sm:$0xff] %vm2744, %v2602
      %2852 = vst.msk [vmem:[%s172 + $0x358] sm:$0xff] %vm2744, %v2603
      %2853 = vst.msk [vmem:[%s172 + $0x360] sm:$0xff] %vm2744, %v2604
      %2854 = vst.msk [vmem:[%s172 + $0x368] sm:$0xff] %vm2744, %v2605
      %2855 = vst.msk [vmem:[%s172 + $0x370] sm:$0xff] %vm2744, %v2606
      %2856 = vst.msk [vmem:[%s172 + $0x378] sm:$0xff] %vm2744, %v2607
      %2857 = vst.msk [vmem:[%s172 + $0x380] sm:$0xff] %vm2744, %v2608
      %2858 = vst.msk [vmem:[%s172 + $0x388] sm:$0xff] %vm2744, %v2609
      %2859 = vst.msk [vmem:[%s172 + $0x390] sm:$0xff] %vm2744, %v2610
      %2860 = vst.msk [vmem:[%s172 + $0x398] sm:$0xff] %vm2744, %v2611
      %2861 = vst.msk [vmem:[%s172 + $0x3a0] sm:$0xff] %vm2744, %v2612
      %2862 = vst.msk [vmem:[%s172 + $0x3a8] sm:$0xff] %vm2744, %v2613
      %2863 = vst.msk [vmem:[%s172 + $0x3b0] sm:$0xff] %vm2744, %v2614
      %2864 = vst.msk [vmem:[%s172 + $0x3b8] sm:$0xff] %vm2744, %v2615
      %2865 = vst.msk [vmem:[%s172 + $0x3c0] sm:$0xff] %vm2744, %v2616
      %2866 = vst.msk [vmem:[%s172 + $0x3c8] sm:$0xff] %vm2744, %v2617
      %2867 = vst.msk [vmem:[%s172 + $0x3d0] sm:$0xff] %vm2744, %v2618
      %2868 = vst.msk [vmem:[%s172 + $0x3d8] sm:$0xff] %vm2744, %v2619
      %2869 = vst.msk [vmem:[%s172 + $0x3e0] sm:$0xff] %vm2744, %v2620
      %2870 = vst.msk [vmem:[%s172 + $0x3e8] sm:$0xff] %vm2744, %v2621
      %2871 = vst.msk [vmem:[%s172 + $0x3f0] sm:$0xff] %vm2744, %v2622
      %2872 = vst.msk [vmem:[%s172 + $0x3f8] sm:$0xff] %vm2744, %v2623
      %2873 = vst.msk [vmem:[%s172 + $0x400] sm:$0xff] %vm2744, %v2624
      %2874 = vst.msk [vmem:[%s172 + $0x408] sm:$0xff] %vm2744, %v2625
      %2875 = vst.msk [vmem:[%s172 + $0x410] sm:$0xff] %vm2744, %v2626
      %2876 = vst.msk [vmem:[%s172 + $0x418] sm:$0xff] %vm2744, %v2627
      %2877 = vst.msk [vmem:[%s172 + $0x420] sm:$0xff] %vm2744, %v2628
      %2878 = vst.msk [vmem:[%s172 + $0x428] sm:$0xff] %vm2744, %v2629
      %2879 = vst.msk [vmem:[%s172 + $0x430] sm:$0xff] %vm2744, %v2630
      %2880 = vst.msk [vmem:[%s172 + $0x438] sm:$0xff] %vm2744, %v2631
      %2881 = vst.msk [vmem:[%s172 + $0x440] sm:$0xff] %vm2744, %v2632
      %2882 = vst.msk [vmem:[%s172 + $0x448] sm:$0xff] %vm2744, %v2633
      %2883 = vst.msk [vmem:[%s172 + $0x450] sm:$0xff] %vm2744, %v2634
      %2884 = vst.msk [vmem:[%s172 + $0x458] sm:$0xff] %vm2744, %v2635
      %2885 = vst.msk [vmem:[%s172 + $0x460] sm:$0xff] %vm2744, %v2636
      %2886 = vst.msk [vmem:[%s172 + $0x468] sm:$0xff] %vm2744, %v2637
      %2887 = vst.msk [vmem:[%s172 + $0x470] sm:$0xff] %vm2744, %v2638
      %2888 = vst.msk [vmem:[%s172 + $0x478] sm:$0xff] %vm2744, %v2639
      %2889 = vst.msk [vmem:[%s172 + $0x480] sm:$0xff] %vm2744, %v2640
      %2890 = vst.msk [vmem:[%s172 + $0x488] sm:$0xff] %vm2744, %v2641
      %2891 = vst.msk [vmem:[%s172 + $0x490] sm:$0xff] %vm2744, %v2642
      %2892 = vst.msk [vmem:[%s172 + $0x498] sm:$0xff] %vm2744, %v2643
      %2893 = vst.msk [vmem:[%s172 + $0x4a0] sm:$0xff] %vm2744, %v2644
      %2894 = vst.msk [vmem:[%s172 + $0x4a8] sm:$0xff] %vm2744, %v2645
      %2895 = vst.msk [vmem:[%s172 + $0x4b0] sm:$0xff] %vm2744, %v2646
      %2896 = vst.msk [vmem:[%s172 + $0x4b8] sm:$0xff] %vm2744, %v2647
      %2897 = vst.msk [vmem:[%s172 + $0x4c0] sm:$0xff] %vm2744, %v2648
      %2898 = vst.msk [vmem:[%s172 + $0x4c8] sm:$0xff] %vm2744, %v2649
      %2899 = vst.msk [vmem:[%s172 + $0x4d0] sm:$0xff] %vm2744, %v2650
      %2900 = vst.msk [vmem:[%s172 + $0x4d8] sm:$0xff] %vm2744, %v2651
      %2901 = vst.msk [vmem:[%s172 + $0x4e0] sm:$0xff] %vm2744, %v2652
      %2902 = vst.msk [vmem:[%s172 + $0x4e8] sm:$0xff] %vm2744, %v2653
      %2903 = vst.msk [vmem:[%s172 + $0x4f0] sm:$0xff] %vm2744, %v2654
      %2904 = vst.msk [vmem:[%s172 + $0x4f8] sm:$0xff] %vm2744, %v2655
      %2905 = vst.msk [vmem:[%s172 + $0x500] sm:$0xff] %vm2744, %v2656
      %2906 = vst.msk [vmem:[%s172 + $0x508] sm:$0xff] %vm2744, %v2657
      %2907 = vst.msk [vmem:[%s172 + $0x510] sm:$0xff] %vm2744, %v2658
      %2908 = vst.msk [vmem:[%s172 + $0x518] sm:$0xff] %vm2744, %v2659
      %2909 = vst.msk [vmem:[%s172 + $0x520] sm:$0xff] %vm2744, %v2660
      %2910 = vst.msk [vmem:[%s172 + $0x528] sm:$0xff] %vm2744, %v2661
      %2911 = vst.msk [vmem:[%s172 + $0x530] sm:$0xff] %vm2744, %v2662
      %2912 = vst.msk [vmem:[%s172 + $0x538] sm:$0xff] %vm2744, %v2663
      %2913 = vst.msk [vmem:[%s172 + $0x540] sm:$0xff] %vm2744, %v2664
      %2914 = vst.msk [vmem:[%s172 + $0x548] sm:$0xff] %vm2744, %v2665
      %2915 = vst.msk [vmem:[%s172 + $0x550] sm:$0xff] %vm2744, %v2666
      %2916 = vst.msk [vmem:[%s172 + $0x558] sm:$0xff] %vm2744, %v2667
      %2917 = vst.msk [vmem:[%s172 + $0x560] sm:$0xff] %vm2744, %v2668
      %2918 = vst.msk [vmem:[%s172 + $0x568] sm:$0xff] %vm2744, %v2669
      %2919 = vst.msk [vmem:[%s172 + $0x570] sm:$0xff] %vm2744, %v2670
      %2920 = vst.msk [vmem:[%s172 + $0x578] sm:$0xff] %vm2744, %v2671
      %2921 = vst.msk [vmem:[%s172 + $0x580] sm:$0xff] %vm2744, %v2672
      %2922 = vst.msk [vmem:[%s172 + $0x588] sm:$0xff] %vm2744, %v2673
      %2923 = vst.msk [vmem:[%s172 + $0x590] sm:$0xff] %vm2744, %v2674
      %2924 = vst.msk [vmem:[%s172 + $0x598] sm:$0xff] %vm2744, %v2675
      %2925 = vst.msk [vmem:[%s172 + $0x5a0] sm:$0xff] %vm2744, %v2676
      %2926 = vst.msk [vmem:[%s172 + $0x5a8] sm:$0xff] %vm2744, %v2677
      %2927 = vst.msk [vmem:[%s172 + $0x5b0] sm:$0xff] %vm2744, %v2678
      %2928 = vst.msk [vmem:[%s172 + $0x5b8] sm:$0xff] %vm2744, %v2679
      %2929 = vst.msk [vmem:[%s172 + $0x5c0] sm:$0xff] %vm2744, %v2680
      %2930 = vst.msk [vmem:[%s172 + $0x5c8] sm:$0xff] %vm2744, %v2681
      %2931 = vst.msk [vmem:[%s172 + $0x5d0] sm:$0xff] %vm2744, %v2682
      %2932 = vst.msk [vmem:[%s172 + $0x5d8] sm:$0xff] %vm2744, %v2683
      %2933 = vst.msk [vmem:[%s172 + $0x5e0] sm:$0xff] %vm2744, %v2684
      %2934 = vst.msk [vmem:[%s172 + $0x5e8] sm:$0xff] %vm2744, %v2685
      %2935 = vst.msk [vmem:[%s172 + $0x5f0] sm:$0xff] %vm2744, %v2686
      %2936 = vst.msk [vmem:[%s172 + $0x5f8] sm:$0xff] %vm2744, %v2687
      %2937 = vst.msk [vmem:[%s172 + $0x600] sm:$0xff] %vm2744, %v2688
      %2938 = vst.msk [vmem:[%s172 + $0x608] sm:$0xff] %vm2744, %v2689
      %2939 = vst.msk [vmem:[%s172 + $0x610] sm:$0xff] %vm2744, %v2690
      %2940 = vst.msk [vmem:[%s172 + $0x618] sm:$0xff] %vm2744, %v2691
      %2941 = vst.msk [vmem:[%s172 + $0x620] sm:$0xff] %vm2744, %v2692
      %2942 = vst.msk [vmem:[%s172 + $0x628] sm:$0xff] %vm2744, %v2693
      %2943 = vst.msk [vmem:[%s172 + $0x630] sm:$0xff] %vm2744, %v2694
      %2944 = vst.msk [vmem:[%s172 + $0x638] sm:$0xff] %vm2744, %v2695
      %2945 = vst.msk [vmem:[%s172 + $0x640] sm:$0xff] %vm2744, %v2696
      %2946 = vst.msk [vmem:[%s172 + $0x648] sm:$0xff] %vm2744, %v2697
      %2947 = vst.msk [vmem:[%s172 + $0x650] sm:$0xff] %vm2744, %v2698
      %2948 = vst.msk [vmem:[%s172 + $0x658] sm:$0xff] %vm2744, %v2699
      %2949 = vst.msk [vmem:[%s172 + $0x660] sm:$0xff] %vm2744, %v2700
      %2950 = vst.msk [vmem:[%s172 + $0x668] sm:$0xff] %vm2744, %v2701
      %2951 = vst.msk [vmem:[%s172 + $0x670] sm:$0xff] %vm2744, %v2702
      %2952 = vst.msk [vmem:[%s172 + $0x678] sm:$0xff] %vm2744, %v2703
      %2953 = vst.msk [vmem:[%s172 + $0x680] sm:$0xff] %vm2744, %v2704
      %2954 = vst.msk [vmem:[%s172 + $0x688] sm:$0xff] %vm2744, %v2705
      %2955 = vst.msk [vmem:[%s172 + $0x690] sm:$0xff] %vm2744, %v2706
      %2956 = vst.msk [vmem:[%s172 + $0x698] sm:$0xff] %vm2744, %v2707
      %2957 = vst.msk [vmem:[%s172 + $0x6a0] sm:$0xff] %vm2744, %v2708
      %2958 = vst.msk [vmem:[%s172 + $0x6a8] sm:$0xff] %vm2744, %v2709
      %2959 = vst.msk [vmem:[%s172 + $0x6b0] sm:$0xff] %vm2744, %v2710
      %2960 = vst.msk [vmem:[%s172 + $0x6b8] sm:$0xff] %vm2744, %v2711
      %2961 = vst.msk [vmem:[%s172 + $0x6c0] sm:$0xff] %vm2744, %v2712
      %2962 = vst.msk [vmem:[%s172 + $0x6c8] sm:$0xff] %vm2744, %v2713
      %2963 = vst.msk [vmem:[%s172 + $0x6d0] sm:$0xff] %vm2744, %v2714
      %2964 = vst.msk [vmem:[%s172 + $0x6d8] sm:$0xff] %vm2744, %v2715
      %2965 = vst.msk [vmem:[%s172 + $0x6e0] sm:$0xff] %vm2744, %v2716
      %2966 = vst.msk [vmem:[%s172 + $0x6e8] sm:$0xff] %vm2744, %v2717
      %2967 = vst.msk [vmem:[%s172 + $0x6f0] sm:$0xff] %vm2744, %v2718
      %2968 = vst.msk [vmem:[%s172 + $0x6f8] sm:$0xff] %vm2744, %v2719
      %2969 = vst.msk [vmem:[%s172 + $0x700] sm:$0xff] %vm2744, %v2720
      %2970 = vst.msk [vmem:[%s172 + $0x708] sm:$0xff] %vm2744, %v2721
      %2971 = vst.msk [vmem:[%s172 + $0x710] sm:$0xff] %vm2744, %v2722
      %2972 = vst.msk [vmem:[%s172 + $0x718] sm:$0xff] %vm2744, %v2723
      %2973 = vst.msk [vmem:[%s172 + $0x720] sm:$0xff] %vm2744, %v2724
      %2974 = vst.msk [vmem:[%s172 + $0x728] sm:$0xff] %vm2744, %v2725
      %2975 = vst.msk [vmem:[%s172 + $0x730] sm:$0xff] %vm2744, %v2726
      %2976 = vst.msk [vmem:[%s172 + $0x738] sm:$0xff] %vm2744, %v2727
      %2977 = vst.msk [vmem:[%s172 + $0x740] sm:$0xff] %vm2744, %v2728
      %2978 = vst.msk [vmem:[%s172 + $0x748] sm:$0xff] %vm2744, %v2729
      %2979 = vst.msk [vmem:[%s172 + $0x750] sm:$0xff] %vm2744, %v2730
      %2980 = vst.msk [vmem:[%s172 + $0x758] sm:$0xff] %vm2744, %v2731
      %2981 = vst.msk [vmem:[%s172 + $0x760] sm:$0xff] %vm2744, %v2732
      %2982 = vst.msk [vmem:[%s172 + $0x768] sm:$0xff] %vm2744, %v2733
      %2983 = vst.msk [vmem:[%s172 + $0x770] sm:$0xff] %vm2744, %v2734
      %2984 = vst.msk [vmem:[%s172 + $0x778] sm:$0xff] %vm2744, %v2735
      %2985 = vst.msk [vmem:[%s172 + $0x780] sm:$0xff] %vm2744, %v2736
      %2986 = vst.msk [vmem:[%s172 + $0x788] sm:$0xff] %vm2744, %v2737
      %2987 = vst.msk [vmem:[%s172 + $0x790] sm:$0xff] %vm2744, %v2738
      %2988 = vst.msk [vmem:[%s172 + $0x798] sm:$0xff] %vm2744, %v2739
      %2989 = vst.msk [vmem:[%s172 + $0x7a0] sm:$0xff] %vm2744, %v2740
      %2990 = vst.msk [vmem:[%s172 + $0x7a8] sm:$0xff] %vm2744, %v2741
      %2991 = vst.msk [vmem:[%s172 + $0x7b0] sm:$0xff] %vm2744, %v2742
      %2992 = vst.msk [vmem:[%s172 + $0x7b8] sm:$0xff] %vm2744, %v2743
      %s2993 = smul.u32 248, %s14
      %p2994 = scmp.lt.s32.totalorder %s2993, 2727
      %s2995 = scalar_select %p2994, %s2993, 2727
      %s2996 = smul.addr %s2995, 8
      %s2997 = scalar_lea.vmem %s3, %s2996
      // Predicated region
      $region33: #{forward.5} parent=31 // pred_check
        %p2998 = pneg %p100
      $region34: #{forward.5} parent=31 // pred_check_branch
        %3000 = sbr.rel (%p2998) target = $region36
      $region35: #{forward.5} parent=31 // pred_region
        %s3001 = smul.u32 248, %s14
      $region36: #{forward.5} parent=31 // pred_fallthru
        _
    $region32: #{forward.5} parent=5 // pred_fallthru
      _
    %p3002 = scmp.le.s32.totalorder 2, %s9
    // Predicated region
    $region37: #{forward.5} parent=5 // pred_check
      %p3003 = pneg %p3002
    $region38: #{forward.5} parent=5 // pred_check_branch
      %3005 = sbr.rel (%p3003) target = $region40
    $region39: #{forward.5} parent=5 // pred_region
      %s3006 = ssub.s32 %s9, 2
      // Predicated region
      $region41: #{forward.5} parent=39 // pred_check
        %p3007 = pneg %p106
      $region42: #{forward.5} parent=39 // pred_check_branch
        %3009 = sbr.rel (%p3007) target = $region44
      $region43: #{forward.5} parent=39 // pred_region
        %s3010 = smul.u32 248, %s15
        %p3011 = scmp.lt.s32.totalorder %s3010, 2727
        %s3012 = scalar_select %p3011, %s3010, 2727
        %s3013 = smul.addr %s3012, 8
        %s3014 = scalar_lea.vmem %s3, %s3013
      $region44: #{forward.5} parent=39 // pred_fallthru
        _
    $region40: #{forward.5} parent=5 // pred_fallthru
      _
  $region6: #{forward.5} parent=0 // loop_footer
    %s13 = sadd.s32 1, %s9
  $region7: #{forward.5} parent=0 // loop_footer_branch
    %8 = sbr.rel target = $region3
  $region8: #{forward.5} parent=0 // loop_exit
    _

// kernel: forward.6
$region0: #{forward.6}
  #allocation0 [shape = 'u32[]', space=smem, size = 0x4, offset = 0x4, fixed_abs, tag = 'smem constant byte address 0x4 - core index']
  #allocation1 [shape = 'u32[144,128]{1,0:T(1,128)}', space=vmem, size = 0x12000, scoped, tag = 'internal scratch']
  %s0 = inlined_call_operand.vmem [shape: f32[44,744], index: 0, kind: input, shape index: {}]
  %s1 = inlined_call_operand.vmem [shape: f32[44,744], index: 1, kind: input, shape index: {}]
  %s2 = inlined_call_operand.vmem [shape: f32[44,744], index: 2, kind: input, shape index: {}]
  %s3 = inlined_call_operand.vmem [shape: f32[44,744], index: 3, kind: input, shape index: {}]
  %s4 = inlined_call_operand.vmem [shape: f32[44,744], index: 4, kind: output, shape index: {}]
  %s5 = sld [smem:[#allocation0]]
  $region26: #{forward.6} parent=0
    _
  %s7 = ssub.s32 1, %s5
  %s8 = scalar_select 0, %s7, %s5
  // Predicated region
  $region2: #{forward.6} parent=0 // pred_check
    _
  $region3: #{forward.6} parent=0 // pred_check_branch
    %10 = sbr.rel (0) target = $region5
  $region4: #{forward.6} parent=0 // pred_region
    _
  $region5: #{forward.6} parent=0 // pred_fallthru
    _
  // Predicated region
  $region6: #{forward.6} parent=0 // pred_check
    _
  $region7: #{forward.6} parent=0 // pred_check_branch
    %12 = sbr.rel (0) target = $region9
  $region8: #{forward.6} parent=0 // pred_region
    _
  $region9: #{forward.6} parent=0 // pred_fallthru
    _
  // Predicated region
  $region10: #{forward.6} parent=0 // pred_check
    _
  $region11: #{forward.6} parent=0 // pred_check_branch
    %14 = sbr.rel (0) target = $region13
  $region12: #{forward.6} parent=0 // pred_region
    _
  $region13: #{forward.6} parent=0 // pred_fallthru
    _
  // Predicated region
  $region14: #{forward.6} parent=0 // pred_check
    _
  $region15: #{forward.6} parent=0 // pred_check_branch
    %16 = sbr.rel (0) target = $region17
  $region16: #{forward.6} parent=0 // pred_region
    _
  $region17: #{forward.6} parent=0 // pred_fallthru
    _
  %v17 = vld [vmem:[%s0] sm:$0xff]
  %v18 = vld [vmem:[%s0 + $0x8] sm:$0xff]
  %v19 = vld [vmem:[%s0 + $0x10] sm:$0xff]
  %v20 = vld [vmem:[%s0 + $0x18] sm:$0xff]
  %v21 = vld [vmem:[%s0 + $0x20] sm:$0xff]
  %v22 = vld [vmem:[%s0 + $0x28] sm:$0xff]
  %v23 = vld [vmem:[%s0 + $0x30] sm:$0xff]
  %v24 = vld [vmem:[%s0 + $0x38] sm:$0xff]
  %v25 = vld [vmem:[%s0 + $0x40] sm:$0xff]
  %v26 = vld [vmem:[%s0 + $0x48] sm:$0xff]
  %v27 = vld [vmem:[%s0 + $0x50] sm:$0xff]
  %v28 = vld [vmem:[%s0 + $0x58] sm:$0xff]
  %v29 = vld [vmem:[%s0 + $0x60] sm:$0xff]
  %v30 = vld [vmem:[%s0 + $0x68] sm:$0xff]
  %v31 = vld [vmem:[%s0 + $0x70] sm:$0xff]
  %v32 = vld [vmem:[%s0 + $0x78] sm:$0xff]
  %v33 = vld [vmem:[%s0 + $0x80] sm:$0xff]
  %v34 = vld [vmem:[%s0 + $0x88] sm:$0xff]
  %v35 = vld [vmem:[%s0 + $0x90] sm:$0xff]
  %v36 = vld [vmem:[%s0 + $0x98] sm:$0xff]
  %v37 = vld [vmem:[%s0 + $0xa0] sm:$0xff]
  %v38 = vld [vmem:[%s0 + $0xa8] sm:$0xff]
  %v39 = vld [vmem:[%s0 + $0xb0] sm:$0xff]
  %v40 = vld [vmem:[%s0 + $0xb8] sm:$0xff]
  %v41 = vld [vmem:[%s0 + $0xc0] sm:$0xff]
  %v42 = vld [vmem:[%s0 + $0xc8] sm:$0xff]
  %v43 = vld [vmem:[%s0 + $0xd0] sm:$0xff]
  %v44 = vld [vmem:[%s0 + $0xd8] sm:$0xff]
  %v45 = vld [vmem:[%s0 + $0xe0] sm:$0xff]
  %v46 = vld [vmem:[%s0 + $0xe8] sm:$0xff]
  %v47 = vld [vmem:[%s0 + $0xf0] sm:$0xf]
  %v48 = vld [vmem:[%s0 + $0xf8] sm:$0xf]
  %v49 = vld [vmem:[%s0 + $0x100] sm:$0xf]
  %v50 = vld [vmem:[%s0 + $0x108] sm:$0xf]
  %v51 = vld [vmem:[%s0 + $0x110] sm:$0xf]
  %v52 = vld [vmem:[%s0 + $0x118] sm:$0xf]
  %v53 = vld [vmem:[%s1] sm:$0xff]
  %v54 = vld [vmem:[%s1 + $0x8] sm:$0xff]
  %v55 = vld [vmem:[%s1 + $0x10] sm:$0xff]
  %v56 = vld [vmem:[%s1 + $0x18] sm:$0xff]
  %v57 = vld [vmem:[%s1 + $0x20] sm:$0xff]
  %v58 = vld [vmem:[%s1 + $0x28] sm:$0xff]
  %v59 = vld [vmem:[%s1 + $0x30] sm:$0xff]
  %v60 = vld [vmem:[%s1 + $0x38] sm:$0xff]
  %v61 = vld [vmem:[%s1 + $0x40] sm:$0xff]
  %v62 = vld [vmem:[%s1 + $0x48] sm:$0xff]
  %v63 = vld [vmem:[%s1 + $0x50] sm:$0xff]
  %v64 = vld [vmem:[%s1 + $0x58] sm:$0xff]
  %v65 = vld [vmem:[%s1 + $0x60] sm:$0xff]
  %v66 = vld [vmem:[%s1 + $0x68] sm:$0xff]
  %v67 = vld [vmem:[%s1 + $0x70] sm:$0xff]
  %v68 = vld [vmem:[%s1 + $0x78] sm:$0xff]
  %v69 = vld [vmem:[%s1 + $0x80] sm:$0xff]
  %v70 = vld [vmem:[%s1 + $0x88] sm:$0xff]
  %v71 = vld [vmem:[%s1 + $0x90] sm:$0xff]
  %v72 = vld [vmem:[%s1 + $0x98] sm:$0xff]
  %v73 = vld [vmem:[%s1 + $0xa0] sm:$0xff]
  %v74 = vld [vmem:[%s1 + $0xa8] sm:$0xff]
  %v75 = vld [vmem:[%s1 + $0xb0] sm:$0xff]
  %v76 = vld [vmem:[%s1 + $0xb8] sm:$0xff]
  %v77 = vld [vmem:[%s1 + $0xc0] sm:$0xff]
  %v78 = vld [vmem:[%s1 + $0xc8] sm:$0xff]
  %v79 = vld [vmem:[%s1 + $0xd0] sm:$0xff]
  %v80 = vld [vmem:[%s1 + $0xd8] sm:$0xff]
  %v81 = vld [vmem:[%s1 + $0xe0] sm:$0xff]
  %v82 = vld [vmem:[%s1 + $0xe8] sm:$0xff]
  %v83 = vld [vmem:[%s1 + $0xf0] sm:$0xf]
  %v84 = vld [vmem:[%s1 + $0xf8] sm:$0xf]
  %v85 = vld [vmem:[%s1 + $0x100] sm:$0xf]
  %v86 = vld [vmem:[%s1 + $0x108] sm:$0xf]
  %v87 = vld [vmem:[%s1 + $0x110] sm:$0xf]
  %v88 = vld [vmem:[%s1 + $0x118] sm:$0xf]
  %v89 = vmax.f32 %v17, %v53
  %v90 = vmax.f32 %v18, %v54
  %v91 = vmax.f32 %v19, %v55
  %v92 = vmax.f32 %v20, %v56
  %v93 = vmax.f32 %v21, %v57
  %v94 = vmax.f32 %v22, %v58
  %v95 = vmax.f32 %v23, %v59
  %v96 = vmax.f32 %v24, %v60
  %v97 = vmax.f32 %v25, %v61
  %v98 = vmax.f32 %v26, %v62
  %v99 = vmax.f32 %v27, %v63
  %v100 = vmax.f32 %v28, %v64
  %v101 = vmax.f32 %v29, %v65
  %v102 = vmax.f32 %v30, %v66
  %v103 = vmax.f32 %v31, %v67
  %v104 = vmax.f32 %v32, %v68
  %v105 = vmax.f32 %v33, %v69
  %v106 = vmax.f32 %v34, %v70
  %v107 = vmax.f32 %v35, %v71
  %v108 = vmax.f32 %v36, %v72
  %v109 = vmax.f32 %v37, %v73
  %v110 = vmax.f32 %v38, %v74
  %v111 = vmax.f32 %v39, %v75
  %v112 = vmax.f32 %v40, %v76
  %v113 = vmax.f32 %v41, %v77
  %v114 = vmax.f32 %v42, %v78
  %v115 = vmax.f32 %v43, %v79
  %v116 = vmax.f32 %v44, %v80
  %v117 = vmax.f32 %v45, %v81
  %v118 = vmax.f32 %v46, %v82
  %v119 = vmax.f32 %v47, %v83
  %v120 = vmax.f32 %v48, %v84
  %v121 = vmax.f32 %v49, %v85
  %v122 = vmax.f32 %v50, %v86
  %v123 = vmax.f32 %v51, %v87
  %v124 = vmax.f32 %v52, %v88
  %v125 = vld [vmem:[%s2] sm:$0xff]
  %v126 = vld [vmem:[%s2 + $0x8] sm:$0xff]
  %v127 = vld [vmem:[%s2 + $0x10] sm:$0xff]
  %v128 = vld [vmem:[%s2 + $0x18] sm:$0xff]
  %v129 = vld [vmem:[%s2 + $0x20] sm:$0xff]
  %v130 = vld [vmem:[%s2 + $0x28] sm:$0xff]
  %v131 = vld [vmem:[%s2 + $0x30] sm:$0xff]
  %v132 = vld [vmem:[%s2 + $0x38] sm:$0xff]
  %v133 = vld [vmem:[%s2 + $0x40] sm:$0xff]
  %v134 = vld [vmem:[%s2 + $0x48] sm:$0xff]
  %v135 = vld [vmem:[%s2 + $0x50] sm:$0xff]
  %v136 = vld [vmem:[%s2 + $0x58] sm:$0xff]
  %v137 = vld [vmem:[%s2 + $0x60] sm:$0xff]
  %v138 = vld [vmem:[%s2 + $0x68] sm:$0xff]
  %v139 = vld [vmem:[%s2 + $0x70] sm:$0xff]
  %v140 = vld [vmem:[%s2 + $0x78] sm:$0xff]
  %v141 = vld [vmem:[%s2 + $0x80] sm:$0xff]
  %v142 = vld [vmem:[%s2 + $0x88] sm:$0xff]
  %v143 = vld [vmem:[%s2 + $0x90] sm:$0xff]
  %v144 = vld [vmem:[%s2 + $0x98] sm:$0xff]
  %v145 = vld [vmem:[%s2 + $0xa0] sm:$0xff]
  %v146 = vld [vmem:[%s2 + $0xa8] sm:$0xff]
  %v147 = vld [vmem:[%s2 + $0xb0] sm:$0xff]
  %v148 = vld [vmem:[%s2 + $0xb8] sm:$0xff]
  %v149 = vld [vmem:[%s2 + $0xc0] sm:$0xff]
  %v150 = vld [vmem:[%s2 + $0xc8] sm:$0xff]
  %v151 = vld [vmem:[%s2 + $0xd0] sm:$0xff]
  %v152 = vld [vmem:[%s2 + $0xd8] sm:$0xff]
  %v153 = vld [vmem:[%s2 + $0xe0] sm:$0xff]
  %v154 = vld [vmem:[%s2 + $0xe8] sm:$0xff]
  %v155 = vld [vmem:[%s2 + $0xf0] sm:$0xf]
  %v156 = vld [vmem:[%s2 + $0xf8] sm:$0xf]
  %v157 = vld [vmem:[%s2 + $0x100] sm:$0xf]
  %v158 = vld [vmem:[%s2 + $0x108] sm:$0xf]
  %v159 = vld [vmem:[%s2 + $0x110] sm:$0xf]
  %v160 = vld [vmem:[%s2 + $0x118] sm:$0xf]
  %v161 = vld [vmem:[%s3] sm:$0xff]
  %v162 = vld [vmem:[%s3 + $0x8] sm:$0xff]
  %v163 = vld [vmem:[%s3 + $0x10] sm:$0xff]
  %v164 = vld [vmem:[%s3 + $0x18] sm:$0xff]
  %v165 = vld [vmem:[%s3 + $0x20] sm:$0xff]
  %v166 = vld [vmem:[%s3 + $0x28] sm:$0xff]
  %v167 = vld [vmem:[%s3 + $0x30] sm:$0xff]
  %v168 = vld [vmem:[%s3 + $0x38] sm:$0xff]
  %v169 = vld [vmem:[%s3 + $0x40] sm:$0xff]
  %v170 = vld [vmem:[%s3 + $0x48] sm:$0xff]
  %v171 = vld [vmem:[%s3 + $0x50] sm:$0xff]
  %v172 = vld [vmem:[%s3 + $0x58] sm:$0xff]
  %v173 = vld [vmem:[%s3 + $0x60] sm:$0xff]
  %v174 = vld [vmem:[%s3 + $0x68] sm:$0xff]
  %v175 = vld [vmem:[%s3 + $0x70] sm:$0xff]
  %v176 = vld [vmem:[%s3 + $0x78] sm:$0xff]
  %v177 = vld [vmem:[%s3 + $0x80] sm:$0xff]
  %v178 = vld [vmem:[%s3 + $0x88] sm:$0xff]
  %v179 = vld [vmem:[%s3 + $0x90] sm:$0xff]
  %v180 = vld [vmem:[%s3 + $0x98] sm:$0xff]
  %v181 = vld [vmem:[%s3 + $0xa0] sm:$0xff]
  %v182 = vld [vmem:[%s3 + $0xa8] sm:$0xff]
  %v183 = vld [vmem:[%s3 + $0xb0] sm:$0xff]
  %v184 = vld [vmem:[%s3 + $0xb8] sm:$0xff]
  %v185 = vld [vmem:[%s3 + $0xc0] sm:$0xff]
  %v186 = vld [vmem:[%s3 + $0xc8] sm:$0xff]
  %v187 = vld [vmem:[%s3 + $0xd0] sm:$0xff]
  %v188 = vld [vmem:[%s3 + $0xd8] sm:$0xff]
  %v189 = vld [vmem:[%s3 + $0xe0] sm:$0xff]
  %v190 = vld [vmem:[%s3 + $0xe8] sm:$0xff]
  %v191 = vld [vmem:[%s3 + $0xf0] sm:$0xf]
  %v192 = vld [vmem:[%s3 + $0xf8] sm:$0xf]
  %v193 = vld [vmem:[%s3 + $0x100] sm:$0xf]
  %v194 = vld [vmem:[%s3 + $0x108] sm:$0xf]
  %v195 = vld [vmem:[%s3 + $0x110] sm:$0xf]
  %v196 = vld [vmem:[%s3 + $0x118] sm:$0xf]
  %v197 = vmax.f32 %v125, %v161
  %v198 = vmax.f32 %v126, %v162
  %v199 = vmax.f32 %v127, %v163
  %v200 = vmax.f32 %v128, %v164
  %v201 = vmax.f32 %v129, %v165
  %v202 = vmax.f32 %v130, %v166
  %v203 = vmax.f32 %v131, %v167
  %v204 = vmax.f32 %v132, %v168
  %v205 = vmax.f32 %v133, %v169
  %v206 = vmax.f32 %v134, %v170
  %v207 = vmax.f32 %v135, %v171
  %v208 = vmax.f32 %v136, %v172
  %v209 = vmax.f32 %v137, %v173
  %v210 = vmax.f32 %v138, %v174
  %v211 = vmax.f32 %v139, %v175
  %v212 = vmax.f32 %v140, %v176
  %v213 = vmax.f32 %v141, %v177
  %v214 = vmax.f32 %v142, %v178
  %v215 = vmax.f32 %v143, %v179
  %v216 = vmax.f32 %v144, %v180
  %v217 = vmax.f32 %v145, %v181
  %v218 = vmax.f32 %v146, %v182
  %v219 = vmax.f32 %v147, %v183
  %v220 = vmax.f32 %v148, %v184
  %v221 = vmax.f32 %v149, %v185
  %v222 = vmax.f32 %v150, %v186
  %v223 = vmax.f32 %v151, %v187
  %v224 = vmax.f32 %v152, %v188
  %v225 = vmax.f32 %v153, %v189
  %v226 = vmax.f32 %v154, %v190
  %v227 = vmax.f32 %v155, %v191
  %v228 = vmax.f32 %v156, %v192
  %v229 = vmax.f32 %v157, %v193
  %v230 = vmax.f32 %v158, %v194
  %v231 = vmax.f32 %v159, %v195
  %v232 = vmax.f32 %v160, %v196
  %v233 = vmax.f32 %v89, %v197
  %v234 = vmax.f32 %v90, %v198
  %v235 = vmax.f32 %v91, %v199
  %v236 = vmax.f32 %v92, %v200
  %v237 = vmax.f32 %v93, %v201
  %v238 = vmax.f32 %v94, %v202
  %v239 = vmax.f32 %v95, %v203
  %v240 = vmax.f32 %v96, %v204
  %v241 = vmax.f32 %v97, %v205
  %v242 = vmax.f32 %v98, %v206
  %v243 = vmax.f32 %v99, %v207
  %v244 = vmax.f32 %v100, %v208
  %v245 = vmax.f32 %v101, %v209
  %v246 = vmax.f32 %v102, %v210
  %v247 = vmax.f32 %v103, %v211
  %v248 = vmax.f32 %v104, %v212
  %v249 = vmax.f32 %v105, %v213
  %v250 = vmax.f32 %v106, %v214
  %v251 = vmax.f32 %v107, %v215
  %v252 = vmax.f32 %v108, %v216
  %v253 = vmax.f32 %v109, %v217
  %v254 = vmax.f32 %v110, %v218
  %v255 = vmax.f32 %v111, %v219
  %v256 = vmax.f32 %v112, %v220
  %v257 = vmax.f32 %v113, %v221
  %v258 = vmax.f32 %v114, %v222
  %v259 = vmax.f32 %v115, %v223
  %v260 = vmax.f32 %v116, %v224
  %v261 = vmax.f32 %v117, %v225
  %v262 = vmax.f32 %v118, %v226
  %v263 = vmax.f32 %v119, %v227
  %v264 = vmax.f32 %v120, %v228
  %v265 = vmax.f32 %v121, %v229
  %v266 = vmax.f32 %v122, %v230
  %v267 = vmax.f32 %v123, %v231
  %v268 = vmax.f32 %v124, %v232
  %269 = vst [vmem:[%s4] sm:$0xff] %v233
  %270 = vst [vmem:[%s4 + $0x8] sm:$0xff] %v234
  %271 = vst [vmem:[%s4 + $0x10] sm:$0xff] %v235
  %272 = vst [vmem:[%s4 + $0x18] sm:$0xff] %v236
  %273 = vst [vmem:[%s4 + $0x20] sm:$0xff] %v237
  %vm274 = vcmask 850944
  %275 = vst.msk [vmem:[%s4 + $0x28] sm:$0xff] %vm274, %v238
  %276 = vst [vmem:[%s4 + $0x30] sm:$0xff] %v239
  %277 = vst [vmem:[%s4 + $0x38] sm:$0xff] %v240
  %278 = vst [vmem:[%s4 + $0x40] sm:$0xff] %v241
  %279 = vst [vmem:[%s4 + $0x48] sm:$0xff] %v242
  %280 = vst [vmem:[%s4 + $0x50] sm:$0xff] %v243
  %281 = vst.msk [vmem:[%s4 + $0x58] sm:$0xff] %vm274, %v244
  %282 = vst [vmem:[%s4 + $0x60] sm:$0xff] %v245
  %283 = vst [vmem:[%s4 + $0x68] sm:$0xff] %v246
  %284 = vst [vmem:[%s4 + $0x70] sm:$0xff] %v247
  %285 = vst [vmem:[%s4 + $0x78] sm:$0xff] %v248
  %286 = vst [vmem:[%s4 + $0x80] sm:$0xff] %v249
  %287 = vst.msk [vmem:[%s4 + $0x88] sm:$0xff] %vm274, %v250
  %288 = vst [vmem:[%s4 + $0x90] sm:$0xff] %v251
  %289 = vst [vmem:[%s4 + $0x98] sm:$0xff] %v252
  %290 = vst [vmem:[%s4 + $0xa0] sm:$0xff] %v253
  %291 = vst [vmem:[%s4 + $0xa8] sm:$0xff] %v254
  %292 = vst [vmem:[%s4 + $0xb0] sm:$0xff] %v255
  %293 = vst.msk [vmem:[%s4 + $0xb8] sm:$0xff] %vm274, %v256
  %294 = vst [vmem:[%s4 + $0xc0] sm:$0xff] %v257
  %295 = vst [vmem:[%s4 + $0xc8] sm:$0xff] %v258
  %296 = vst [vmem:[%s4 + $0xd0] sm:$0xff] %v259
  %297 = vst [vmem:[%s4 + $0xd8] sm:$0xff] %v260
  %298 = vst [vmem:[%s4 + $0xe0] sm:$0xff] %v261
  %299 = vst.msk [vmem:[%s4 + $0xe8] sm:$0xff] %vm274, %v262
  %300 = vst [vmem:[%s4 + $0xf0] sm:$0xf] %v263
  %301 = vst [vmem:[%s4 + $0xf8] sm:$0xf] %v264
  %302 = vst [vmem:[%s4 + $0x100] sm:$0xf] %v265
  %303 = vst [vmem:[%s4 + $0x108] sm:$0xf] %v266
  %304 = vst [vmem:[%s4 + $0x110] sm:$0xf] %v267
  %vm305 = vcmask 846848
  %306 = vst.msk [vmem:[%s4 + $0x118] sm:$0xf] %vm305, %v268
  // Predicated region
  $region18: #{forward.6} parent=0 // pred_check
    _
  $region19: #{forward.6} parent=0 // pred_check_branch
    %308 = sbr.rel (0) target = $region21
  $region20: #{forward.6} parent=0 // pred_region
    _
  $region21: #{forward.6} parent=0 // pred_fallthru
    _
  // Predicated region
  $region22: #{forward.6} parent=0 // pred_check
    _
  $region23: #{forward.6} parent=0 // pred_check_branch
    %310 = sbr.rel (0) target = $region25
  $region24: #{forward.6} parent=0 // pred_region
    _
  $region25: #{forward.6} parent=0 // pred_fallthru
    _

// kernel: forward.7
$region0: #{forward.7}
  #allocation0 [shape = 'u32[]', space=smem, size = 0x4, offset = 0x4, fixed_abs, tag = 'smem constant byte address 0x4 - core index']
  #allocation1 [shape = 'u32[144,128]{1,0:T(1,128)}', space=vmem, size = 0x12000, scoped, tag = 'internal scratch']
  %s0 = inlined_call_operand.vmem [shape: bf16[3360,270], index: 0, kind: input, shape index: {}]
  %s1 = inlined_call_operand.vmem [shape: bf16[270,16], index: 1, kind: input, shape index: {}]
  %s2 = inlined_call_operand.vmem [shape: f32[1,16], index: 2, kind: input, shape index: {}]
  %s3 = inlined_call_operand.vmem [shape: f32[3360,16], index: 3, kind: output, shape index: {}]
  %s4 = sld [smem:[#allocation0]]
  $region45: #{forward.7} parent=0
    _
  %s6 = ssub.s32 1, %s4
  %s7 = scalar_select 0, %s6, %s4
  loop: start=0, step=1, limit=4
  $region2: #{forward.7} parent=0 // loop_pre_header
    _
  $region3: #{forward.7} parent=0 // loop_header
    %s9 = sphi 0, %s13
    %p10 = scmp.ge.s32.totalorder %s9, 4
    %s19 = sphi 0, %s21
    %s22 = sphi 0, %s19
    %s23 = sphi 0, %s22
    %s39 = sphi 0, %s23
    %s43 = sphi 0, %s43
    %s45 = sphi 0, %s43
    %s46 = sphi 0, %s45
    %s60 = sphi 0, %s46
    %s64 = sphi 0, %s64
    %s66 = sphi 0, %s64
    %s67 = sphi 0, %s66
    %s81 = sphi 0, %s67
    %s87 = sphi 0, %s89
    %s90 = sphi 0, %s87
    %s91 = sphi 0, %s90
    %s107 = sphi 0, %s91
  $region4: #{forward.7} parent=0 // loop_header_branch
    %12 = sbr.rel (%p10) target = $region8
  $region5: #{forward.7} parent=0 // loop_body
    %s14 = ssub.s32 %s9, 1
    %s15 = ssub.s32 %s9, 2
    %s16 = sadd.s32 %s9, 1
    %s17 = ssub.s32 %s9, %s16
    %p18 = scmp.eq.s32.totalorder %s17, 0
    %s20 = sadd.s32 %s19, 1
    %s21 = scalar_select %p18, %s19, %s20
    %p24 = pneg %p18
    %p25 = scmp.eq.s32.totalorder %s9, 1
    %p26 = por %p24, %p25
    %p27 = scmp.ne.s32.totalorder %s19, %s22
    %p28 = scmp.eq.s32.totalorder %s9, 0
    %p29 = por %p27, %p28
    %p30 = scmp.ne.s32.totalorder %s19, %s22
    %p31 = scmp.eq.s32.totalorder %s14, 1
    %p32 = por %p30, %p31
    %p33 = scmp.ne.s32.totalorder %s22, %s23
    %p34 = scmp.eq.s32.totalorder %s14, 0
    %p35 = por %p33, %p34
    %p36 = scmp.ne.s32.totalorder %s22, %s23
    %p37 = scmp.eq.s32.totalorder %s15, 1
    %p38 = por %p36, %p37
    %p40 = scmp.ne.s32.totalorder %s23, %s39
    %p41 = scmp.eq.s32.totalorder %s15, 0
    %p42 = por %p40, %p41
    %s44 = sadd.s32 %s43, 1
    %p47 = scmp.eq.s32.totalorder %s9, 1
    %p48 = scmp.ne.s32.totalorder %s43, %s45
    %p49 = scmp.eq.s32.totalorder %s9, 0
    %p50 = por %p48, %p49
    %p51 = scmp.ne.s32.totalorder %s43, %s45
    %p52 = scmp.eq.s32.totalorder %s14, 1
    %p53 = por %p51, %p52
    %p54 = scmp.ne.s32.totalorder %s45, %s46
    %p55 = scmp.eq.s32.totalorder %s14, 0
    %p56 = por %p54, %p55
    %p57 = scmp.ne.s32.totalorder %s45, %s46
    %p58 = scmp.eq.s32.totalorder %s15, 1
    %p59 = por %p57, %p58
    %p61 = scmp.ne.s32.totalorder %s46, %s60
    %p62 = scmp.eq.s32.totalorder %s15, 0
    %p63 = por %p61, %p62
    %s65 = sadd.s32 %s64, 1
    %p68 = scmp.eq.s32.totalorder %s9, 1
    %p69 = scmp.ne.s32.totalorder %s64, %s66
    %p70 = scmp.eq.s32.totalorder %s9, 0
    %p71 = por %p69, %p70
    %p72 = scmp.ne.s32.totalorder %s64, %s66
    %p73 = scmp.eq.s32.totalorder %s14, 1
    %p74 = por %p72, %p73
    %p75 = scmp.ne.s32.totalorder %s66, %s67
    %p76 = scmp.eq.s32.totalorder %s14, 0
    %p77 = por %p75, %p76
    %p78 = scmp.ne.s32.totalorder %s66, %s67
    %p79 = scmp.eq.s32.totalorder %s15, 1
    %p80 = por %p78, %p79
    %p82 = scmp.ne.s32.totalorder %s67, %s81
    %p83 = scmp.eq.s32.totalorder %s15, 0
    %p84 = por %p82, %p83
    %s85 = ssub.s32 %s9, %s16
    %p86 = scmp.eq.s32.totalorder %s85, 0
    %s88 = sadd.s32 %s87, 1
    %s89 = scalar_select %p86, %s87, %s88
    %p92 = pneg %p86
    %p93 = scmp.eq.s32.totalorder %s9, 1
    %p94 = por %p92, %p93
    %p95 = scmp.ne.s32.totalorder %s87, %s90
    %p96 = scmp.eq.s32.totalorder %s9, 0
    %p97 = por %p95, %p96
    %p98 = scmp.ne.s32.totalorder %s87, %s90
    %p99 = scmp.eq.s32.totalorder %s14, 1
    %p100 = por %p98, %p99
    %p101 = scmp.ne.s32.totalorder %s90, %s91
    %p102 = scmp.eq.s32.totalorder %s14, 0
    %p103 = por %p101, %p102
    %p104 = scmp.ne.s32.totalorder %s90, %s91
    %p105 = scmp.eq.s32.totalorder %s15, 1
    %p106 = por %p104, %p105
    %p108 = scmp.ne.s32.totalorder %s91, %s107
    %p109 = scmp.eq.s32.totalorder %s15, 0
    %p110 = por %p108, %p109
    %p111 = scmp.le.s32.totalorder 1, %s9
    %p112 = scmp.lt.s32.totalorder %s9, 3
    %p113 = pnand %p111, %p112
    %p114 = pneg %p113
    // Predicated region
    $region9: #{forward.7} parent=5 // pred_check
      _
    $region10: #{forward.7} parent=5 // pred_check_branch
      %116 = sbr.rel (%p113) target = $region12
    $region11: #{forward.7} parent=5 // pred_region
      %s117 = ssub.s32 %s9, 1
      // Predicated region
      $region13: #{forward.7} parent=11 // pred_check
        %p118 = pneg %p56
      $region14: #{forward.7} parent=11 // pred_check_branch
        %120 = sbr.rel (%p118) target = $region16
      $region15: #{forward.7} parent=11 // pred_region
        _
      $region16: #{forward.7} parent=11 // pred_fallthru
        _
      // Predicated region
      $region17: #{forward.7} parent=11 // pred_check
        %p121 = pneg %p77
      $region18: #{forward.7} parent=11 // pred_check_branch
        %123 = sbr.rel (%p121) target = $region20
      $region19: #{forward.7} parent=11 // pred_region
        _
      $region20: #{forward.7} parent=11 // pred_fallthru
        _
    $region12: #{forward.7} parent=5 // pred_fallthru
      _
    %p124 = scmp.lt.s32.totalorder %s9, 2
    // Predicated region
    $region21: #{forward.7} parent=5 // pred_check
      %p125 = pneg %p124
    $region22: #{forward.7} parent=5 // pred_check_branch
      %127 = sbr.rel (%p125) target = $region24
    $region23: #{forward.7} parent=5 // pred_region
      // Predicated region
      $region25: #{forward.7} parent=23 // pred_check
        %p128 = pneg %p29
      $region26: #{forward.7} parent=23 // pred_check_branch
        %130 = sbr.rel (%p128) target = $region28
      $region27: #{forward.7} parent=23 // pred_region
        %s131 = smul.u32 210, %s9
        %p132 = scmp.lt.s32.totalorder %s131, 419
        %s133 = scalar_select %p132, %s131, 419
        %s134 = smul.addr %s133, 3
        %s135 = smul.addr %s134, 4
        %s136 = scalar_lea.vmem %s0, %s135
        %s137 = smul.u32 210, %s9
      $region28: #{forward.7} parent=23 // pred_fallthru
        _
    $region24: #{forward.7} parent=5 // pred_fallthru
      _
    %p138 = scmp.le.s32.totalorder 1, %s9
    %p139 = scmp.lt.s32.totalorder %s9, 3
    %p140 = pnand %p138, %p139
    %p141 = pneg %p140
    // Predicated region
    $region29: #{forward.7} parent=5 // pred_check
      _
    $region30: #{forward.7} parent=5 // pred_check_branch
      %143 = sbr.rel (%p140) target = $region32
    $region31: #{forward.7} parent=5 // pred_region
      %s144 = ssub.s32 %s9, 1
      %s145 = smul.u32 210, %s14
      %p146 = scmp.lt.s32.totalorder %s145, 419
      %s147 = scalar_select %p146, %s145, 419
      %s148 = smul.addr %s147, 3
      %s149 = smul.addr %s148, 4
      %s150 = scalar_lea.vmem %s0, %s149
      %p151 = pneg %p35
      %p152 = pneg %p32
      %p153 = pneg %p56
      %p154 = pneg %p53
      %p155 = pneg %p77
      %p156 = pneg %p74
      %p157 = pneg %p103
      %p158 = pneg %p100
      %s159 = smul.u32 210, %s14
      %p160 = scmp.lt.s32.totalorder %s159, 419
      %s161 = scalar_select %p160, %s159, 419
      %s162 = smul.addr %s161, 8
      %s163 = scalar_lea.vmem %s3, %s162
      %s164 = smul.u32 210, %s14
      %p165 = scmp.lt.s32.totalorder %s164, 419
      %s166 = scalar_select %p165, %s164, 419
      %s167 = smul.addr %s166, 3
      %s168 = smul.addr %s167, 4
      %s169 = scalar_lea.vmem %s0, %s168
      %s170 = smul.u32 210, %s14
      %s171 = smul.u32 210, %s14
      %p172 = scmp.lt.s32.totalorder %s171, 419
      %s173 = scalar_select %p172, %s171, 419
      %s174 = smul.addr %s173, 8
      %s175 = scalar_lea.vmem %s3, %s174
      %s176 = smul.u32 210, %s14
      %v178 = vld [vmem:[%s169] sm:$0xff]
      %v179 = vld [vmem:[%s169 + $0x8] sm:$0xf]
      %v180 = vld [vmem:[%s169 + $0xc] sm:$0xff]
      %v181 = vld [vmem:[%s169 + $0x14] sm:$0xf]
      %v182 = vld [vmem:[%s169 + $0x18] sm:$0xff]
      %v183 = vld [vmem:[%s169 + $0x20] sm:$0xf]
      %v184 = vld [vmem:[%s169 + $0x24] sm:$0xff]
      %v185 = vld [vmem:[%s169 + $0x2c] sm:$0xf]
      %v186 = vld [vmem:[%s169 + $0x30] sm:$0xff]
      %v187 = vld [vmem:[%s169 + $0x38] sm:$0xf]
      %v188 = vld [vmem:[%s169 + $0x3c] sm:$0xff]
      %v189 = vld [vmem:[%s169 + $0x44] sm:$0xf]
      %v190 = vld [vmem:[%s169 + $0x48] sm:$0xff]
      %v191 = vld [vmem:[%s169 + $0x50] sm:$0xf]
      %v192 = vld [vmem:[%s169 + $0x54] sm:$0xff]
      %v193 = vld [vmem:[%s169 + $0x5c] sm:$0xf]
      %v194 = vld [vmem:[%s169 + $0x60] sm:$0xff]
      %v195 = vld [vmem:[%s169 + $0x68] sm:$0xf]
      %v196 = vld [vmem:[%s169 + $0x6c] sm:$0xff]
      %v197 = vld [vmem:[%s169 + $0x74] sm:$0xf]
      %v198 = vld [vmem:[%s169 + $0x78] sm:$0xff]
      %v199 = vld [vmem:[%s169 + $0x80] sm:$0xf]
      %v200 = vld [vmem:[%s169 + $0x84] sm:$0xff]
      %v201 = vld [vmem:[%s169 + $0x8c] sm:$0xf]
      %v202 = vld [vmem:[%s169 + $0x90] sm:$0xff]
      %v203 = vld [vmem:[%s169 + $0x98] sm:$0xf]
      %v204 = vld [vmem:[%s169 + $0x9c] sm:$0xff]
      %v205 = vld [vmem:[%s169 + $0xa4] sm:$0xf]
      %v206 = vld [vmem:[%s169 + $0xa8] sm:$0xff]
      %v207 = vld [vmem:[%s169 + $0xb0] sm:$0xf]
      %v208 = vld [vmem:[%s169 + $0xb4] sm:$0xff]
      %v209 = vld [vmem:[%s169 + $0xbc] sm:$0xf]
      %v210 = vld [vmem:[%s169 + $0xc0] sm:$0xff]
      %v211 = vld [vmem:[%s169 + $0xc8] sm:$0xf]
      %v212 = vld [vmem:[%s169 + $0xcc] sm:$0xff]
      %v213 = vld [vmem:[%s169 + $0xd4] sm:$0xf]
      %v214 = vld [vmem:[%s169 + $0xd8] sm:$0xff]
      %v215 = vld [vmem:[%s169 + $0xe0] sm:$0xf]
      %v216 = vld [vmem:[%s169 + $0xe4] sm:$0xff]
      %v217 = vld [vmem:[%s169 + $0xec] sm:$0xf]
      %v218 = vld [vmem:[%s169 + $0xf0] sm:$0xff]
      %v219 = vld [vmem:[%s169 + $0xf8] sm:$0xf]
      %v220 = vld [vmem:[%s169 + $0xfc] sm:$0xff]
      %v221 = vld [vmem:[%s169 + $0x104] sm:$0xf]
      %v222 = vld [vmem:[%s169 + $0x108] sm:$0xff]
      %v223 = vld [vmem:[%s169 + $0x110] sm:$0xf]
      %v224 = vld [vmem:[%s169 + $0x114] sm:$0xff]
      %v225 = vld [vmem:[%s169 + $0x11c] sm:$0xf]
      %v226 = vld [vmem:[%s169 + $0x120] sm:$0xff]
      %v227 = vld [vmem:[%s169 + $0x128] sm:$0xf]
      %v228 = vld [vmem:[%s169 + $0x12c] sm:$0xff]
      %v229 = vld [vmem:[%s169 + $0x134] sm:$0xf]
      %v230 = vld [vmem:[%s169 + $0x138] sm:$0xff]
      %v231 = vld [vmem:[%s169 + $0x140] sm:$0xf]
      %v232 = vld [vmem:[%s169 + $0x144] sm:$0xff]
      %v233 = vld [vmem:[%s169 + $0x14c] sm:$0xf]
      %v234 = vld [vmem:[%s169 + $0x150] sm:$0xff]
      %v235 = vld [vmem:[%s169 + $0x158] sm:$0xf]
      %v236 = vld [vmem:[%s169 + $0x15c] sm:$0xff]
      %v237 = vld [vmem:[%s169 + $0x164] sm:$0xf]
      %v238 = vld [vmem:[%s169 + $0x168] sm:$0xff]
      %v239 = vld [vmem:[%s169 + $0x170] sm:$0xf]
      %v240 = vld [vmem:[%s169 + $0x174] sm:$0xff]
      %v241 = vld [vmem:[%s169 + $0x17c] sm:$0xf]
      %v242 = vld [vmem:[%s169 + $0x180] sm:$0xff]
      %v243 = vld [vmem:[%s169 + $0x188] sm:$0xf]
      %v244 = vld [vmem:[%s169 + $0x18c] sm:$0xff]
      %v245 = vld [vmem:[%s169 + $0x194] sm:$0xf]
      %v246 = vld [vmem:[%s169 + $0x198] sm:$0xff]
      %v247 = vld [vmem:[%s169 + $0x1a0] sm:$0xf]
      %v248 = vld [vmem:[%s169 + $0x1a4] sm:$0xff]
      %v249 = vld [vmem:[%s169 + $0x1ac] sm:$0xf]
      %v250 = vld [vmem:[%s169 + $0x1b0] sm:$0xff]
      %v251 = vld [vmem:[%s169 + $0x1b8] sm:$0xf]
      %v252 = vld [vmem:[%s169 + $0x1bc] sm:$0xff]
      %v253 = vld [vmem:[%s169 + $0x1c4] sm:$0xf]
      %v254 = vld [vmem:[%s169 + $0x1c8] sm:$0xff]
      %v255 = vld [vmem:[%s169 + $0x1d0] sm:$0xf]
      %v256 = vld [vmem:[%s169 + $0x1d4] sm:$0xff]
      %v257 = vld [vmem:[%s169 + $0x1dc] sm:$0xf]
      %v258 = vld [vmem:[%s169 + $0x1e0] sm:$0xff]
      %v259 = vld [vmem:[%s169 + $0x1e8] sm:$0xf]
      %v260 = vld [vmem:[%s169 + $0x1ec] sm:$0xff]
      %v261 = vld [vmem:[%s169 + $0x1f4] sm:$0xf]
      %v262 = vld [vmem:[%s169 + $0x1f8] sm:$0xff]
      %v263 = vld [vmem:[%s169 + $0x200] sm:$0xf]
      %v264 = vld [vmem:[%s169 + $0x204] sm:$0xff]
      %v265 = vld [vmem:[%s169 + $0x20c] sm:$0xf]
      %v266 = vld [vmem:[%s169 + $0x210] sm:$0xff]
      %v267 = vld [vmem:[%s169 + $0x218] sm:$0xf]
      %v268 = vld [vmem:[%s169 + $0x21c] sm:$0xff]
      %v269 = vld [vmem:[%s169 + $0x224] sm:$0xf]
      %v270 = vld [vmem:[%s169 + $0x228] sm:$0xff]
      %v271 = vld [vmem:[%s169 + $0x230] sm:$0xf]
      %v272 = vld [vmem:[%s169 + $0x234] sm:$0xff]
      %v273 = vld [vmem:[%s169 + $0x23c] sm:$0xf]
      %v274 = vld [vmem:[%s169 + $0x240] sm:$0xff]
      %v275 = vld [vmem:[%s169 + $0x248] sm:$0xf]
      %v276 = vld [vmem:[%s169 + $0x24c] sm:$0xff]
      %v277 = vld [vmem:[%s169 + $0x254] sm:$0xf]
      %v278 = vld [vmem:[%s169 + $0x258] sm:$0xff]
      %v279 = vld [vmem:[%s169 + $0x260] sm:$0xf]
      %v280 = vld [vmem:[%s169 + $0x264] sm:$0xff]
      %v281 = vld [vmem:[%s169 + $0x26c] sm:$0xf]
      %v282 = vld [vmem:[%s169 + $0x270] sm:$0xff]
      %v283 = vld [vmem:[%s169 + $0x278] sm:$0xf]
      %v284 = vld [vmem:[%s169 + $0x27c] sm:$0xff]
      %v285 = vld [vmem:[%s169 + $0x284] sm:$0xf]
      %v286 = vld [vmem:[%s169 + $0x288] sm:$0xff]
      %v287 = vld [vmem:[%s169 + $0x290] sm:$0xf]
      %v288 = vld [vmem:[%s169 + $0x294] sm:$0xff]
      %v289 = vld [vmem:[%s169 + $0x29c] sm:$0xf]
      %v290 = vld [vmem:[%s169 + $0x2a0] sm:$0xff]
      %v291 = vld [vmem:[%s169 + $0x2a8] sm:$0xf]
      %v292 = vld [vmem:[%s169 + $0x2ac] sm:$0xff]
      %v293 = vld [vmem:[%s169 + $0x2b4] sm:$0xf]
      %v294 = vld [vmem:[%s169 + $0x2b8] sm:$0xff]
      %v295 = vld [vmem:[%s169 + $0x2c0] sm:$0xf]
      %v296 = vld [vmem:[%s169 + $0x2c4] sm:$0xff]
      %v297 = vld [vmem:[%s169 + $0x2cc] sm:$0xf]
      %v298 = vld [vmem:[%s169 + $0x2d0] sm:$0xff]
      %v299 = vld [vmem:[%s169 + $0x2d8] sm:$0xf]
      %v300 = vld [vmem:[%s169 + $0x2dc] sm:$0xff]
      %v301 = vld [vmem:[%s169 + $0x2e4] sm:$0xf]
      %v302 = vld [vmem:[%s169 + $0x2e8] sm:$0xff]
      %v303 = vld [vmem:[%s169 + $0x2f0] sm:$0xf]
      %v304 = vld [vmem:[%s169 + $0x2f4] sm:$0xff]
      %v305 = vld [vmem:[%s169 + $0x2fc] sm:$0xf]
      %v306 = vld [vmem:[%s169 + $0x300] sm:$0xff]
      %v307 = vld [vmem:[%s169 + $0x308] sm:$0xf]
      %v308 = vld [vmem:[%s169 + $0x30c] sm:$0xff]
      %v309 = vld [vmem:[%s169 + $0x314] sm:$0xf]
      %v310 = vld [vmem:[%s169 + $0x318] sm:$0xff]
      %v311 = vld [vmem:[%s169 + $0x320] sm:$0xf]
      %v312 = vld [vmem:[%s169 + $0x324] sm:$0xff]
      %v313 = vld [vmem:[%s169 + $0x32c] sm:$0xf]
      %v314 = vld [vmem:[%s169 + $0x330] sm:$0xff]
      %v315 = vld [vmem:[%s169 + $0x338] sm:$0xf]
      %v316 = vld [vmem:[%s169 + $0x33c] sm:$0xff]
      %v317 = vld [vmem:[%s169 + $0x344] sm:$0xf]
      %v318 = vld [vmem:[%s169 + $0x348] sm:$0xff]
      %v319 = vld [vmem:[%s169 + $0x350] sm:$0xf]
      %v320 = vld [vmem:[%s169 + $0x354] sm:$0xff]
      %v321 = vld [vmem:[%s169 + $0x35c] sm:$0xf]
      %v322 = vld [vmem:[%s169 + $0x360] sm:$0xff]
      %v323 = vld [vmem:[%s169 + $0x368] sm:$0xf]
      %v324 = vld [vmem:[%s169 + $0x36c] sm:$0xff]
      %v325 = vld [vmem:[%s169 + $0x374] sm:$0xf]
      %v326 = vld [vmem:[%s169 + $0x378] sm:$0xff]
      %v327 = vld [vmem:[%s169 + $0x380] sm:$0xf]
      %v328 = vld [vmem:[%s169 + $0x384] sm:$0xff]
      %v329 = vld [vmem:[%s169 + $0x38c] sm:$0xf]
      %v330 = vld [vmem:[%s169 + $0x390] sm:$0xff]
      %v331 = vld [vmem:[%s169 + $0x398] sm:$0xf]
      %v332 = vld [vmem:[%s169 + $0x39c] sm:$0xff]
      %v333 = vld [vmem:[%s169 + $0x3a4] sm:$0xf]
      %v334 = vld [vmem:[%s169 + $0x3a8] sm:$0xff]
      %v335 = vld [vmem:[%s169 + $0x3b0] sm:$0xf]
      %v336 = vld [vmem:[%s169 + $0x3b4] sm:$0xff]
      %v337 = vld [vmem:[%s169 + $0x3bc] sm:$0xf]
      %v338 = vld [vmem:[%s169 + $0x3c0] sm:$0xff]
      %v339 = vld [vmem:[%s169 + $0x3c8] sm:$0xf]
      %v340 = vld [vmem:[%s169 + $0x3cc] sm:$0xff]
      %v341 = vld [vmem:[%s169 + $0x3d4] sm:$0xf]
      %v342 = vld [vmem:[%s169 + $0x3d8] sm:$0xff]
      %v343 = vld [vmem:[%s169 + $0x3e0] sm:$0xf]
      %v344 = vld [vmem:[%s169 + $0x3e4] sm:$0xff]
      %v345 = vld [vmem:[%s169 + $0x3ec] sm:$0xf]
      %v346 = vld [vmem:[%s169 + $0x3f0] sm:$0xff]
      %v347 = vld [vmem:[%s169 + $0x3f8] sm:$0xf]
      %v348 = vld [vmem:[%s169 + $0x3fc] sm:$0xff]
      %v349 = vld [vmem:[%s169 + $0x404] sm:$0xf]
      %v350 = vld [vmem:[%s169 + $0x408] sm:$0xff]
      %v351 = vld [vmem:[%s169 + $0x410] sm:$0xf]
      %v352 = vld [vmem:[%s169 + $0x414] sm:$0xff]
      %v353 = vld [vmem:[%s169 + $0x41c] sm:$0xf]
      %v354 = vld [vmem:[%s169 + $0x420] sm:$0xff]
      %v355 = vld [vmem:[%s169 + $0x428] sm:$0xf]
      %v356 = vld [vmem:[%s169 + $0x42c] sm:$0xff]
      %v357 = vld [vmem:[%s169 + $0x434] sm:$0xf]
      %v358 = vld [vmem:[%s169 + $0x438] sm:$0xff]
      %v359 = vld [vmem:[%s169 + $0x440] sm:$0xf]
      %v360 = vld [vmem:[%s169 + $0x444] sm:$0xff]
      %v361 = vld [vmem:[%s169 + $0x44c] sm:$0xf]
      %v362 = vld [vmem:[%s169 + $0x450] sm:$0xff]
      %v363 = vld [vmem:[%s169 + $0x458] sm:$0xf]
      %v364 = vld [vmem:[%s169 + $0x45c] sm:$0xff]
      %v365 = vld [vmem:[%s169 + $0x464] sm:$0xf]
      %v366 = vld [vmem:[%s169 + $0x468] sm:$0xff]
      %v367 = vld [vmem:[%s169 + $0x470] sm:$0xf]
      %v368 = vld [vmem:[%s169 + $0x474] sm:$0xff]
      %v369 = vld [vmem:[%s169 + $0x47c] sm:$0xf]
      %v370 = vld [vmem:[%s169 + $0x480] sm:$0xff]
      %v371 = vld [vmem:[%s169 + $0x488] sm:$0xf]
      %v372 = vld [vmem:[%s169 + $0x48c] sm:$0xff]
      %v373 = vld [vmem:[%s169 + $0x494] sm:$0xf]
      %v374 = vld [vmem:[%s169 + $0x498] sm:$0xff]
      %v375 = vld [vmem:[%s169 + $0x4a0] sm:$0xf]
      %v376 = vld [vmem:[%s169 + $0x4a4] sm:$0xff]
      %v377 = vld [vmem:[%s169 + $0x4ac] sm:$0xf]
      %v378 = vld [vmem:[%s169 + $0x4b0] sm:$0xff]
      %v379 = vld [vmem:[%s169 + $0x4b8] sm:$0xf]
      %v380 = vld [vmem:[%s169 + $0x4bc] sm:$0xff]
      %v381 = vld [vmem:[%s169 + $0x4c4] sm:$0xf]
      %v382 = vld [vmem:[%s169 + $0x4c8] sm:$0xff]
      %v383 = vld [vmem:[%s169 + $0x4d0] sm:$0xf]
      %v384 = vld [vmem:[%s169 + $0x4d4] sm:$0xff]
      %v385 = vld [vmem:[%s169 + $0x4dc] sm:$0xf]
      %v386 = vld [vmem:[%s169 + $0x4e0] sm:$0xff]
      %v387 = vld [vmem:[%s169 + $0x4e8] sm:$0xf]
      %v388 = vld [vmem:[%s169 + $0x4ec] sm:$0xff]
      %v389 = vld [vmem:[%s169 + $0x4f4] sm:$0xf]
      %v390 = vld [vmem:[%s169 + $0x4f8] sm:$0xff]
      %v391 = vld [vmem:[%s169 + $0x500] sm:$0xf]
      %v392 = vld [vmem:[%s169 + $0x504] sm:$0xff]
      %v393 = vld [vmem:[%s169 + $0x50c] sm:$0xf]
      %v394 = vld [vmem:[%s169 + $0x510] sm:$0xff]
      %v395 = vld [vmem:[%s169 + $0x518] sm:$0xf]
      %v396 = vld [vmem:[%s169 + $0x51c] sm:$0xff]
      %v397 = vld [vmem:[%s169 + $0x524] sm:$0xf]
      %v398 = vld [vmem:[%s169 + $0x528] sm:$0xff]
      %v399 = vld [vmem:[%s169 + $0x530] sm:$0xf]
      %v400 = vld [vmem:[%s169 + $0x534] sm:$0xff]
      %v401 = vld [vmem:[%s169 + $0x53c] sm:$0xf]
      %v402 = vld [vmem:[%s169 + $0x540] sm:$0xff]
      %v403 = vld [vmem:[%s169 + $0x548] sm:$0xf]
      %v404 = vld [vmem:[%s169 + $0x54c] sm:$0xff]
      %v405 = vld [vmem:[%s169 + $0x554] sm:$0xf]
      %v406 = vld [vmem:[%s169 + $0x558] sm:$0xff]
      %v407 = vld [vmem:[%s169 + $0x560] sm:$0xf]
      %v408 = vld [vmem:[%s169 + $0x564] sm:$0xff]
      %v409 = vld [vmem:[%s169 + $0x56c] sm:$0xf]
      %v410 = vld [vmem:[%s169 + $0x570] sm:$0xff]
      %v411 = vld [vmem:[%s169 + $0x578] sm:$0xf]
      %v412 = vld [vmem:[%s169 + $0x57c] sm:$0xff]
      %v413 = vld [vmem:[%s169 + $0x584] sm:$0xf]
      %v414 = vld [vmem:[%s169 + $0x588] sm:$0xff]
      %v415 = vld [vmem:[%s169 + $0x590] sm:$0xf]
      %v416 = vld [vmem:[%s169 + $0x594] sm:$0xff]
      %v417 = vld [vmem:[%s169 + $0x59c] sm:$0xf]
      %v418 = vld [vmem:[%s169 + $0x5a0] sm:$0xff]
      %v419 = vld [vmem:[%s169 + $0x5a8] sm:$0xf]
      %v420 = vld [vmem:[%s169 + $0x5ac] sm:$0xff]
      %v421 = vld [vmem:[%s169 + $0x5b4] sm:$0xf]
      %v422 = vld [vmem:[%s169 + $0x5b8] sm:$0xff]
      %v423 = vld [vmem:[%s169 + $0x5c0] sm:$0xf]
      %v424 = vld [vmem:[%s169 + $0x5c4] sm:$0xff]
      %v425 = vld [vmem:[%s169 + $0x5cc] sm:$0xf]
      %v426 = vld [vmem:[%s169 + $0x5d0] sm:$0xff]
      %v427 = vld [vmem:[%s169 + $0x5d8] sm:$0xf]
      %v428 = vld [vmem:[%s169 + $0x5dc] sm:$0xff]
      %v429 = vld [vmem:[%s169 + $0x5e4] sm:$0xf]
      %v430 = vld [vmem:[%s169 + $0x5e8] sm:$0xff]
      %v431 = vld [vmem:[%s169 + $0x5f0] sm:$0xf]
      %v432 = vld [vmem:[%s169 + $0x5f4] sm:$0xff]
      %v433 = vld [vmem:[%s169 + $0x5fc] sm:$0xf]
      %v434 = vld [vmem:[%s169 + $0x600] sm:$0xff]
      %v435 = vld [vmem:[%s169 + $0x608] sm:$0xf]
      %v436 = vld [vmem:[%s169 + $0x60c] sm:$0xff]
      %v437 = vld [vmem:[%s169 + $0x614] sm:$0xf]
      %v438 = vld [vmem:[%s169 + $0x618] sm:$0xff]
      %v439 = vld [vmem:[%s169 + $0x620] sm:$0xf]
      %v440 = vld [vmem:[%s169 + $0x624] sm:$0xff]
      %v441 = vld [vmem:[%s169 + $0x62c] sm:$0xf]
      %v442 = vld [vmem:[%s169 + $0x630] sm:$0xff]
      %v443 = vld [vmem:[%s169 + $0x638] sm:$0xf]
      %v444 = vld [vmem:[%s169 + $0x63c] sm:$0xff]
      %v445 = vld [vmem:[%s169 + $0x644] sm:$0xf]
      %v446 = vld [vmem:[%s169 + $0x648] sm:$0xff]
      %v447 = vld [vmem:[%s169 + $0x650] sm:$0xf]
      %v448 = vld [vmem:[%s169 + $0x654] sm:$0xff]
      %v449 = vld [vmem:[%s169 + $0x65c] sm:$0xf]
      %v450 = vld [vmem:[%s169 + $0x660] sm:$0xff]
      %v451 = vld [vmem:[%s169 + $0x668] sm:$0xf]
      %v452 = vld [vmem:[%s169 + $0x66c] sm:$0xff]
      %v453 = vld [vmem:[%s169 + $0x674] sm:$0xf]
      %v454 = vld [vmem:[%s169 + $0x678] sm:$0xff]
      %v455 = vld [vmem:[%s169 + $0x680] sm:$0xf]
      %v456 = vld [vmem:[%s169 + $0x684] sm:$0xff]
      %v457 = vld [vmem:[%s169 + $0x68c] sm:$0xf]
      %v458 = vld [vmem:[%s169 + $0x690] sm:$0xff]
      %v459 = vld [vmem:[%s169 + $0x698] sm:$0xf]
      %v460 = vld [vmem:[%s169 + $0x69c] sm:$0xff]
      %v461 = vld [vmem:[%s169 + $0x6a4] sm:$0xf]
      %v462 = vld [vmem:[%s169 + $0x6a8] sm:$0xff]
      %v463 = vld [vmem:[%s169 + $0x6b0] sm:$0xf]
      %v464 = vld [vmem:[%s169 + $0x6b4] sm:$0xff]
      %v465 = vld [vmem:[%s169 + $0x6bc] sm:$0xf]
      %v466 = vld [vmem:[%s169 + $0x6c0] sm:$0xff]
      %v467 = vld [vmem:[%s169 + $0x6c8] sm:$0xf]
      %v468 = vld [vmem:[%s169 + $0x6cc] sm:$0xff]
      %v469 = vld [vmem:[%s169 + $0x6d4] sm:$0xf]
      %v470 = vld [vmem:[%s169 + $0x6d8] sm:$0xff]
      %v471 = vld [vmem:[%s169 + $0x6e0] sm:$0xf]
      %v472 = vld [vmem:[%s169 + $0x6e4] sm:$0xff]
      %v473 = vld [vmem:[%s169 + $0x6ec] sm:$0xf]
      %v474 = vld [vmem:[%s169 + $0x6f0] sm:$0xff]
      %v475 = vld [vmem:[%s169 + $0x6f8] sm:$0xf]
      %v476 = vld [vmem:[%s169 + $0x6fc] sm:$0xff]
      %v477 = vld [vmem:[%s169 + $0x704] sm:$0xf]
      %v478 = vld [vmem:[%s169 + $0x708] sm:$0xff]
      %v479 = vld [vmem:[%s169 + $0x710] sm:$0xf]
      %v480 = vld [vmem:[%s169 + $0x714] sm:$0xff]
      %v481 = vld [vmem:[%s169 + $0x71c] sm:$0xf]
      %v482 = vld [vmem:[%s169 + $0x720] sm:$0xff]
      %v483 = vld [vmem:[%s169 + $0x728] sm:$0xf]
      %v484 = vld [vmem:[%s169 + $0x72c] sm:$0xff]
      %v485 = vld [vmem:[%s169 + $0x734] sm:$0xf]
      %v486 = vld [vmem:[%s169 + $0x738] sm:$0xff]
      %v487 = vld [vmem:[%s169 + $0x740] sm:$0xf]
      %v488 = vld [vmem:[%s169 + $0x744] sm:$0xff]
      %v489 = vld [vmem:[%s169 + $0x74c] sm:$0xf]
      %v490 = vld [vmem:[%s169 + $0x750] sm:$0xff]
      %v491 = vld [vmem:[%s169 + $0x758] sm:$0xf]
      %v492 = vld [vmem:[%s169 + $0x75c] sm:$0xff]
      %v493 = vld [vmem:[%s169 + $0x764] sm:$0xf]
      %v494 = vld [vmem:[%s169 + $0x768] sm:$0xff]
      %v495 = vld [vmem:[%s169 + $0x770] sm:$0xf]
      %v496 = vld [vmem:[%s169 + $0x774] sm:$0xff]
      %v497 = vld [vmem:[%s169 + $0x77c] sm:$0xf]
      %v498 = vld [vmem:[%s169 + $0x780] sm:$0xff]
      %v499 = vld [vmem:[%s169 + $0x788] sm:$0xf]
      %v500 = vld [vmem:[%s169 + $0x78c] sm:$0xff]
      %v501 = vld [vmem:[%s169 + $0x794] sm:$0xf]
      %v502 = vld [vmem:[%s169 + $0x798] sm:$0xff]
      %v503 = vld [vmem:[%s169 + $0x7a0] sm:$0xf]
      %v504 = vld [vmem:[%s169 + $0x7a4] sm:$0xff]
      %v505 = vld [vmem:[%s169 + $0x7ac] sm:$0xf]
      %v506 = vld [vmem:[%s169 + $0x7b0] sm:$0xff]
      %v507 = vld [vmem:[%s169 + $0x7b8] sm:$0xf]
      %v508 = vld [vmem:[%s169 + $0x7bc] sm:$0xff]
      %v509 = vld [vmem:[%s169 + $0x7c4] sm:$0xf]
      %v510 = vld [vmem:[%s169 + $0x7c8] sm:$0xff]
      %v511 = vld [vmem:[%s169 + $0x7d0] sm:$0xf]
      %v512 = vld [vmem:[%s169 + $0x7d4] sm:$0xff]
      %v513 = vld [vmem:[%s169 + $0x7dc] sm:$0xf]
      %v514 = vld [vmem:[%s169 + $0x7e0] sm:$0xff]
      %v515 = vld [vmem:[%s169 + $0x7e8] sm:$0xf]
      %v516 = vld [vmem:[%s169 + $0x7ec] sm:$0xff]
      %v517 = vld [vmem:[%s169 + $0x7f4] sm:$0xf]
      %v518 = vld [vmem:[%s169 + $0x7f8] sm:$0xff]
      %v519 = vld [vmem:[%s169 + $0x800] sm:$0xf]
      %v520 = vld [vmem:[%s169 + $0x804] sm:$0xff]
      %v521 = vld [vmem:[%s169 + $0x80c] sm:$0xf]
      %v522 = vld [vmem:[%s169 + $0x810] sm:$0xff]
      %v523 = vld [vmem:[%s169 + $0x818] sm:$0xf]
      %v524 = vld [vmem:[%s169 + $0x81c] sm:$0xff]
      %v525 = vld [vmem:[%s169 + $0x824] sm:$0xf]
      %v526 = vld [vmem:[%s169 + $0x828] sm:$0xff]
      %v527 = vld [vmem:[%s169 + $0x830] sm:$0xf]
      %v528 = vld [vmem:[%s169 + $0x834] sm:$0xff]
      %v529 = vld [vmem:[%s169 + $0x83c] sm:$0xf]
      %v530 = vld [vmem:[%s169 + $0x840] sm:$0xff]
      %v531 = vld [vmem:[%s169 + $0x848] sm:$0xf]
      %v532 = vld [vmem:[%s169 + $0x84c] sm:$0xff]
      %v533 = vld [vmem:[%s169 + $0x854] sm:$0xf]
      %v534 = vld [vmem:[%s169 + $0x858] sm:$0xff]
      %v535 = vld [vmem:[%s169 + $0x860] sm:$0xf]
      %v536 = vld [vmem:[%s169 + $0x864] sm:$0xff]
      %v537 = vld [vmem:[%s169 + $0x86c] sm:$0xf]
      %v538 = vld [vmem:[%s169 + $0x870] sm:$0xff]
      %v539 = vld [vmem:[%s169 + $0x878] sm:$0xf]
      %v540 = vld [vmem:[%s169 + $0x87c] sm:$0xff]
      %v541 = vld [vmem:[%s169 + $0x884] sm:$0xf]
      %v542 = vld [vmem:[%s169 + $0x888] sm:$0xff]
      %v543 = vld [vmem:[%s169 + $0x890] sm:$0xf]
      %v544 = vld [vmem:[%s169 + $0x894] sm:$0xff]
      %v545 = vld [vmem:[%s169 + $0x89c] sm:$0xf]
      %v546 = vld [vmem:[%s169 + $0x8a0] sm:$0xff]
      %v547 = vld [vmem:[%s169 + $0x8a8] sm:$0xf]
      %v548 = vld [vmem:[%s169 + $0x8ac] sm:$0xff]
      %v549 = vld [vmem:[%s169 + $0x8b4] sm:$0xf]
      %v550 = vld [vmem:[%s169 + $0x8b8] sm:$0xff]
      %v551 = vld [vmem:[%s169 + $0x8c0] sm:$0xf]
      %v552 = vld [vmem:[%s169 + $0x8c4] sm:$0xff]
      %v553 = vld [vmem:[%s169 + $0x8cc] sm:$0xf]
      %v554 = vld [vmem:[%s169 + $0x8d0] sm:$0xff]
      %v555 = vld [vmem:[%s169 + $0x8d8] sm:$0xf]
      %v556 = vld [vmem:[%s169 + $0x8dc] sm:$0xff]
      %v557 = vld [vmem:[%s169 + $0x8e4] sm:$0xf]
      %v558 = vld [vmem:[%s169 + $0x8e8] sm:$0xff]
      %v559 = vld [vmem:[%s169 + $0x8f0] sm:$0xf]
      %v560 = vld [vmem:[%s169 + $0x8f4] sm:$0xff]
      %v561 = vld [vmem:[%s169 + $0x8fc] sm:$0xf]
      %v562 = vld [vmem:[%s169 + $0x900] sm:$0xff]
      %v563 = vld [vmem:[%s169 + $0x908] sm:$0xf]
      %v564 = vld [vmem:[%s169 + $0x90c] sm:$0xff]
      %v565 = vld [vmem:[%s169 + $0x914] sm:$0xf]
      %v566 = vld [vmem:[%s169 + $0x918] sm:$0xff]
      %v567 = vld [vmem:[%s169 + $0x920] sm:$0xf]
      %v568 = vld [vmem:[%s169 + $0x924] sm:$0xff]
      %v569 = vld [vmem:[%s169 + $0x92c] sm:$0xf]
      %v570 = vld [vmem:[%s169 + $0x930] sm:$0xff]
      %v571 = vld [vmem:[%s169 + $0x938] sm:$0xf]
      %v572 = vld [vmem:[%s169 + $0x93c] sm:$0xff]
      %v573 = vld [vmem:[%s169 + $0x944] sm:$0xf]
      %v574 = vld [vmem:[%s169 + $0x948] sm:$0xff]
      %v575 = vld [vmem:[%s169 + $0x950] sm:$0xf]
      %v576 = vld [vmem:[%s169 + $0x954] sm:$0xff]
      %v577 = vld [vmem:[%s169 + $0x95c] sm:$0xf]
      %v578 = vld [vmem:[%s169 + $0x960] sm:$0xff]
      %v579 = vld [vmem:[%s169 + $0x968] sm:$0xf]
      %v580 = vld [vmem:[%s169 + $0x96c] sm:$0xff]
      %v581 = vld [vmem:[%s169 + $0x974] sm:$0xf]
      %v582 = vld [vmem:[%s169 + $0x978] sm:$0xff]
      %v583 = vld [vmem:[%s169 + $0x980] sm:$0xf]
      %v584 = vld [vmem:[%s169 + $0x984] sm:$0xff]
      %v585 = vld [vmem:[%s169 + $0x98c] sm:$0xf]
      %v586 = vld [vmem:[%s169 + $0x990] sm:$0xff]
      %v587 = vld [vmem:[%s169 + $0x998] sm:$0xf]
      %v588 = vld [vmem:[%s169 + $0x99c] sm:$0xff]
      %v589 = vld [vmem:[%s169 + $0x9a4] sm:$0xf]
      %v590 = vld [vmem:[%s169 + $0x9a8] sm:$0xff]
      %v591 = vld [vmem:[%s169 + $0x9b0] sm:$0xf]
      %v592 = vld [vmem:[%s169 + $0x9b4] sm:$0xff]
      %v593 = vld [vmem:[%s169 + $0x9bc] sm:$0xf]
      %v594 = vld [vmem:[%s169 + $0x9c0] sm:$0xff]
      %v595 = vld [vmem:[%s169 + $0x9c8] sm:$0xf]
      %v596 = vld [vmem:[%s169 + $0x9cc] sm:$0xff]
      %v597 = vld [vmem:[%s169 + $0x9d4] sm:$0xf]
      %v598 = vld [vmem:[%s1] sm:$0xf]
      %v599 = vld [vmem:[%s1 + $0x4] sm:$0xf]
      %v600 = vld [vmem:[%s1 + $0x8] sm:$0xf]
      %v601 = vld [vmem:[%s1 + $0xc] sm:$0xf]
      %v602 = vld [vmem:[%s1 + $0x10] sm:$0xf]
      %v603 = vld [vmem:[%s1 + $0x14] sm:$0xf]
      %v604 = vld [vmem:[%s1 + $0x18] sm:$0xf]
      %v605 = vld [vmem:[%s1 + $0x1c] sm:$0xf]
      %v606 = vld [vmem:[%s1 + $0x20] sm:$0xf]
      %v607 = vld [vmem:[%s1 + $0x24] sm:$0xf]
      %v608 = vld [vmem:[%s1 + $0x28] sm:$0xf]
      %v609 = vld [vmem:[%s1 + $0x2c] sm:$0xf]
      %v610 = vld [vmem:[%s1 + $0x30] sm:$0xf]
      %v611 = vld [vmem:[%s1 + $0x34] sm:$0xf]
      %v612 = vld [vmem:[%s1 + $0x38] sm:$0xf]
      %v613 = vld [vmem:[%s1 + $0x3c] sm:$0xf]
      %v614 = vld [vmem:[%s1 + $0x40] sm:$0xf]
      %v615 = vld [vmem:[%s1 + $0x44] sm:$0xf]
      %v616 = vld [vmem:[%s1 + $0x48] sm:$0xf]
      %v617 = vld [vmem:[%s1 + $0x4c] sm:$0xf]
      %v618 = vld [vmem:[%s1 + $0x50] sm:$0xf]
      %v619 = vld [vmem:[%s1 + $0x54] sm:$0xf]
      %v620 = vld [vmem:[%s1 + $0x58] sm:$0xf]
      %v621 = vld [vmem:[%s1 + $0x5c] sm:$0xf]
      %v622 = vld [vmem:[%s1 + $0x60] sm:$0xf]
      %v623 = vld [vmem:[%s1 + $0x64] sm:$0xf]
      %v624 = vld [vmem:[%s1 + $0x68] sm:$0xf]
      %v625 = vld [vmem:[%s1 + $0x6c] sm:$0xf]
      %v626 = vld [vmem:[%s1 + $0x70] sm:$0xf]
      %v627 = vld [vmem:[%s1 + $0x74] sm:$0xf]
      %v628 = vld [vmem:[%s1 + $0x78] sm:$0xf]
      %v629 = vld [vmem:[%s1 + $0x7c] sm:$0xf]
      %v630 = vld [vmem:[%s1 + $0x80] sm:$0xf]
      %v631 = vld [vmem:[%s1 + $0x84] sm:$0x7]
      %v632 = vld [vmem:[%s2] sm:$0x1]
      %v634 = vlaneseq
      %v635 = vshrl.u32 %v634, 7
      %v636 = vsub.s32 0, %v635
      %v637 = vrot.slane %v632, %v636
      %v1059 = vunpack.c.l.b16 %v178
      %v1060 = vunpack.c.h.b16 %v178
      %v1061 = vunpack.c.l.b16 %v179
      %v1062 = vunpack.c.l.b16 %v180
      %v1063 = vunpack.c.h.b16 %v180
      %v1064 = vunpack.c.l.b16 %v181
      %v1065 = vunpack.c.l.b16 %v182
      %v1066 = vunpack.c.h.b16 %v182
      %v1067 = vunpack.c.l.b16 %v183
      %v1068 = vunpack.c.l.b16 %v184
      %v1069 = vunpack.c.h.b16 %v184
      %v1070 = vunpack.c.l.b16 %v185
      %v1071 = vunpack.c.l.b16 %v186
      %v1072 = vunpack.c.h.b16 %v186
      %v1073 = vunpack.c.l.b16 %v187
      %v1074 = vunpack.c.l.b16 %v188
      %v1075 = vunpack.c.h.b16 %v188
      %v1076 = vunpack.c.l.b16 %v189
      %v1077 = vunpack.c.l.b16 %v190
      %v1078 = vunpack.c.h.b16 %v190
      %v1079 = vunpack.c.l.b16 %v191
      %v1080 = vunpack.c.l.b16 %v192
      %v1081 = vunpack.c.h.b16 %v192
      %v1082 = vunpack.c.l.b16 %v193
      %v1083 = vunpack.c.l.b16 %v194
      %v1084 = vunpack.c.h.b16 %v194
      %v1085 = vunpack.c.l.b16 %v195
      %v1086 = vunpack.c.l.b16 %v196
      %v1087 = vunpack.c.h.b16 %v196
      %v1088 = vunpack.c.l.b16 %v197
      %v1089 = vunpack.c.l.b16 %v198
      %v1090 = vunpack.c.h.b16 %v198
      %v1091 = vunpack.c.l.b16 %v199
      %v1092 = vunpack.c.l.b16 %v200
      %v1093 = vunpack.c.h.b16 %v200
      %v1094 = vunpack.c.l.b16 %v201
      %v1095 = vunpack.c.l.b16 %v202
      %v1096 = vunpack.c.h.b16 %v202
      %v1097 = vunpack.c.l.b16 %v203
      %v1098 = vunpack.c.l.b16 %v204
      %v1099 = vunpack.c.h.b16 %v204
      %v1100 = vunpack.c.l.b16 %v205
      %v1101 = vunpack.c.l.b16 %v206
      %v1102 = vunpack.c.h.b16 %v206
      %v1103 = vunpack.c.l.b16 %v207
      %v1104 = vunpack.c.l.b16 %v208
      %v1105 = vunpack.c.h.b16 %v208
      %v1106 = vunpack.c.l.b16 %v209
      %v1107 = vunpack.c.l.b16 %v210
      %v1108 = vunpack.c.h.b16 %v210
      %v1109 = vunpack.c.l.b16 %v211
      %v1110 = vunpack.c.l.b16 %v212
      %v1111 = vunpack.c.h.b16 %v212
      %v1112 = vunpack.c.l.b16 %v213
      %v1113 = vunpack.c.l.b16 %v214
      %v1114 = vunpack.c.h.b16 %v214
      %v1115 = vunpack.c.l.b16 %v215
      %v1116 = vunpack.c.l.b16 %v216
      %v1117 = vunpack.c.h.b16 %v216
      %v1118 = vunpack.c.l.b16 %v217
      %v1119 = vunpack.c.l.b16 %v218
      %v1120 = vunpack.c.h.b16 %v218
      %v1121 = vunpack.c.l.b16 %v219
      %v1122 = vunpack.c.l.b16 %v220
      %v1123 = vunpack.c.h.b16 %v220
      %v1124 = vunpack.c.l.b16 %v221
      %v1125 = vunpack.c.l.b16 %v222
      %v1126 = vunpack.c.h.b16 %v222
      %v1127 = vunpack.c.l.b16 %v223
      %v1128 = vunpack.c.l.b16 %v224
      %v1129 = vunpack.c.h.b16 %v224
      %v1130 = vunpack.c.l.b16 %v225
      %v1131 = vunpack.c.l.b16 %v226
      %v1132 = vunpack.c.h.b16 %v226
      %v1133 = vunpack.c.l.b16 %v227
      %v1134 = vunpack.c.l.b16 %v228
      %v1135 = vunpack.c.h.b16 %v228
      %v1136 = vunpack.c.l.b16 %v229
      %v1137 = vunpack.c.l.b16 %v230
      %v1138 = vunpack.c.h.b16 %v230
      %v1139 = vunpack.c.l.b16 %v231
      %v1140 = vunpack.c.l.b16 %v232
      %v1141 = vunpack.c.h.b16 %v232
      %v1142 = vunpack.c.l.b16 %v233
      %v1143 = vunpack.c.l.b16 %v234
      %v1144 = vunpack.c.h.b16 %v234
      %v1145 = vunpack.c.l.b16 %v235
      %v1146 = vunpack.c.l.b16 %v236
      %v1147 = vunpack.c.h.b16 %v236
      %v1148 = vunpack.c.l.b16 %v237
      %v1149 = vunpack.c.l.b16 %v238
      %v1150 = vunpack.c.h.b16 %v238
      %v1151 = vunpack.c.l.b16 %v239
      %v1152 = vunpack.c.l.b16 %v240
      %v1153 = vunpack.c.h.b16 %v240
      %v1154 = vunpack.c.l.b16 %v241
      %v1155 = vunpack.c.l.b16 %v242
      %v1156 = vunpack.c.h.b16 %v242
      %v1157 = vunpack.c.l.b16 %v243
      %v1158 = vunpack.c.l.b16 %v244
      %v1159 = vunpack.c.h.b16 %v244
      %v1160 = vunpack.c.l.b16 %v245
      %v1161 = vunpack.c.l.b16 %v246
      %v1162 = vunpack.c.h.b16 %v246
      %v1163 = vunpack.c.l.b16 %v247
      %v1164 = vunpack.c.l.b16 %v248
      %v1165 = vunpack.c.h.b16 %v248
      %v1166 = vunpack.c.l.b16 %v249
      %v1167 = vunpack.c.l.b16 %v250
      %v1168 = vunpack.c.h.b16 %v250
      %v1169 = vunpack.c.l.b16 %v251
      %v1170 = vunpack.c.l.b16 %v252
      %v1171 = vunpack.c.h.b16 %v252
      %v1172 = vunpack.c.l.b16 %v253
      %v1173 = vunpack.c.l.b16 %v254
      %v1174 = vunpack.c.h.b16 %v254
      %v1175 = vunpack.c.l.b16 %v255
      %v1176 = vunpack.c.l.b16 %v256
      %v1177 = vunpack.c.h.b16 %v256
      %v1178 = vunpack.c.l.b16 %v257
      %v1179 = vunpack.c.l.b16 %v258
      %v1180 = vunpack.c.h.b16 %v258
      %v1181 = vunpack.c.l.b16 %v259
      %v1182 = vunpack.c.l.b16 %v260
      %v1183 = vunpack.c.h.b16 %v260
      %v1184 = vunpack.c.l.b16 %v261
      %v1185 = vunpack.c.l.b16 %v262
      %v1186 = vunpack.c.h.b16 %v262
      %v1187 = vunpack.c.l.b16 %v263
      %v1188 = vunpack.c.l.b16 %v264
      %v1189 = vunpack.c.h.b16 %v264
      %v1190 = vunpack.c.l.b16 %v265
      %v1191 = vunpack.c.l.b16 %v266
      %v1192 = vunpack.c.h.b16 %v266
      %v1193 = vunpack.c.l.b16 %v267
      %v1194 = vunpack.c.l.b16 %v268
      %v1195 = vunpack.c.h.b16 %v268
      %v1196 = vunpack.c.l.b16 %v269
      %v1197 = vunpack.c.l.b16 %v270
      %v1198 = vunpack.c.h.b16 %v270
      %v1199 = vunpack.c.l.b16 %v271
      %v1200 = vunpack.c.l.b16 %v272
      %v1201 = vunpack.c.h.b16 %v272
      %v1202 = vunpack.c.l.b16 %v273
      %v1203 = vunpack.c.l.b16 %v274
      %v1204 = vunpack.c.h.b16 %v274
      %v1205 = vunpack.c.l.b16 %v275
      %v1206 = vunpack.c.l.b16 %v276
      %v1207 = vunpack.c.h.b16 %v276
      %v1208 = vunpack.c.l.b16 %v277
      %v1209 = vunpack.c.l.b16 %v278
      %v1210 = vunpack.c.h.b16 %v278
      %v1211 = vunpack.c.l.b16 %v279
      %v1212 = vunpack.c.l.b16 %v280
      %v1213 = vunpack.c.h.b16 %v280
      %v1214 = vunpack.c.l.b16 %v281
      %v1215 = vunpack.c.l.b16 %v282
      %v1216 = vunpack.c.h.b16 %v282
      %v1217 = vunpack.c.l.b16 %v283
      %v1218 = vunpack.c.l.b16 %v284
      %v1219 = vunpack.c.h.b16 %v284
      %v1220 = vunpack.c.l.b16 %v285
      %v1221 = vunpack.c.l.b16 %v286
      %v1222 = vunpack.c.h.b16 %v286
      %v1223 = vunpack.c.l.b16 %v287
      %v1224 = vunpack.c.l.b16 %v288
      %v1225 = vunpack.c.h.b16 %v288
      %v1226 = vunpack.c.l.b16 %v289
      %v1227 = vunpack.c.l.b16 %v290
      %v1228 = vunpack.c.h.b16 %v290
      %v1229 = vunpack.c.l.b16 %v291
      %v1230 = vunpack.c.l.b16 %v292
      %v1231 = vunpack.c.h.b16 %v292
      %v1232 = vunpack.c.l.b16 %v293
      %v1233 = vunpack.c.l.b16 %v294
      %v1234 = vunpack.c.h.b16 %v294
      %v1235 = vunpack.c.l.b16 %v295
      %v1236 = vunpack.c.l.b16 %v296
      %v1237 = vunpack.c.h.b16 %v296
      %v1238 = vunpack.c.l.b16 %v297
      %v1239 = vunpack.c.l.b16 %v298
      %v1240 = vunpack.c.h.b16 %v298
      %v1241 = vunpack.c.l.b16 %v299
      %v1242 = vunpack.c.l.b16 %v300
      %v1243 = vunpack.c.h.b16 %v300
      %v1244 = vunpack.c.l.b16 %v301
      %v1245 = vunpack.c.l.b16 %v302
      %v1246 = vunpack.c.h.b16 %v302
      %v1247 = vunpack.c.l.b16 %v303
      %v1248 = vunpack.c.l.b16 %v304
      %v1249 = vunpack.c.h.b16 %v304
      %v1250 = vunpack.c.l.b16 %v305
      %v1251 = vunpack.c.l.b16 %v306
      %v1252 = vunpack.c.h.b16 %v306
      %v1253 = vunpack.c.l.b16 %v307
      %v1254 = vunpack.c.l.b16 %v308
      %v1255 = vunpack.c.h.b16 %v308
      %v1256 = vunpack.c.l.b16 %v309
      %v1257 = vunpack.c.l.b16 %v310
      %v1258 = vunpack.c.h.b16 %v310
      %v1259 = vunpack.c.l.b16 %v311
      %v1260 = vunpack.c.l.b16 %v312
      %v1261 = vunpack.c.h.b16 %v312
      %v1262 = vunpack.c.l.b16 %v313
      %v1263 = vunpack.c.l.b16 %v314
      %v1264 = vunpack.c.h.b16 %v314
      %v1265 = vunpack.c.l.b16 %v315
      %v1266 = vunpack.c.l.b16 %v316
      %v1267 = vunpack.c.h.b16 %v316
      %v1268 = vunpack.c.l.b16 %v317
      %v1269 = vunpack.c.l.b16 %v318
      %v1270 = vunpack.c.h.b16 %v318
      %v1271 = vunpack.c.l.b16 %v319
      %v1272 = vunpack.c.l.b16 %v320
      %v1273 = vunpack.c.h.b16 %v320
      %v1274 = vunpack.c.l.b16 %v321
      %v1275 = vunpack.c.l.b16 %v322
      %v1276 = vunpack.c.h.b16 %v322
      %v1277 = vunpack.c.l.b16 %v323
      %v1278 = vunpack.c.l.b16 %v324
      %v1279 = vunpack.c.h.b16 %v324
      %v1280 = vunpack.c.l.b16 %v325
      %v1281 = vunpack.c.l.b16 %v326
      %v1282 = vunpack.c.h.b16 %v326
      %v1283 = vunpack.c.l.b16 %v327
      %v1284 = vunpack.c.l.b16 %v328
      %v1285 = vunpack.c.h.b16 %v328
      %v1286 = vunpack.c.l.b16 %v329
      %v1287 = vunpack.c.l.b16 %v330
      %v1288 = vunpack.c.h.b16 %v330
      %v1289 = vunpack.c.l.b16 %v331
      %v1290 = vunpack.c.l.b16 %v332
      %v1291 = vunpack.c.h.b16 %v332
      %v1292 = vunpack.c.l.b16 %v333
      %v1293 = vunpack.c.l.b16 %v334
      %v1294 = vunpack.c.h.b16 %v334
      %v1295 = vunpack.c.l.b16 %v335
      %v1296 = vunpack.c.l.b16 %v336
      %v1297 = vunpack.c.h.b16 %v336
      %v1298 = vunpack.c.l.b16 %v337
      %v1299 = vunpack.c.l.b16 %v338
      %v1300 = vunpack.c.h.b16 %v338
      %v1301 = vunpack.c.l.b16 %v339
      %v1302 = vunpack.c.l.b16 %v340
      %v1303 = vunpack.c.h.b16 %v340
      %v1304 = vunpack.c.l.b16 %v341
      %v1305 = vunpack.c.l.b16 %v342
      %v1306 = vunpack.c.h.b16 %v342
      %v1307 = vunpack.c.l.b16 %v343
      %v1308 = vunpack.c.l.b16 %v344
      %v1309 = vunpack.c.h.b16 %v344
      %v1310 = vunpack.c.l.b16 %v345
      %v1311 = vunpack.c.l.b16 %v346
      %v1312 = vunpack.c.h.b16 %v346
      %v1313 = vunpack.c.l.b16 %v347
      %v1314 = vunpack.c.l.b16 %v348
      %v1315 = vunpack.c.h.b16 %v348
      %v1316 = vunpack.c.l.b16 %v349
      %v1317 = vunpack.c.l.b16 %v350
      %v1318 = vunpack.c.h.b16 %v350
      %v1319 = vunpack.c.l.b16 %v351
      %v1320 = vunpack.c.l.b16 %v352
      %v1321 = vunpack.c.h.b16 %v352
      %v1322 = vunpack.c.l.b16 %v353
      %v1323 = vunpack.c.l.b16 %v354
      %v1324 = vunpack.c.h.b16 %v354
      %v1325 = vunpack.c.l.b16 %v355
      %v1326 = vunpack.c.l.b16 %v356
      %v1327 = vunpack.c.h.b16 %v356
      %v1328 = vunpack.c.l.b16 %v357
      %v1329 = vunpack.c.l.b16 %v358
      %v1330 = vunpack.c.h.b16 %v358
      %v1331 = vunpack.c.l.b16 %v359
      %v1332 = vunpack.c.l.b16 %v360
      %v1333 = vunpack.c.h.b16 %v360
      %v1334 = vunpack.c.l.b16 %v361
      %v1335 = vunpack.c.l.b16 %v362
      %v1336 = vunpack.c.h.b16 %v362
      %v1337 = vunpack.c.l.b16 %v363
      %v1338 = vunpack.c.l.b16 %v364
      %v1339 = vunpack.c.h.b16 %v364
      %v1340 = vunpack.c.l.b16 %v365
      %v1341 = vunpack.c.l.b16 %v366
      %v1342 = vunpack.c.h.b16 %v366
      %v1343 = vunpack.c.l.b16 %v367
      %v1344 = vunpack.c.l.b16 %v368
      %v1345 = vunpack.c.h.b16 %v368
      %v1346 = vunpack.c.l.b16 %v369
      %v1347 = vunpack.c.l.b16 %v370
      %v1348 = vunpack.c.h.b16 %v370
      %v1349 = vunpack.c.l.b16 %v371
      %v1350 = vunpack.c.l.b16 %v372
      %v1351 = vunpack.c.h.b16 %v372
      %v1352 = vunpack.c.l.b16 %v373
      %v1353 = vunpack.c.l.b16 %v374
      %v1354 = vunpack.c.h.b16 %v374
      %v1355 = vunpack.c.l.b16 %v375
      %v1356 = vunpack.c.l.b16 %v376
      %v1357 = vunpack.c.h.b16 %v376
      %v1358 = vunpack.c.l.b16 %v377
      %v1359 = vunpack.c.l.b16 %v378
      %v1360 = vunpack.c.h.b16 %v378
      %v1361 = vunpack.c.l.b16 %v379
      %v1362 = vunpack.c.l.b16 %v380
      %v1363 = vunpack.c.h.b16 %v380
      %v1364 = vunpack.c.l.b16 %v381
      %v1365 = vunpack.c.l.b16 %v382
      %v1366 = vunpack.c.h.b16 %v382
      %v1367 = vunpack.c.l.b16 %v383
      %v1368 = vunpack.c.l.b16 %v384
      %v1369 = vunpack.c.h.b16 %v384
      %v1370 = vunpack.c.l.b16 %v385
      %v1371 = vunpack.c.l.b16 %v386
      %v1372 = vunpack.c.h.b16 %v386
      %v1373 = vunpack.c.l.b16 %v387
      %v1374 = vunpack.c.l.b16 %v388
      %v1375 = vunpack.c.h.b16 %v388
      %v1376 = vunpack.c.l.b16 %v389
      %v1377 = vunpack.c.l.b16 %v390
      %v1378 = vunpack.c.h.b16 %v390
      %v1379 = vunpack.c.l.b16 %v391
      %v1380 = vunpack.c.l.b16 %v392
      %v1381 = vunpack.c.h.b16 %v392
      %v1382 = vunpack.c.l.b16 %v393
      %v1383 = vunpack.c.l.b16 %v394
      %v1384 = vunpack.c.h.b16 %v394
      %v1385 = vunpack.c.l.b16 %v395
      %v1386 = vunpack.c.l.b16 %v396
      %v1387 = vunpack.c.h.b16 %v396
      %v1388 = vunpack.c.l.b16 %v397
      %v1389 = vunpack.c.l.b16 %v398
      %v1390 = vunpack.c.h.b16 %v398
      %v1391 = vunpack.c.l.b16 %v399
      %v1392 = vunpack.c.l.b16 %v400
      %v1393 = vunpack.c.h.b16 %v400
      %v1394 = vunpack.c.l.b16 %v401
      %v1395 = vunpack.c.l.b16 %v402
      %v1396 = vunpack.c.h.b16 %v402
      %v1397 = vunpack.c.l.b16 %v403
      %v1398 = vunpack.c.l.b16 %v404
      %v1399 = vunpack.c.h.b16 %v404
      %v1400 = vunpack.c.l.b16 %v405
      %v1401 = vunpack.c.l.b16 %v406
      %v1402 = vunpack.c.h.b16 %v406
      %v1403 = vunpack.c.l.b16 %v407
      %v1404 = vunpack.c.l.b16 %v408
      %v1405 = vunpack.c.h.b16 %v408
      %v1406 = vunpack.c.l.b16 %v409
      %v1407 = vunpack.c.l.b16 %v410
      %v1408 = vunpack.c.h.b16 %v410
      %v1409 = vunpack.c.l.b16 %v411
      %v1410 = vunpack.c.l.b16 %v412
      %v1411 = vunpack.c.h.b16 %v412
      %v1412 = vunpack.c.l.b16 %v413
      %v1413 = vunpack.c.l.b16 %v414
      %v1414 = vunpack.c.h.b16 %v414
      %v1415 = vunpack.c.l.b16 %v415
      %v1416 = vunpack.c.l.b16 %v416
      %v1417 = vunpack.c.h.b16 %v416
      %v1418 = vunpack.c.l.b16 %v417
      %v1419 = vunpack.c.l.b16 %v418
      %v1420 = vunpack.c.h.b16 %v418
      %v1421 = vunpack.c.l.b16 %v419
      %v1422 = vunpack.c.l.b16 %v420
      %v1423 = vunpack.c.h.b16 %v420
      %v1424 = vunpack.c.l.b16 %v421
      %v1425 = vunpack.c.l.b16 %v422
      %v1426 = vunpack.c.h.b16 %v422
      %v1427 = vunpack.c.l.b16 %v423
      %v1428 = vunpack.c.l.b16 %v424
      %v1429 = vunpack.c.h.b16 %v424
      %v1430 = vunpack.c.l.b16 %v425
      %v1431 = vunpack.c.l.b16 %v426
      %v1432 = vunpack.c.h.b16 %v426
      %v1433 = vunpack.c.l.b16 %v427
      %v1434 = vunpack.c.l.b16 %v428
      %v1435 = vunpack.c.h.b16 %v428
      %v1436 = vunpack.c.l.b16 %v429
      %v1437 = vunpack.c.l.b16 %v430
      %v1438 = vunpack.c.h.b16 %v430
      %v1439 = vunpack.c.l.b16 %v431
      %v1440 = vunpack.c.l.b16 %v432
      %v1441 = vunpack.c.h.b16 %v432
      %v1442 = vunpack.c.l.b16 %v433
      %v1443 = vunpack.c.l.b16 %v434
      %v1444 = vunpack.c.h.b16 %v434
      %v1445 = vunpack.c.l.b16 %v435
      %v1446 = vunpack.c.l.b16 %v436
      %v1447 = vunpack.c.h.b16 %v436
      %v1448 = vunpack.c.l.b16 %v437
      %v1449 = vunpack.c.l.b16 %v438
      %v1450 = vunpack.c.h.b16 %v438
      %v1451 = vunpack.c.l.b16 %v439
      %v1452 = vunpack.c.l.b16 %v440
      %v1453 = vunpack.c.h.b16 %v440
      %v1454 = vunpack.c.l.b16 %v441
      %v1455 = vunpack.c.l.b16 %v442
      %v1456 = vunpack.c.h.b16 %v442
      %v1457 = vunpack.c.l.b16 %v443
      %v1458 = vunpack.c.l.b16 %v444
      %v1459 = vunpack.c.h.b16 %v444
      %v1460 = vunpack.c.l.b16 %v445
      %v1461 = vunpack.c.l.b16 %v446
      %v1462 = vunpack.c.h.b16 %v446
      %v1463 = vunpack.c.l.b16 %v447
      %v1464 = vunpack.c.l.b16 %v448
      %v1465 = vunpack.c.h.b16 %v448
      %v1466 = vunpack.c.l.b16 %v449
      %v1467 = vunpack.c.l.b16 %v450
      %v1468 = vunpack.c.h.b16 %v450
      %v1469 = vunpack.c.l.b16 %v451
      %v1470 = vunpack.c.l.b16 %v452
      %v1471 = vunpack.c.h.b16 %v452
      %v1472 = vunpack.c.l.b16 %v453
      %v1473 = vunpack.c.l.b16 %v454
      %v1474 = vunpack.c.h.b16 %v454
      %v1475 = vunpack.c.l.b16 %v455
      %v1476 = vunpack.c.l.b16 %v456
      %v1477 = vunpack.c.h.b16 %v456
      %v1478 = vunpack.c.l.b16 %v457
      %v1479 = vunpack.c.l.b16 %v458
      %v1480 = vunpack.c.h.b16 %v458
      %v1481 = vunpack.c.l.b16 %v459
      %v1482 = vunpack.c.l.b16 %v460
      %v1483 = vunpack.c.h.b16 %v460
      %v1484 = vunpack.c.l.b16 %v461
      %v1485 = vunpack.c.l.b16 %v462
      %v1486 = vunpack.c.h.b16 %v462
      %v1487 = vunpack.c.l.b16 %v463
      %v1488 = vunpack.c.l.b16 %v464
      %v1489 = vunpack.c.h.b16 %v464
      %v1490 = vunpack.c.l.b16 %v465
      %v1491 = vunpack.c.l.b16 %v466
      %v1492 = vunpack.c.h.b16 %v466
      %v1493 = vunpack.c.l.b16 %v467
      %v1494 = vunpack.c.l.b16 %v468
      %v1495 = vunpack.c.h.b16 %v468
      %v1496 = vunpack.c.l.b16 %v469
      %v1497 = vunpack.c.l.b16 %v470
      %v1498 = vunpack.c.h.b16 %v470
      %v1499 = vunpack.c.l.b16 %v471
      %v1500 = vunpack.c.l.b16 %v472
      %v1501 = vunpack.c.h.b16 %v472
      %v1502 = vunpack.c.l.b16 %v473
      %v1503 = vunpack.c.l.b16 %v474
      %v1504 = vunpack.c.h.b16 %v474
      %v1505 = vunpack.c.l.b16 %v475
      %v1506 = vunpack.c.l.b16 %v476
      %v1507 = vunpack.c.h.b16 %v476
      %v1508 = vunpack.c.l.b16 %v477
      %v1509 = vunpack.c.l.b16 %v478
      %v1510 = vunpack.c.h.b16 %v478
      %v1511 = vunpack.c.l.b16 %v479
      %v1512 = vunpack.c.l.b16 %v480
      %v1513 = vunpack.c.h.b16 %v480
      %v1514 = vunpack.c.l.b16 %v481
      %v1515 = vunpack.c.l.b16 %v482
      %v1516 = vunpack.c.h.b16 %v482
      %v1517 = vunpack.c.l.b16 %v483
      %v1518 = vunpack.c.l.b16 %v484
      %v1519 = vunpack.c.h.b16 %v484
      %v1520 = vunpack.c.l.b16 %v485
      %v1521 = vunpack.c.l.b16 %v486
      %v1522 = vunpack.c.h.b16 %v486
      %v1523 = vunpack.c.l.b16 %v487
      %v1524 = vunpack.c.l.b16 %v488
      %v1525 = vunpack.c.h.b16 %v488
      %v1526 = vunpack.c.l.b16 %v489
      %v1527 = vunpack.c.l.b16 %v490
      %v1528 = vunpack.c.h.b16 %v490
      %v1529 = vunpack.c.l.b16 %v491
      %v1530 = vunpack.c.l.b16 %v492
      %v1531 = vunpack.c.h.b16 %v492
      %v1532 = vunpack.c.l.b16 %v493
      %v1533 = vunpack.c.l.b16 %v494
      %v1534 = vunpack.c.h.b16 %v494
      %v1535 = vunpack.c.l.b16 %v495
      %v1536 = vunpack.c.l.b16 %v496
      %v1537 = vunpack.c.h.b16 %v496
      %v1538 = vunpack.c.l.b16 %v497
      %v1539 = vunpack.c.l.b16 %v498
      %v1540 = vunpack.c.h.b16 %v498
      %v1541 = vunpack.c.l.b16 %v499
      %v1542 = vunpack.c.l.b16 %v500
      %v1543 = vunpack.c.h.b16 %v500
      %v1544 = vunpack.c.l.b16 %v501
      %v1545 = vunpack.c.l.b16 %v502
      %v1546 = vunpack.c.h.b16 %v502
      %v1547 = vunpack.c.l.b16 %v503
      %v1548 = vunpack.c.l.b16 %v504
      %v1549 = vunpack.c.h.b16 %v504
      %v1550 = vunpack.c.l.b16 %v505
      %v1551 = vunpack.c.l.b16 %v506
      %v1552 = vunpack.c.h.b16 %v506
      %v1553 = vunpack.c.l.b16 %v507
      %v1554 = vunpack.c.l.b16 %v508
      %v1555 = vunpack.c.h.b16 %v508
      %v1556 = vunpack.c.l.b16 %v509
      %v1557 = vunpack.c.l.b16 %v510
      %v1558 = vunpack.c.h.b16 %v510
      %v1559 = vunpack.c.l.b16 %v511
      %v1560 = vunpack.c.l.b16 %v512
      %v1561 = vunpack.c.h.b16 %v512
      %v1562 = vunpack.c.l.b16 %v513
      %v1563 = vunpack.c.l.b16 %v514
      %v1564 = vunpack.c.h.b16 %v514
      %v1565 = vunpack.c.l.b16 %v515
      %v1566 = vunpack.c.l.b16 %v516
      %v1567 = vunpack.c.h.b16 %v516
      %v1568 = vunpack.c.l.b16 %v517
      %v1569 = vunpack.c.l.b16 %v518
      %v1570 = vunpack.c.h.b16 %v518
      %v1571 = vunpack.c.l.b16 %v519
      %v1572 = vunpack.c.l.b16 %v520
      %v1573 = vunpack.c.h.b16 %v520
      %v1574 = vunpack.c.l.b16 %v521
      %v1575 = vunpack.c.l.b16 %v522
      %v1576 = vunpack.c.h.b16 %v522
      %v1577 = vunpack.c.l.b16 %v523
      %v1578 = vunpack.c.l.b16 %v524
      %v1579 = vunpack.c.h.b16 %v524
      %v1580 = vunpack.c.l.b16 %v525
      %v1581 = vunpack.c.l.b16 %v526
      %v1582 = vunpack.c.h.b16 %v526
      %v1583 = vunpack.c.l.b16 %v527
      %v1584 = vunpack.c.l.b16 %v528
      %v1585 = vunpack.c.h.b16 %v528
      %v1586 = vunpack.c.l.b16 %v529
      %v1587 = vunpack.c.l.b16 %v530
      %v1588 = vunpack.c.h.b16 %v530
      %v1589 = vunpack.c.l.b16 %v531
      %v1590 = vunpack.c.l.b16 %v532
      %v1591 = vunpack.c.h.b16 %v532
      %v1592 = vunpack.c.l.b16 %v533
      %v1593 = vunpack.c.l.b16 %v534
      %v1594 = vunpack.c.h.b16 %v534
      %v1595 = vunpack.c.l.b16 %v535
      %v1596 = vunpack.c.l.b16 %v536
      %v1597 = vunpack.c.h.b16 %v536
      %v1598 = vunpack.c.l.b16 %v537
      %v1599 = vunpack.c.l.b16 %v538
      %v1600 = vunpack.c.h.b16 %v538
      %v1601 = vunpack.c.l.b16 %v539
      %v1602 = vunpack.c.l.b16 %v540
      %v1603 = vunpack.c.h.b16 %v540
      %v1604 = vunpack.c.l.b16 %v541
      %v1605 = vunpack.c.l.b16 %v542
      %v1606 = vunpack.c.h.b16 %v542
      %v1607 = vunpack.c.l.b16 %v543
      %v1608 = vunpack.c.l.b16 %v544
      %v1609 = vunpack.c.h.b16 %v544
      %v1610 = vunpack.c.l.b16 %v545
      %v1611 = vunpack.c.l.b16 %v546
      %v1612 = vunpack.c.h.b16 %v546
      %v1613 = vunpack.c.l.b16 %v547
      %v1614 = vunpack.c.l.b16 %v548
      %v1615 = vunpack.c.h.b16 %v548
      %v1616 = vunpack.c.l.b16 %v549
      %v1617 = vunpack.c.l.b16 %v550
      %v1618 = vunpack.c.h.b16 %v550
      %v1619 = vunpack.c.l.b16 %v551
      %v1620 = vunpack.c.l.b16 %v552
      %v1621 = vunpack.c.h.b16 %v552
      %v1622 = vunpack.c.l.b16 %v553
      %v1623 = vunpack.c.l.b16 %v554
      %v1624 = vunpack.c.h.b16 %v554
      %v1625 = vunpack.c.l.b16 %v555
      %v1626 = vunpack.c.l.b16 %v556
      %v1627 = vunpack.c.h.b16 %v556
      %v1628 = vunpack.c.l.b16 %v557
      %v1629 = vunpack.c.l.b16 %v558
      %v1630 = vunpack.c.h.b16 %v558
      %v1631 = vunpack.c.l.b16 %v559
      %v1632 = vunpack.c.l.b16 %v560
      %v1633 = vunpack.c.h.b16 %v560
      %v1634 = vunpack.c.l.b16 %v561
      %v1635 = vunpack.c.l.b16 %v562
      %v1636 = vunpack.c.h.b16 %v562
      %v1637 = vunpack.c.l.b16 %v563
      %v1638 = vunpack.c.l.b16 %v564
      %v1639 = vunpack.c.h.b16 %v564
      %v1640 = vunpack.c.l.b16 %v565
      %v1641 = vunpack.c.l.b16 %v566
      %v1642 = vunpack.c.h.b16 %v566
      %v1643 = vunpack.c.l.b16 %v567
      %v1644 = vunpack.c.l.b16 %v568
      %v1645 = vunpack.c.h.b16 %v568
      %v1646 = vunpack.c.l.b16 %v569
      %v1647 = vunpack.c.l.b16 %v570
      %v1648 = vunpack.c.h.b16 %v570
      %v1649 = vunpack.c.l.b16 %v571
      %v1650 = vunpack.c.l.b16 %v572
      %v1651 = vunpack.c.h.b16 %v572
      %v1652 = vunpack.c.l.b16 %v573
      %v1653 = vunpack.c.l.b16 %v574
      %v1654 = vunpack.c.h.b16 %v574
      %v1655 = vunpack.c.l.b16 %v575
      %v1656 = vunpack.c.l.b16 %v576
      %v1657 = vunpack.c.h.b16 %v576
      %v1658 = vunpack.c.l.b16 %v577
      %v1659 = vunpack.c.l.b16 %v578
      %v1660 = vunpack.c.h.b16 %v578
      %v1661 = vunpack.c.l.b16 %v579
      %v1662 = vunpack.c.l.b16 %v580
      %v1663 = vunpack.c.h.b16 %v580
      %v1664 = vunpack.c.l.b16 %v581
      %v1665 = vunpack.c.l.b16 %v582
      %v1666 = vunpack.c.h.b16 %v582
      %v1667 = vunpack.c.l.b16 %v583
      %v1668 = vunpack.c.l.b16 %v584
      %v1669 = vunpack.c.h.b16 %v584
      %v1670 = vunpack.c.l.b16 %v585
      %v1671 = vunpack.c.l.b16 %v586
      %v1672 = vunpack.c.h.b16 %v586
      %v1673 = vunpack.c.l.b16 %v587
      %v1674 = vunpack.c.l.b16 %v588
      %v1675 = vunpack.c.h.b16 %v588
      %v1676 = vunpack.c.l.b16 %v589
      %v1677 = vunpack.c.l.b16 %v590
      %v1678 = vunpack.c.h.b16 %v590
      %v1679 = vunpack.c.l.b16 %v591
      %v1680 = vunpack.c.l.b16 %v592
      %v1681 = vunpack.c.h.b16 %v592
      %v1682 = vunpack.c.l.b16 %v593
      %v1683 = vunpack.c.l.b16 %v594
      %v1684 = vunpack.c.h.b16 %v594
      %v1685 = vunpack.c.l.b16 %v595
      %v1686 = vunpack.c.l.b16 %v596
      %v1687 = vunpack.c.h.b16 %v596
      %v1688 = vunpack.c.l.b16 %v597
      %v1689 = vpack.c.b16 %v1062, %v1059
      %v1690 = vpack.c.b16 %v1063, %v1060
      %v1691 = vpack.c.b16 %v1064, %v1061
      %v1692 = vpack.c.b16 %v1068, %v1065
      %v1693 = vpack.c.b16 %v1069, %v1066
      %v1694 = vpack.c.b16 %v1070, %v1067
      %v1695 = vpack.c.b16 %v1074, %v1071
      %v1696 = vpack.c.b16 %v1075, %v1072
      %v1697 = vpack.c.b16 %v1076, %v1073
      %v1698 = vpack.c.b16 %v1080, %v1077
      %v1699 = vpack.c.b16 %v1081, %v1078
      %v1700 = vpack.c.b16 %v1082, %v1079
      %v1701 = vpack.c.b16 %v1086, %v1083
      %v1702 = vpack.c.b16 %v1087, %v1084
      %v1703 = vpack.c.b16 %v1088, %v1085
      %v1704 = vpack.c.b16 %v1092, %v1089
      %v1705 = vpack.c.b16 %v1093, %v1090
      %v1706 = vpack.c.b16 %v1094, %v1091
      %v1707 = vpack.c.b16 %v1098, %v1095
      %v1708 = vpack.c.b16 %v1099, %v1096
      %v1709 = vpack.c.b16 %v1100, %v1097
      %v1710 = vpack.c.b16 %v1104, %v1101
      %v1711 = vpack.c.b16 %v1105, %v1102
      %v1712 = vpack.c.b16 %v1106, %v1103
      %v1713 = vpack.c.b16 %v1110, %v1107
      %v1714 = vpack.c.b16 %v1111, %v1108
      %v1715 = vpack.c.b16 %v1112, %v1109
      %v1716 = vpack.c.b16 %v1116, %v1113
      %v1717 = vpack.c.b16 %v1117, %v1114
      %v1718 = vpack.c.b16 %v1118, %v1115
      %v1719 = vpack.c.b16 %v1122, %v1119
      %v1720 = vpack.c.b16 %v1123, %v1120
      %v1721 = vpack.c.b16 %v1124, %v1121
      %v1722 = vpack.c.b16 %v1128, %v1125
      %v1723 = vpack.c.b16 %v1129, %v1126
      %v1724 = vpack.c.b16 %v1130, %v1127
      %v1725 = vpack.c.b16 %v1134, %v1131
      %v1726 = vpack.c.b16 %v1135, %v1132
      %v1727 = vpack.c.b16 %v1136, %v1133
      %v1728 = vpack.c.b16 %v1140, %v1137
      %v1729 = vpack.c.b16 %v1141, %v1138
      %v1730 = vpack.c.b16 %v1142, %v1139
      %v1731 = vpack.c.b16 %v1146, %v1143
      %v1732 = vpack.c.b16 %v1147, %v1144
      %v1733 = vpack.c.b16 %v1148, %v1145
      %v1734 = vpack.c.b16 %v1152, %v1149
      %v1735 = vpack.c.b16 %v1153, %v1150
      %v1736 = vpack.c.b16 %v1154, %v1151
      %v1737 = vpack.c.b16 %v1158, %v1155
      %v1738 = vpack.c.b16 %v1159, %v1156
      %v1739 = vpack.c.b16 %v1160, %v1157
      %v1740 = vpack.c.b16 %v1164, %v1161
      %v1741 = vpack.c.b16 %v1165, %v1162
      %v1742 = vpack.c.b16 %v1166, %v1163
      %v1743 = vpack.c.b16 %v1170, %v1167
      %v1744 = vpack.c.b16 %v1171, %v1168
      %v1745 = vpack.c.b16 %v1172, %v1169
      %v1746 = vpack.c.b16 %v1176, %v1173
      %v1747 = vpack.c.b16 %v1177, %v1174
      %v1748 = vpack.c.b16 %v1178, %v1175
      %v1749 = vpack.c.b16 %v1182, %v1179
      %v1750 = vpack.c.b16 %v1183, %v1180
      %v1751 = vpack.c.b16 %v1184, %v1181
      %v1752 = vpack.c.b16 %v1188, %v1185
      %v1753 = vpack.c.b16 %v1189, %v1186
      %v1754 = vpack.c.b16 %v1190, %v1187
      %v1755 = vpack.c.b16 %v1194, %v1191
      %v1756 = vpack.c.b16 %v1195, %v1192
      %v1757 = vpack.c.b16 %v1196, %v1193
      %v1758 = vpack.c.b16 %v1200, %v1197
      %v1759 = vpack.c.b16 %v1201, %v1198
      %v1760 = vpack.c.b16 %v1202, %v1199
      %v1761 = vpack.c.b16 %v1206, %v1203
      %v1762 = vpack.c.b16 %v1207, %v1204
      %v1763 = vpack.c.b16 %v1208, %v1205
      %v1764 = vpack.c.b16 %v1212, %v1209
      %v1765 = vpack.c.b16 %v1213, %v1210
      %v1766 = vpack.c.b16 %v1214, %v1211
      %v1767 = vpack.c.b16 %v1218, %v1215
      %v1768 = vpack.c.b16 %v1219, %v1216
      %v1769 = vpack.c.b16 %v1220, %v1217
      %v1770 = vpack.c.b16 %v1224, %v1221
      %v1771 = vpack.c.b16 %v1225, %v1222
      %v1772 = vpack.c.b16 %v1226, %v1223
      %v1773 = vpack.c.b16 %v1230, %v1227
      %v1774 = vpack.c.b16 %v1231, %v1228
      %v1775 = vpack.c.b16 %v1232, %v1229
      %v1776 = vpack.c.b16 %v1236, %v1233
      %v1777 = vpack.c.b16 %v1237, %v1234
      %v1778 = vpack.c.b16 %v1238, %v1235
      %v1779 = vpack.c.b16 %v1242, %v1239
      %v1780 = vpack.c.b16 %v1243, %v1240
      %v1781 = vpack.c.b16 %v1244, %v1241
      %v1782 = vpack.c.b16 %v1248, %v1245
      %v1783 = vpack.c.b16 %v1249, %v1246
      %v1784 = vpack.c.b16 %v1250, %v1247
      %v1785 = vpack.c.b16 %v1254, %v1251
      %v1786 = vpack.c.b16 %v1255, %v1252
      %v1787 = vpack.c.b16 %v1256, %v1253
      %v1788 = vpack.c.b16 %v1260, %v1257
      %v1789 = vpack.c.b16 %v1261, %v1258
      %v1790 = vpack.c.b16 %v1262, %v1259
      %v1791 = vpack.c.b16 %v1266, %v1263
      %v1792 = vpack.c.b16 %v1267, %v1264
      %v1793 = vpack.c.b16 %v1268, %v1265
      %v1794 = vpack.c.b16 %v1272, %v1269
      %v1795 = vpack.c.b16 %v1273, %v1270
      %v1796 = vpack.c.b16 %v1274, %v1271
      %v1797 = vpack.c.b16 %v1278, %v1275
      %v1798 = vpack.c.b16 %v1279, %v1276
      %v1799 = vpack.c.b16 %v1280, %v1277
      %v1800 = vpack.c.b16 %v1284, %v1281
      %v1801 = vpack.c.b16 %v1285, %v1282
      %v1802 = vpack.c.b16 %v1286, %v1283
      %v1803 = vpack.c.b16 %v1290, %v1287
      %v1804 = vpack.c.b16 %v1291, %v1288
      %v1805 = vpack.c.b16 %v1292, %v1289
      %v1806 = vpack.c.b16 %v1296, %v1293
      %v1807 = vpack.c.b16 %v1297, %v1294
      %v1808 = vpack.c.b16 %v1298, %v1295
      %v1809 = vpack.c.b16 %v1302, %v1299
      %v1810 = vpack.c.b16 %v1303, %v1300
      %v1811 = vpack.c.b16 %v1304, %v1301
      %v1812 = vpack.c.b16 %v1308, %v1305
      %v1813 = vpack.c.b16 %v1309, %v1306
      %v1814 = vpack.c.b16 %v1310, %v1307
      %v1815 = vpack.c.b16 %v1314, %v1311
      %v1816 = vpack.c.b16 %v1315, %v1312
      %v1817 = vpack.c.b16 %v1316, %v1313
      %v1818 = vpack.c.b16 %v1320, %v1317
      %v1819 = vpack.c.b16 %v1321, %v1318
      %v1820 = vpack.c.b16 %v1322, %v1319
      %v1821 = vpack.c.b16 %v1326, %v1323
      %v1822 = vpack.c.b16 %v1327, %v1324
      %v1823 = vpack.c.b16 %v1328, %v1325
      %v1824 = vpack.c.b16 %v1332, %v1329
      %v1825 = vpack.c.b16 %v1333, %v1330
      %v1826 = vpack.c.b16 %v1334, %v1331
      %v1827 = vpack.c.b16 %v1338, %v1335
      %v1828 = vpack.c.b16 %v1339, %v1336
      %v1829 = vpack.c.b16 %v1340, %v1337
      %v1830 = vpack.c.b16 %v1344, %v1341
      %v1831 = vpack.c.b16 %v1345, %v1342
      %v1832 = vpack.c.b16 %v1346, %v1343
      %v1833 = vpack.c.b16 %v1350, %v1347
      %v1834 = vpack.c.b16 %v1351, %v1348
      %v1835 = vpack.c.b16 %v1352, %v1349
      %v1836 = vpack.c.b16 %v1356, %v1353
      %v1837 = vpack.c.b16 %v1357, %v1354
      %v1838 = vpack.c.b16 %v1358, %v1355
      %v1839 = vpack.c.b16 %v1362, %v1359
      %v1840 = vpack.c.b16 %v1363, %v1360
      %v1841 = vpack.c.b16 %v1364, %v1361
      %v1842 = vpack.c.b16 %v1368, %v1365
      %v1843 = vpack.c.b16 %v1369, %v1366
      %v1844 = vpack.c.b16 %v1370, %v1367
      %v1845 = vpack.c.b16 %v1374, %v1371
      %v1846 = vpack.c.b16 %v1375, %v1372
      %v1847 = vpack.c.b16 %v1376, %v1373
      %v1848 = vpack.c.b16 %v1380, %v1377
      %v1849 = vpack.c.b16 %v1381, %v1378
      %v1850 = vpack.c.b16 %v1382, %v1379
      %v1851 = vpack.c.b16 %v1386, %v1383
      %v1852 = vpack.c.b16 %v1387, %v1384
      %v1853 = vpack.c.b16 %v1388, %v1385
      %v1854 = vpack.c.b16 %v1392, %v1389
      %v1855 = vpack.c.b16 %v1393, %v1390
      %v1856 = vpack.c.b16 %v1394, %v1391
      %v1857 = vpack.c.b16 %v1398, %v1395
      %v1858 = vpack.c.b16 %v1399, %v1396
      %v1859 = vpack.c.b16 %v1400, %v1397
      %v1860 = vpack.c.b16 %v1404, %v1401
      %v1861 = vpack.c.b16 %v1405, %v1402
      %v1862 = vpack.c.b16 %v1406, %v1403
      %v1863 = vpack.c.b16 %v1410, %v1407
      %v1864 = vpack.c.b16 %v1411, %v1408
      %v1865 = vpack.c.b16 %v1412, %v1409
      %v1866 = vpack.c.b16 %v1416, %v1413
      %v1867 = vpack.c.b16 %v1417, %v1414
      %v1868 = vpack.c.b16 %v1418, %v1415
      %v1869 = vpack.c.b16 %v1422, %v1419
      %v1870 = vpack.c.b16 %v1423, %v1420
      %v1871 = vpack.c.b16 %v1424, %v1421
      %v1872 = vpack.c.b16 %v1428, %v1425
      %v1873 = vpack.c.b16 %v1429, %v1426
      %v1874 = vpack.c.b16 %v1430, %v1427
      %v1875 = vpack.c.b16 %v1434, %v1431
      %v1876 = vpack.c.b16 %v1435, %v1432
      %v1877 = vpack.c.b16 %v1436, %v1433
      %v1878 = vpack.c.b16 %v1440, %v1437
      %v1879 = vpack.c.b16 %v1441, %v1438
      %v1880 = vpack.c.b16 %v1442, %v1439
      %v1881 = vpack.c.b16 %v1446, %v1443
      %v1882 = vpack.c.b16 %v1447, %v1444
      %v1883 = vpack.c.b16 %v1448, %v1445
      %v1884 = vpack.c.b16 %v1452, %v1449
      %v1885 = vpack.c.b16 %v1453, %v1450
      %v1886 = vpack.c.b16 %v1454, %v1451
      %v1887 = vpack.c.b16 %v1458, %v1455
      %v1888 = vpack.c.b16 %v1459, %v1456
      %v1889 = vpack.c.b16 %v1460, %v1457
      %v1890 = vpack.c.b16 %v1464, %v1461
      %v1891 = vpack.c.b16 %v1465, %v1462
      %v1892 = vpack.c.b16 %v1466, %v1463
      %v1893 = vpack.c.b16 %v1470, %v1467
      %v1894 = vpack.c.b16 %v1471, %v1468
      %v1895 = vpack.c.b16 %v1472, %v1469
      %v1896 = vpack.c.b16 %v1476, %v1473
      %v1897 = vpack.c.b16 %v1477, %v1474
      %v1898 = vpack.c.b16 %v1478, %v1475
      %v1899 = vpack.c.b16 %v1482, %v1479
      %v1900 = vpack.c.b16 %v1483, %v1480
      %v1901 = vpack.c.b16 %v1484, %v1481
      %v1902 = vpack.c.b16 %v1488, %v1485
      %v1903 = vpack.c.b16 %v1489, %v1486
      %v1904 = vpack.c.b16 %v1490, %v1487
      %v1905 = vpack.c.b16 %v1494, %v1491
      %v1906 = vpack.c.b16 %v1495, %v1492
      %v1907 = vpack.c.b16 %v1496, %v1493
      %v1908 = vpack.c.b16 %v1500, %v1497
      %v1909 = vpack.c.b16 %v1501, %v1498
      %v1910 = vpack.c.b16 %v1502, %v1499
      %v1911 = vpack.c.b16 %v1506, %v1503
      %v1912 = vpack.c.b16 %v1507, %v1504
      %v1913 = vpack.c.b16 %v1508, %v1505
      %v1914 = vpack.c.b16 %v1512, %v1509
      %v1915 = vpack.c.b16 %v1513, %v1510
      %v1916 = vpack.c.b16 %v1514, %v1511
      %v1917 = vpack.c.b16 %v1518, %v1515
      %v1918 = vpack.c.b16 %v1519, %v1516
      %v1919 = vpack.c.b16 %v1520, %v1517
      %v1920 = vpack.c.b16 %v1524, %v1521
      %v1921 = vpack.c.b16 %v1525, %v1522
      %v1922 = vpack.c.b16 %v1526, %v1523
      %v1923 = vpack.c.b16 %v1530, %v1527
      %v1924 = vpack.c.b16 %v1531, %v1528
      %v1925 = vpack.c.b16 %v1532, %v1529
      %v1926 = vpack.c.b16 %v1536, %v1533
      %v1927 = vpack.c.b16 %v1537, %v1534
      %v1928 = vpack.c.b16 %v1538, %v1535
      %v1929 = vpack.c.b16 %v1542, %v1539
      %v1930 = vpack.c.b16 %v1543, %v1540
      %v1931 = vpack.c.b16 %v1544, %v1541
      %v1932 = vpack.c.b16 %v1548, %v1545
      %v1933 = vpack.c.b16 %v1549, %v1546
      %v1934 = vpack.c.b16 %v1550, %v1547
      %v1935 = vpack.c.b16 %v1554, %v1551
      %v1936 = vpack.c.b16 %v1555, %v1552
      %v1937 = vpack.c.b16 %v1556, %v1553
      %v1938 = vpack.c.b16 %v1560, %v1557
      %v1939 = vpack.c.b16 %v1561, %v1558
      %v1940 = vpack.c.b16 %v1562, %v1559
      %v1941 = vpack.c.b16 %v1566, %v1563
      %v1942 = vpack.c.b16 %v1567, %v1564
      %v1943 = vpack.c.b16 %v1568, %v1565
      %v1944 = vpack.c.b16 %v1572, %v1569
      %v1945 = vpack.c.b16 %v1573, %v1570
      %v1946 = vpack.c.b16 %v1574, %v1571
      %v1947 = vpack.c.b16 %v1578, %v1575
      %v1948 = vpack.c.b16 %v1579, %v1576
      %v1949 = vpack.c.b16 %v1580, %v1577
      %v1950 = vpack.c.b16 %v1584, %v1581
      %v1951 = vpack.c.b16 %v1585, %v1582
      %v1952 = vpack.c.b16 %v1586, %v1583
      %v1953 = vpack.c.b16 %v1590, %v1587
      %v1954 = vpack.c.b16 %v1591, %v1588
      %v1955 = vpack.c.b16 %v1592, %v1589
      %v1956 = vpack.c.b16 %v1596, %v1593
      %v1957 = vpack.c.b16 %v1597, %v1594
      %v1958 = vpack.c.b16 %v1598, %v1595
      %v1959 = vpack.c.b16 %v1602, %v1599
      %v1960 = vpack.c.b16 %v1603, %v1600
      %v1961 = vpack.c.b16 %v1604, %v1601
      %v1962 = vpack.c.b16 %v1608, %v1605
      %v1963 = vpack.c.b16 %v1609, %v1606
      %v1964 = vpack.c.b16 %v1610, %v1607
      %v1965 = vpack.c.b16 %v1614, %v1611
      %v1966 = vpack.c.b16 %v1615, %v1612
      %v1967 = vpack.c.b16 %v1616, %v1613
      %v1968 = vpack.c.b16 %v1620, %v1617
      %v1969 = vpack.c.b16 %v1621, %v1618
      %v1970 = vpack.c.b16 %v1622, %v1619
      %v1971 = vpack.c.b16 %v1626, %v1623
      %v1972 = vpack.c.b16 %v1627, %v1624
      %v1973 = vpack.c.b16 %v1628, %v1625
      %v1974 = vpack.c.b16 %v1632, %v1629
      %v1975 = vpack.c.b16 %v1633, %v1630
      %v1976 = vpack.c.b16 %v1634, %v1631
      %v1977 = vpack.c.b16 %v1638, %v1635
      %v1978 = vpack.c.b16 %v1639, %v1636
      %v1979 = vpack.c.b16 %v1640, %v1637
      %v1980 = vpack.c.b16 %v1644, %v1641
      %v1981 = vpack.c.b16 %v1645, %v1642
      %v1982 = vpack.c.b16 %v1646, %v1643
      %v1983 = vpack.c.b16 %v1650, %v1647
      %v1984 = vpack.c.b16 %v1651, %v1648
      %v1985 = vpack.c.b16 %v1652, %v1649
      %v1986 = vpack.c.b16 %v1656, %v1653
      %v1987 = vpack.c.b16 %v1657, %v1654
      %v1988 = vpack.c.b16 %v1658, %v1655
      %v1989 = vpack.c.b16 %v1662, %v1659
      %v1990 = vpack.c.b16 %v1663, %v1660
      %v1991 = vpack.c.b16 %v1664, %v1661
      %v1992 = vpack.c.b16 %v1668, %v1665
      %v1993 = vpack.c.b16 %v1669, %v1666
      %v1994 = vpack.c.b16 %v1670, %v1667
      %v1995 = vpack.c.b16 %v1674, %v1671
      %v1996 = vpack.c.b16 %v1675, %v1672
      %v1997 = vpack.c.b16 %v1676, %v1673
      %v1998 = vpack.c.b16 %v1680, %v1677
      %v1999 = vpack.c.b16 %v1681, %v1678
      %v2000 = vpack.c.b16 %v1682, %v1679
      %v2001 = vpack.c.b16 %v1686, %v1683
      %v2002 = vpack.c.b16 %v1687, %v1684
      %v2003 = vpack.c.b16 %v1688, %v1685
      %v2248 = vunpack.c.l.b16 %v598
      %v2249 = vunpack.c.l.b16 %v599
      %v2250 = vunpack.c.l.b16 %v600
      %v2251 = vunpack.c.l.b16 %v601
      %v2252 = vunpack.c.l.b16 %v602
      %v2253 = vunpack.c.l.b16 %v603
      %v2254 = vunpack.c.l.b16 %v604
      %v2255 = vunpack.c.l.b16 %v605
      %v2256 = vunpack.c.l.b16 %v606
      %v2257 = vunpack.c.l.b16 %v607
      %v2258 = vunpack.c.l.b16 %v608
      %v2259 = vunpack.c.l.b16 %v609
      %v2260 = vunpack.c.l.b16 %v610
      %v2261 = vunpack.c.l.b16 %v611
      %v2262 = vunpack.c.l.b16 %v612
      %v2263 = vunpack.c.l.b16 %v613
      %v2264 = vunpack.c.l.b16 %v614
      %v2265 = vunpack.c.l.b16 %v615
      %v2266 = vunpack.c.l.b16 %v616
      %v2267 = vunpack.c.l.b16 %v617
      %v2268 = vunpack.c.l.b16 %v618
      %v2269 = vunpack.c.l.b16 %v619
      %v2270 = vunpack.c.l.b16 %v620
      %v2271 = vunpack.c.l.b16 %v621
      %v2272 = vunpack.c.l.b16 %v622
      %v2273 = vunpack.c.l.b16 %v623
      %v2274 = vunpack.c.l.b16 %v624
      %v2275 = vunpack.c.l.b16 %v625
      %v2276 = vunpack.c.l.b16 %v626
      %v2277 = vunpack.c.l.b16 %v627
      %v2278 = vunpack.c.l.b16 %v628
      %v2279 = vunpack.c.l.b16 %v629
      %v2280 = vunpack.c.l.b16 %v630
      %v2281 = vunpack.c.l.b16 %v631
      %v2282 = vpack.c.b16 %v2249, %v2248
      %v2283 = vpack.c.b16 %v2251, %v2250
      %v2284 = vpack.c.b16 %v2253, %v2252
      %v2285 = vpack.c.b16 %v2255, %v2254
      %v2286 = vpack.c.b16 %v2257, %v2256
      %v2287 = vpack.c.b16 %v2259, %v2258
      %v2288 = vpack.c.b16 %v2261, %v2260
      %v2289 = vpack.c.b16 %v2263, %v2262
      %v2290 = vpack.c.b16 %v2265, %v2264
      %v2291 = vpack.c.b16 %v2267, %v2266
      %v2292 = vpack.c.b16 %v2269, %v2268
      %v2293 = vpack.c.b16 %v2271, %v2270
      %v2294 = vpack.c.b16 %v2273, %v2272
      %v2295 = vpack.c.b16 %v2275, %v2274
      %v2296 = vpack.c.b16 %v2277, %v2276
      %v2297 = vpack.c.b16 %v2279, %v2278
      %v2298 = vpack.c.b16 %v2281, %v2280
      %vm2315 = vcmask 113664
      %v2317 = vsel %vm2315, %v1691, 0
      %v2320 = vsel %vm2315, %v1694, 0
      %v2323 = vsel %vm2315, %v1697, 0
      %v2326 = vsel %vm2315, %v1700, 0
      %v2329 = vsel %vm2315, %v1703, 0
      %v2332 = vsel %vm2315, %v1706, 0
      %v2335 = vsel %vm2315, %v1709, 0
      %v2338 = vsel %vm2315, %v1712, 0
      %v2341 = vsel %vm2315, %v1715, 0
      %v2344 = vsel %vm2315, %v1718, 0
      %v2347 = vsel %vm2315, %v1721, 0
      %v2350 = vsel %vm2315, %v1724, 0
      %v2353 = vsel %vm2315, %v1727, 0
      %v2356 = vsel %vm2315, %v1730, 0
      %v2359 = vsel %vm2315, %v1733, 0
      %v2362 = vsel %vm2315, %v1736, 0
      %v2365 = vsel %vm2315, %v1739, 0
      %v2368 = vsel %vm2315, %v1742, 0
      %v2371 = vsel %vm2315, %v1745, 0
      %v2374 = vsel %vm2315, %v1748, 0
      %v2377 = vsel %vm2315, %v1751, 0
      %v2380 = vsel %vm2315, %v1754, 0
      %v2383 = vsel %vm2315, %v1757, 0
      %v2386 = vsel %vm2315, %v1760, 0
      %v2389 = vsel %vm2315, %v1763, 0
      %v2392 = vsel %vm2315, %v1766, 0
      %v2395 = vsel %vm2315, %v1769, 0
      %v2398 = vsel %vm2315, %v1772, 0
      %v2401 = vsel %vm2315, %v1775, 0
      %v2404 = vsel %vm2315, %v1778, 0
      %v2407 = vsel %vm2315, %v1781, 0
      %v2410 = vsel %vm2315, %v1784, 0
      %v2413 = vsel %vm2315, %v1787, 0
      %v2416 = vsel %vm2315, %v1790, 0
      %v2419 = vsel %vm2315, %v1793, 0
      %v2422 = vsel %vm2315, %v1796, 0
      %v2425 = vsel %vm2315, %v1799, 0
      %v2428 = vsel %vm2315, %v1802, 0
      %v2431 = vsel %vm2315, %v1805, 0
      %v2434 = vsel %vm2315, %v1808, 0
      %v2437 = vsel %vm2315, %v1811, 0
      %v2440 = vsel %vm2315, %v1814, 0
      %v2443 = vsel %vm2315, %v1817, 0
      %v2446 = vsel %vm2315, %v1820, 0
      %v2449 = vsel %vm2315, %v1823, 0
      %v2452 = vsel %vm2315, %v1826, 0
      %v2455 = vsel %vm2315, %v1829, 0
      %v2458 = vsel %vm2315, %v1832, 0
      %v2461 = vsel %vm2315, %v1835, 0
      %v2464 = vsel %vm2315, %v1838, 0
      %v2467 = vsel %vm2315, %v1841, 0
      %v2470 = vsel %vm2315, %v1844, 0
      %v2473 = vsel %vm2315, %v1847, 0
      %v2476 = vsel %vm2315, %v1850, 0
      %v2479 = vsel %vm2315, %v1853, 0
      %v2482 = vsel %vm2315, %v1856, 0
      %v2485 = vsel %vm2315, %v1859, 0
      %v2488 = vsel %vm2315, %v1862, 0
      %v2491 = vsel %vm2315, %v1865, 0
      %v2494 = vsel %vm2315, %v1868, 0
      %v2497 = vsel %vm2315, %v1871, 0
      %v2500 = vsel %vm2315, %v1874, 0
      %v2503 = vsel %vm2315, %v1877, 0
      %v2506 = vsel %vm2315, %v1880, 0
      %v2509 = vsel %vm2315, %v1883, 0
      %v2512 = vsel %vm2315, %v1886, 0
      %v2515 = vsel %vm2315, %v1889, 0
      %v2518 = vsel %vm2315, %v1892, 0
      %v2521 = vsel %vm2315, %v1895, 0
      %v2524 = vsel %vm2315, %v1898, 0
      %v2527 = vsel %vm2315, %v1901, 0
      %v2530 = vsel %vm2315, %v1904, 0
      %v2533 = vsel %vm2315, %v1907, 0
      %v2536 = vsel %vm2315, %v1910, 0
      %v2539 = vsel %vm2315, %v1913, 0
      %v2542 = vsel %vm2315, %v1916, 0
      %v2545 = vsel %vm2315, %v1919, 0
      %v2548 = vsel %vm2315, %v1922, 0
      %v2551 = vsel %vm2315, %v1925, 0
      %v2554 = vsel %vm2315, %v1928, 0
      %v2557 = vsel %vm2315, %v1931, 0
      %v2560 = vsel %vm2315, %v1934, 0
      %v2563 = vsel %vm2315, %v1937, 0
      %v2566 = vsel %vm2315, %v1940, 0
      %v2569 = vsel %vm2315, %v1943, 0
      %v2572 = vsel %vm2315, %v1946, 0
      %v2575 = vsel %vm2315, %v1949, 0
      %v2578 = vsel %vm2315, %v1952, 0
      %v2581 = vsel %vm2315, %v1955, 0
      %v2584 = vsel %vm2315, %v1958, 0
      %v2587 = vsel %vm2315, %v1961, 0
      %v2590 = vsel %vm2315, %v1964, 0
      %v2593 = vsel %vm2315, %v1967, 0
      %v2596 = vsel %vm2315, %v1970, 0
      %v2599 = vsel %vm2315, %v1973, 0
      %v2602 = vsel %vm2315, %v1976, 0
      %v2605 = vsel %vm2315, %v1979, 0
      %v2608 = vsel %vm2315, %v1982, 0
      %v2611 = vsel %vm2315, %v1985, 0
      %v2614 = vsel %vm2315, %v1988, 0
      %v2617 = vsel %vm2315, %v1991, 0
      %v2620 = vsel %vm2315, %v1994, 0
      %v2623 = vsel %vm2315, %v1997, 0
      %v2626 = vsel %vm2315, %v2000, 0
      %v2629 = vsel %vm2315, %v2003, 0
      %vm2631 = vcmask 1046528
      %v2633 = vsel %vm2631, %v2298, 0
      %2635 = vmatprep.subr.bf16.mxu0 0
      %2636 = vmatpush1.bf16.msra.mxu0 %v2282
      %2637 = vmatprep.subr.bf16.mxu0 0
      %2638 = vmatpush1.bf16.msra.mxu0 %v2283
      %2639 = vmatprep.subr.bf16.mxu0 0
      %2640 = vmatpush1.bf16.msra.mxu0 %v2284
      %2641 = vmatprep.subr.bf16.mxu0 0
      %2642 = vmatpush1.bf16.msra.mxu0 %v2285
      %2643 = vmatprep.subr.bf16.mxu0 0
      %2644 = vmatpush1.bf16.msra.mxu0 %v2286
      %2645 = vmatprep.subr.bf16.mxu0 0
      %2646 = vmatpush1.bf16.msra.mxu0 %v2287
      %2647 = vmatprep.subr.bf16.mxu0 0
      %2648 = vmatpush1.bf16.msra.mxu0 %v2288
      %2649 = vmatprep.subr.bf16.mxu0 0
      %2650 = vmatpush1.bf16.msra.mxu0 %v2289
      %2651 = vmatprep.subr.bf16.mxu0 0
      %2652 = vmatpush1.bf16.msra.mxu0 %v2290
      %2653 = vmatprep.subr.bf16.mxu0 0
      %2654 = vmatpush1.bf16.msra.mxu0 %v2291
      %2655 = vmatprep.subr.bf16.mxu0 0
      %2656 = vmatpush1.bf16.msra.mxu0 %v2292
      %2657 = vmatprep.subr.bf16.mxu0 0
      %2658 = vmatpush1.bf16.msra.mxu0 %v2293
      %2659 = vmatprep.subr.bf16.mxu0 0
      %2660 = vmatpush1.bf16.msra.mxu0 %v2294
      %2661 = vmatprep.subr.bf16.mxu0 0
      %2662 = vmatpush1.bf16.msra.mxu0 %v2295
      %2663 = vmatprep.subr.bf16.mxu0 0
      %2664 = vmatpush1.bf16.msra.mxu0 %v2296
      %2665 = vmatprep.subr.bf16.mxu0 0
      %2666 = vmatpush1.bf16.msra.mxu0 %v2297
      %2667 = vmatprep.mubr.bf16.mxu0 %v1690
      %2668 = vmatmul.mubr.bf16.gmra.mrb[0].mxu0 %v1689
      %v2669 = vpop.f32.mrb[0].mxu0
      %v2670 = vadd.f32 %v637, %v2669
      %v2671 = vpop.f32.mrb[0].mxu0
      %v2672 = vpop.f32.mrb[0].mxu0
      %v2673 = vadd.f32 %v637, %v2672
      %v2674 = vpop.f32.mrb[0].mxu0
      %2675 = vmatprep.mubr.bf16.mxu0 %v1693
      %2676 = vmatmul.mubr.bf16.gmra.mrb[0].mxu0 %v1692
      %v2677 = vpop.f32.mrb[0].mxu0
      %v2678 = vadd.f32 %v637, %v2677
      %v2679 = vpop.f32.mrb[0].mxu0
      %v2680 = vpop.f32.mrb[0].mxu0
      %v2681 = vadd.f32 %v637, %v2680
      %v2682 = vpop.f32.mrb[0].mxu0
      %2683 = vmatprep.mubr.bf16.mxu0 %v1696
      %2684 = vmatmul.mubr.bf16.gmra.mrb[0].mxu0 %v1695
      %v2685 = vpop.f32.mrb[0].mxu0
      %v2686 = vadd.f32 %v637, %v2685
      %v2687 = vpop.f32.mrb[0].mxu0
      %v2688 = vpop.f32.mrb[0].mxu0
      %v2689 = vadd.f32 %v637, %v2688
      %v2690 = vpop.f32.mrb[0].mxu0
      %2691 = vmatprep.mubr.bf16.mxu0 %v1699
      %2692 = vmatmul.mubr.bf16.gmra.mrb[0].mxu0 %v1698
      %v2693 = vpop.f32.mrb[0].mxu0
      %v2694 = vadd.f32 %v637, %v2693
      %v2695 = vpop.f32.mrb[0].mxu0
      %v2696 = vpop.f32.mrb[0].mxu0
      %v2697 = vadd.f32 %v637, %v2696
      %v2698 = vpop.f32.mrb[0].mxu0
      %2699 = vmatprep.mubr.bf16.mxu0 %v1702
      %2700 = vmatmul.mubr.bf16.gmra.mrb[0].mxu0 %v1701
      %v2701 = vpop.f32.mrb[0].mxu0
      %v2702 = vadd.f32 %v637, %v2701
      %v2703 = vpop.f32.mrb[0].mxu0
      %v2704 = vpop.f32.mrb[0].mxu0
      %v2705 = vadd.f32 %v637, %v2704
      %v2706 = vpop.f32.mrb[0].mxu0
      %2707 = vmatprep.mubr.bf16.mxu0 %v1705
      %2708 = vmatmul.mubr.bf16.gmra.mrb[0].mxu0 %v1704
      %v2709 = vpop.f32.mrb[0].mxu0
      %v2710 = vadd.f32 %v637, %v2709
      %v2711 = vpop.f32.mrb[0].mxu0
      %v2712 = vpop.f32.mrb[0].mxu0
      %v2713 = vadd.f32 %v637, %v2712
      %v2714 = vpop.f32.mrb[0].mxu0
      %2715 = vmatprep.mubr.bf16.mxu0 %v1708
      %2716 = vmatmul.mubr.bf16.gmra.mrb[0].mxu0 %v1707
      %v2717 = vpop.f32.mrb[0].mxu0
      %v2718 = vadd.f32 %v637, %v2717
      %v2719 = vpop.f32.mrb[0].mxu0
      %v2720 = vpop.f32.mrb[0].mxu0
      %v2721 = vadd.f32 %v637, %v2720
      %v2722 = vpop.f32.mrb[0].mxu0
      %2723 = vmatprep.mubr.bf16.mxu0 %v1711
      %2724 = vmatmul.mubr.bf16.gmra.mrb[0].mxu0 %v1710
      %v2725 = vpop.f32.mrb[0].mxu0
      %v2726 = vadd.f32 %v637, %v2725
      %v2727 = vpop.f32.mrb[0].mxu0
      %v2728 = vpop.f32.mrb[0].mxu0
      %v2729 = vadd.f32 %v637, %v2728
      %v2730 = vpop.f32.mrb[0].mxu0
      %2731 = vmatprep.mubr.bf16.mxu0 %v1714
      %2732 = vmatmul.mubr.bf16.gmra.mrb[0].mxu0 %v1713
      %v2733 = vpop.f32.mrb[0].mxu0
      %v2734 = vadd.f32 %v637, %v2733
      %v2735 = vpop.f32.mrb[0].mxu0
      %v2736 = vpop.f32.mrb[0].mxu0
      %v2737 = vadd.f32 %v637, %v2736
      %v2738 = vpop.f32.mrb[0].mxu0
      %2739 = vmatprep.mubr.bf16.mxu0 %v1717
      %2740 = vmatmul.mubr.bf16.gmra.mrb[0].mxu0 %v1716
      %v2741 = vpop.f32.mrb[0].mxu0
      %v2742 = vadd.f32 %v637, %v2741
      %v2743 = vpop.f32.mrb[0].mxu0
      %v2744 = vpop.f32.mrb[0].mxu0
      %v2745 = vadd.f32 %v637, %v2744
      %v2746 = vpop.f32.mrb[0].mxu0
      %2747 = vmatprep.mubr.bf16.mxu0 %v1720
      %2748 = vmatmul.mubr.bf16.gmra.mrb[0].mxu0 %v1719
      %v2749 = vpop.f32.mrb[0].mxu0
      %v2750 = vadd.f32 %v637, %v2749
      %v2751 = vpop.f32.mrb[0].mxu0
      %v2752 = vpop.f32.mrb[0].mxu0
      %v2753 = vadd.f32 %v637, %v2752
      %v2754 = vpop.f32.mrb[0].mxu0
      %2755 = vmatprep.mubr.bf16.mxu0 %v1723
      %2756 = vmatmul.mubr.bf16.gmra.mrb[0].mxu0 %v1722
      %v2757 = vpop.f32.mrb[0].mxu0
      %v2758 = vadd.f32 %v637, %v2757
      %v2759 = vpop.f32.mrb[0].mxu0
      %v2760 = vpop.f32.mrb[0].mxu0
      %v2761 = vadd.f32 %v637, %v2760
      %v2762 = vpop.f32.mrb[0].mxu0
      %2763 = vmatprep.mubr.bf16.mxu0 %v1726
      %2764 = vmatmul.mubr.bf16.gmra.mrb[0].mxu0 %v1725
      %v2765 = vpop.f32.mrb[0].mxu0
      %v2766 = vadd.f32 %v637, %v2765
      %v2767 = vpop.f32.mrb[0].mxu0
      %v2768 = vpop.f32.mrb[0].mxu0
      %v2769 = vadd.f32 %v637, %v2768
      %v2770 = vpop.f32.mrb[0].mxu0
      %2771 = vmatprep.mubr.bf16.mxu0 %v1729
      %2772 = vmatmul.mubr.bf16.gmra.mrb[0].mxu0 %v1728
      %v2773 = vpop.f32.mrb[0].mxu0
      %v2774 = vadd.f32 %v637, %v2773
      %v2775 = vpop.f32.mrb[0].mxu0
      %v2776 = vpop.f32.mrb[0].mxu0
      %v2777 = vadd.f32 %v637, %v2776
      %v2778 = vpop.f32.mrb[0].mxu0
      %2779 = vmatprep.mubr.bf16.mxu0 %v1732
      %2780 = vmatmul.mubr.bf16.gmra.mrb[0].mxu0 %v1731
      %v2781 = vpop.f32.mrb[0].mxu0
      %v2782 = vadd.f32 %v637, %v2781
      %v2783 = vpop.f32.mrb[0].mxu0
      %v2784 = vpop.f32.mrb[0].mxu0
      %v2785 = vadd.f32 %v637, %v2784
      %v2786 = vpop.f32.mrb[0].mxu0
      %2787 = vmatprep.mubr.bf16.mxu0 %v1735
      %2788 = vmatmul.mubr.bf16.gmra.mrb[0].mxu0 %v1734
      %v2789 = vpop.f32.mrb[0].mxu0
      %v2790 = vadd.f32 %v637, %v2789
      %v2791 = vpop.f32.mrb[0].mxu0
      %v2792 = vpop.f32.mrb[0].mxu0
      %v2793 = vadd.f32 %v637, %v2792
      %v2794 = vpop.f32.mrb[0].mxu0
      %2795 = vmatprep.mubr.bf16.mxu0 %v1738
      %2796 = vmatmul.mubr.bf16.gmra.mrb[0].mxu0 %v1737
      %v2797 = vpop.f32.mrb[0].mxu0
      %v2798 = vadd.f32 %v637, %v2797
      %v2799 = vpop.f32.mrb[0].mxu0
      %v2800 = vpop.f32.mrb[0].mxu0
      %v2801 = vadd.f32 %v637, %v2800
      %v2802 = vpop.f32.mrb[0].mxu0
      %2803 = vmatprep.mubr.bf16.mxu0 %v1741
      %2804 = vmatmul.mubr.bf16.gmra.mrb[0].mxu0 %v1740
      %v2805 = vpop.f32.mrb[0].mxu0
      %v2806 = vadd.f32 %v637, %v2805
      %v2807 = vpop.f32.mrb[0].mxu0
      %v2808 = vpop.f32.mrb[0].mxu0
      %v2809 = vadd.f32 %v637, %v2808
      %v2810 = vpop.f32.mrb[0].mxu0
      %2811 = vmatprep.mubr.bf16.mxu0 %v1744
      %2812 = vmatmul.mubr.bf16.gmra.mrb[0].mxu0 %v1743
      %v2813 = vpop.f32.mrb[0].mxu0
      %v2814 = vadd.f32 %v637, %v2813
      %v2815 = vpop.f32.mrb[0].mxu0
      %v2816 = vpop.f32.mrb[0].mxu0
      %v2817 = vadd.f32 %v637, %v2816
      %v2818 = vpop.f32.mrb[0].mxu0
      %2819 = vmatprep.mubr.bf16.mxu0 %v1747
      %2820 = vmatmul.mubr.bf16.gmra.mrb[0].mxu0 %v1746
      %v2821 = vpop.f32.mrb[0].mxu0
      %v2822 = vadd.f32 %v637, %v2821
      %v2823 = vpop.f32.mrb[0].mxu0
      %v2824 = vpop.f32.mrb[0].mxu0
      %v2825 = vadd.f32 %v637, %v2824
      %v2826 = vpop.f32.mrb[0].mxu0
      %2827 = vmatprep.mubr.bf16.mxu0 %v1750
      %2828 = vmatmul.mubr.bf16.gmra.mrb[0].mxu0 %v1749
      %v2829 = vpop.f32.mrb[0].mxu0
      %v2830 = vadd.f32 %v637, %v2829
      %v2831 = vpop.f32.mrb[0].mxu0
      %v2832 = vpop.f32.mrb[0].mxu0
      %v2833 = vadd.f32 %v637, %v2832
      %v2834 = vpop.f32.mrb[0].mxu0
      %2835 = vmatprep.mubr.bf16.mxu0 %v1753
      %2836 = vmatmul.mubr.bf16.gmra.mrb[0].mxu0 %v1752
      %v2837 = vpop.f32.mrb[0].mxu0
      %v2838 = vadd.f32 %v637, %v2837
      %v2839 = vpop.f32.mrb[0].mxu0
      %v2840 = vpop.f32.mrb[0].mxu0
      %v2841 = vadd.f32 %v637, %v2840
      %v2842 = vpop.f32.mrb[0].mxu0
      %2843 = vmatprep.mubr.bf16.mxu0 %v1756
      %2844 = vmatmul.mubr.bf16.gmra.mrb[0].mxu0 %v1755
      %v2845 = vpop.f32.mrb[0].mxu0
      %v2846 = vadd.f32 %v637, %v2845
      %v2847 = vpop.f32.mrb[0].mxu0
      %v2848 = vpop.f32.mrb[0].mxu0
      %v2849 = vadd.f32 %v637, %v2848
      %v2850 = vpop.f32.mrb[0].mxu0
      %2851 = vmatprep.mubr.bf16.mxu0 %v1759
      %2852 = vmatmul.mubr.bf16.gmra.mrb[0].mxu0 %v1758
      %v2853 = vpop.f32.mrb[0].mxu0
      %v2854 = vadd.f32 %v637, %v2853
      %v2855 = vpop.f32.mrb[0].mxu0
      %v2856 = vpop.f32.mrb[0].mxu0
      %v2857 = vadd.f32 %v637, %v2856
      %v2858 = vpop.f32.mrb[0].mxu0
      %2859 = vmatprep.mubr.bf16.mxu0 %v1762
      %2860 = vmatmul.mubr.bf16.gmra.mrb[0].mxu0 %v1761
      %v2861 = vpop.f32.mrb[0].mxu0
      %v2862 = vadd.f32 %v637, %v2861
      %v2863 = vpop.f32.mrb[0].mxu0
      %v2864 = vpop.f32.mrb[0].mxu0
      %v2865 = vadd.f32 %v637, %v2864
      %v2866 = vpop.f32.mrb[0].mxu0
      %2867 = vmatprep.mubr.bf16.mxu0 %v1765
      %2868 = vmatmul.mubr.bf16.gmra.mrb[0].mxu0 %v1764
      %v2869 = vpop.f32.mrb[0].mxu0
      %v2870 = vadd.f32 %v637, %v2869
      %v2871 = vpop.f32.mrb[0].mxu0
      %v2872 = vpop.f32.mrb[0].mxu0
      %v2873 = vadd.f32 %v637, %v2872
      %v2874 = vpop.f32.mrb[0].mxu0
      %2875 = vmatprep.mubr.bf16.mxu0 %v1768
      %2876 = vmatmul.mubr.bf16.gmra.mrb[0].mxu0 %v1767
      %v2877 = vpop.f32.mrb[0].mxu0
      %v2878 = vadd.f32 %v637, %v2877
      %v2879 = vpop.f32.mrb[0].mxu0
      %v2880 = vpop.f32.mrb[0].mxu0
      %v2881 = vadd.f32 %v637, %v2880
      %v2882 = vpop.f32.mrb[0].mxu0
      %2883 = vmatprep.mubr.bf16.mxu0 %v1771
      %2884 = vmatmul.mubr.bf16.gmra.mrb[0].mxu0 %v1770
      %v2885 = vpop.f32.mrb[0].mxu0
      %v2886 = vadd.f32 %v637, %v2885
      %v2887 = vpop.f32.mrb[0].mxu0
      %v2888 = vpop.f32.mrb[0].mxu0
      %v2889 = vadd.f32 %v637, %v2888
      %v2890 = vpop.f32.mrb[0].mxu0
      %2891 = vmatprep.mubr.bf16.mxu0 %v1774
      %2892 = vmatmul.mubr.bf16.gmra.mrb[0].mxu0 %v1773
      %v2893 = vpop.f32.mrb[0].mxu0
      %v2894 = vadd.f32 %v637, %v2893
      %v2895 = vpop.f32.mrb[0].mxu0
      %v2896 = vpop.f32.mrb[0].mxu0
      %v2897 = vadd.f32 %v637, %v2896
      %v2898 = vpop.f32.mrb[0].mxu0
      %2899 = vmatprep.mubr.bf16.mxu0 %v1777
      %2900 = vmatmul.mubr.bf16.gmra.mrb[0].mxu0 %v1776
      %v2901 = vpop.f32.mrb[0].mxu0
      %v2902 = vadd.f32 %v637, %v2901
      %v2903 = vpop.f32.mrb[0].mxu0
      %v2904 = vpop.f32.mrb[0].mxu0
      %v2905 = vadd.f32 %v637, %v2904
      %v2906 = vpop.f32.mrb[0].mxu0
      %2907 = vmatprep.mubr.bf16.mxu0 %v1780
      %2908 = vmatmul.mubr.bf16.gmra.mrb[0].mxu0 %v1779
      %v2909 = vpop.f32.mrb[0].mxu0
      %v2910 = vadd.f32 %v637, %v2909
      %v2911 = vpop.f32.mrb[0].mxu0
      %v2912 = vpop.f32.mrb[0].mxu0
      %v2913 = vadd.f32 %v637, %v2912
      %v2914 = vpop.f32.mrb[0].mxu0
      %2915 = vmatprep.mubr.bf16.mxu0 %v1783
      %2916 = vmatmul.mubr.bf16.gmra.mrb[0].mxu0 %v1782
      %v2917 = vpop.f32.mrb[0].mxu0
      %v2918 = vadd.f32 %v637, %v2917
      %v2919 = vpop.f32.mrb[0].mxu0
      %v2920 = vpop.f32.mrb[0].mxu0
      %v2921 = vadd.f32 %v637, %v2920
      %v2922 = vpop.f32.mrb[0].mxu0
      %2923 = vmatprep.mubr.bf16.mxu0 %v1786
      %2924 = vmatmul.mubr.bf16.gmra.mrb[0].mxu0 %v1785
      %v2925 = vpop.f32.mrb[0].mxu0
      %v2926 = vadd.f32 %v637, %v2925
      %v2927 = vpop.f32.mrb[0].mxu0
      %v2928 = vpop.f32.mrb[0].mxu0
      %v2929 = vadd.f32 %v637, %v2928
      %v2930 = vpop.f32.mrb[0].mxu0
      %2931 = vmatprep.mubr.bf16.mxu0 %v1789
      %2932 = vmatmul.mubr.bf16.gmra.mrb[0].mxu0 %v1788
      %v2933 = vpop.f32.mrb[0].mxu0
      %v2934 = vadd.f32 %v637, %v2933
      %v2935 = vpop.f32.mrb[0].mxu0
      %v2936 = vpop.f32.mrb[0].mxu0
      %v2937 = vadd.f32 %v637, %v2936
      %v2938 = vpop.f32.mrb[0].mxu0
      %2939 = vmatprep.mubr.bf16.mxu0 %v1792
      %2940 = vmatmul.mubr.bf16.gmra.mrb[0].mxu0 %v1791
      %v2941 = vpop.f32.mrb[0].mxu0
      %v2942 = vadd.f32 %v637, %v2941
      %v2943 = vpop.f32.mrb[0].mxu0
      %v2944 = vpop.f32.mrb[0].mxu0
      %v2945 = vadd.f32 %v637, %v2944
      %v2946 = vpop.f32.mrb[0].mxu0
      %2947 = vmatprep.mubr.bf16.mxu0 %v1795
      %2948 = vmatmul.mubr.bf16.gmra.mrb[0].mxu0 %v1794
      %v2949 = vpop.f32.mrb[0].mxu0
      %v2950 = vadd.f32 %v637, %v2949
      %v2951 = vpop.f32.mrb[0].mxu0
      %v2952 = vpop.f32.mrb[0].mxu0
      %v2953 = vadd.f32 %v637, %v2952
      %v2954 = vpop.f32.mrb[0].mxu0
      %2955 = vmatprep.mubr.bf16.mxu0 %v1798
      %2956 = vmatmul.mubr.bf16.gmra.mrb[0].mxu0 %v1797
      %v2957 = vpop.f32.mrb[0].mxu0
      %v2958 = vadd.f32 %v637, %v2957
      %v2959 = vpop.f32.mrb[0].mxu0
      %v2960 = vpop.f32.mrb[0].mxu0
      %v2961 = vadd.f32 %v637, %v2960
      %v2962 = vpop.f32.mrb[0].mxu0
      %2963 = vmatprep.mubr.bf16.mxu0 %v1801
      %2964 = vmatmul.mubr.bf16.gmra.mrb[0].mxu0 %v1800
      %v2965 = vpop.f32.mrb[0].mxu0
      %v2966 = vadd.f32 %v637, %v2965
      %v2967 = vpop.f32.mrb[0].mxu0
      %v2968 = vpop.f32.mrb[0].mxu0
      %v2969 = vadd.f32 %v637, %v2968
      %v2970 = vpop.f32.mrb[0].mxu0
      %2971 = vmatprep.mubr.bf16.mxu0 %v1804
      %2972 = vmatmul.mubr.bf16.gmra.mrb[0].mxu0 %v1803
      %v2973 = vpop.f32.mrb[0].mxu0
      %v2974 = vadd.f32 %v637, %v2973
      %v2975 = vpop.f32.mrb[0].mxu0
      %v2976 = vpop.f32.mrb[0].mxu0
      %v2977 = vadd.f32 %v637, %v2976
      %v2978 = vpop.f32.mrb[0].mxu0
      %2979 = vmatprep.mubr.bf16.mxu0 %v1807
      %2980 = vmatmul.mubr.bf16.gmra.mrb[0].mxu0 %v1806
      %v2981 = vpop.f32.mrb[0].mxu0
      %v2982 = vadd.f32 %v637, %v2981
      %v2983 = vpop.f32.mrb[0].mxu0
      %v2984 = vpop.f32.mrb[0].mxu0
      %v2985 = vadd.f32 %v637, %v2984
      %v2986 = vpop.f32.mrb[0].mxu0
      %2987 = vmatprep.mubr.bf16.mxu0 %v1810
      %2988 = vmatmul.mubr.bf16.gmra.mrb[0].mxu0 %v1809
      %v2989 = vpop.f32.mrb[0].mxu0
      %v2990 = vadd.f32 %v637, %v2989
      %v2991 = vpop.f32.mrb[0].mxu0
      %v2992 = vpop.f32.mrb[0].mxu0
      %v2993 = vadd.f32 %v637, %v2992
      %v2994 = vpop.f32.mrb[0].mxu0
      %2995 = vmatprep.mubr.bf16.mxu0 %v1813
      %2996 = vmatmul.mubr.bf16.gmra.mrb[0].mxu0 %v1812
      %v2997 = vpop.f32.mrb[0].mxu0
      %v2998 = vadd.f32 %v637, %v2997
      %v2999 = vpop.f32.mrb[0].mxu0
      %v3000 = vpop.f32.mrb[0].mxu0
      %v3001 = vadd.f32 %v637, %v3000
      %v3002 = vpop.f32.mrb[0].mxu0
      %3003 = vmatprep.mubr.bf16.mxu0 %v1816
      %3004 = vmatmul.mubr.bf16.gmra.mrb[0].mxu0 %v1815
      %v3005 = vpop.f32.mrb[0].mxu0
      %v3006 = vadd.f32 %v637, %v3005
      %v3007 = vpop.f32.mrb[0].mxu0
      %v3008 = vpop.f32.mrb[0].mxu0
      %v3009 = vadd.f32 %v637, %v3008
      %v3010 = vpop.f32.mrb[0].mxu0
      %3011 = vmatprep.mubr.bf16.mxu0 %v1819
      %3012 = vmatmul.mubr.bf16.gmra.mrb[0].mxu0 %v1818
      %v3013 = vpop.f32.mrb[0].mxu0
      %v3014 = vadd.f32 %v637, %v3013
      %v3015 = vpop.f32.mrb[0].mxu0
      %v3016 = vpop.f32.mrb[0].mxu0
      %v3017 = vadd.f32 %v637, %v3016
      %v3018 = vpop.f32.mrb[0].mxu0
      %3019 = vmatprep.mubr.bf16.mxu0 %v1822
      %3020 = vmatmul.mubr.bf16.gmra.mrb[0].mxu0 %v1821
      %v3021 = vpop.f32.mrb[0].mxu0
      %v3022 = vadd.f32 %v637, %v3021
      %v3023 = vpop.f32.mrb[0].mxu0
      %v3024 = vpop.f32.mrb[0].mxu0
      %v3025 = vadd.f32 %v637, %v3024
      %v3026 = vpop.f32.mrb[0].mxu0
      %3027 = vmatprep.mubr.bf16.mxu0 %v1825
      %3028 = vmatmul.mubr.bf16.gmra.mrb[0].mxu0 %v1824
      %v3029 = vpop.f32.mrb[0].mxu0
      %v3030 = vadd.f32 %v637, %v3029
      %v3031 = vpop.f32.mrb[0].mxu0
      %v3032 = vpop.f32.mrb[0].mxu0
      %v3033 = vadd.f32 %v637, %v3032
      %v3034 = vpop.f32.mrb[0].mxu0
      %3035 = vmatprep.mubr.bf16.mxu0 %v1828
      %3036 = vmatmul.mubr.bf16.gmra.mrb[0].mxu0 %v1827
      %v3037 = vpop.f32.mrb[0].mxu0
      %v3038 = vadd.f32 %v637, %v3037
      %v3039 = vpop.f32.mrb[0].mxu0
      %v3040 = vpop.f32.mrb[0].mxu0
      %v3041 = vadd.f32 %v637, %v3040
      %v3042 = vpop.f32.mrb[0].mxu0
      %3043 = vmatprep.mubr.bf16.mxu0 %v1831
      %3044 = vmatmul.mubr.bf16.gmra.mrb[0].mxu0 %v1830
      %v3045 = vpop.f32.mrb[0].mxu0
      %v3046 = vadd.f32 %v637, %v3045
      %v3047 = vpop.f32.mrb[0].mxu0
      %v3048 = vpop.f32.mrb[0].mxu0
      %v3049 = vadd.f32 %v637, %v3048
      %v3050 = vpop.f32.mrb[0].mxu0
      %3051 = vmatprep.mubr.bf16.mxu0 %v1834
      %3052 = vmatmul.mubr.bf16.gmra.mrb[0].mxu0 %v1833
      %v3053 = vpop.f32.mrb[0].mxu0
      %v3054 = vadd.f32 %v637, %v3053
      %v3055 = vpop.f32.mrb[0].mxu0
      %v3056 = vpop.f32.mrb[0].mxu0
      %v3057 = vadd.f32 %v637, %v3056
      %v3058 = vpop.f32.mrb[0].mxu0
      %3059 = vmatprep.mubr.bf16.mxu0 %v1837
      %3060 = vmatmul.mubr.bf16.gmra.mrb[0].mxu0 %v1836
      %v3061 = vpop.f32.mrb[0].mxu0
      %v3062 = vadd.f32 %v637, %v3061
      %v3063 = vpop.f32.mrb[0].mxu0
      %v3064 = vpop.f32.mrb[0].mxu0
      %v3065 = vadd.f32 %v637, %v3064
      %v3066 = vpop.f32.mrb[0].mxu0
      %3067 = vmatprep.mubr.bf16.mxu0 %v1840
      %3068 = vmatmul.mubr.bf16.gmra.mrb[0].mxu0 %v1839
      %v3069 = vpop.f32.mrb[0].mxu0
      %v3070 = vadd.f32 %v637, %v3069
      %v3071 = vpop.f32.mrb[0].mxu0
      %v3072 = vpop.f32.mrb[0].mxu0
      %v3073 = vadd.f32 %v637, %v3072
      %v3074 = vpop.f32.mrb[0].mxu0
      %3075 = vmatprep.mubr.bf16.mxu0 %v1843
      %3076 = vmatmul.mubr.bf16.gmra.mrb[0].mxu0 %v1842
      %v3077 = vpop.f32.mrb[0].mxu0
      %v3078 = vadd.f32 %v637, %v3077
      %v3079 = vpop.f32.mrb[0].mxu0
      %v3080 = vpop.f32.mrb[0].mxu0
      %v3081 = vadd.f32 %v637, %v3080
      %v3082 = vpop.f32.mrb[0].mxu0
      %3083 = vmatprep.mubr.bf16.mxu0 %v1846
      %3084 = vmatmul.mubr.bf16.gmra.mrb[0].mxu0 %v1845
      %v3085 = vpop.f32.mrb[0].mxu0
      %v3086 = vadd.f32 %v637, %v3085
      %v3087 = vpop.f32.mrb[0].mxu0
      %v3088 = vpop.f32.mrb[0].mxu0
      %v3089 = vadd.f32 %v637, %v3088
      %v3090 = vpop.f32.mrb[0].mxu0
      %3091 = vmatprep.mubr.bf16.mxu0 %v1849
      %3092 = vmatmul.mubr.bf16.gmra.mrb[0].mxu0 %v1848
      %v3093 = vpop.f32.mrb[0].mxu0
      %v3094 = vadd.f32 %v637, %v3093
      %v3095 = vpop.f32.mrb[0].mxu0
      %v3096 = vpop.f32.mrb[0].mxu0
      %v3097 = vadd.f32 %v637, %v3096
      %v3098 = vpop.f32.mrb[0].mxu0
      %3099 = vmatprep.mubr.bf16.mxu0 %v1852
      %3100 = vmatmul.mubr.bf16.gmra.mrb[0].mxu0 %v1851
      %v3101 = vpop.f32.mrb[0].mxu0
      %v3102 = vadd.f32 %v637, %v3101
      %v3103 = vpop.f32.mrb[0].mxu0
      %v3104 = vpop.f32.mrb[0].mxu0
      %v3105 = vadd.f32 %v637, %v3104
      %v3106 = vpop.f32.mrb[0].mxu0
      %3107 = vmatprep.mubr.bf16.mxu0 %v1855
      %3108 = vmatmul.mubr.bf16.gmra.mrb[0].mxu0 %v1854
      %v3109 = vpop.f32.mrb[0].mxu0
      %v3110 = vadd.f32 %v637, %v3109
      %v3111 = vpop.f32.mrb[0].mxu0
      %v3112 = vpop.f32.mrb[0].mxu0
      %v3113 = vadd.f32 %v637, %v3112
      %v3114 = vpop.f32.mrb[0].mxu0
      %3115 = vmatprep.mubr.bf16.mxu0 %v1858
      %3116 = vmatmul.mubr.bf16.gmra.mrb[0].mxu0 %v1857
      %v3117 = vpop.f32.mrb[0].mxu0
      %v3118 = vadd.f32 %v637, %v3117
      %v3119 = vpop.f32.mrb[0].mxu0
      %v3120 = vpop.f32.mrb[0].mxu0
      %v3121 = vadd.f32 %v637, %v3120
      %v3122 = vpop.f32.mrb[0].mxu0
      %3123 = vmatprep.mubr.bf16.mxu0 %v1861
      %3124 = vmatmul.mubr.bf16.gmra.mrb[0].mxu0 %v1860
      %v3125 = vpop.f32.mrb[0].mxu0
      %v3126 = vadd.f32 %v637, %v3125
      %v3127 = vpop.f32.mrb[0].mxu0
      %v3128 = vpop.f32.mrb[0].mxu0
      %v3129 = vadd.f32 %v637, %v3128
      %v3130 = vpop.f32.mrb[0].mxu0
      %3131 = vmatprep.mubr.bf16.mxu0 %v1864
      %3132 = vmatmul.mubr.bf16.gmra.mrb[0].mxu0 %v1863
      %v3133 = vpop.f32.mrb[0].mxu0
      %v3134 = vadd.f32 %v637, %v3133
      %v3135 = vpop.f32.mrb[0].mxu0
      %v3136 = vpop.f32.mrb[0].mxu0
      %v3137 = vadd.f32 %v637, %v3136
      %v3138 = vpop.f32.mrb[0].mxu0
      %3139 = vmatprep.mubr.bf16.mxu0 %v1867
      %3140 = vmatmul.mubr.bf16.gmra.mrb[0].mxu0 %v1866
      %v3141 = vpop.f32.mrb[0].mxu0
      %v3142 = vadd.f32 %v637, %v3141
      %v3143 = vpop.f32.mrb[0].mxu0
      %v3144 = vpop.f32.mrb[0].mxu0
      %v3145 = vadd.f32 %v637, %v3144
      %v3146 = vpop.f32.mrb[0].mxu0
      %3147 = vmatprep.mubr.bf16.mxu0 %v1870
      %3148 = vmatmul.mubr.bf16.gmra.mrb[0].mxu0 %v1869
      %v3149 = vpop.f32.mrb[0].mxu0
      %v3150 = vadd.f32 %v637, %v3149
      %v3151 = vpop.f32.mrb[0].mxu0
      %v3152 = vpop.f32.mrb[0].mxu0
      %v3153 = vadd.f32 %v637, %v3152
      %v3154 = vpop.f32.mrb[0].mxu0
      %3155 = vmatprep.mubr.bf16.mxu0 %v1873
      %3156 = vmatmul.mubr.bf16.gmra.mrb[0].mxu0 %v1872
      %v3157 = vpop.f32.mrb[0].mxu0
      %v3158 = vadd.f32 %v637, %v3157
      %v3159 = vpop.f32.mrb[0].mxu0
      %v3160 = vpop.f32.mrb[0].mxu0
      %v3161 = vadd.f32 %v637, %v3160
      %v3162 = vpop.f32.mrb[0].mxu0
      %3163 = vmatprep.mubr.bf16.mxu0 %v1876
      %3164 = vmatmul.mubr.bf16.gmra.mrb[0].mxu0 %v1875
      %v3165 = vpop.f32.mrb[0].mxu0
      %v3166 = vadd.f32 %v637, %v3165
      %v3167 = vpop.f32.mrb[0].mxu0
      %v3168 = vpop.f32.mrb[0].mxu0
      %v3169 = vadd.f32 %v637, %v3168
      %v3170 = vpop.f32.mrb[0].mxu0
      %3171 = vmatprep.mubr.bf16.mxu0 %v1879
      %3172 = vmatmul.mubr.bf16.gmra.mrb[0].mxu0 %v1878
      %v3173 = vpop.f32.mrb[0].mxu0
      %v3174 = vadd.f32 %v637, %v3173
      %v3175 = vpop.f32.mrb[0].mxu0
      %v3176 = vpop.f32.mrb[0].mxu0
      %v3177 = vadd.f32 %v637, %v3176
      %v3178 = vpop.f32.mrb[0].mxu0
      %3179 = vmatprep.mubr.bf16.mxu0 %v1882
      %3180 = vmatmul.mubr.bf16.gmra.mrb[0].mxu0 %v1881
      %v3181 = vpop.f32.mrb[0].mxu0
      %v3182 = vadd.f32 %v637, %v3181
      %v3183 = vpop.f32.mrb[0].mxu0
      %v3184 = vpop.f32.mrb[0].mxu0
      %v3185 = vadd.f32 %v637, %v3184
      %v3186 = vpop.f32.mrb[0].mxu0
      %3187 = vmatprep.mubr.bf16.mxu0 %v1885
      %3188 = vmatmul.mubr.bf16.gmra.mrb[0].mxu0 %v1884
      %v3189 = vpop.f32.mrb[0].mxu0
      %v3190 = vadd.f32 %v637, %v3189
      %v3191 = vpop.f32.mrb[0].mxu0
      %v3192 = vpop.f32.mrb[0].mxu0
      %v3193 = vadd.f32 %v637, %v3192
      %v3194 = vpop.f32.mrb[0].mxu0
      %3195 = vmatprep.mubr.bf16.mxu0 %v1888
      %3196 = vmatmul.mubr.bf16.gmra.mrb[0].mxu0 %v1887
      %v3197 = vpop.f32.mrb[0].mxu0
      %v3198 = vadd.f32 %v637, %v3197
      %v3199 = vpop.f32.mrb[0].mxu0
      %v3200 = vpop.f32.mrb[0].mxu0
      %v3201 = vadd.f32 %v637, %v3200
      %v3202 = vpop.f32.mrb[0].mxu0
      %3203 = vmatprep.mubr.bf16.mxu0 %v1891
      %3204 = vmatmul.mubr.bf16.gmra.mrb[0].mxu0 %v1890
      %v3205 = vpop.f32.mrb[0].mxu0
      %v3206 = vadd.f32 %v637, %v3205
      %v3207 = vpop.f32.mrb[0].mxu0
      %v3208 = vpop.f32.mrb[0].mxu0
      %v3209 = vadd.f32 %v637, %v3208
      %v3210 = vpop.f32.mrb[0].mxu0
      %3211 = vmatprep.mubr.bf16.mxu0 %v1894
      %3212 = vmatmul.mubr.bf16.gmra.mrb[0].mxu0 %v1893
      %v3213 = vpop.f32.mrb[0].mxu0
      %v3214 = vadd.f32 %v637, %v3213
      %v3215 = vpop.f32.mrb[0].mxu0
      %v3216 = vpop.f32.mrb[0].mxu0
      %v3217 = vadd.f32 %v637, %v3216
      %v3218 = vpop.f32.mrb[0].mxu0
      %3219 = vmatprep.mubr.bf16.mxu0 %v1897
      %3220 = vmatmul.mubr.bf16.gmra.mrb[0].mxu0 %v1896
      %v3221 = vpop.f32.mrb[0].mxu0
      %v3222 = vadd.f32 %v637, %v3221
      %v3223 = vpop.f32.mrb[0].mxu0
      %v3224 = vpop.f32.mrb[0].mxu0
      %v3225 = vadd.f32 %v637, %v3224
      %v3226 = vpop.f32.mrb[0].mxu0
      %3227 = vmatprep.mubr.bf16.mxu0 %v1900
      %3228 = vmatmul.mubr.bf16.gmra.mrb[0].mxu0 %v1899
      %v3229 = vpop.f32.mrb[0].mxu0
      %v3230 = vadd.f32 %v637, %v3229
      %v3231 = vpop.f32.mrb[0].mxu0
      %v3232 = vpop.f32.mrb[0].mxu0
      %v3233 = vadd.f32 %v637, %v3232
      %v3234 = vpop.f32.mrb[0].mxu0
      %3235 = vmatprep.mubr.bf16.mxu0 %v1903
      %3236 = vmatmul.mubr.bf16.gmra.mrb[0].mxu0 %v1902
      %v3237 = vpop.f32.mrb[0].mxu0
      %v3238 = vadd.f32 %v637, %v3237
      %v3239 = vpop.f32.mrb[0].mxu0
      %v3240 = vpop.f32.mrb[0].mxu0
      %v3241 = vadd.f32 %v637, %v3240
      %v3242 = vpop.f32.mrb[0].mxu0
      %3243 = vmatprep.mubr.bf16.mxu0 %v1906
      %3244 = vmatmul.mubr.bf16.gmra.mrb[0].mxu0 %v1905
      %v3245 = vpop.f32.mrb[0].mxu0
      %v3246 = vadd.f32 %v637, %v3245
      %v3247 = vpop.f32.mrb[0].mxu0
      %v3248 = vpop.f32.mrb[0].mxu0
      %v3249 = vadd.f32 %v637, %v3248
      %v3250 = vpop.f32.mrb[0].mxu0
      %3251 = vmatprep.mubr.bf16.mxu0 %v1909
      %3252 = vmatmul.mubr.bf16.gmra.mrb[0].mxu0 %v1908
      %v3253 = vpop.f32.mrb[0].mxu0
      %v3254 = vadd.f32 %v637, %v3253
      %v3255 = vpop.f32.mrb[0].mxu0
      %v3256 = vpop.f32.mrb[0].mxu0
      %v3257 = vadd.f32 %v637, %v3256
      %v3258 = vpop.f32.mrb[0].mxu0
      %3259 = vmatprep.mubr.bf16.mxu0 %v1912
      %3260 = vmatmul.mubr.bf16.gmra.mrb[0].mxu0 %v1911
      %v3261 = vpop.f32.mrb[0].mxu0
      %v3262 = vadd.f32 %v637, %v3261
      %v3263 = vpop.f32.mrb[0].mxu0
      %v3264 = vpop.f32.mrb[0].mxu0
      %v3265 = vadd.f32 %v637, %v3264
      %v3266 = vpop.f32.mrb[0].mxu0
      %3267 = vmatprep.mubr.bf16.mxu0 %v1915
      %3268 = vmatmul.mubr.bf16.gmra.mrb[0].mxu0 %v1914
      %v3269 = vpop.f32.mrb[0].mxu0
      %v3270 = vadd.f32 %v637, %v3269
      %v3271 = vpop.f32.mrb[0].mxu0
      %v3272 = vpop.f32.mrb[0].mxu0
      %v3273 = vadd.f32 %v637, %v3272
      %v3274 = vpop.f32.mrb[0].mxu0
      %3275 = vmatprep.mubr.bf16.mxu0 %v1918
      %3276 = vmatmul.mubr.bf16.gmra.mrb[0].mxu0 %v1917
      %v3277 = vpop.f32.mrb[0].mxu0
      %v3278 = vadd.f32 %v637, %v3277
      %v3279 = vpop.f32.mrb[0].mxu0
      %v3280 = vpop.f32.mrb[0].mxu0
      %v3281 = vadd.f32 %v637, %v3280
      %v3282 = vpop.f32.mrb[0].mxu0
      %3283 = vmatprep.mubr.bf16.mxu0 %v1921
      %3284 = vmatmul.mubr.bf16.gmra.mrb[0].mxu0 %v1920
      %v3285 = vpop.f32.mrb[0].mxu0
      %v3286 = vadd.f32 %v637, %v3285
      %v3287 = vpop.f32.mrb[0].mxu0
      %v3288 = vpop.f32.mrb[0].mxu0
      %v3289 = vadd.f32 %v637, %v3288
      %v3290 = vpop.f32.mrb[0].mxu0
      %3291 = vmatprep.mubr.bf16.mxu0 %v1924
      %3292 = vmatmul.mubr.bf16.gmra.mrb[0].mxu0 %v1923
      %v3293 = vpop.f32.mrb[0].mxu0
      %v3294 = vadd.f32 %v637, %v3293
      %v3295 = vpop.f32.mrb[0].mxu0
      %v3296 = vpop.f32.mrb[0].mxu0
      %v3297 = vadd.f32 %v637, %v3296
      %v3298 = vpop.f32.mrb[0].mxu0
      %3299 = vmatprep.mubr.bf16.mxu0 %v1927
      %3300 = vmatmul.mubr.bf16.gmra.mrb[0].mxu0 %v1926
      %v3301 = vpop.f32.mrb[0].mxu0
      %v3302 = vadd.f32 %v637, %v3301
      %v3303 = vpop.f32.mrb[0].mxu0
      %v3304 = vpop.f32.mrb[0].mxu0
      %v3305 = vadd.f32 %v637, %v3304
      %v3306 = vpop.f32.mrb[0].mxu0
      %3307 = vmatprep.mubr.bf16.mxu0 %v1930
      %3308 = vmatmul.mubr.bf16.gmra.mrb[0].mxu0 %v1929
      %v3309 = vpop.f32.mrb[0].mxu0
      %v3310 = vadd.f32 %v637, %v3309
      %v3311 = vpop.f32.mrb[0].mxu0
      %v3312 = vpop.f32.mrb[0].mxu0
      %v3313 = vadd.f32 %v637, %v3312
      %v3314 = vpop.f32.mrb[0].mxu0
      %3315 = vmatprep.mubr.bf16.mxu0 %v1933
      %3316 = vmatmul.mubr.bf16.gmra.mrb[0].mxu0 %v1932
      %v3317 = vpop.f32.mrb[0].mxu0
      %v3318 = vadd.f32 %v637, %v3317
      %v3319 = vpop.f32.mrb[0].mxu0
      %v3320 = vpop.f32.mrb[0].mxu0
      %v3321 = vadd.f32 %v637, %v3320
      %v3322 = vpop.f32.mrb[0].mxu0
      %3323 = vmatprep.mubr.bf16.mxu0 %v1936
      %3324 = vmatmul.mubr.bf16.gmra.mrb[0].mxu0 %v1935
      %v3325 = vpop.f32.mrb[0].mxu0
      %v3326 = vadd.f32 %v637, %v3325
      %v3327 = vpop.f32.mrb[0].mxu0
      %v3328 = vpop.f32.mrb[0].mxu0
      %v3329 = vadd.f32 %v637, %v3328
      %v3330 = vpop.f32.mrb[0].mxu0
      %3331 = vmatprep.mubr.bf16.mxu0 %v1939
      %3332 = vmatmul.mubr.bf16.gmra.mrb[0].mxu0 %v1938
      %v3333 = vpop.f32.mrb[0].mxu0
      %v3334 = vadd.f32 %v637, %v3333
      %v3335 = vpop.f32.mrb[0].mxu0
      %v3336 = vpop.f32.mrb[0].mxu0
      %v3337 = vadd.f32 %v637, %v3336
      %v3338 = vpop.f32.mrb[0].mxu0
      %3339 = vmatprep.mubr.bf16.mxu0 %v1942
      %3340 = vmatmul.mubr.bf16.gmra.mrb[0].mxu0 %v1941
      %v3341 = vpop.f32.mrb[0].mxu0
      %v3342 = vadd.f32 %v637, %v3341
      %v3343 = vpop.f32.mrb[0].mxu0
      %v3344 = vpop.f32.mrb[0].mxu0
      %v3345 = vadd.f32 %v637, %v3344
      %v3346 = vpop.f32.mrb[0].mxu0
      %3347 = vmatprep.mubr.bf16.mxu0 %v1945
      %3348 = vmatmul.mubr.bf16.gmra.mrb[0].mxu0 %v1944
      %v3349 = vpop.f32.mrb[0].mxu0
      %v3350 = vadd.f32 %v637, %v3349
      %v3351 = vpop.f32.mrb[0].mxu0
      %v3352 = vpop.f32.mrb[0].mxu0
      %v3353 = vadd.f32 %v637, %v3352
      %v3354 = vpop.f32.mrb[0].mxu0
      %3355 = vmatprep.mubr.bf16.mxu0 %v1948
      %3356 = vmatmul.mubr.bf16.gmra.mrb[0].mxu0 %v1947
      %v3357 = vpop.f32.mrb[0].mxu0
      %v3358 = vadd.f32 %v637, %v3357
      %v3359 = vpop.f32.mrb[0].mxu0
      %v3360 = vpop.f32.mrb[0].mxu0
      %v3361 = vadd.f32 %v637, %v3360
      %v3362 = vpop.f32.mrb[0].mxu0
      %3363 = vmatprep.mubr.bf16.mxu0 %v1951
      %3364 = vmatmul.mubr.bf16.gmra.mrb[0].mxu0 %v1950
      %v3365 = vpop.f32.mrb[0].mxu0
      %v3366 = vadd.f32 %v637, %v3365
      %v3367 = vpop.f32.mrb[0].mxu0
      %v3368 = vpop.f32.mrb[0].mxu0
      %v3369 = vadd.f32 %v637, %v3368
      %v3370 = vpop.f32.mrb[0].mxu0
      %3371 = vmatprep.mubr.bf16.mxu0 %v1954
      %3372 = vmatmul.mubr.bf16.gmra.mrb[0].mxu0 %v1953
      %v3373 = vpop.f32.mrb[0].mxu0
      %v3374 = vadd.f32 %v637, %v3373
      %v3375 = vpop.f32.mrb[0].mxu0
      %v3376 = vpop.f32.mrb[0].mxu0
      %v3377 = vadd.f32 %v637, %v3376
      %v3378 = vpop.f32.mrb[0].mxu0
      %3379 = vmatprep.mubr.bf16.mxu0 %v1957
      %3380 = vmatmul.mubr.bf16.gmra.mrb[0].mxu0 %v1956
      %v3381 = vpop.f32.mrb[0].mxu0
      %v3382 = vadd.f32 %v637, %v3381
      %v3383 = vpop.f32.mrb[0].mxu0
      %v3384 = vpop.f32.mrb[0].mxu0
      %v3385 = vadd.f32 %v637, %v3384
      %v3386 = vpop.f32.mrb[0].mxu0
      %3387 = vmatprep.mubr.bf16.mxu0 %v1960
      %3388 = vmatmul.mubr.bf16.gmra.mrb[0].mxu0 %v1959
      %v3389 = vpop.f32.mrb[0].mxu0
      %v3390 = vadd.f32 %v637, %v3389
      %v3391 = vpop.f32.mrb[0].mxu0
      %v3392 = vpop.f32.mrb[0].mxu0
      %v3393 = vadd.f32 %v637, %v3392
      %v3394 = vpop.f32.mrb[0].mxu0
      %3395 = vmatprep.mubr.bf16.mxu0 %v1963
      %3396 = vmatmul.mubr.bf16.gmra.mrb[0].mxu0 %v1962
      %v3397 = vpop.f32.mrb[0].mxu0
      %v3398 = vadd.f32 %v637, %v3397
      %v3399 = vpop.f32.mrb[0].mxu0
      %v3400 = vpop.f32.mrb[0].mxu0
      %v3401 = vadd.f32 %v637, %v3400
      %v3402 = vpop.f32.mrb[0].mxu0
      %3403 = vmatprep.mubr.bf16.mxu0 %v1966
      %3404 = vmatmul.mubr.bf16.gmra.mrb[0].mxu0 %v1965
      %v3405 = vpop.f32.mrb[0].mxu0
      %v3406 = vadd.f32 %v637, %v3405
      %v3407 = vpop.f32.mrb[0].mxu0
      %v3408 = vpop.f32.mrb[0].mxu0
      %v3409 = vadd.f32 %v637, %v3408
      %v3410 = vpop.f32.mrb[0].mxu0
      %3411 = vmatprep.mubr.bf16.mxu0 %v1969
      %3412 = vmatmul.mubr.bf16.gmra.mrb[0].mxu0 %v1968
      %v3413 = vpop.f32.mrb[0].mxu0
      %v3414 = vadd.f32 %v637, %v3413
      %v3415 = vpop.f32.mrb[0].mxu0
      %v3416 = vpop.f32.mrb[0].mxu0
      %v3417 = vadd.f32 %v637, %v3416
      %v3418 = vpop.f32.mrb[0].mxu0
      %3419 = vmatprep.mubr.bf16.mxu0 %v1972
      %3420 = vmatmul.mubr.bf16.gmra.mrb[0].mxu0 %v1971
      %v3421 = vpop.f32.mrb[0].mxu0
      %v3422 = vadd.f32 %v637, %v3421
      %v3423 = vpop.f32.mrb[0].mxu0
      %v3424 = vpop.f32.mrb[0].mxu0
      %v3425 = vadd.f32 %v637, %v3424
      %v3426 = vpop.f32.mrb[0].mxu0
      %3427 = vmatprep.mubr.bf16.mxu0 %v1975
      %3428 = vmatmul.mubr.bf16.gmra.mrb[0].mxu0 %v1974
      %v3429 = vpop.f32.mrb[0].mxu0
      %v3430 = vadd.f32 %v637, %v3429
      %v3431 = vpop.f32.mrb[0].mxu0
      %v3432 = vpop.f32.mrb[0].mxu0
      %v3433 = vadd.f32 %v637, %v3432
      %v3434 = vpop.f32.mrb[0].mxu0
      %3435 = vmatprep.mubr.bf16.mxu0 %v1978
      %3436 = vmatmul.mubr.bf16.gmra.mrb[0].mxu0 %v1977
      %v3437 = vpop.f32.mrb[0].mxu0
      %v3438 = vadd.f32 %v637, %v3437
      %v3439 = vpop.f32.mrb[0].mxu0
      %v3440 = vpop.f32.mrb[0].mxu0
      %v3441 = vadd.f32 %v637, %v3440
      %v3442 = vpop.f32.mrb[0].mxu0
      %3443 = vmatprep.mubr.bf16.mxu0 %v1981
      %3444 = vmatmul.mubr.bf16.gmra.mrb[0].mxu0 %v1980
      %v3445 = vpop.f32.mrb[0].mxu0
      %v3446 = vadd.f32 %v637, %v3445
      %v3447 = vpop.f32.mrb[0].mxu0
      %v3448 = vpop.f32.mrb[0].mxu0
      %v3449 = vadd.f32 %v637, %v3448
      %v3450 = vpop.f32.mrb[0].mxu0
      %3451 = vmatprep.mubr.bf16.mxu0 %v1984
      %3452 = vmatmul.mubr.bf16.gmra.mrb[0].mxu0 %v1983
      %v3453 = vpop.f32.mrb[0].mxu0
      %v3454 = vadd.f32 %v637, %v3453
      %v3455 = vpop.f32.mrb[0].mxu0
      %v3456 = vpop.f32.mrb[0].mxu0
      %v3457 = vadd.f32 %v637, %v3456
      %v3458 = vpop.f32.mrb[0].mxu0
      %3459 = vmatprep.mubr.bf16.mxu0 %v1987
      %3460 = vmatmul.mubr.bf16.gmra.mrb[0].mxu0 %v1986
      %v3461 = vpop.f32.mrb[0].mxu0
      %v3462 = vadd.f32 %v637, %v3461
      %v3463 = vpop.f32.mrb[0].mxu0
      %v3464 = vpop.f32.mrb[0].mxu0
      %v3465 = vadd.f32 %v637, %v3464
      %v3466 = vpop.f32.mrb[0].mxu0
      %3467 = vmatprep.mubr.bf16.mxu0 %v1990
      %3468 = vmatmul.mubr.bf16.gmra.mrb[0].mxu0 %v1989
      %v3469 = vpop.f32.mrb[0].mxu0
      %v3470 = vadd.f32 %v637, %v3469
      %v3471 = vpop.f32.mrb[0].mxu0
      %v3472 = vpop.f32.mrb[0].mxu0
      %v3473 = vadd.f32 %v637, %v3472
      %v3474 = vpop.f32.mrb[0].mxu0
      %3475 = vmatprep.mubr.bf16.mxu0 %v1993
      %3476 = vmatmul.mubr.bf16.gmra.mrb[0].mxu0 %v1992
      %v3477 = vpop.f32.mrb[0].mxu0
      %v3478 = vadd.f32 %v637, %v3477
      %v3479 = vpop.f32.mrb[0].mxu0
      %v3480 = vpop.f32.mrb[0].mxu0
      %v3481 = vadd.f32 %v637, %v3480
      %v3482 = vpop.f32.mrb[0].mxu0
      %3483 = vmatprep.mubr.bf16.mxu0 %v1996
      %3484 = vmatmul.mubr.bf16.gmra.mrb[0].mxu0 %v1995
      %v3485 = vpop.f32.mrb[0].mxu0
      %v3486 = vadd.f32 %v637, %v3485
      %v3487 = vpop.f32.mrb[0].mxu0
      %v3488 = vpop.f32.mrb[0].mxu0
      %v3489 = vadd.f32 %v637, %v3488
      %v3490 = vpop.f32.mrb[0].mxu0
      %3491 = vmatprep.mubr.bf16.mxu0 %v1999
      %3492 = vmatmul.mubr.bf16.gmra.mrb[0].mxu0 %v1998
      %v3493 = vpop.f32.mrb[0].mxu0
      %v3494 = vadd.f32 %v637, %v3493
      %v3495 = vpop.f32.mrb[0].mxu0
      %v3496 = vpop.f32.mrb[0].mxu0
      %v3497 = vadd.f32 %v637, %v3496
      %v3498 = vpop.f32.mrb[0].mxu0
      %3499 = vmatprep.mubr.bf16.mxu0 %v2002
      %3500 = vmatmul.mubr.bf16.gmra.mrb[0].mxu0 %v2001
      %v3501 = vpop.f32.mrb[0].mxu0
      %v3502 = vadd.f32 %v637, %v3501
      %v3503 = vpop.f32.mrb[0].mxu0
      %v3504 = vpop.f32.mrb[0].mxu0
      %v3505 = vadd.f32 %v637, %v3504
      %v3506 = vpop.f32.mrb[0].mxu0
      %3507 = vdwg.mxu0
      %3508 = vmatprep.subr.bf16.mxu0 0
      %3509 = vmatpush1.bf16.msra.mxu0 %v2633
      %3510 = vmatprep.subr.bf16.mxu0 0
      %3511 = vmatpush1.bf16.msra.mxu0 0
      %3512 = vmatprep.subr.bf16.mxu0 0
      %3513 = vmatpush1.bf16.msra.mxu0 0
      %3514 = vmatprep.subr.bf16.mxu0 0
      %3515 = vmatpush1.bf16.msra.mxu0 0
      %3516 = vmatprep.subr.bf16.mxu0 0
      %3517 = vmatpush1.bf16.msra.mxu0 0
      %3518 = vmatprep.subr.bf16.mxu0 0
      %3519 = vmatpush1.bf16.msra.mxu0 0
      %3520 = vmatprep.subr.bf16.mxu0 0
      %3521 = vmatpush1.bf16.msra.mxu0 0
      %3522 = vmatprep.subr.bf16.mxu0 0
      %3523 = vmatpush1.bf16.msra.mxu0 0
      %3524 = vmatprep.subr.bf16.mxu0 0
      %3525 = vmatpush1.bf16.msra.mxu0 0
      %3526 = vmatprep.subr.bf16.mxu0 0
      %3527 = vmatpush1.bf16.msra.mxu0 0
      %3528 = vmatprep.subr.bf16.mxu0 0
      %3529 = vmatpush1.bf16.msra.mxu0 0
      %3530 = vmatprep.subr.bf16.mxu0 0
      %3531 = vmatpush1.bf16.msra.mxu0 0
      %3532 = vmatprep.subr.bf16.mxu0 0
      %3533 = vmatpush1.bf16.msra.mxu0 0
      %3534 = vmatprep.subr.bf16.mxu0 0
      %3535 = vmatpush1.bf16.msra.mxu0 0
      %3536 = vmatprep.subr.bf16.mxu0 0
      %3537 = vmatpush1.bf16.msra.mxu0 0
      %3538 = vmatprep.subr.bf16.mxu0 0
      %3539 = vmatpush1.bf16.msra.mxu0 0
      %3540 = vmatprep.mubr.bf16.mxu0 0
      %3541 = vmatmul.mubr.bf16.gmra.mrb[0].mxu0 %v2317
      %v3542 = vpop.f32.mrb[0].mxu0
      %v3543 = vadd.f32 %v2670, %v3542
      %v3544 = vpop.f32.mrb[0].mxu0
      %v3545 = vpop.f32.mrb[0].mxu0
      %v3546 = vadd.f32 %v2673, %v3545
      %v3547 = vpop.f32.mrb[0].mxu0
      %3548 = vmatprep.mubr.bf16.mxu0 0
      %3549 = vmatmul.mubr.bf16.gmra.mrb[0].mxu0 %v2320
      %v3550 = vpop.f32.mrb[0].mxu0
      %v3551 = vadd.f32 %v2678, %v3550
      %v3552 = vpop.f32.mrb[0].mxu0
      %v3553 = vpop.f32.mrb[0].mxu0
      %v3554 = vadd.f32 %v2681, %v3553
      %v3555 = vpop.f32.mrb[0].mxu0
      %3556 = vmatprep.mubr.bf16.mxu0 0
      %3557 = vmatmul.mubr.bf16.gmra.mrb[0].mxu0 %v2323
      %v3558 = vpop.f32.mrb[0].mxu0
      %v3559 = vadd.f32 %v2686, %v3558
      %v3560 = vpop.f32.mrb[0].mxu0
      %v3561 = vpop.f32.mrb[0].mxu0
      %v3562 = vadd.f32 %v2689, %v3561
      %v3563 = vpop.f32.mrb[0].mxu0
      %3564 = vmatprep.mubr.bf16.mxu0 0
      %3565 = vmatmul.mubr.bf16.gmra.mrb[0].mxu0 %v2326
      %v3566 = vpop.f32.mrb[0].mxu0
      %v3567 = vadd.f32 %v2694, %v3566
      %v3568 = vpop.f32.mrb[0].mxu0
      %v3569 = vpop.f32.mrb[0].mxu0
      %v3570 = vadd.f32 %v2697, %v3569
      %v3571 = vpop.f32.mrb[0].mxu0
      %3572 = vmatprep.mubr.bf16.mxu0 0
      %3573 = vmatmul.mubr.bf16.gmra.mrb[0].mxu0 %v2329
      %v3574 = vpop.f32.mrb[0].mxu0
      %v3575 = vadd.f32 %v2702, %v3574
      %v3576 = vpop.f32.mrb[0].mxu0
      %v3577 = vpop.f32.mrb[0].mxu0
      %v3578 = vadd.f32 %v2705, %v3577
      %v3579 = vpop.f32.mrb[0].mxu0
      %3580 = vmatprep.mubr.bf16.mxu0 0
      %3581 = vmatmul.mubr.bf16.gmra.mrb[0].mxu0 %v2332
      %v3582 = vpop.f32.mrb[0].mxu0
      %v3583 = vadd.f32 %v2710, %v3582
      %v3584 = vpop.f32.mrb[0].mxu0
      %v3585 = vpop.f32.mrb[0].mxu0
      %v3586 = vadd.f32 %v2713, %v3585
      %v3587 = vpop.f32.mrb[0].mxu0
      %3588 = vmatprep.mubr.bf16.mxu0 0
      %3589 = vmatmul.mubr.bf16.gmra.mrb[0].mxu0 %v2335
      %v3590 = vpop.f32.mrb[0].mxu0
      %v3591 = vadd.f32 %v2718, %v3590
      %v3592 = vpop.f32.mrb[0].mxu0
      %v3593 = vpop.f32.mrb[0].mxu0
      %v3594 = vadd.f32 %v2721, %v3593
      %v3595 = vpop.f32.mrb[0].mxu0
      %3596 = vmatprep.mubr.bf16.mxu0 0
      %3597 = vmatmul.mubr.bf16.gmra.mrb[0].mxu0 %v2338
      %v3598 = vpop.f32.mrb[0].mxu0
      %v3599 = vadd.f32 %v2726, %v3598
      %v3600 = vpop.f32.mrb[0].mxu0
      %v3601 = vpop.f32.mrb[0].mxu0
      %v3602 = vadd.f32 %v2729, %v3601
      %v3603 = vpop.f32.mrb[0].mxu0
      %3604 = vmatprep.mubr.bf16.mxu0 0
      %3605 = vmatmul.mubr.bf16.gmra.mrb[0].mxu0 %v2341
      %v3606 = vpop.f32.mrb[0].mxu0
      %v3607 = vadd.f32 %v2734, %v3606
      %v3608 = vpop.f32.mrb[0].mxu0
      %v3609 = vpop.f32.mrb[0].mxu0
      %v3610 = vadd.f32 %v2737, %v3609
      %v3611 = vpop.f32.mrb[0].mxu0
      %3612 = vmatprep.mubr.bf16.mxu0 0
      %3613 = vmatmul.mubr.bf16.gmra.mrb[0].mxu0 %v2344
      %v3614 = vpop.f32.mrb[0].mxu0
      %v3615 = vadd.f32 %v2742, %v3614
      %v3616 = vpop.f32.mrb[0].mxu0
      %v3617 = vpop.f32.mrb[0].mxu0
      %v3618 = vadd.f32 %v2745, %v3617
      %v3619 = vpop.f32.mrb[0].mxu0
      %3620 = vmatprep.mubr.bf16.mxu0 0
      %3621 = vmatmul.mubr.bf16.gmra.mrb[0].mxu0 %v2347
      %v3622 = vpop.f32.mrb[0].mxu0
      %v3623 = vadd.f32 %v2750, %v3622
      %v3624 = vpop.f32.mrb[0].mxu0
      %v3625 = vpop.f32.mrb[0].mxu0
      %v3626 = vadd.f32 %v2753, %v3625
      %v3627 = vpop.f32.mrb[0].mxu0
      %3628 = vmatprep.mubr.bf16.mxu0 0
      %3629 = vmatmul.mubr.bf16.gmra.mrb[0].mxu0 %v2350
      %v3630 = vpop.f32.mrb[0].mxu0
      %v3631 = vadd.f32 %v2758, %v3630
      %v3632 = vpop.f32.mrb[0].mxu0
      %v3633 = vpop.f32.mrb[0].mxu0
      %v3634 = vadd.f32 %v2761, %v3633
      %v3635 = vpop.f32.mrb[0].mxu0
      %3636 = vmatprep.mubr.bf16.mxu0 0
      %3637 = vmatmul.mubr.bf16.gmra.mrb[0].mxu0 %v2353
      %v3638 = vpop.f32.mrb[0].mxu0
      %v3639 = vadd.f32 %v2766, %v3638
      %v3640 = vpop.f32.mrb[0].mxu0
      %v3641 = vpop.f32.mrb[0].mxu0
      %v3642 = vadd.f32 %v2769, %v3641
      %v3643 = vpop.f32.mrb[0].mxu0
      %3644 = vmatprep.mubr.bf16.mxu0 0
      %3645 = vmatmul.mubr.bf16.gmra.mrb[0].mxu0 %v2356
      %v3646 = vpop.f32.mrb[0].mxu0
      %v3647 = vadd.f32 %v2774, %v3646
      %v3648 = vpop.f32.mrb[0].mxu0
      %v3649 = vpop.f32.mrb[0].mxu0
      %v3650 = vadd.f32 %v2777, %v3649
      %v3651 = vpop.f32.mrb[0].mxu0
      %3652 = vmatprep.mubr.bf16.mxu0 0
      %3653 = vmatmul.mubr.bf16.gmra.mrb[0].mxu0 %v2359
      %v3654 = vpop.f32.mrb[0].mxu0
      %v3655 = vadd.f32 %v2782, %v3654
      %v3656 = vpop.f32.mrb[0].mxu0
      %v3657 = vpop.f32.mrb[0].mxu0
      %v3658 = vadd.f32 %v2785, %v3657
      %v3659 = vpop.f32.mrb[0].mxu0
      %3660 = vmatprep.mubr.bf16.mxu0 0
      %3661 = vmatmul.mubr.bf16.gmra.mrb[0].mxu0 %v2362
      %v3662 = vpop.f32.mrb[0].mxu0
      %v3663 = vadd.f32 %v2790, %v3662
      %v3664 = vpop.f32.mrb[0].mxu0
      %v3665 = vpop.f32.mrb[0].mxu0
      %v3666 = vadd.f32 %v2793, %v3665
      %v3667 = vpop.f32.mrb[0].mxu0
      %3668 = vmatprep.mubr.bf16.mxu0 0
      %3669 = vmatmul.mubr.bf16.gmra.mrb[0].mxu0 %v2365
      %v3670 = vpop.f32.mrb[0].mxu0
      %v3671 = vadd.f32 %v2798, %v3670
      %v3672 = vpop.f32.mrb[0].mxu0
      %v3673 = vpop.f32.mrb[0].mxu0
      %v3674 = vadd.f32 %v2801, %v3673
      %v3675 = vpop.f32.mrb[0].mxu0
      %3676 = vmatprep.mubr.bf16.mxu0 0
      %3677 = vmatmul.mubr.bf16.gmra.mrb[0].mxu0 %v2368
      %v3678 = vpop.f32.mrb[0].mxu0
      %v3679 = vadd.f32 %v2806, %v3678
      %v3680 = vpop.f32.mrb[0].mxu0
      %v3681 = vpop.f32.mrb[0].mxu0
      %v3682 = vadd.f32 %v2809, %v3681
      %v3683 = vpop.f32.mrb[0].mxu0
      %3684 = vmatprep.mubr.bf16.mxu0 0
      %3685 = vmatmul.mubr.bf16.gmra.mrb[0].mxu0 %v2371
      %v3686 = vpop.f32.mrb[0].mxu0
      %v3687 = vadd.f32 %v2814, %v3686
      %v3688 = vpop.f32.mrb[0].mxu0
      %v3689 = vpop.f32.mrb[0].mxu0
      %v3690 = vadd.f32 %v2817, %v3689
      %v3691 = vpop.f32.mrb[0].mxu0
      %3692 = vmatprep.mubr.bf16.mxu0 0
      %3693 = vmatmul.mubr.bf16.gmra.mrb[0].mxu0 %v2374
      %v3694 = vpop.f32.mrb[0].mxu0
      %v3695 = vadd.f32 %v2822, %v3694
      %v3696 = vpop.f32.mrb[0].mxu0
      %v3697 = vpop.f32.mrb[0].mxu0
      %v3698 = vadd.f32 %v2825, %v3697
      %v3699 = vpop.f32.mrb[0].mxu0
      %3700 = vmatprep.mubr.bf16.mxu0 0
      %3701 = vmatmul.mubr.bf16.gmra.mrb[0].mxu0 %v2377
      %v3702 = vpop.f32.mrb[0].mxu0
      %v3703 = vadd.f32 %v2830, %v3702
      %v3704 = vpop.f32.mrb[0].mxu0
      %v3705 = vpop.f32.mrb[0].mxu0
      %v3706 = vadd.f32 %v2833, %v3705
      %v3707 = vpop.f32.mrb[0].mxu0
      %3708 = vmatprep.mubr.bf16.mxu0 0
      %3709 = vmatmul.mubr.bf16.gmra.mrb[0].mxu0 %v2380
      %v3710 = vpop.f32.mrb[0].mxu0
      %v3711 = vadd.f32 %v2838, %v3710
      %v3712 = vpop.f32.mrb[0].mxu0
      %v3713 = vpop.f32.mrb[0].mxu0
      %v3714 = vadd.f32 %v2841, %v3713
      %v3715 = vpop.f32.mrb[0].mxu0
      %3716 = vmatprep.mubr.bf16.mxu0 0
      %3717 = vmatmul.mubr.bf16.gmra.mrb[0].mxu0 %v2383
      %v3718 = vpop.f32.mrb[0].mxu0
      %v3719 = vadd.f32 %v2846, %v3718
      %v3720 = vpop.f32.mrb[0].mxu0
      %v3721 = vpop.f32.mrb[0].mxu0
      %v3722 = vadd.f32 %v2849, %v3721
      %v3723 = vpop.f32.mrb[0].mxu0
      %3724 = vmatprep.mubr.bf16.mxu0 0
      %3725 = vmatmul.mubr.bf16.gmra.mrb[0].mxu0 %v2386
      %v3726 = vpop.f32.mrb[0].mxu0
      %v3727 = vadd.f32 %v2854, %v3726
      %v3728 = vpop.f32.mrb[0].mxu0
      %v3729 = vpop.f32.mrb[0].mxu0
      %v3730 = vadd.f32 %v2857, %v3729
      %v3731 = vpop.f32.mrb[0].mxu0
      %3732 = vmatprep.mubr.bf16.mxu0 0
      %3733 = vmatmul.mubr.bf16.gmra.mrb[0].mxu0 %v2389
      %v3734 = vpop.f32.mrb[0].mxu0
      %v3735 = vadd.f32 %v2862, %v3734
      %v3736 = vpop.f32.mrb[0].mxu0
      %v3737 = vpop.f32.mrb[0].mxu0
      %v3738 = vadd.f32 %v2865, %v3737
      %v3739 = vpop.f32.mrb[0].mxu0
      %3740 = vmatprep.mubr.bf16.mxu0 0
      %3741 = vmatmul.mubr.bf16.gmra.mrb[0].mxu0 %v2392
      %v3742 = vpop.f32.mrb[0].mxu0
      %v3743 = vadd.f32 %v2870, %v3742
      %v3744 = vpop.f32.mrb[0].mxu0
      %v3745 = vpop.f32.mrb[0].mxu0
      %v3746 = vadd.f32 %v2873, %v3745
      %v3747 = vpop.f32.mrb[0].mxu0
      %3748 = vmatprep.mubr.bf16.mxu0 0
      %3749 = vmatmul.mubr.bf16.gmra.mrb[0].mxu0 %v2395
      %v3750 = vpop.f32.mrb[0].mxu0
      %v3751 = vadd.f32 %v2878, %v3750
      %v3752 = vpop.f32.mrb[0].mxu0
      %v3753 = vpop.f32.mrb[0].mxu0
      %v3754 = vadd.f32 %v2881, %v3753
      %v3755 = vpop.f32.mrb[0].mxu0
      %3756 = vmatprep.mubr.bf16.mxu0 0
      %3757 = vmatmul.mubr.bf16.gmra.mrb[0].mxu0 %v2398
      %v3758 = vpop.f32.mrb[0].mxu0
      %v3759 = vadd.f32 %v2886, %v3758
      %v3760 = vpop.f32.mrb[0].mxu0
      %v3761 = vpop.f32.mrb[0].mxu0
      %v3762 = vadd.f32 %v2889, %v3761
      %v3763 = vpop.f32.mrb[0].mxu0
      %3764 = vmatprep.mubr.bf16.mxu0 0
      %3765 = vmatmul.mubr.bf16.gmra.mrb[0].mxu0 %v2401
      %v3766 = vpop.f32.mrb[0].mxu0
      %v3767 = vadd.f32 %v2894, %v3766
      %v3768 = vpop.f32.mrb[0].mxu0
      %v3769 = vpop.f32.mrb[0].mxu0
      %v3770 = vadd.f32 %v2897, %v3769
      %v3771 = vpop.f32.mrb[0].mxu0
      %3772 = vmatprep.mubr.bf16.mxu0 0
      %3773 = vmatmul.mubr.bf16.gmra.mrb[0].mxu0 %v2404
      %v3774 = vpop.f32.mrb[0].mxu0
      %v3775 = vadd.f32 %v2902, %v3774
      %v3776 = vpop.f32.mrb[0].mxu0
      %v3777 = vpop.f32.mrb[0].mxu0
      %v3778 = vadd.f32 %v2905, %v3777
      %v3779 = vpop.f32.mrb[0].mxu0
      %3780 = vmatprep.mubr.bf16.mxu0 0
      %3781 = vmatmul.mubr.bf16.gmra.mrb[0].mxu0 %v2407
      %v3782 = vpop.f32.mrb[0].mxu0
      %v3783 = vadd.f32 %v2910, %v3782
      %v3784 = vpop.f32.mrb[0].mxu0
      %v3785 = vpop.f32.mrb[0].mxu0
      %v3786 = vadd.f32 %v2913, %v3785
      %v3787 = vpop.f32.mrb[0].mxu0
      %3788 = vmatprep.mubr.bf16.mxu0 0
      %3789 = vmatmul.mubr.bf16.gmra.mrb[0].mxu0 %v2410
      %v3790 = vpop.f32.mrb[0].mxu0
      %v3791 = vadd.f32 %v2918, %v3790
      %v3792 = vpop.f32.mrb[0].mxu0
      %v3793 = vpop.f32.mrb[0].mxu0
      %v3794 = vadd.f32 %v2921, %v3793
      %v3795 = vpop.f32.mrb[0].mxu0
      %3796 = vmatprep.mubr.bf16.mxu0 0
      %3797 = vmatmul.mubr.bf16.gmra.mrb[0].mxu0 %v2413
      %v3798 = vpop.f32.mrb[0].mxu0
      %v3799 = vadd.f32 %v2926, %v3798
      %v3800 = vpop.f32.mrb[0].mxu0
      %v3801 = vpop.f32.mrb[0].mxu0
      %v3802 = vadd.f32 %v2929, %v3801
      %v3803 = vpop.f32.mrb[0].mxu0
      %3804 = vmatprep.mubr.bf16.mxu0 0
      %3805 = vmatmul.mubr.bf16.gmra.mrb[0].mxu0 %v2416
      %v3806 = vpop.f32.mrb[0].mxu0
      %v3807 = vadd.f32 %v2934, %v3806
      %v3808 = vpop.f32.mrb[0].mxu0
      %v3809 = vpop.f32.mrb[0].mxu0
      %v3810 = vadd.f32 %v2937, %v3809
      %v3811 = vpop.f32.mrb[0].mxu0
      %3812 = vmatprep.mubr.bf16.mxu0 0
      %3813 = vmatmul.mubr.bf16.gmra.mrb[0].mxu0 %v2419
      %v3814 = vpop.f32.mrb[0].mxu0
      %v3815 = vadd.f32 %v2942, %v3814
      %v3816 = vpop.f32.mrb[0].mxu0
      %v3817 = vpop.f32.mrb[0].mxu0
      %v3818 = vadd.f32 %v2945, %v3817
      %v3819 = vpop.f32.mrb[0].mxu0
      %3820 = vmatprep.mubr.bf16.mxu0 0
      %3821 = vmatmul.mubr.bf16.gmra.mrb[0].mxu0 %v2422
      %v3822 = vpop.f32.mrb[0].mxu0
      %v3823 = vadd.f32 %v2950, %v3822
      %v3824 = vpop.f32.mrb[0].mxu0
      %v3825 = vpop.f32.mrb[0].mxu0
      %v3826 = vadd.f32 %v2953, %v3825
      %v3827 = vpop.f32.mrb[0].mxu0
      %3828 = vmatprep.mubr.bf16.mxu0 0
      %3829 = vmatmul.mubr.bf16.gmra.mrb[0].mxu0 %v2425
      %v3830 = vpop.f32.mrb[0].mxu0
      %v3831 = vadd.f32 %v2958, %v3830
      %v3832 = vpop.f32.mrb[0].mxu0
      %v3833 = vpop.f32.mrb[0].mxu0
      %v3834 = vadd.f32 %v2961, %v3833
      %v3835 = vpop.f32.mrb[0].mxu0
      %3836 = vmatprep.mubr.bf16.mxu0 0
      %3837 = vmatmul.mubr.bf16.gmra.mrb[0].mxu0 %v2428
      %v3838 = vpop.f32.mrb[0].mxu0
      %v3839 = vadd.f32 %v2966, %v3838
      %v3840 = vpop.f32.mrb[0].mxu0
      %v3841 = vpop.f32.mrb[0].mxu0
      %v3842 = vadd.f32 %v2969, %v3841
      %v3843 = vpop.f32.mrb[0].mxu0
      %3844 = vmatprep.mubr.bf16.mxu0 0
      %3845 = vmatmul.mubr.bf16.gmra.mrb[0].mxu0 %v2431
      %v3846 = vpop.f32.mrb[0].mxu0
      %v3847 = vadd.f32 %v2974, %v3846
      %v3848 = vpop.f32.mrb[0].mxu0
      %v3849 = vpop.f32.mrb[0].mxu0
      %v3850 = vadd.f32 %v2977, %v3849
      %v3851 = vpop.f32.mrb[0].mxu0
      %3852 = vmatprep.mubr.bf16.mxu0 0
      %3853 = vmatmul.mubr.bf16.gmra.mrb[0].mxu0 %v2434
      %v3854 = vpop.f32.mrb[0].mxu0
      %v3855 = vadd.f32 %v2982, %v3854
      %v3856 = vpop.f32.mrb[0].mxu0
      %v3857 = vpop.f32.mrb[0].mxu0
      %v3858 = vadd.f32 %v2985, %v3857
      %v3859 = vpop.f32.mrb[0].mxu0
      %3860 = vmatprep.mubr.bf16.mxu0 0
      %3861 = vmatmul.mubr.bf16.gmra.mrb[0].mxu0 %v2437
      %v3862 = vpop.f32.mrb[0].mxu0
      %v3863 = vadd.f32 %v2990, %v3862
      %v3864 = vpop.f32.mrb[0].mxu0
      %v3865 = vpop.f32.mrb[0].mxu0
      %v3866 = vadd.f32 %v2993, %v3865
      %v3867 = vpop.f32.mrb[0].mxu0
      %3868 = vmatprep.mubr.bf16.mxu0 0
      %3869 = vmatmul.mubr.bf16.gmra.mrb[0].mxu0 %v2440
      %v3870 = vpop.f32.mrb[0].mxu0
      %v3871 = vadd.f32 %v2998, %v3870
      %v3872 = vpop.f32.mrb[0].mxu0
      %v3873 = vpop.f32.mrb[0].mxu0
      %v3874 = vadd.f32 %v3001, %v3873
      %v3875 = vpop.f32.mrb[0].mxu0
      %3876 = vmatprep.mubr.bf16.mxu0 0
      %3877 = vmatmul.mubr.bf16.gmra.mrb[0].mxu0 %v2443
      %v3878 = vpop.f32.mrb[0].mxu0
      %v3879 = vadd.f32 %v3006, %v3878
      %v3880 = vpop.f32.mrb[0].mxu0
      %v3881 = vpop.f32.mrb[0].mxu0
      %v3882 = vadd.f32 %v3009, %v3881
      %v3883 = vpop.f32.mrb[0].mxu0
      %3884 = vmatprep.mubr.bf16.mxu0 0
      %3885 = vmatmul.mubr.bf16.gmra.mrb[0].mxu0 %v2446
      %v3886 = vpop.f32.mrb[0].mxu0
      %v3887 = vadd.f32 %v3014, %v3886
      %v3888 = vpop.f32.mrb[0].mxu0
      %v3889 = vpop.f32.mrb[0].mxu0
      %v3890 = vadd.f32 %v3017, %v3889
      %v3891 = vpop.f32.mrb[0].mxu0
      %3892 = vmatprep.mubr.bf16.mxu0 0
      %3893 = vmatmul.mubr.bf16.gmra.mrb[0].mxu0 %v2449
      %v3894 = vpop.f32.mrb[0].mxu0
      %v3895 = vadd.f32 %v3022, %v3894
      %v3896 = vpop.f32.mrb[0].mxu0
      %v3897 = vpop.f32.mrb[0].mxu0
      %v3898 = vadd.f32 %v3025, %v3897
      %v3899 = vpop.f32.mrb[0].mxu0
      %3900 = vmatprep.mubr.bf16.mxu0 0
      %3901 = vmatmul.mubr.bf16.gmra.mrb[0].mxu0 %v2452
      %v3902 = vpop.f32.mrb[0].mxu0
      %v3903 = vadd.f32 %v3030, %v3902
      %v3904 = vpop.f32.mrb[0].mxu0
      %v3905 = vpop.f32.mrb[0].mxu0
      %v3906 = vadd.f32 %v3033, %v3905
      %v3907 = vpop.f32.mrb[0].mxu0
      %3908 = vmatprep.mubr.bf16.mxu0 0
      %3909 = vmatmul.mubr.bf16.gmra.mrb[0].mxu0 %v2455
      %v3910 = vpop.f32.mrb[0].mxu0
      %v3911 = vadd.f32 %v3038, %v3910
      %v3912 = vpop.f32.mrb[0].mxu0
      %v3913 = vpop.f32.mrb[0].mxu0
      %v3914 = vadd.f32 %v3041, %v3913
      %v3915 = vpop.f32.mrb[0].mxu0
      %3916 = vmatprep.mubr.bf16.mxu0 0
      %3917 = vmatmul.mubr.bf16.gmra.mrb[0].mxu0 %v2458
      %v3918 = vpop.f32.mrb[0].mxu0
      %v3919 = vadd.f32 %v3046, %v3918
      %v3920 = vpop.f32.mrb[0].mxu0
      %v3921 = vpop.f32.mrb[0].mxu0
      %v3922 = vadd.f32 %v3049, %v3921
      %v3923 = vpop.f32.mrb[0].mxu0
      %3924 = vmatprep.mubr.bf16.mxu0 0
      %3925 = vmatmul.mubr.bf16.gmra.mrb[0].mxu0 %v2461
      %v3926 = vpop.f32.mrb[0].mxu0
      %v3927 = vadd.f32 %v3054, %v3926
      %v3928 = vpop.f32.mrb[0].mxu0
      %v3929 = vpop.f32.mrb[0].mxu0
      %v3930 = vadd.f32 %v3057, %v3929
      %v3931 = vpop.f32.mrb[0].mxu0
      %3932 = vmatprep.mubr.bf16.mxu0 0
      %3933 = vmatmul.mubr.bf16.gmra.mrb[0].mxu0 %v2464
      %v3934 = vpop.f32.mrb[0].mxu0
      %v3935 = vadd.f32 %v3062, %v3934
      %v3936 = vpop.f32.mrb[0].mxu0
      %v3937 = vpop.f32.mrb[0].mxu0
      %v3938 = vadd.f32 %v3065, %v3937
      %v3939 = vpop.f32.mrb[0].mxu0
      %3940 = vmatprep.mubr.bf16.mxu0 0
      %3941 = vmatmul.mubr.bf16.gmra.mrb[0].mxu0 %v2467
      %v3942 = vpop.f32.mrb[0].mxu0
      %v3943 = vadd.f32 %v3070, %v3942
      %v3944 = vpop.f32.mrb[0].mxu0
      %v3945 = vpop.f32.mrb[0].mxu0
      %v3946 = vadd.f32 %v3073, %v3945
      %v3947 = vpop.f32.mrb[0].mxu0
      %3948 = vmatprep.mubr.bf16.mxu0 0
      %3949 = vmatmul.mubr.bf16.gmra.mrb[0].mxu0 %v2470
      %v3950 = vpop.f32.mrb[0].mxu0
      %v3951 = vadd.f32 %v3078, %v3950
      %v3952 = vpop.f32.mrb[0].mxu0
      %v3953 = vpop.f32.mrb[0].mxu0
      %v3954 = vadd.f32 %v3081, %v3953
      %v3955 = vpop.f32.mrb[0].mxu0
      %3956 = vmatprep.mubr.bf16.mxu0 0
      %3957 = vmatmul.mubr.bf16.gmra.mrb[0].mxu0 %v2473
      %v3958 = vpop.f32.mrb[0].mxu0
      %v3959 = vadd.f32 %v3086, %v3958
      %v3960 = vpop.f32.mrb[0].mxu0
      %v3961 = vpop.f32.mrb[0].mxu0
      %v3962 = vadd.f32 %v3089, %v3961
      %v3963 = vpop.f32.mrb[0].mxu0
      %3964 = vmatprep.mubr.bf16.mxu0 0
      %3965 = vmatmul.mubr.bf16.gmra.mrb[0].mxu0 %v2476
      %v3966 = vpop.f32.mrb[0].mxu0
      %v3967 = vadd.f32 %v3094, %v3966
      %v3968 = vpop.f32.mrb[0].mxu0
      %v3969 = vpop.f32.mrb[0].mxu0
      %v3970 = vadd.f32 %v3097, %v3969
      %v3971 = vpop.f32.mrb[0].mxu0
      %3972 = vmatprep.mubr.bf16.mxu0 0
      %3973 = vmatmul.mubr.bf16.gmra.mrb[0].mxu0 %v2479
      %v3974 = vpop.f32.mrb[0].mxu0
      %v3975 = vadd.f32 %v3102, %v3974
      %v3976 = vpop.f32.mrb[0].mxu0
      %v3977 = vpop.f32.mrb[0].mxu0
      %v3978 = vadd.f32 %v3105, %v3977
      %v3979 = vpop.f32.mrb[0].mxu0
      %3980 = vmatprep.mubr.bf16.mxu0 0
      %3981 = vmatmul.mubr.bf16.gmra.mrb[0].mxu0 %v2482
      %v3982 = vpop.f32.mrb[0].mxu0
      %v3983 = vadd.f32 %v3110, %v3982
      %v3984 = vpop.f32.mrb[0].mxu0
      %v3985 = vpop.f32.mrb[0].mxu0
      %v3986 = vadd.f32 %v3113, %v3985
      %v3987 = vpop.f32.mrb[0].mxu0
      %3988 = vmatprep.mubr.bf16.mxu0 0
      %3989 = vmatmul.mubr.bf16.gmra.mrb[0].mxu0 %v2485
      %v3990 = vpop.f32.mrb[0].mxu0
      %v3991 = vadd.f32 %v3118, %v3990
      %v3992 = vpop.f32.mrb[0].mxu0
      %v3993 = vpop.f32.mrb[0].mxu0
      %v3994 = vadd.f32 %v3121, %v3993
      %v3995 = vpop.f32.mrb[0].mxu0
      %3996 = vmatprep.mubr.bf16.mxu0 0
      %3997 = vmatmul.mubr.bf16.gmra.mrb[0].mxu0 %v2488
      %v3998 = vpop.f32.mrb[0].mxu0
      %v3999 = vadd.f32 %v3126, %v3998
      %v4000 = vpop.f32.mrb[0].mxu0
      %v4001 = vpop.f32.mrb[0].mxu0
      %v4002 = vadd.f32 %v3129, %v4001
      %v4003 = vpop.f32.mrb[0].mxu0
      %4004 = vmatprep.mubr.bf16.mxu0 0
      %4005 = vmatmul.mubr.bf16.gmra.mrb[0].mxu0 %v2491
      %v4006 = vpop.f32.mrb[0].mxu0
      %v4007 = vadd.f32 %v3134, %v4006
      %v4008 = vpop.f32.mrb[0].mxu0
      %v4009 = vpop.f32.mrb[0].mxu0
      %v4010 = vadd.f32 %v3137, %v4009
      %v4011 = vpop.f32.mrb[0].mxu0
      %4012 = vmatprep.mubr.bf16.mxu0 0
      %4013 = vmatmul.mubr.bf16.gmra.mrb[0].mxu0 %v2494
      %v4014 = vpop.f32.mrb[0].mxu0
      %v4015 = vadd.f32 %v3142, %v4014
      %v4016 = vpop.f32.mrb[0].mxu0
      %v4017 = vpop.f32.mrb[0].mxu0
      %v4018 = vadd.f32 %v3145, %v4017
      %v4019 = vpop.f32.mrb[0].mxu0
      %4020 = vmatprep.mubr.bf16.mxu0 0
      %4021 = vmatmul.mubr.bf16.gmra.mrb[0].mxu0 %v2497
      %v4022 = vpop.f32.mrb[0].mxu0
      %v4023 = vadd.f32 %v3150, %v4022
      %v4024 = vpop.f32.mrb[0].mxu0
      %v4025 = vpop.f32.mrb[0].mxu0
      %v4026 = vadd.f32 %v3153, %v4025
      %v4027 = vpop.f32.mrb[0].mxu0
      %4028 = vmatprep.mubr.bf16.mxu0 0
      %4029 = vmatmul.mubr.bf16.gmra.mrb[0].mxu0 %v2500
      %v4030 = vpop.f32.mrb[0].mxu0
      %v4031 = vadd.f32 %v3158, %v4030
      %v4032 = vpop.f32.mrb[0].mxu0
      %v4033 = vpop.f32.mrb[0].mxu0
      %v4034 = vadd.f32 %v3161, %v4033
      %v4035 = vpop.f32.mrb[0].mxu0
      %4036 = vmatprep.mubr.bf16.mxu0 0
      %4037 = vmatmul.mubr.bf16.gmra.mrb[0].mxu0 %v2503
      %v4038 = vpop.f32.mrb[0].mxu0
      %v4039 = vadd.f32 %v3166, %v4038
      %v4040 = vpop.f32.mrb[0].mxu0
      %v4041 = vpop.f32.mrb[0].mxu0
      %v4042 = vadd.f32 %v3169, %v4041
      %v4043 = vpop.f32.mrb[0].mxu0
      %4044 = vmatprep.mubr.bf16.mxu0 0
      %4045 = vmatmul.mubr.bf16.gmra.mrb[0].mxu0 %v2506
      %v4046 = vpop.f32.mrb[0].mxu0
      %v4047 = vadd.f32 %v3174, %v4046
      %v4048 = vpop.f32.mrb[0].mxu0
      %v4049 = vpop.f32.mrb[0].mxu0
      %v4050 = vadd.f32 %v3177, %v4049
      %v4051 = vpop.f32.mrb[0].mxu0
      %4052 = vmatprep.mubr.bf16.mxu0 0
      %4053 = vmatmul.mubr.bf16.gmra.mrb[0].mxu0 %v2509
      %v4054 = vpop.f32.mrb[0].mxu0
      %v4055 = vadd.f32 %v3182, %v4054
      %v4056 = vpop.f32.mrb[0].mxu0
      %v4057 = vpop.f32.mrb[0].mxu0
      %v4058 = vadd.f32 %v3185, %v4057
      %v4059 = vpop.f32.mrb[0].mxu0
      %4060 = vmatprep.mubr.bf16.mxu0 0
      %4061 = vmatmul.mubr.bf16.gmra.mrb[0].mxu0 %v2512
      %v4062 = vpop.f32.mrb[0].mxu0
      %v4063 = vadd.f32 %v3190, %v4062
      %v4064 = vpop.f32.mrb[0].mxu0
      %v4065 = vpop.f32.mrb[0].mxu0
      %v4066 = vadd.f32 %v3193, %v4065
      %v4067 = vpop.f32.mrb[0].mxu0
      %4068 = vmatprep.mubr.bf16.mxu0 0
      %4069 = vmatmul.mubr.bf16.gmra.mrb[0].mxu0 %v2515
      %v4070 = vpop.f32.mrb[0].mxu0
      %v4071 = vadd.f32 %v3198, %v4070
      %v4072 = vpop.f32.mrb[0].mxu0
      %v4073 = vpop.f32.mrb[0].mxu0
      %v4074 = vadd.f32 %v3201, %v4073
      %v4075 = vpop.f32.mrb[0].mxu0
      %4076 = vmatprep.mubr.bf16.mxu0 0
      %4077 = vmatmul.mubr.bf16.gmra.mrb[0].mxu0 %v2518
      %v4078 = vpop.f32.mrb[0].mxu0
      %v4079 = vadd.f32 %v3206, %v4078
      %v4080 = vpop.f32.mrb[0].mxu0
      %v4081 = vpop.f32.mrb[0].mxu0
      %v4082 = vadd.f32 %v3209, %v4081
      %v4083 = vpop.f32.mrb[0].mxu0
      %4084 = vmatprep.mubr.bf16.mxu0 0
      %4085 = vmatmul.mubr.bf16.gmra.mrb[0].mxu0 %v2521
      %v4086 = vpop.f32.mrb[0].mxu0
      %v4087 = vadd.f32 %v3214, %v4086
      %v4088 = vpop.f32.mrb[0].mxu0
      %v4089 = vpop.f32.mrb[0].mxu0
      %v4090 = vadd.f32 %v3217, %v4089
      %v4091 = vpop.f32.mrb[0].mxu0
      %4092 = vmatprep.mubr.bf16.mxu0 0
      %4093 = vmatmul.mubr.bf16.gmra.mrb[0].mxu0 %v2524
      %v4094 = vpop.f32.mrb[0].mxu0
      %v4095 = vadd.f32 %v3222, %v4094
      %v4096 = vpop.f32.mrb[0].mxu0
      %v4097 = vpop.f32.mrb[0].mxu0
      %v4098 = vadd.f32 %v3225, %v4097
      %v4099 = vpop.f32.mrb[0].mxu0
      %4100 = vmatprep.mubr.bf16.mxu0 0
      %4101 = vmatmul.mubr.bf16.gmra.mrb[0].mxu0 %v2527
      %v4102 = vpop.f32.mrb[0].mxu0
      %v4103 = vadd.f32 %v3230, %v4102
      %v4104 = vpop.f32.mrb[0].mxu0
      %v4105 = vpop.f32.mrb[0].mxu0
      %v4106 = vadd.f32 %v3233, %v4105
      %v4107 = vpop.f32.mrb[0].mxu0
      %4108 = vmatprep.mubr.bf16.mxu0 0
      %4109 = vmatmul.mubr.bf16.gmra.mrb[0].mxu0 %v2530
      %v4110 = vpop.f32.mrb[0].mxu0
      %v4111 = vadd.f32 %v3238, %v4110
      %v4112 = vpop.f32.mrb[0].mxu0
      %v4113 = vpop.f32.mrb[0].mxu0
      %v4114 = vadd.f32 %v3241, %v4113
      %v4115 = vpop.f32.mrb[0].mxu0
      %4116 = vmatprep.mubr.bf16.mxu0 0
      %4117 = vmatmul.mubr.bf16.gmra.mrb[0].mxu0 %v2533
      %v4118 = vpop.f32.mrb[0].mxu0
      %v4119 = vadd.f32 %v3246, %v4118
      %v4120 = vpop.f32.mrb[0].mxu0
      %v4121 = vpop.f32.mrb[0].mxu0
      %v4122 = vadd.f32 %v3249, %v4121
      %v4123 = vpop.f32.mrb[0].mxu0
      %4124 = vmatprep.mubr.bf16.mxu0 0
      %4125 = vmatmul.mubr.bf16.gmra.mrb[0].mxu0 %v2536
      %v4126 = vpop.f32.mrb[0].mxu0
      %v4127 = vadd.f32 %v3254, %v4126
      %v4128 = vpop.f32.mrb[0].mxu0
      %v4129 = vpop.f32.mrb[0].mxu0
      %v4130 = vadd.f32 %v3257, %v4129
      %v4131 = vpop.f32.mrb[0].mxu0
      %4132 = vmatprep.mubr.bf16.mxu0 0
      %4133 = vmatmul.mubr.bf16.gmra.mrb[0].mxu0 %v2539
      %v4134 = vpop.f32.mrb[0].mxu0
      %v4135 = vadd.f32 %v3262, %v4134
      %v4136 = vpop.f32.mrb[0].mxu0
      %v4137 = vpop.f32.mrb[0].mxu0
      %v4138 = vadd.f32 %v3265, %v4137
      %v4139 = vpop.f32.mrb[0].mxu0
      %4140 = vmatprep.mubr.bf16.mxu0 0
      %4141 = vmatmul.mubr.bf16.gmra.mrb[0].mxu0 %v2542
      %v4142 = vpop.f32.mrb[0].mxu0
      %v4143 = vadd.f32 %v3270, %v4142
      %v4144 = vpop.f32.mrb[0].mxu0
      %v4145 = vpop.f32.mrb[0].mxu0
      %v4146 = vadd.f32 %v3273, %v4145
      %v4147 = vpop.f32.mrb[0].mxu0
      %4148 = vmatprep.mubr.bf16.mxu0 0
      %4149 = vmatmul.mubr.bf16.gmra.mrb[0].mxu0 %v2545
      %v4150 = vpop.f32.mrb[0].mxu0
      %v4151 = vadd.f32 %v3278, %v4150
      %v4152 = vpop.f32.mrb[0].mxu0
      %v4153 = vpop.f32.mrb[0].mxu0
      %v4154 = vadd.f32 %v3281, %v4153
      %v4155 = vpop.f32.mrb[0].mxu0
      %4156 = vmatprep.mubr.bf16.mxu0 0
      %4157 = vmatmul.mubr.bf16.gmra.mrb[0].mxu0 %v2548
      %v4158 = vpop.f32.mrb[0].mxu0
      %v4159 = vadd.f32 %v3286, %v4158
      %v4160 = vpop.f32.mrb[0].mxu0
      %v4161 = vpop.f32.mrb[0].mxu0
      %v4162 = vadd.f32 %v3289, %v4161
      %v4163 = vpop.f32.mrb[0].mxu0
      %4164 = vmatprep.mubr.bf16.mxu0 0
      %4165 = vmatmul.mubr.bf16.gmra.mrb[0].mxu0 %v2551
      %v4166 = vpop.f32.mrb[0].mxu0
      %v4167 = vadd.f32 %v3294, %v4166
      %v4168 = vpop.f32.mrb[0].mxu0
      %v4169 = vpop.f32.mrb[0].mxu0
      %v4170 = vadd.f32 %v3297, %v4169
      %v4171 = vpop.f32.mrb[0].mxu0
      %4172 = vmatprep.mubr.bf16.mxu0 0
      %4173 = vmatmul.mubr.bf16.gmra.mrb[0].mxu0 %v2554
      %v4174 = vpop.f32.mrb[0].mxu0
      %v4175 = vadd.f32 %v3302, %v4174
      %v4176 = vpop.f32.mrb[0].mxu0
      %v4177 = vpop.f32.mrb[0].mxu0
      %v4178 = vadd.f32 %v3305, %v4177
      %v4179 = vpop.f32.mrb[0].mxu0
      %4180 = vmatprep.mubr.bf16.mxu0 0
      %4181 = vmatmul.mubr.bf16.gmra.mrb[0].mxu0 %v2557
      %v4182 = vpop.f32.mrb[0].mxu0
      %v4183 = vadd.f32 %v3310, %v4182
      %v4184 = vpop.f32.mrb[0].mxu0
      %v4185 = vpop.f32.mrb[0].mxu0
      %v4186 = vadd.f32 %v3313, %v4185
      %v4187 = vpop.f32.mrb[0].mxu0
      %4188 = vmatprep.mubr.bf16.mxu0 0
      %4189 = vmatmul.mubr.bf16.gmra.mrb[0].mxu0 %v2560
      %v4190 = vpop.f32.mrb[0].mxu0
      %v4191 = vadd.f32 %v3318, %v4190
      %v4192 = vpop.f32.mrb[0].mxu0
      %v4193 = vpop.f32.mrb[0].mxu0
      %v4194 = vadd.f32 %v3321, %v4193
      %v4195 = vpop.f32.mrb[0].mxu0
      %4196 = vmatprep.mubr.bf16.mxu0 0
      %4197 = vmatmul.mubr.bf16.gmra.mrb[0].mxu0 %v2563
      %v4198 = vpop.f32.mrb[0].mxu0
      %v4199 = vadd.f32 %v3326, %v4198
      %v4200 = vpop.f32.mrb[0].mxu0
      %v4201 = vpop.f32.mrb[0].mxu0
      %v4202 = vadd.f32 %v3329, %v4201
      %v4203 = vpop.f32.mrb[0].mxu0
      %4204 = vmatprep.mubr.bf16.mxu0 0
      %4205 = vmatmul.mubr.bf16.gmra.mrb[0].mxu0 %v2566
      %v4206 = vpop.f32.mrb[0].mxu0
      %v4207 = vadd.f32 %v3334, %v4206
      %v4208 = vpop.f32.mrb[0].mxu0
      %v4209 = vpop.f32.mrb[0].mxu0
      %v4210 = vadd.f32 %v3337, %v4209
      %v4211 = vpop.f32.mrb[0].mxu0
      %4212 = vmatprep.mubr.bf16.mxu0 0
      %4213 = vmatmul.mubr.bf16.gmra.mrb[0].mxu0 %v2569
      %v4214 = vpop.f32.mrb[0].mxu0
      %v4215 = vadd.f32 %v3342, %v4214
      %v4216 = vpop.f32.mrb[0].mxu0
      %v4217 = vpop.f32.mrb[0].mxu0
      %v4218 = vadd.f32 %v3345, %v4217
      %v4219 = vpop.f32.mrb[0].mxu0
      %4220 = vmatprep.mubr.bf16.mxu0 0
      %4221 = vmatmul.mubr.bf16.gmra.mrb[0].mxu0 %v2572
      %v4222 = vpop.f32.mrb[0].mxu0
      %v4223 = vadd.f32 %v3350, %v4222
      %v4224 = vpop.f32.mrb[0].mxu0
      %v4225 = vpop.f32.mrb[0].mxu0
      %v4226 = vadd.f32 %v3353, %v4225
      %v4227 = vpop.f32.mrb[0].mxu0
      %4228 = vmatprep.mubr.bf16.mxu0 0
      %4229 = vmatmul.mubr.bf16.gmra.mrb[0].mxu0 %v2575
      %v4230 = vpop.f32.mrb[0].mxu0
      %v4231 = vadd.f32 %v3358, %v4230
      %v4232 = vpop.f32.mrb[0].mxu0
      %v4233 = vpop.f32.mrb[0].mxu0
      %v4234 = vadd.f32 %v3361, %v4233
      %v4235 = vpop.f32.mrb[0].mxu0
      %4236 = vmatprep.mubr.bf16.mxu0 0
      %4237 = vmatmul.mubr.bf16.gmra.mrb[0].mxu0 %v2578
      %v4238 = vpop.f32.mrb[0].mxu0
      %v4239 = vadd.f32 %v3366, %v4238
      %v4240 = vpop.f32.mrb[0].mxu0
      %v4241 = vpop.f32.mrb[0].mxu0
      %v4242 = vadd.f32 %v3369, %v4241
      %v4243 = vpop.f32.mrb[0].mxu0
      %4244 = vmatprep.mubr.bf16.mxu0 0
      %4245 = vmatmul.mubr.bf16.gmra.mrb[0].mxu0 %v2581
      %v4246 = vpop.f32.mrb[0].mxu0
      %v4247 = vadd.f32 %v3374, %v4246
      %v4248 = vpop.f32.mrb[0].mxu0
      %v4249 = vpop.f32.mrb[0].mxu0
      %v4250 = vadd.f32 %v3377, %v4249
      %v4251 = vpop.f32.mrb[0].mxu0
      %4252 = vmatprep.mubr.bf16.mxu0 0
      %4253 = vmatmul.mubr.bf16.gmra.mrb[0].mxu0 %v2584
      %v4254 = vpop.f32.mrb[0].mxu0
      %v4255 = vadd.f32 %v3382, %v4254
      %v4256 = vpop.f32.mrb[0].mxu0
      %v4257 = vpop.f32.mrb[0].mxu0
      %v4258 = vadd.f32 %v3385, %v4257
      %v4259 = vpop.f32.mrb[0].mxu0
      %4260 = vmatprep.mubr.bf16.mxu0 0
      %4261 = vmatmul.mubr.bf16.gmra.mrb[0].mxu0 %v2587
      %v4262 = vpop.f32.mrb[0].mxu0
      %v4263 = vadd.f32 %v3390, %v4262
      %v4264 = vpop.f32.mrb[0].mxu0
      %v4265 = vpop.f32.mrb[0].mxu0
      %v4266 = vadd.f32 %v3393, %v4265
      %v4267 = vpop.f32.mrb[0].mxu0
      %4268 = vmatprep.mubr.bf16.mxu0 0
      %4269 = vmatmul.mubr.bf16.gmra.mrb[0].mxu0 %v2590
      %v4270 = vpop.f32.mrb[0].mxu0
      %v4271 = vadd.f32 %v3398, %v4270
      %v4272 = vpop.f32.mrb[0].mxu0
      %v4273 = vpop.f32.mrb[0].mxu0
      %v4274 = vadd.f32 %v3401, %v4273
      %v4275 = vpop.f32.mrb[0].mxu0
      %4276 = vmatprep.mubr.bf16.mxu0 0
      %4277 = vmatmul.mubr.bf16.gmra.mrb[0].mxu0 %v2593
      %v4278 = vpop.f32.mrb[0].mxu0
      %v4279 = vadd.f32 %v3406, %v4278
      %v4280 = vpop.f32.mrb[0].mxu0
      %v4281 = vpop.f32.mrb[0].mxu0
      %v4282 = vadd.f32 %v3409, %v4281
      %v4283 = vpop.f32.mrb[0].mxu0
      %4284 = vmatprep.mubr.bf16.mxu0 0
      %4285 = vmatmul.mubr.bf16.gmra.mrb[0].mxu0 %v2596
      %v4286 = vpop.f32.mrb[0].mxu0
      %v4287 = vadd.f32 %v3414, %v4286
      %v4288 = vpop.f32.mrb[0].mxu0
      %v4289 = vpop.f32.mrb[0].mxu0
      %v4290 = vadd.f32 %v3417, %v4289
      %v4291 = vpop.f32.mrb[0].mxu0
      %4292 = vmatprep.mubr.bf16.mxu0 0
      %4293 = vmatmul.mubr.bf16.gmra.mrb[0].mxu0 %v2599
      %v4294 = vpop.f32.mrb[0].mxu0
      %v4295 = vadd.f32 %v3422, %v4294
      %v4296 = vpop.f32.mrb[0].mxu0
      %v4297 = vpop.f32.mrb[0].mxu0
      %v4298 = vadd.f32 %v3425, %v4297
      %v4299 = vpop.f32.mrb[0].mxu0
      %4300 = vmatprep.mubr.bf16.mxu0 0
      %4301 = vmatmul.mubr.bf16.gmra.mrb[0].mxu0 %v2602
      %v4302 = vpop.f32.mrb[0].mxu0
      %v4303 = vadd.f32 %v3430, %v4302
      %v4304 = vpop.f32.mrb[0].mxu0
      %v4305 = vpop.f32.mrb[0].mxu0
      %v4306 = vadd.f32 %v3433, %v4305
      %v4307 = vpop.f32.mrb[0].mxu0
      %4308 = vmatprep.mubr.bf16.mxu0 0
      %4309 = vmatmul.mubr.bf16.gmra.mrb[0].mxu0 %v2605
      %v4310 = vpop.f32.mrb[0].mxu0
      %v4311 = vadd.f32 %v3438, %v4310
      %v4312 = vpop.f32.mrb[0].mxu0
      %v4313 = vpop.f32.mrb[0].mxu0
      %v4314 = vadd.f32 %v3441, %v4313
      %v4315 = vpop.f32.mrb[0].mxu0
      %4316 = vmatprep.mubr.bf16.mxu0 0
      %4317 = vmatmul.mubr.bf16.gmra.mrb[0].mxu0 %v2608
      %v4318 = vpop.f32.mrb[0].mxu0
      %v4319 = vadd.f32 %v3446, %v4318
      %v4320 = vpop.f32.mrb[0].mxu0
      %v4321 = vpop.f32.mrb[0].mxu0
      %v4322 = vadd.f32 %v3449, %v4321
      %v4323 = vpop.f32.mrb[0].mxu0
      %4324 = vmatprep.mubr.bf16.mxu0 0
      %4325 = vmatmul.mubr.bf16.gmra.mrb[0].mxu0 %v2611
      %v4326 = vpop.f32.mrb[0].mxu0
      %v4327 = vadd.f32 %v3454, %v4326
      %v4328 = vpop.f32.mrb[0].mxu0
      %v4329 = vpop.f32.mrb[0].mxu0
      %v4330 = vadd.f32 %v3457, %v4329
      %v4331 = vpop.f32.mrb[0].mxu0
      %4332 = vmatprep.mubr.bf16.mxu0 0
      %4333 = vmatmul.mubr.bf16.gmra.mrb[0].mxu0 %v2614
      %v4334 = vpop.f32.mrb[0].mxu0
      %v4335 = vadd.f32 %v3462, %v4334
      %v4336 = vpop.f32.mrb[0].mxu0
      %v4337 = vpop.f32.mrb[0].mxu0
      %v4338 = vadd.f32 %v3465, %v4337
      %v4339 = vpop.f32.mrb[0].mxu0
      %4340 = vmatprep.mubr.bf16.mxu0 0
      %4341 = vmatmul.mubr.bf16.gmra.mrb[0].mxu0 %v2617
      %v4342 = vpop.f32.mrb[0].mxu0
      %v4343 = vadd.f32 %v3470, %v4342
      %v4344 = vpop.f32.mrb[0].mxu0
      %v4345 = vpop.f32.mrb[0].mxu0
      %v4346 = vadd.f32 %v3473, %v4345
      %v4347 = vpop.f32.mrb[0].mxu0
      %4348 = vmatprep.mubr.bf16.mxu0 0
      %4349 = vmatmul.mubr.bf16.gmra.mrb[0].mxu0 %v2620
      %v4350 = vpop.f32.mrb[0].mxu0
      %v4351 = vadd.f32 %v3478, %v4350
      %v4352 = vpop.f32.mrb[0].mxu0
      %v4353 = vpop.f32.mrb[0].mxu0
      %v4354 = vadd.f32 %v3481, %v4353
      %v4355 = vpop.f32.mrb[0].mxu0
      %4356 = vmatprep.mubr.bf16.mxu0 0
      %4357 = vmatmul.mubr.bf16.gmra.mrb[0].mxu0 %v2623
      %v4358 = vpop.f32.mrb[0].mxu0
      %v4359 = vadd.f32 %v3486, %v4358
      %v4360 = vpop.f32.mrb[0].mxu0
      %v4361 = vpop.f32.mrb[0].mxu0
      %v4362 = vadd.f32 %v3489, %v4361
      %v4363 = vpop.f32.mrb[0].mxu0
      %4364 = vmatprep.mubr.bf16.mxu0 0
      %4365 = vmatmul.mubr.bf16.gmra.mrb[0].mxu0 %v2626
      %v4366 = vpop.f32.mrb[0].mxu0
      %v4367 = vadd.f32 %v3494, %v4366
      %v4368 = vpop.f32.mrb[0].mxu0
      %v4369 = vpop.f32.mrb[0].mxu0
      %v4370 = vadd.f32 %v3497, %v4369
      %v4371 = vpop.f32.mrb[0].mxu0
      %4372 = vmatprep.mubr.bf16.mxu0 0
      %4373 = vmatmul.mubr.bf16.gmra.mrb[0].mxu0 %v2629
      %v4374 = vpop.f32.mrb[0].mxu0
      %v4375 = vadd.f32 %v3502, %v4374
      %v4376 = vpop.f32.mrb[0].mxu0
      %v4377 = vpop.f32.mrb[0].mxu0
      %v4378 = vadd.f32 %v3505, %v4377
      %v4379 = vpop.f32.mrb[0].mxu0
      %4380 = vdwg.mxu0
      %v4381 = vmax.f32 %v3543, 0.0
      %v4382 = vmax.f32 %v3546, 0.0
      %v4383 = vmax.f32 %v3551, 0.0
      %v4384 = vmax.f32 %v3554, 0.0
      %v4385 = vmax.f32 %v3559, 0.0
      %v4386 = vmax.f32 %v3562, 0.0
      %v4387 = vmax.f32 %v3567, 0.0
      %v4388 = vmax.f32 %v3570, 0.0
      %v4389 = vmax.f32 %v3575, 0.0
      %v4390 = vmax.f32 %v3578, 0.0
      %v4391 = vmax.f32 %v3583, 0.0
      %v4392 = vmax.f32 %v3586, 0.0
      %v4393 = vmax.f32 %v3591, 0.0
      %v4394 = vmax.f32 %v3594, 0.0
      %v4395 = vmax.f32 %v3599, 0.0
      %v4396 = vmax.f32 %v3602, 0.0
      %v4397 = vmax.f32 %v3607, 0.0
      %v4398 = vmax.f32 %v3610, 0.0
      %v4399 = vmax.f32 %v3615, 0.0
      %v4400 = vmax.f32 %v3618, 0.0
      %v4401 = vmax.f32 %v3623, 0.0
      %v4402 = vmax.f32 %v3626, 0.0
      %v4403 = vmax.f32 %v3631, 0.0
      %v4404 = vmax.f32 %v3634, 0.0
      %v4405 = vmax.f32 %v3639, 0.0
      %v4406 = vmax.f32 %v3642, 0.0
      %v4407 = vmax.f32 %v3647, 0.0
      %v4408 = vmax.f32 %v3650, 0.0
      %v4409 = vmax.f32 %v3655, 0.0
      %v4410 = vmax.f32 %v3658, 0.0
      %v4411 = vmax.f32 %v3663, 0.0
      %v4412 = vmax.f32 %v3666, 0.0
      %v4413 = vmax.f32 %v3671, 0.0
      %v4414 = vmax.f32 %v3674, 0.0
      %v4415 = vmax.f32 %v3679, 0.0
      %v4416 = vmax.f32 %v3682, 0.0
      %v4417 = vmax.f32 %v3687, 0.0
      %v4418 = vmax.f32 %v3690, 0.0
      %v4419 = vmax.f32 %v3695, 0.0
      %v4420 = vmax.f32 %v3698, 0.0
      %v4421 = vmax.f32 %v3703, 0.0
      %v4422 = vmax.f32 %v3706, 0.0
      %v4423 = vmax.f32 %v3711, 0.0
      %v4424 = vmax.f32 %v3714, 0.0
      %v4425 = vmax.f32 %v3719, 0.0
      %v4426 = vmax.f32 %v3722, 0.0
      %v4427 = vmax.f32 %v3727, 0.0
      %v4428 = vmax.f32 %v3730, 0.0
      %v4429 = vmax.f32 %v3735, 0.0
      %v4430 = vmax.f32 %v3738, 0.0
      %v4431 = vmax.f32 %v3743, 0.0
      %v4432 = vmax.f32 %v3746, 0.0
      %v4433 = vmax.f32 %v3751, 0.0
      %v4434 = vmax.f32 %v3754, 0.0
      %v4435 = vmax.f32 %v3759, 0.0
      %v4436 = vmax.f32 %v3762, 0.0
      %v4437 = vmax.f32 %v3767, 0.0
      %v4438 = vmax.f32 %v3770, 0.0
      %v4439 = vmax.f32 %v3775, 0.0
      %v4440 = vmax.f32 %v3778, 0.0
      %v4441 = vmax.f32 %v3783, 0.0
      %v4442 = vmax.f32 %v3786, 0.0
      %v4443 = vmax.f32 %v3791, 0.0
      %v4444 = vmax.f32 %v3794, 0.0
      %v4445 = vmax.f32 %v3799, 0.0
      %v4446 = vmax.f32 %v3802, 0.0
      %v4447 = vmax.f32 %v3807, 0.0
      %v4448 = vmax.f32 %v3810, 0.0
      %v4449 = vmax.f32 %v3815, 0.0
      %v4450 = vmax.f32 %v3818, 0.0
      %v4451 = vmax.f32 %v3823, 0.0
      %v4452 = vmax.f32 %v3826, 0.0
      %v4453 = vmax.f32 %v3831, 0.0
      %v4454 = vmax.f32 %v3834, 0.0
      %v4455 = vmax.f32 %v3839, 0.0
      %v4456 = vmax.f32 %v3842, 0.0
      %v4457 = vmax.f32 %v3847, 0.0
      %v4458 = vmax.f32 %v3850, 0.0
      %v4459 = vmax.f32 %v3855, 0.0
      %v4460 = vmax.f32 %v3858, 0.0
      %v4461 = vmax.f32 %v3863, 0.0
      %v4462 = vmax.f32 %v3866, 0.0
      %v4463 = vmax.f32 %v3871, 0.0
      %v4464 = vmax.f32 %v3874, 0.0
      %v4465 = vmax.f32 %v3879, 0.0
      %v4466 = vmax.f32 %v3882, 0.0
      %v4467 = vmax.f32 %v3887, 0.0
      %v4468 = vmax.f32 %v3890, 0.0
      %v4469 = vmax.f32 %v3895, 0.0
      %v4470 = vmax.f32 %v3898, 0.0
      %v4471 = vmax.f32 %v3903, 0.0
      %v4472 = vmax.f32 %v3906, 0.0
      %v4473 = vmax.f32 %v3911, 0.0
      %v4474 = vmax.f32 %v3914, 0.0
      %v4475 = vmax.f32 %v3919, 0.0
      %v4476 = vmax.f32 %v3922, 0.0
      %v4477 = vmax.f32 %v3927, 0.0
      %v4478 = vmax.f32 %v3930, 0.0
      %v4479 = vmax.f32 %v3935, 0.0
      %v4480 = vmax.f32 %v3938, 0.0
      %v4481 = vmax.f32 %v3943, 0.0
      %v4482 = vmax.f32 %v3946, 0.0
      %v4483 = vmax.f32 %v3951, 0.0
      %v4484 = vmax.f32 %v3954, 0.0
      %v4485 = vmax.f32 %v3959, 0.0
      %v4486 = vmax.f32 %v3962, 0.0
      %v4487 = vmax.f32 %v3967, 0.0
      %v4488 = vmax.f32 %v3970, 0.0
      %v4489 = vmax.f32 %v3975, 0.0
      %v4490 = vmax.f32 %v3978, 0.0
      %v4491 = vmax.f32 %v3983, 0.0
      %v4492 = vmax.f32 %v3986, 0.0
      %v4493 = vmax.f32 %v3991, 0.0
      %v4494 = vmax.f32 %v3994, 0.0
      %v4495 = vmax.f32 %v3999, 0.0
      %v4496 = vmax.f32 %v4002, 0.0
      %v4497 = vmax.f32 %v4007, 0.0
      %v4498 = vmax.f32 %v4010, 0.0
      %v4499 = vmax.f32 %v4015, 0.0
      %v4500 = vmax.f32 %v4018, 0.0
      %v4501 = vmax.f32 %v4023, 0.0
      %v4502 = vmax.f32 %v4026, 0.0
      %v4503 = vmax.f32 %v4031, 0.0
      %v4504 = vmax.f32 %v4034, 0.0
      %v4505 = vmax.f32 %v4039, 0.0
      %v4506 = vmax.f32 %v4042, 0.0
      %v4507 = vmax.f32 %v4047, 0.0
      %v4508 = vmax.f32 %v4050, 0.0
      %v4509 = vmax.f32 %v4055, 0.0
      %v4510 = vmax.f32 %v4058, 0.0
      %v4511 = vmax.f32 %v4063, 0.0
      %v4512 = vmax.f32 %v4066, 0.0
      %v4513 = vmax.f32 %v4071, 0.0
      %v4514 = vmax.f32 %v4074, 0.0
      %v4515 = vmax.f32 %v4079, 0.0
      %v4516 = vmax.f32 %v4082, 0.0
      %v4517 = vmax.f32 %v4087, 0.0
      %v4518 = vmax.f32 %v4090, 0.0
      %v4519 = vmax.f32 %v4095, 0.0
      %v4520 = vmax.f32 %v4098, 0.0
      %v4521 = vmax.f32 %v4103, 0.0
      %v4522 = vmax.f32 %v4106, 0.0
      %v4523 = vmax.f32 %v4111, 0.0
      %v4524 = vmax.f32 %v4114, 0.0
      %v4525 = vmax.f32 %v4119, 0.0
      %v4526 = vmax.f32 %v4122, 0.0
      %v4527 = vmax.f32 %v4127, 0.0
      %v4528 = vmax.f32 %v4130, 0.0
      %v4529 = vmax.f32 %v4135, 0.0
      %v4530 = vmax.f32 %v4138, 0.0
      %v4531 = vmax.f32 %v4143, 0.0
      %v4532 = vmax.f32 %v4146, 0.0
      %v4533 = vmax.f32 %v4151, 0.0
      %v4534 = vmax.f32 %v4154, 0.0
      %v4535 = vmax.f32 %v4159, 0.0
      %v4536 = vmax.f32 %v4162, 0.0
      %v4537 = vmax.f32 %v4167, 0.0
      %v4538 = vmax.f32 %v4170, 0.0
      %v4539 = vmax.f32 %v4175, 0.0
      %v4540 = vmax.f32 %v4178, 0.0
      %v4541 = vmax.f32 %v4183, 0.0
      %v4542 = vmax.f32 %v4186, 0.0
      %v4543 = vmax.f32 %v4191, 0.0
      %v4544 = vmax.f32 %v4194, 0.0
      %v4545 = vmax.f32 %v4199, 0.0
      %v4546 = vmax.f32 %v4202, 0.0
      %v4547 = vmax.f32 %v4207, 0.0
      %v4548 = vmax.f32 %v4210, 0.0
      %v4549 = vmax.f32 %v4215, 0.0
      %v4550 = vmax.f32 %v4218, 0.0
      %v4551 = vmax.f32 %v4223, 0.0
      %v4552 = vmax.f32 %v4226, 0.0
      %v4553 = vmax.f32 %v4231, 0.0
      %v4554 = vmax.f32 %v4234, 0.0
      %v4555 = vmax.f32 %v4239, 0.0
      %v4556 = vmax.f32 %v4242, 0.0
      %v4557 = vmax.f32 %v4247, 0.0
      %v4558 = vmax.f32 %v4250, 0.0
      %v4559 = vmax.f32 %v4255, 0.0
      %v4560 = vmax.f32 %v4258, 0.0
      %v4561 = vmax.f32 %v4263, 0.0
      %v4562 = vmax.f32 %v4266, 0.0
      %v4563 = vmax.f32 %v4271, 0.0
      %v4564 = vmax.f32 %v4274, 0.0
      %v4565 = vmax.f32 %v4279, 0.0
      %v4566 = vmax.f32 %v4282, 0.0
      %v4567 = vmax.f32 %v4287, 0.0
      %v4568 = vmax.f32 %v4290, 0.0
      %v4569 = vmax.f32 %v4295, 0.0
      %v4570 = vmax.f32 %v4298, 0.0
      %v4571 = vmax.f32 %v4303, 0.0
      %v4572 = vmax.f32 %v4306, 0.0
      %v4573 = vmax.f32 %v4311, 0.0
      %v4574 = vmax.f32 %v4314, 0.0
      %v4575 = vmax.f32 %v4319, 0.0
      %v4576 = vmax.f32 %v4322, 0.0
      %v4577 = vmax.f32 %v4327, 0.0
      %v4578 = vmax.f32 %v4330, 0.0
      %v4579 = vmax.f32 %v4335, 0.0
      %v4580 = vmax.f32 %v4338, 0.0
      %v4581 = vmax.f32 %v4343, 0.0
      %v4582 = vmax.f32 %v4346, 0.0
      %v4583 = vmax.f32 %v4351, 0.0
      %v4584 = vmax.f32 %v4354, 0.0
      %v4585 = vmax.f32 %v4359, 0.0
      %v4586 = vmax.f32 %v4362, 0.0
      %v4587 = vmax.f32 %v4367, 0.0
      %v4588 = vmax.f32 %v4370, 0.0
      %v4589 = vmax.f32 %v4375, 0.0
      %v4590 = vmax.f32 %v4378, 0.0
      %vm4591 = vcmask 130048
      %4592 = vst.msk [vmem:[%s175] sm:$0xff] %vm4591, %v4381
      %4593 = vst.msk [vmem:[%s175 + $0x8] sm:$0xff] %vm4591, %v4382
      %4594 = vst.msk [vmem:[%s175 + $0x10] sm:$0xff] %vm4591, %v4383
      %4595 = vst.msk [vmem:[%s175 + $0x18] sm:$0xff] %vm4591, %v4384
      %4596 = vst.msk [vmem:[%s175 + $0x20] sm:$0xff] %vm4591, %v4385
      %4597 = vst.msk [vmem:[%s175 + $0x28] sm:$0xff] %vm4591, %v4386
      %4598 = vst.msk [vmem:[%s175 + $0x30] sm:$0xff] %vm4591, %v4387
      %4599 = vst.msk [vmem:[%s175 + $0x38] sm:$0xff] %vm4591, %v4388
      %4600 = vst.msk [vmem:[%s175 + $0x40] sm:$0xff] %vm4591, %v4389
      %4601 = vst.msk [vmem:[%s175 + $0x48] sm:$0xff] %vm4591, %v4390
      %4602 = vst.msk [vmem:[%s175 + $0x50] sm:$0xff] %vm4591, %v4391
      %4603 = vst.msk [vmem:[%s175 + $0x58] sm:$0xff] %vm4591, %v4392
      %4604 = vst.msk [vmem:[%s175 + $0x60] sm:$0xff] %vm4591, %v4393
      %4605 = vst.msk [vmem:[%s175 + $0x68] sm:$0xff] %vm4591, %v4394
      %4606 = vst.msk [vmem:[%s175 + $0x70] sm:$0xff] %vm4591, %v4395
      %4607 = vst.msk [vmem:[%s175 + $0x78] sm:$0xff] %vm4591, %v4396
      %4608 = vst.msk [vmem:[%s175 + $0x80] sm:$0xff] %vm4591, %v4397
      %4609 = vst.msk [vmem:[%s175 + $0x88] sm:$0xff] %vm4591, %v4398
      %4610 = vst.msk [vmem:[%s175 + $0x90] sm:$0xff] %vm4591, %v4399
      %4611 = vst.msk [vmem:[%s175 + $0x98] sm:$0xff] %vm4591, %v4400
      %4612 = vst.msk [vmem:[%s175 + $0xa0] sm:$0xff] %vm4591, %v4401
      %4613 = vst.msk [vmem:[%s175 + $0xa8] sm:$0xff] %vm4591, %v4402
      %4614 = vst.msk [vmem:[%s175 + $0xb0] sm:$0xff] %vm4591, %v4403
      %4615 = vst.msk [vmem:[%s175 + $0xb8] sm:$0xff] %vm4591, %v4404
      %4616 = vst.msk [vmem:[%s175 + $0xc0] sm:$0xff] %vm4591, %v4405
      %4617 = vst.msk [vmem:[%s175 + $0xc8] sm:$0xff] %vm4591, %v4406
      %4618 = vst.msk [vmem:[%s175 + $0xd0] sm:$0xff] %vm4591, %v4407
      %4619 = vst.msk [vmem:[%s175 + $0xd8] sm:$0xff] %vm4591, %v4408
      %4620 = vst.msk [vmem:[%s175 + $0xe0] sm:$0xff] %vm4591, %v4409
      %4621 = vst.msk [vmem:[%s175 + $0xe8] sm:$0xff] %vm4591, %v4410
      %4622 = vst.msk [vmem:[%s175 + $0xf0] sm:$0xff] %vm4591, %v4411
      %4623 = vst.msk [vmem:[%s175 + $0xf8] sm:$0xff] %vm4591, %v4412
      %4624 = vst.msk [vmem:[%s175 + $0x100] sm:$0xff] %vm4591, %v4413
      %4625 = vst.msk [vmem:[%s175 + $0x108] sm:$0xff] %vm4591, %v4414
      %4626 = vst.msk [vmem:[%s175 + $0x110] sm:$0xff] %vm4591, %v4415
      %4627 = vst.msk [vmem:[%s175 + $0x118] sm:$0xff] %vm4591, %v4416
      %4628 = vst.msk [vmem:[%s175 + $0x120] sm:$0xff] %vm4591, %v4417
      %4629 = vst.msk [vmem:[%s175 + $0x128] sm:$0xff] %vm4591, %v4418
      %4630 = vst.msk [vmem:[%s175 + $0x130] sm:$0xff] %vm4591, %v4419
      %4631 = vst.msk [vmem:[%s175 + $0x138] sm:$0xff] %vm4591, %v4420
      %4632 = vst.msk [vmem:[%s175 + $0x140] sm:$0xff] %vm4591, %v4421
      %4633 = vst.msk [vmem:[%s175 + $0x148] sm:$0xff] %vm4591, %v4422
      %4634 = vst.msk [vmem:[%s175 + $0x150] sm:$0xff] %vm4591, %v4423
      %4635 = vst.msk [vmem:[%s175 + $0x158] sm:$0xff] %vm4591, %v4424
      %4636 = vst.msk [vmem:[%s175 + $0x160] sm:$0xff] %vm4591, %v4425
      %4637 = vst.msk [vmem:[%s175 + $0x168] sm:$0xff] %vm4591, %v4426
      %4638 = vst.msk [vmem:[%s175 + $0x170] sm:$0xff] %vm4591, %v4427
      %4639 = vst.msk [vmem:[%s175 + $0x178] sm:$0xff] %vm4591, %v4428
      %4640 = vst.msk [vmem:[%s175 + $0x180] sm:$0xff] %vm4591, %v4429
      %4641 = vst.msk [vmem:[%s175 + $0x188] sm:$0xff] %vm4591, %v4430
      %4642 = vst.msk [vmem:[%s175 + $0x190] sm:$0xff] %vm4591, %v4431
      %4643 = vst.msk [vmem:[%s175 + $0x198] sm:$0xff] %vm4591, %v4432
      %4644 = vst.msk [vmem:[%s175 + $0x1a0] sm:$0xff] %vm4591, %v4433
      %4645 = vst.msk [vmem:[%s175 + $0x1a8] sm:$0xff] %vm4591, %v4434
      %4646 = vst.msk [vmem:[%s175 + $0x1b0] sm:$0xff] %vm4591, %v4435
      %4647 = vst.msk [vmem:[%s175 + $0x1b8] sm:$0xff] %vm4591, %v4436
      %4648 = vst.msk [vmem:[%s175 + $0x1c0] sm:$0xff] %vm4591, %v4437
      %4649 = vst.msk [vmem:[%s175 + $0x1c8] sm:$0xff] %vm4591, %v4438
      %4650 = vst.msk [vmem:[%s175 + $0x1d0] sm:$0xff] %vm4591, %v4439
      %4651 = vst.msk [vmem:[%s175 + $0x1d8] sm:$0xff] %vm4591, %v4440
      %4652 = vst.msk [vmem:[%s175 + $0x1e0] sm:$0xff] %vm4591, %v4441
      %4653 = vst.msk [vmem:[%s175 + $0x1e8] sm:$0xff] %vm4591, %v4442
      %4654 = vst.msk [vmem:[%s175 + $0x1f0] sm:$0xff] %vm4591, %v4443
      %4655 = vst.msk [vmem:[%s175 + $0x1f8] sm:$0xff] %vm4591, %v4444
      %4656 = vst.msk [vmem:[%s175 + $0x200] sm:$0xff] %vm4591, %v4445
      %4657 = vst.msk [vmem:[%s175 + $0x208] sm:$0xff] %vm4591, %v4446
      %4658 = vst.msk [vmem:[%s175 + $0x210] sm:$0xff] %vm4591, %v4447
      %4659 = vst.msk [vmem:[%s175 + $0x218] sm:$0xff] %vm4591, %v4448
      %4660 = vst.msk [vmem:[%s175 + $0x220] sm:$0xff] %vm4591, %v4449
      %4661 = vst.msk [vmem:[%s175 + $0x228] sm:$0xff] %vm4591, %v4450
      %4662 = vst.msk [vmem:[%s175 + $0x230] sm:$0xff] %vm4591, %v4451
      %4663 = vst.msk [vmem:[%s175 + $0x238] sm:$0xff] %vm4591, %v4452
      %4664 = vst.msk [vmem:[%s175 + $0x240] sm:$0xff] %vm4591, %v4453
      %4665 = vst.msk [vmem:[%s175 + $0x248] sm:$0xff] %vm4591, %v4454
      %4666 = vst.msk [vmem:[%s175 + $0x250] sm:$0xff] %vm4591, %v4455
      %4667 = vst.msk [vmem:[%s175 + $0x258] sm:$0xff] %vm4591, %v4456
      %4668 = vst.msk [vmem:[%s175 + $0x260] sm:$0xff] %vm4591, %v4457
      %4669 = vst.msk [vmem:[%s175 + $0x268] sm:$0xff] %vm4591, %v4458
      %4670 = vst.msk [vmem:[%s175 + $0x270] sm:$0xff] %vm4591, %v4459
      %4671 = vst.msk [vmem:[%s175 + $0x278] sm:$0xff] %vm4591, %v4460
      %4672 = vst.msk [vmem:[%s175 + $0x280] sm:$0xff] %vm4591, %v4461
      %4673 = vst.msk [vmem:[%s175 + $0x288] sm:$0xff] %vm4591, %v4462
      %4674 = vst.msk [vmem:[%s175 + $0x290] sm:$0xff] %vm4591, %v4463
      %4675 = vst.msk [vmem:[%s175 + $0x298] sm:$0xff] %vm4591, %v4464
      %4676 = vst.msk [vmem:[%s175 + $0x2a0] sm:$0xff] %vm4591, %v4465
      %4677 = vst.msk [vmem:[%s175 + $0x2a8] sm:$0xff] %vm4591, %v4466
      %4678 = vst.msk [vmem:[%s175 + $0x2b0] sm:$0xff] %vm4591, %v4467
      %4679 = vst.msk [vmem:[%s175 + $0x2b8] sm:$0xff] %vm4591, %v4468
      %4680 = vst.msk [vmem:[%s175 + $0x2c0] sm:$0xff] %vm4591, %v4469
      %4681 = vst.msk [vmem:[%s175 + $0x2c8] sm:$0xff] %vm4591, %v4470
      %4682 = vst.msk [vmem:[%s175 + $0x2d0] sm:$0xff] %vm4591, %v4471
      %4683 = vst.msk [vmem:[%s175 + $0x2d8] sm:$0xff] %vm4591, %v4472
      %4684 = vst.msk [vmem:[%s175 + $0x2e0] sm:$0xff] %vm4591, %v4473
      %4685 = vst.msk [vmem:[%s175 + $0x2e8] sm:$0xff] %vm4591, %v4474
      %4686 = vst.msk [vmem:[%s175 + $0x2f0] sm:$0xff] %vm4591, %v4475
      %4687 = vst.msk [vmem:[%s175 + $0x2f8] sm:$0xff] %vm4591, %v4476
      %4688 = vst.msk [vmem:[%s175 + $0x300] sm:$0xff] %vm4591, %v4477
      %4689 = vst.msk [vmem:[%s175 + $0x308] sm:$0xff] %vm4591, %v4478
      %4690 = vst.msk [vmem:[%s175 + $0x310] sm:$0xff] %vm4591, %v4479
      %4691 = vst.msk [vmem:[%s175 + $0x318] sm:$0xff] %vm4591, %v4480
      %4692 = vst.msk [vmem:[%s175 + $0x320] sm:$0xff] %vm4591, %v4481
      %4693 = vst.msk [vmem:[%s175 + $0x328] sm:$0xff] %vm4591, %v4482
      %4694 = vst.msk [vmem:[%s175 + $0x330] sm:$0xff] %vm4591, %v4483
      %4695 = vst.msk [vmem:[%s175 + $0x338] sm:$0xff] %vm4591, %v4484
      %4696 = vst.msk [vmem:[%s175 + $0x340] sm:$0xff] %vm4591, %v4485
      %4697 = vst.msk [vmem:[%s175 + $0x348] sm:$0xff] %vm4591, %v4486
      %4698 = vst.msk [vmem:[%s175 + $0x350] sm:$0xff] %vm4591, %v4487
      %4699 = vst.msk [vmem:[%s175 + $0x358] sm:$0xff] %vm4591, %v4488
      %4700 = vst.msk [vmem:[%s175 + $0x360] sm:$0xff] %vm4591, %v4489
      %4701 = vst.msk [vmem:[%s175 + $0x368] sm:$0xff] %vm4591, %v4490
      %4702 = vst.msk [vmem:[%s175 + $0x370] sm:$0xff] %vm4591, %v4491
      %4703 = vst.msk [vmem:[%s175 + $0x378] sm:$0xff] %vm4591, %v4492
      %4704 = vst.msk [vmem:[%s175 + $0x380] sm:$0xff] %vm4591, %v4493
      %4705 = vst.msk [vmem:[%s175 + $0x388] sm:$0xff] %vm4591, %v4494
      %4706 = vst.msk [vmem:[%s175 + $0x390] sm:$0xff] %vm4591, %v4495
      %4707 = vst.msk [vmem:[%s175 + $0x398] sm:$0xff] %vm4591, %v4496
      %4708 = vst.msk [vmem:[%s175 + $0x3a0] sm:$0xff] %vm4591, %v4497
      %4709 = vst.msk [vmem:[%s175 + $0x3a8] sm:$0xff] %vm4591, %v4498
      %4710 = vst.msk [vmem:[%s175 + $0x3b0] sm:$0xff] %vm4591, %v4499
      %4711 = vst.msk [vmem:[%s175 + $0x3b8] sm:$0xff] %vm4591, %v4500
      %4712 = vst.msk [vmem:[%s175 + $0x3c0] sm:$0xff] %vm4591, %v4501
      %4713 = vst.msk [vmem:[%s175 + $0x3c8] sm:$0xff] %vm4591, %v4502
      %4714 = vst.msk [vmem:[%s175 + $0x3d0] sm:$0xff] %vm4591, %v4503
      %4715 = vst.msk [vmem:[%s175 + $0x3d8] sm:$0xff] %vm4591, %v4504
      %4716 = vst.msk [vmem:[%s175 + $0x3e0] sm:$0xff] %vm4591, %v4505
      %4717 = vst.msk [vmem:[%s175 + $0x3e8] sm:$0xff] %vm4591, %v4506
      %4718 = vst.msk [vmem:[%s175 + $0x3f0] sm:$0xff] %vm4591, %v4507
      %4719 = vst.msk [vmem:[%s175 + $0x3f8] sm:$0xff] %vm4591, %v4508
      %4720 = vst.msk [vmem:[%s175 + $0x400] sm:$0xff] %vm4591, %v4509
      %4721 = vst.msk [vmem:[%s175 + $0x408] sm:$0xff] %vm4591, %v4510
      %4722 = vst.msk [vmem:[%s175 + $0x410] sm:$0xff] %vm4591, %v4511
      %4723 = vst.msk [vmem:[%s175 + $0x418] sm:$0xff] %vm4591, %v4512
      %4724 = vst.msk [vmem:[%s175 + $0x420] sm:$0xff] %vm4591, %v4513
      %4725 = vst.msk [vmem:[%s175 + $0x428] sm:$0xff] %vm4591, %v4514
      %4726 = vst.msk [vmem:[%s175 + $0x430] sm:$0xff] %vm4591, %v4515
      %4727 = vst.msk [vmem:[%s175 + $0x438] sm:$0xff] %vm4591, %v4516
      %4728 = vst.msk [vmem:[%s175 + $0x440] sm:$0xff] %vm4591, %v4517
      %4729 = vst.msk [vmem:[%s175 + $0x448] sm:$0xff] %vm4591, %v4518
      %4730 = vst.msk [vmem:[%s175 + $0x450] sm:$0xff] %vm4591, %v4519
      %4731 = vst.msk [vmem:[%s175 + $0x458] sm:$0xff] %vm4591, %v4520
      %4732 = vst.msk [vmem:[%s175 + $0x460] sm:$0xff] %vm4591, %v4521
      %4733 = vst.msk [vmem:[%s175 + $0x468] sm:$0xff] %vm4591, %v4522
      %4734 = vst.msk [vmem:[%s175 + $0x470] sm:$0xff] %vm4591, %v4523
      %4735 = vst.msk [vmem:[%s175 + $0x478] sm:$0xff] %vm4591, %v4524
      %4736 = vst.msk [vmem:[%s175 + $0x480] sm:$0xff] %vm4591, %v4525
      %4737 = vst.msk [vmem:[%s175 + $0x488] sm:$0xff] %vm4591, %v4526
      %4738 = vst.msk [vmem:[%s175 + $0x490] sm:$0xff] %vm4591, %v4527
      %4739 = vst.msk [vmem:[%s175 + $0x498] sm:$0xff] %vm4591, %v4528
      %4740 = vst.msk [vmem:[%s175 + $0x4a0] sm:$0xff] %vm4591, %v4529
      %4741 = vst.msk [vmem:[%s175 + $0x4a8] sm:$0xff] %vm4591, %v4530
      %4742 = vst.msk [vmem:[%s175 + $0x4b0] sm:$0xff] %vm4591, %v4531
      %4743 = vst.msk [vmem:[%s175 + $0x4b8] sm:$0xff] %vm4591, %v4532
      %4744 = vst.msk [vmem:[%s175 + $0x4c0] sm:$0xff] %vm4591, %v4533
      %4745 = vst.msk [vmem:[%s175 + $0x4c8] sm:$0xff] %vm4591, %v4534
      %4746 = vst.msk [vmem:[%s175 + $0x4d0] sm:$0xff] %vm4591, %v4535
      %4747 = vst.msk [vmem:[%s175 + $0x4d8] sm:$0xff] %vm4591, %v4536
      %4748 = vst.msk [vmem:[%s175 + $0x4e0] sm:$0xff] %vm4591, %v4537
      %4749 = vst.msk [vmem:[%s175 + $0x4e8] sm:$0xff] %vm4591, %v4538
      %4750 = vst.msk [vmem:[%s175 + $0x4f0] sm:$0xff] %vm4591, %v4539
      %4751 = vst.msk [vmem:[%s175 + $0x4f8] sm:$0xff] %vm4591, %v4540
      %4752 = vst.msk [vmem:[%s175 + $0x500] sm:$0xff] %vm4591, %v4541
      %4753 = vst.msk [vmem:[%s175 + $0x508] sm:$0xff] %vm4591, %v4542
      %4754 = vst.msk [vmem:[%s175 + $0x510] sm:$0xff] %vm4591, %v4543
      %4755 = vst.msk [vmem:[%s175 + $0x518] sm:$0xff] %vm4591, %v4544
      %4756 = vst.msk [vmem:[%s175 + $0x520] sm:$0xff] %vm4591, %v4545
      %4757 = vst.msk [vmem:[%s175 + $0x528] sm:$0xff] %vm4591, %v4546
      %4758 = vst.msk [vmem:[%s175 + $0x530] sm:$0xff] %vm4591, %v4547
      %4759 = vst.msk [vmem:[%s175 + $0x538] sm:$0xff] %vm4591, %v4548
      %4760 = vst.msk [vmem:[%s175 + $0x540] sm:$0xff] %vm4591, %v4549
      %4761 = vst.msk [vmem:[%s175 + $0x548] sm:$0xff] %vm4591, %v4550
      %4762 = vst.msk [vmem:[%s175 + $0x550] sm:$0xff] %vm4591, %v4551
      %4763 = vst.msk [vmem:[%s175 + $0x558] sm:$0xff] %vm4591, %v4552
      %4764 = vst.msk [vmem:[%s175 + $0x560] sm:$0xff] %vm4591, %v4553
      %4765 = vst.msk [vmem:[%s175 + $0x568] sm:$0xff] %vm4591, %v4554
      %4766 = vst.msk [vmem:[%s175 + $0x570] sm:$0xff] %vm4591, %v4555
      %4767 = vst.msk [vmem:[%s175 + $0x578] sm:$0xff] %vm4591, %v4556
      %4768 = vst.msk [vmem:[%s175 + $0x580] sm:$0xff] %vm4591, %v4557
      %4769 = vst.msk [vmem:[%s175 + $0x588] sm:$0xff] %vm4591, %v4558
      %4770 = vst.msk [vmem:[%s175 + $0x590] sm:$0xff] %vm4591, %v4559
      %4771 = vst.msk [vmem:[%s175 + $0x598] sm:$0xff] %vm4591, %v4560
      %4772 = vst.msk [vmem:[%s175 + $0x5a0] sm:$0xff] %vm4591, %v4561
      %4773 = vst.msk [vmem:[%s175 + $0x5a8] sm:$0xff] %vm4591, %v4562
      %4774 = vst.msk [vmem:[%s175 + $0x5b0] sm:$0xff] %vm4591, %v4563
      %4775 = vst.msk [vmem:[%s175 + $0x5b8] sm:$0xff] %vm4591, %v4564
      %4776 = vst.msk [vmem:[%s175 + $0x5c0] sm:$0xff] %vm4591, %v4565
      %4777 = vst.msk [vmem:[%s175 + $0x5c8] sm:$0xff] %vm4591, %v4566
      %4778 = vst.msk [vmem:[%s175 + $0x5d0] sm:$0xff] %vm4591, %v4567
      %4779 = vst.msk [vmem:[%s175 + $0x5d8] sm:$0xff] %vm4591, %v4568
      %4780 = vst.msk [vmem:[%s175 + $0x5e0] sm:$0xff] %vm4591, %v4569
      %4781 = vst.msk [vmem:[%s175 + $0x5e8] sm:$0xff] %vm4591, %v4570
      %4782 = vst.msk [vmem:[%s175 + $0x5f0] sm:$0xff] %vm4591, %v4571
      %4783 = vst.msk [vmem:[%s175 + $0x5f8] sm:$0xff] %vm4591, %v4572
      %4784 = vst.msk [vmem:[%s175 + $0x600] sm:$0xff] %vm4591, %v4573
      %4785 = vst.msk [vmem:[%s175 + $0x608] sm:$0xff] %vm4591, %v4574
      %4786 = vst.msk [vmem:[%s175 + $0x610] sm:$0xff] %vm4591, %v4575
      %4787 = vst.msk [vmem:[%s175 + $0x618] sm:$0xff] %vm4591, %v4576
      %4788 = vst.msk [vmem:[%s175 + $0x620] sm:$0xff] %vm4591, %v4577
      %4789 = vst.msk [vmem:[%s175 + $0x628] sm:$0xff] %vm4591, %v4578
      %4790 = vst.msk [vmem:[%s175 + $0x630] sm:$0xff] %vm4591, %v4579
      %4791 = vst.msk [vmem:[%s175 + $0x638] sm:$0xff] %vm4591, %v4580
      %4792 = vst.msk [vmem:[%s175 + $0x640] sm:$0xff] %vm4591, %v4581
      %4793 = vst.msk [vmem:[%s175 + $0x648] sm:$0xff] %vm4591, %v4582
      %4794 = vst.msk [vmem:[%s175 + $0x650] sm:$0xff] %vm4591, %v4583
      %4795 = vst.msk [vmem:[%s175 + $0x658] sm:$0xff] %vm4591, %v4584
      %4796 = vst.msk [vmem:[%s175 + $0x660] sm:$0xff] %vm4591, %v4585
      %4797 = vst.msk [vmem:[%s175 + $0x668] sm:$0xff] %vm4591, %v4586
      %4798 = vst.msk [vmem:[%s175 + $0x670] sm:$0xff] %vm4591, %v4587
      %4799 = vst.msk [vmem:[%s175 + $0x678] sm:$0xff] %vm4591, %v4588
      %4800 = vst.msk [vmem:[%s175 + $0x680] sm:$0xff] %vm4591, %v4589
      %4801 = vst.msk [vmem:[%s175 + $0x688] sm:$0xff] %vm4591, %v4590
      %s4802 = smul.u32 210, %s14
      %p4803 = scmp.lt.s32.totalorder %s4802, 419
      %s4804 = scalar_select %p4803, %s4802, 419
      %s4805 = smul.addr %s4804, 8
      %s4806 = scalar_lea.vmem %s3, %s4805
      // Predicated region
      $region33: #{forward.7} parent=31 // pred_check
        %p4807 = pneg %p100
      $region34: #{forward.7} parent=31 // pred_check_branch
        %4809 = sbr.rel (%p4807) target = $region36
      $region35: #{forward.7} parent=31 // pred_region
        %s4810 = smul.u32 210, %s14
      $region36: #{forward.7} parent=31 // pred_fallthru
        _
    $region32: #{forward.7} parent=5 // pred_fallthru
      _
    %p4811 = scmp.le.s32.totalorder 2, %s9
    // Predicated region
    $region37: #{forward.7} parent=5 // pred_check
      %p4812 = pneg %p4811
    $region38: #{forward.7} parent=5 // pred_check_branch
      %4814 = sbr.rel (%p4812) target = $region40
    $region39: #{forward.7} parent=5 // pred_region
      %s4815 = ssub.s32 %s9, 2
      // Predicated region
      $region41: #{forward.7} parent=39 // pred_check
        %p4816 = pneg %p106
      $region42: #{forward.7} parent=39 // pred_check_branch
        %4818 = sbr.rel (%p4816) target = $region44
      $region43: #{forward.7} parent=39 // pred_region
        %s4819 = smul.u32 210, %s15
        %p4820 = scmp.lt.s32.totalorder %s4819, 419
        %s4821 = scalar_select %p4820, %s4819, 419
        %s4822 = smul.addr %s4821, 8
        %s4823 = scalar_lea.vmem %s3, %s4822
      $region44: #{forward.7} parent=39 // pred_fallthru
        _
    $region40: #{forward.7} parent=5 // pred_fallthru
      _
  $region6: #{forward.7} parent=0 // loop_footer
    %s13 = sadd.s32 1, %s9
  $region7: #{forward.7} parent=0 // loop_footer_branch
    %8 = sbr.rel target = $region3
  $region8: #{forward.7} parent=0 // loop_exit
    _

// kernel: forward.8
$region0: #{forward.8}
  #allocation0 [shape = 'u32[]', space=smem, size = 0x4, offset = 0x4, fixed_abs, tag = 'smem constant byte address 0x4 - core index']
  #allocation1 [shape = 'u32[144,128]{1,0:T(1,128)}', space=vmem, size = 0x12000, scoped, tag = 'internal scratch']
  %s0 = inlined_call_operand.vmem [shape: f32[14,960], index: 0, kind: input, shape index: {}]
  %s1 = inlined_call_operand.vmem [shape: f32[14,960], index: 1, kind: input, shape index: {}]
  %s2 = inlined_call_operand.vmem [shape: f32[14,960], index: 2, kind: input, shape index: {}]
  %s3 = inlined_call_operand.vmem [shape: f32[14,960], index: 3, kind: input, shape index: {}]
  %s4 = inlined_call_operand.vmem [shape: f32[14,960], index: 4, kind: output, shape index: {}]
  %s5 = sld [smem:[#allocation0]]
  $region26: #{forward.8} parent=0
    _
  %s7 = ssub.s32 1, %s5
  %s8 = scalar_select 0, %s7, %s5
  // Predicated region
  $region2: #{forward.8} parent=0 // pred_check
    _
  $region3: #{forward.8} parent=0 // pred_check_branch
    %10 = sbr.rel (0) target = $region5
  $region4: #{forward.8} parent=0 // pred_region
    _
  $region5: #{forward.8} parent=0 // pred_fallthru
    _
  // Predicated region
  $region6: #{forward.8} parent=0 // pred_check
    _
  $region7: #{forward.8} parent=0 // pred_check_branch
    %12 = sbr.rel (0) target = $region9
  $region8: #{forward.8} parent=0 // pred_region
    _
  $region9: #{forward.8} parent=0 // pred_fallthru
    _
  // Predicated region
  $region10: #{forward.8} parent=0 // pred_check
    _
  $region11: #{forward.8} parent=0 // pred_check_branch
    %14 = sbr.rel (0) target = $region13
  $region12: #{forward.8} parent=0 // pred_region
    _
  $region13: #{forward.8} parent=0 // pred_fallthru
    _
  // Predicated region
  $region14: #{forward.8} parent=0 // pred_check
    _
  $region15: #{forward.8} parent=0 // pred_check_branch
    %16 = sbr.rel (0) target = $region17
  $region16: #{forward.8} parent=0 // pred_region
    _
  $region17: #{forward.8} parent=0 // pred_fallthru
    _
  %v17 = vld [vmem:[%s0] sm:$0xff]
  %v18 = vld [vmem:[%s0 + $0x8] sm:$0xff]
  %v19 = vld [vmem:[%s0 + $0x10] sm:$0xff]
  %v20 = vld [vmem:[%s0 + $0x18] sm:$0xff]
  %v21 = vld [vmem:[%s0 + $0x20] sm:$0xff]
  %v22 = vld [vmem:[%s0 + $0x28] sm:$0xff]
  %v23 = vld [vmem:[%s0 + $0x30] sm:$0xff]
  %v24 = vld [vmem:[%s0 + $0x38] sm:$0xff]
  %v25 = vld [vmem:[%s0 + $0x40] sm:$0x3f]
  %v26 = vld [vmem:[%s0 + $0x48] sm:$0x3f]
  %v27 = vld [vmem:[%s0 + $0x50] sm:$0x3f]
  %v28 = vld [vmem:[%s0 + $0x58] sm:$0x3f]
  %v29 = vld [vmem:[%s0 + $0x60] sm:$0x3f]
  %v30 = vld [vmem:[%s0 + $0x68] sm:$0x3f]
  %v31 = vld [vmem:[%s0 + $0x70] sm:$0x3f]
  %v32 = vld [vmem:[%s0 + $0x78] sm:$0x3f]
  %v33 = vld [vmem:[%s1] sm:$0xff]
  %v34 = vld [vmem:[%s1 + $0x8] sm:$0xff]
  %v35 = vld [vmem:[%s1 + $0x10] sm:$0xff]
  %v36 = vld [vmem:[%s1 + $0x18] sm:$0xff]
  %v37 = vld [vmem:[%s1 + $0x20] sm:$0xff]
  %v38 = vld [vmem:[%s1 + $0x28] sm:$0xff]
  %v39 = vld [vmem:[%s1 + $0x30] sm:$0xff]
  %v40 = vld [vmem:[%s1 + $0x38] sm:$0xff]
  %v41 = vld [vmem:[%s1 + $0x40] sm:$0x3f]
  %v42 = vld [vmem:[%s1 + $0x48] sm:$0x3f]
  %v43 = vld [vmem:[%s1 + $0x50] sm:$0x3f]
  %v44 = vld [vmem:[%s1 + $0x58] sm:$0x3f]
  %v45 = vld [vmem:[%s1 + $0x60] sm:$0x3f]
  %v46 = vld [vmem:[%s1 + $0x68] sm:$0x3f]
  %v47 = vld [vmem:[%s1 + $0x70] sm:$0x3f]
  %v48 = vld [vmem:[%s1 + $0x78] sm:$0x3f]
  %v49 = vmax.f32 %v17, %v33
  %v50 = vmax.f32 %v18, %v34
  %v51 = vmax.f32 %v19, %v35
  %v52 = vmax.f32 %v20, %v36
  %v53 = vmax.f32 %v21, %v37
  %v54 = vmax.f32 %v22, %v38
  %v55 = vmax.f32 %v23, %v39
  %v56 = vmax.f32 %v24, %v40
  %v57 = vmax.f32 %v25, %v41
  %v58 = vmax.f32 %v26, %v42
  %v59 = vmax.f32 %v27, %v43
  %v60 = vmax.f32 %v28, %v44
  %v61 = vmax.f32 %v29, %v45
  %v62 = vmax.f32 %v30, %v46
  %v63 = vmax.f32 %v31, %v47
  %v64 = vmax.f32 %v32, %v48
  %v65 = vld [vmem:[%s2] sm:$0xff]
  %v66 = vld [vmem:[%s2 + $0x8] sm:$0xff]
  %v67 = vld [vmem:[%s2 + $0x10] sm:$0xff]
  %v68 = vld [vmem:[%s2 + $0x18] sm:$0xff]
  %v69 = vld [vmem:[%s2 + $0x20] sm:$0xff]
  %v70 = vld [vmem:[%s2 + $0x28] sm:$0xff]
  %v71 = vld [vmem:[%s2 + $0x30] sm:$0xff]
  %v72 = vld [vmem:[%s2 + $0x38] sm:$0xff]
  %v73 = vld [vmem:[%s2 + $0x40] sm:$0x3f]
  %v74 = vld [vmem:[%s2 + $0x48] sm:$0x3f]
  %v75 = vld [vmem:[%s2 + $0x50] sm:$0x3f]
  %v76 = vld [vmem:[%s2 + $0x58] sm:$0x3f]
  %v77 = vld [vmem:[%s2 + $0x60] sm:$0x3f]
  %v78 = vld [vmem:[%s2 + $0x68] sm:$0x3f]
  %v79 = vld [vmem:[%s2 + $0x70] sm:$0x3f]
  %v80 = vld [vmem:[%s2 + $0x78] sm:$0x3f]
  %v81 = vld [vmem:[%s3] sm:$0xff]
  %v82 = vld [vmem:[%s3 + $0x8] sm:$0xff]
  %v83 = vld [vmem:[%s3 + $0x10] sm:$0xff]
  %v84 = vld [vmem:[%s3 + $0x18] sm:$0xff]
  %v85 = vld [vmem:[%s3 + $0x20] sm:$0xff]
  %v86 = vld [vmem:[%s3 + $0x28] sm:$0xff]
  %v87 = vld [vmem:[%s3 + $0x30] sm:$0xff]
  %v88 = vld [vmem:[%s3 + $0x38] sm:$0xff]
  %v89 = vld [vmem:[%s3 + $0x40] sm:$0x3f]
  %v90 = vld [vmem:[%s3 + $0x48] sm:$0x3f]
  %v91 = vld [vmem:[%s3 + $0x50] sm:$0x3f]
  %v92 = vld [vmem:[%s3 + $0x58] sm:$0x3f]
  %v93 = vld [vmem:[%s3 + $0x60] sm:$0x3f]
  %v94 = vld [vmem:[%s3 + $0x68] sm:$0x3f]
  %v95 = vld [vmem:[%s3 + $0x70] sm:$0x3f]
  %v96 = vld [vmem:[%s3 + $0x78] sm:$0x3f]
  %v97 = vmax.f32 %v65, %v81
  %v98 = vmax.f32 %v66, %v82
  %v99 = vmax.f32 %v67, %v83
  %v100 = vmax.f32 %v68, %v84
  %v101 = vmax.f32 %v69, %v85
  %v102 = vmax.f32 %v70, %v86
  %v103 = vmax.f32 %v71, %v87
  %v104 = vmax.f32 %v72, %v88
  %v105 = vmax.f32 %v73, %v89
  %v106 = vmax.f32 %v74, %v90
  %v107 = vmax.f32 %v75, %v91
  %v108 = vmax.f32 %v76, %v92
  %v109 = vmax.f32 %v77, %v93
  %v110 = vmax.f32 %v78, %v94
  %v111 = vmax.f32 %v79, %v95
  %v112 = vmax.f32 %v80, %v96
  %v113 = vmax.f32 %v49, %v97
  %v114 = vmax.f32 %v50, %v98
  %v115 = vmax.f32 %v51, %v99
  %v116 = vmax.f32 %v52, %v100
  %v117 = vmax.f32 %v53, %v101
  %v118 = vmax.f32 %v54, %v102
  %v119 = vmax.f32 %v55, %v103
  %v120 = vmax.f32 %v56, %v104
  %v121 = vmax.f32 %v57, %v105
  %v122 = vmax.f32 %v58, %v106
  %v123 = vmax.f32 %v59, %v107
  %v124 = vmax.f32 %v60, %v108
  %v125 = vmax.f32 %v61, %v109
  %v126 = vmax.f32 %v62, %v110
  %v127 = vmax.f32 %v63, %v111
  %v128 = vmax.f32 %v64, %v112
  %129 = vst [vmem:[%s4] sm:$0xff] %v113
  %130 = vst [vmem:[%s4 + $0x8] sm:$0xff] %v114
  %131 = vst [vmem:[%s4 + $0x10] sm:$0xff] %v115
  %132 = vst [vmem:[%s4 + $0x18] sm:$0xff] %v116
  %133 = vst [vmem:[%s4 + $0x20] sm:$0xff] %v117
  %134 = vst [vmem:[%s4 + $0x28] sm:$0xff] %v118
  %135 = vst [vmem:[%s4 + $0x30] sm:$0xff] %v119
  %vm136 = vcmask 523264
  %137 = vst.msk [vmem:[%s4 + $0x38] sm:$0xff] %vm136, %v120
  %138 = vst [vmem:[%s4 + $0x40] sm:$0x3f] %v121
  %139 = vst [vmem:[%s4 + $0x48] sm:$0x3f] %v122
  %140 = vst [vmem:[%s4 + $0x50] sm:$0x3f] %v123
  %141 = vst [vmem:[%s4 + $0x58] sm:$0x3f] %v124
  %142 = vst [vmem:[%s4 + $0x60] sm:$0x3f] %v125
  %143 = vst [vmem:[%s4 + $0x68] sm:$0x3f] %v126
  %144 = vst [vmem:[%s4 + $0x70] sm:$0x3f] %v127
  %vm145 = vcmask 521216
  %146 = vst.msk [vmem:[%s4 + $0x78] sm:$0x3f] %vm145, %v128
  // Predicated region
  $region18: #{forward.8} parent=0 // pred_check
    _
  $region19: #{forward.8} parent=0 // pred_check_branch
    %148 = sbr.rel (0) target = $region21
  $region20: #{forward.8} parent=0 // pred_region
    _
  $region21: #{forward.8} parent=0 // pred_fallthru
    _
  // Predicated region
  $region22: #{forward.8} parent=0 // pred_check
    _
  $region23: #{forward.8} parent=0 // pred_check_branch
    %150 = sbr.rel (0) target = $region25
  $region24: #{forward.8} parent=0 // pred_region
    _
  $region25: #{forward.8} parent=0 // pred_fallthru
    _

// kernel: forward.9
$region0: #{forward.9}
  #allocation0 [shape = 'u32[]', space=smem, size = 0x4, offset = 0x4, fixed_abs, tag = 'smem constant byte address 0x4 - core index']
  #allocation1 [shape = 'u32[144,128]{1,0:T(1,128)}', space=vmem, size = 0x12000, scoped, tag = 'internal scratch']
  %s0 = inlined_call_operand.vmem [shape: bf16[8,6720], index: 0, kind: input, shape index: {}]
  %s1 = inlined_call_operand.vmem [shape: bf16[6720,128], index: 1, kind: input, shape index: {}]
  %s2 = inlined_call_operand.vmem [shape: f32[1,128], index: 2, kind: input, shape index: {}]
  %s3 = inlined_call_operand.vmem [shape: bf16[128,128], index: 3, kind: input, shape index: {}]
  %s4 = inlined_call_operand.vmem [shape: f32[1,128], index: 4, kind: input, shape index: {}]
  %s5 = inlined_call_operand.vmem [shape: bf16[128,128], index: 5, kind: input, shape index: {}]
  %s6 = inlined_call_operand.vmem [shape: f32[1,128], index: 6, kind: input, shape index: {}]
  %s7 = inlined_call_operand.vmem [shape: f32[8,128], index: 7, kind: output, shape index: {}]
  %s8 = sld [smem:[#allocation0]]
  $region38: #{forward.9} parent=0
    _
  %s10 = ssub.s32 1, %s8
  %s11 = scalar_select 0, %s10, %s8
  // Predicated region
  $region2: #{forward.9} parent=0 // pred_check
    _
  $region3: #{forward.9} parent=0 // pred_check_branch
    %13 = sbr.rel (0) target = $region5
  $region4: #{forward.9} parent=0 // pred_region
    _
  $region5: #{forward.9} parent=0 // pred_fallthru
    _
  // Predicated region
  $region6: #{forward.9} parent=0 // pred_check
    _
  $region7: #{forward.9} parent=0 // pred_check_branch
    %15 = sbr.rel (0) target = $region9
  $region8: #{forward.9} parent=0 // pred_region
    _
  $region9: #{forward.9} parent=0 // pred_fallthru
    _
  // Predicated region
  $region10: #{forward.9} parent=0 // pred_check
    _
  $region11: #{forward.9} parent=0 // pred_check_branch
    %17 = sbr.rel (0) target = $region13
  $region12: #{forward.9} parent=0 // pred_region
    _
  $region13: #{forward.9} parent=0 // pred_fallthru
    _
  // Predicated region
  $region14: #{forward.9} parent=0 // pred_check
    _
  $region15: #{forward.9} parent=0 // pred_check_branch
    %19 = sbr.rel (0) target = $region17
  $region16: #{forward.9} parent=0 // pred_region
    _
  $region17: #{forward.9} parent=0 // pred_fallthru
    _
  // Predicated region
  $region18: #{forward.9} parent=0 // pred_check
    _
  $region19: #{forward.9} parent=0 // pred_check_branch
    %21 = sbr.rel (0) target = $region21
  $region20: #{forward.9} parent=0 // pred_region
    _
  $region21: #{forward.9} parent=0 // pred_fallthru
    _
  // Predicated region
  $region22: #{forward.9} parent=0 // pred_check
    _
  $region23: #{forward.9} parent=0 // pred_check_branch
    %23 = sbr.rel (0) target = $region25
  $region24: #{forward.9} parent=0 // pred_region
    _
  $region25: #{forward.9} parent=0 // pred_fallthru
    _
  // Predicated region
  $region26: #{forward.9} parent=0 // pred_check
    _
  $region27: #{forward.9} parent=0 // pred_check_branch
    %25 = sbr.rel (0) target = $region29
  $region28: #{forward.9} parent=0 // pred_region
    _
  $region29: #{forward.9} parent=0 // pred_fallthru
    _
  %v27 = vld [vmem:[%s0] sm:$0xff]
  %v28 = vld [vmem:[%s0 + $0x8] sm:$0xff]
  %v29 = vld [vmem:[%s0 + $0x10] sm:$0xff]
  %v30 = vld [vmem:[%s0 + $0x18] sm:$0xff]
  %v31 = vld [vmem:[%s0 + $0x20] sm:$0xff]
  %v32 = vld [vmem:[%s0 + $0x28] sm:$0xff]
  %v33 = vld [vmem:[%s0 + $0x30] sm:$0xff]
  %v34 = vld [vmem:[%s0 + $0x38] sm:$0xff]
  %v35 = vld [vmem:[%s0 + $0x40] sm:$0xff]
  %v36 = vld [vmem:[%s0 + $0x48] sm:$0xff]
  %v37 = vld [vmem:[%s0 + $0x50] sm:$0xff]
  %v38 = vld [vmem:[%s0 + $0x58] sm:$0xff]
  %v39 = vld [vmem:[%s0 + $0x60] sm:$0xff]
  %v40 = vld [vmem:[%s0 + $0x68] sm:$0xff]
  %v41 = vld [vmem:[%s0 + $0x70] sm:$0xff]
  %v42 = vld [vmem:[%s0 + $0x78] sm:$0xff]
  %v43 = vld [vmem:[%s0 + $0x80] sm:$0xff]
  %v44 = vld [vmem:[%s0 + $0x88] sm:$0xff]
  %v45 = vld [vmem:[%s0 + $0x90] sm:$0xff]
  %v46 = vld [vmem:[%s0 + $0x98] sm:$0xff]
  %v47 = vld [vmem:[%s0 + $0xa0] sm:$0xff]
  %v48 = vld [vmem:[%s0 + $0xa8] sm:$0xff]
  %v49 = vld [vmem:[%s0 + $0xb0] sm:$0xff]
  %v50 = vld [vmem:[%s0 + $0xb8] sm:$0xff]
  %v51 = vld [vmem:[%s0 + $0xc0] sm:$0xff]
  %v52 = vld [vmem:[%s0 + $0xc8] sm:$0xff]
  %v53 = vld [vmem:[%s0 + $0xd0] sm:$0xf]
  %v54 = vld [vmem:[%s1] sm:$0xf]
  %v55 = vld [vmem:[%s1 + $0x4] sm:$0xf]
  %v56 = vld [vmem:[%s1 + $0x8] sm:$0xf]
  %v57 = vld [vmem:[%s1 + $0xc] sm:$0xf]
  %v58 = vld [vmem:[%s1 + $0x10] sm:$0xf]
  %v59 = vld [vmem:[%s1 + $0x14] sm:$0xf]
  %v60 = vld [vmem:[%s1 + $0x18] sm:$0xf]
  %v61 = vld [vmem:[%s1 + $0x1c] sm:$0xf]
  %v62 = vld [vmem:[%s1 + $0x20] sm:$0xf]
  %v63 = vld [vmem:[%s1 + $0x24] sm:$0xf]
  %v64 = vld [vmem:[%s1 + $0x28] sm:$0xf]
  %v65 = vld [vmem:[%s1 + $0x2c] sm:$0xf]
  %v66 = vld [vmem:[%s1 + $0x30] sm:$0xf]
  %v67 = vld [vmem:[%s1 + $0x34] sm:$0xf]
  %v68 = vld [vmem:[%s1 + $0x38] sm:$0xf]
  %v69 = vld [vmem:[%s1 + $0x3c] sm:$0xf]
  %v70 = vld [vmem:[%s1 + $0x40] sm:$0xf]
  %v71 = vld [vmem:[%s1 + $0x44] sm:$0xf]
  %v72 = vld [vmem:[%s1 + $0x48] sm:$0xf]
  %v73 = vld [vmem:[%s1 + $0x4c] sm:$0xf]
  %v74 = vld [vmem:[%s1 + $0x50] sm:$0xf]
  %v75 = vld [vmem:[%s1 + $0x54] sm:$0xf]
  %v76 = vld [vmem:[%s1 + $0x58] sm:$0xf]
  %v77 = vld [vmem:[%s1 + $0x5c] sm:$0xf]
  %v78 = vld [vmem:[%s1 + $0x60] sm:$0xf]
  %v79 = vld [vmem:[%s1 + $0x64] sm:$0xf]
  %v80 = vld [vmem:[%s1 + $0x68] sm:$0xf]
  %v81 = vld [vmem:[%s1 + $0x6c] sm:$0xf]
  %v82 = vld [vmem:[%s1 + $0x70] sm:$0xf]
  %v83 = vld [vmem:[%s1 + $0x74] sm:$0xf]
  %v84 = vld [vmem:[%s1 + $0x78] sm:$0xf]
  %v85 = vld [vmem:[%s1 + $0x7c] sm:$0xf]
  %v86 = vld [vmem:[%s1 + $0x80] sm:$0xf]
  %v87 = vld [vmem:[%s1 + $0x84] sm:$0xf]
  %v88 = vld [vmem:[%s1 + $0x88] sm:$0xf]
  %v89 = vld [vmem:[%s1 + $0x8c] sm:$0xf]
  %v90 = vld [vmem:[%s1 + $0x90] sm:$0xf]
  %v91 = vld [vmem:[%s1 + $0x94] sm:$0xf]
  %v92 = vld [vmem:[%s1 + $0x98] sm:$0xf]
  %v93 = vld [vmem:[%s1 + $0x9c] sm:$0xf]
  %v94 = vld [vmem:[%s1 + $0xa0] sm:$0xf]
  %v95 = vld [vmem:[%s1 + $0xa4] sm:$0xf]
  %v96 = vld [vmem:[%s1 + $0xa8] sm:$0xf]
  %v97 = vld [vmem:[%s1 + $0xac] sm:$0xf]
  %v98 = vld [vmem:[%s1 + $0xb0] sm:$0xf]
  %v99 = vld [vmem:[%s1 + $0xb4] sm:$0xf]
  %v100 = vld [vmem:[%s1 + $0xb8] sm:$0xf]
  %v101 = vld [vmem:[%s1 + $0xbc] sm:$0xf]
  %v102 = vld [vmem:[%s1 + $0xc0] sm:$0xf]
  %v103 = vld [vmem:[%s1 + $0xc4] sm:$0xf]
  %v104 = vld [vmem:[%s1 + $0xc8] sm:$0xf]
  %v105 = vld [vmem:[%s1 + $0xcc] sm:$0xf]
  %v106 = vld [vmem:[%s1 + $0xd0] sm:$0xf]
  %v107 = vld [vmem:[%s1 + $0xd4] sm:$0xf]
  %v108 = vld [vmem:[%s1 + $0xd8] sm:$0xf]
  %v109 = vld [vmem:[%s1 + $0xdc] sm:$0xf]
  %v110 = vld [vmem:[%s1 + $0xe0] sm:$0xf]
  %v111 = vld [vmem:[%s1 + $0xe4] sm:$0xf]
  %v112 = vld [vmem:[%s1 + $0xe8] sm:$0xf]
  %v113 = vld [vmem:[%s1 + $0xec] sm:$0xf]
  %v114 = vld [vmem:[%s1 + $0xf0] sm:$0xf]
  %v115 = vld [vmem:[%s1 + $0xf4] sm:$0xf]
  %v116 = vld [vmem:[%s1 + $0xf8] sm:$0xf]
  %v117 = vld [vmem:[%s1 + $0xfc] sm:$0xf]
  %v118 = vld [vmem:[%s1 + $0x100] sm:$0xf]
  %v119 = vld [vmem:[%s1 + $0x104] sm:$0xf]
  %v120 = vld [vmem:[%s1 + $0x108] sm:$0xf]
  %v121 = vld [vmem:[%s1 + $0x10c] sm:$0xf]
  %v122 = vld [vmem:[%s1 + $0x110] sm:$0xf]
  %v123 = vld [vmem:[%s1 + $0x114] sm:$0xf]
  %v124 = vld [vmem:[%s1 + $0x118] sm:$0xf]
  %v125 = vld [vmem:[%s1 + $0x11c] sm:$0xf]
  %v126 = vld [vmem:[%s1 + $0x120] sm:$0xf]
  %v127 = vld [vmem:[%s1 + $0x124] sm:$0xf]
  %v128 = vld [vmem:[%s1 + $0x128] sm:$0xf]
  %v129 = vld [vmem:[%s1 + $0x12c] sm:$0xf]
  %v130 = vld [vmem:[%s1 + $0x130] sm:$0xf]
  %v131 = vld [vmem:[%s1 + $0x134] sm:$0xf]
  %v132 = vld [vmem:[%s1 + $0x138] sm:$0xf]
  %v133 = vld [vmem:[%s1 + $0x13c] sm:$0xf]
  %v134 = vld [vmem:[%s1 + $0x140] sm:$0xf]
  %v135 = vld [vmem:[%s1 + $0x144] sm:$0xf]
  %v136 = vld [vmem:[%s1 + $0x148] sm:$0xf]
  %v137 = vld [vmem:[%s1 + $0x14c] sm:$0xf]
  %v138 = vld [vmem:[%s1 + $0x150] sm:$0xf]
  %v139 = vld [vmem:[%s1 + $0x154] sm:$0xf]
  %v140 = vld [vmem:[%s1 + $0x158] sm:$0xf]
  %v141 = vld [vmem:[%s1 + $0x15c] sm:$0xf]
  %v142 = vld [vmem:[%s1 + $0x160] sm:$0xf]
  %v143 = vld [vmem:[%s1 + $0x164] sm:$0xf]
  %v144 = vld [vmem:[%s1 + $0x168] sm:$0xf]
  %v145 = vld [vmem:[%s1 + $0x16c] sm:$0xf]
  %v146 = vld [vmem:[%s1 + $0x170] sm:$0xf]
  %v147 = vld [vmem:[%s1 + $0x174] sm:$0xf]
  %v148 = vld [vmem:[%s1 + $0x178] sm:$0xf]
  %v149 = vld [vmem:[%s1 + $0x17c] sm:$0xf]
  %v150 = vld [vmem:[%s1 + $0x180] sm:$0xf]
  %v151 = vld [vmem:[%s1 + $0x184] sm:$0xf]
  %v152 = vld [vmem:[%s1 + $0x188] sm:$0xf]
  %v153 = vld [vmem:[%s1 + $0x18c] sm:$0xf]
  %v154 = vld [vmem:[%s1 + $0x190] sm:$0xf]
  %v155 = vld [vmem:[%s1 + $0x194] sm:$0xf]
  %v156 = vld [vmem:[%s1 + $0x198] sm:$0xf]
  %v157 = vld [vmem:[%s1 + $0x19c] sm:$0xf]
  %v158 = vld [vmem:[%s1 + $0x1a0] sm:$0xf]
  %v159 = vld [vmem:[%s1 + $0x1a4] sm:$0xf]
  %v160 = vld [vmem:[%s1 + $0x1a8] sm:$0xf]
  %v161 = vld [vmem:[%s1 + $0x1ac] sm:$0xf]
  %v162 = vld [vmem:[%s1 + $0x1b0] sm:$0xf]
  %v163 = vld [vmem:[%s1 + $0x1b4] sm:$0xf]
  %v164 = vld [vmem:[%s1 + $0x1b8] sm:$0xf]
  %v165 = vld [vmem:[%s1 + $0x1bc] sm:$0xf]
  %v166 = vld [vmem:[%s1 + $0x1c0] sm:$0xf]
  %v167 = vld [vmem:[%s1 + $0x1c4] sm:$0xf]
  %v168 = vld [vmem:[%s1 + $0x1c8] sm:$0xf]
  %v169 = vld [vmem:[%s1 + $0x1cc] sm:$0xf]
  %v170 = vld [vmem:[%s1 + $0x1d0] sm:$0xf]
  %v171 = vld [vmem:[%s1 + $0x1d4] sm:$0xf]
  %v172 = vld [vmem:[%s1 + $0x1d8] sm:$0xf]
  %v173 = vld [vmem:[%s1 + $0x1dc] sm:$0xf]
  %v174 = vld [vmem:[%s1 + $0x1e0] sm:$0xf]
  %v175 = vld [vmem:[%s1 + $0x1e4] sm:$0xf]
  %v176 = vld [vmem:[%s1 + $0x1e8] sm:$0xf]
  %v177 = vld [vmem:[%s1 + $0x1ec] sm:$0xf]
  %v178 = vld [vmem:[%s1 + $0x1f0] sm:$0xf]
  %v179 = vld [vmem:[%s1 + $0x1f4] sm:$0xf]
  %v180 = vld [vmem:[%s1 + $0x1f8] sm:$0xf]
  %v181 = vld [vmem:[%s1 + $0x1fc] sm:$0xf]
  %v182 = vld [vmem:[%s1 + $0x200] sm:$0xf]
  %v183 = vld [vmem:[%s1 + $0x204] sm:$0xf]
  %v184 = vld [vmem:[%s1 + $0x208] sm:$0xf]
  %v185 = vld [vmem:[%s1 + $0x20c] sm:$0xf]
  %v186 = vld [vmem:[%s1 + $0x210] sm:$0xf]
  %v187 = vld [vmem:[%s1 + $0x214] sm:$0xf]
  %v188 = vld [vmem:[%s1 + $0x218] sm:$0xf]
  %v189 = vld [vmem:[%s1 + $0x21c] sm:$0xf]
  %v190 = vld [vmem:[%s1 + $0x220] sm:$0xf]
  %v191 = vld [vmem:[%s1 + $0x224] sm:$0xf]
  %v192 = vld [vmem:[%s1 + $0x228] sm:$0xf]
  %v193 = vld [vmem:[%s1 + $0x22c] sm:$0xf]
  %v194 = vld [vmem:[%s1 + $0x230] sm:$0xf]
  %v195 = vld [vmem:[%s1 + $0x234] sm:$0xf]
  %v196 = vld [vmem:[%s1 + $0x238] sm:$0xf]
  %v197 = vld [vmem:[%s1 + $0x23c] sm:$0xf]
  %v198 = vld [vmem:[%s1 + $0x240] sm:$0xf]
  %v199 = vld [vmem:[%s1 + $0x244] sm:$0xf]
  %v200 = vld [vmem:[%s1 + $0x248] sm:$0xf]
  %v201 = vld [vmem:[%s1 + $0x24c] sm:$0xf]
  %v202 = vld [vmem:[%s1 + $0x250] sm:$0xf]
  %v203 = vld [vmem:[%s1 + $0x254] sm:$0xf]
  %v204 = vld [vmem:[%s1 + $0x258] sm:$0xf]
  %v205 = vld [vmem:[%s1 + $0x25c] sm:$0xf]
  %v206 = vld [vmem:[%s1 + $0x260] sm:$0xf]
  %v207 = vld [vmem:[%s1 + $0x264] sm:$0xf]
  %v208 = vld [vmem:[%s1 + $0x268] sm:$0xf]
  %v209 = vld [vmem:[%s1 + $0x26c] sm:$0xf]
  %v210 = vld [vmem:[%s1 + $0x270] sm:$0xf]
  %v211 = vld [vmem:[%s1 + $0x274] sm:$0xf]
  %v212 = vld [vmem:[%s1 + $0x278] sm:$0xf]
  %v213 = vld [vmem:[%s1 + $0x27c] sm:$0xf]
  %v214 = vld [vmem:[%s1 + $0x280] sm:$0xf]
  %v215 = vld [vmem:[%s1 + $0x284] sm:$0xf]
  %v216 = vld [vmem:[%s1 + $0x288] sm:$0xf]
  %v217 = vld [vmem:[%s1 + $0x28c] sm:$0xf]
  %v218 = vld [vmem:[%s1 + $0x290] sm:$0xf]
  %v219 = vld [vmem:[%s1 + $0x294] sm:$0xf]
  %v220 = vld [vmem:[%s1 + $0x298] sm:$0xf]
  %v221 = vld [vmem:[%s1 + $0x29c] sm:$0xf]
  %v222 = vld [vmem:[%s1 + $0x2a0] sm:$0xf]
  %v223 = vld [vmem:[%s1 + $0x2a4] sm:$0xf]
  %v224 = vld [vmem:[%s1 + $0x2a8] sm:$0xf]
  %v225 = vld [vmem:[%s1 + $0x2ac] sm:$0xf]
  %v226 = vld [vmem:[%s1 + $0x2b0] sm:$0xf]
  %v227 = vld [vmem:[%s1 + $0x2b4] sm:$0xf]
  %v228 = vld [vmem:[%s1 + $0x2b8] sm:$0xf]
  %v229 = vld [vmem:[%s1 + $0x2bc] sm:$0xf]
  %v230 = vld [vmem:[%s1 + $0x2c0] sm:$0xf]
  %v231 = vld [vmem:[%s1 + $0x2c4] sm:$0xf]
  %v232 = vld [vmem:[%s1 + $0x2c8] sm:$0xf]
  %v233 = vld [vmem:[%s1 + $0x2cc] sm:$0xf]
  %v234 = vld [vmem:[%s1 + $0x2d0] sm:$0xf]
  %v235 = vld [vmem:[%s1 + $0x2d4] sm:$0xf]
  %v236 = vld [vmem:[%s1 + $0x2d8] sm:$0xf]
  %v237 = vld [vmem:[%s1 + $0x2dc] sm:$0xf]
  %v238 = vld [vmem:[%s1 + $0x2e0] sm:$0xf]
  %v239 = vld [vmem:[%s1 + $0x2e4] sm:$0xf]
  %v240 = vld [vmem:[%s1 + $0x2e8] sm:$0xf]
  %v241 = vld [vmem:[%s1 + $0x2ec] sm:$0xf]
  %v242 = vld [vmem:[%s1 + $0x2f0] sm:$0xf]
  %v243 = vld [vmem:[%s1 + $0x2f4] sm:$0xf]
  %v244 = vld [vmem:[%s1 + $0x2f8] sm:$0xf]
  %v245 = vld [vmem:[%s1 + $0x2fc] sm:$0xf]
  %v246 = vld [vmem:[%s1 + $0x300] sm:$0xf]
  %v247 = vld [vmem:[%s1 + $0x304] sm:$0xf]
  %v248 = vld [vmem:[%s1 + $0x308] sm:$0xf]
  %v249 = vld [vmem:[%s1 + $0x30c] sm:$0xf]
  %v250 = vld [vmem:[%s1 + $0x310] sm:$0xf]
  %v251 = vld [vmem:[%s1 + $0x314] sm:$0xf]
  %v252 = vld [vmem:[%s1 + $0x318] sm:$0xf]
  %v253 = vld [vmem:[%s1 + $0x31c] sm:$0xf]
  %v254 = vld [vmem:[%s1 + $0x320] sm:$0xf]
  %v255 = vld [vmem:[%s1 + $0x324] sm:$0xf]
  %v256 = vld [vmem:[%s1 + $0x328] sm:$0xf]
  %v257 = vld [vmem:[%s1 + $0x32c] sm:$0xf]
  %v258 = vld [vmem:[%s1 + $0x330] sm:$0xf]
  %v259 = vld [vmem:[%s1 + $0x334] sm:$0xf]
  %v260 = vld [vmem:[%s1 + $0x338] sm:$0xf]
  %v261 = vld [vmem:[%s1 + $0x33c] sm:$0xf]
  %v262 = vld [vmem:[%s1 + $0x340] sm:$0xf]
  %v263 = vld [vmem:[%s1 + $0x344] sm:$0xf]
  %v264 = vld [vmem:[%s1 + $0x348] sm:$0xf]
  %v265 = vld [vmem:[%s1 + $0x34c] sm:$0xf]
  %v266 = vld [vmem:[%s1 + $0x350] sm:$0xf]
  %v267 = vld [vmem:[%s1 + $0x354] sm:$0xf]
  %v268 = vld [vmem:[%s1 + $0x358] sm:$0xf]
  %v269 = vld [vmem:[%s1 + $0x35c] sm:$0xf]
  %v270 = vld [vmem:[%s1 + $0x360] sm:$0xf]
  %v271 = vld [vmem:[%s1 + $0x364] sm:$0xf]
  %v272 = vld [vmem:[%s1 + $0x368] sm:$0xf]
  %v273 = vld [vmem:[%s1 + $0x36c] sm:$0xf]
  %v274 = vld [vmem:[%s1 + $0x370] sm:$0xf]
  %v275 = vld [vmem:[%s1 + $0x374] sm:$0xf]
  %v276 = vld [vmem:[%s1 + $0x378] sm:$0xf]
  %v277 = vld [vmem:[%s1 + $0x37c] sm:$0xf]
  %v278 = vld [vmem:[%s1 + $0x380] sm:$0xf]
  %v279 = vld [vmem:[%s1 + $0x384] sm:$0xf]
  %v280 = vld [vmem:[%s1 + $0x388] sm:$0xf]
  %v281 = vld [vmem:[%s1 + $0x38c] sm:$0xf]
  %v282 = vld [vmem:[%s1 + $0x390] sm:$0xf]
  %v283 = vld [vmem:[%s1 + $0x394] sm:$0xf]
  %v284 = vld [vmem:[%s1 + $0x398] sm:$0xf]
  %v285 = vld [vmem:[%s1 + $0x39c] sm:$0xf]
  %v286 = vld [vmem:[%s1 + $0x3a0] sm:$0xf]
  %v287 = vld [vmem:[%s1 + $0x3a4] sm:$0xf]
  %v288 = vld [vmem:[%s1 + $0x3a8] sm:$0xf]
  %v289 = vld [vmem:[%s1 + $0x3ac] sm:$0xf]
  %v290 = vld [vmem:[%s1 + $0x3b0] sm:$0xf]
  %v291 = vld [vmem:[%s1 + $0x3b4] sm:$0xf]
  %v292 = vld [vmem:[%s1 + $0x3b8] sm:$0xf]
  %v293 = vld [vmem:[%s1 + $0x3bc] sm:$0xf]
  %v294 = vld [vmem:[%s1 + $0x3c0] sm:$0xf]
  %v295 = vld [vmem:[%s1 + $0x3c4] sm:$0xf]
  %v296 = vld [vmem:[%s1 + $0x3c8] sm:$0xf]
  %v297 = vld [vmem:[%s1 + $0x3cc] sm:$0xf]
  %v298 = vld [vmem:[%s1 + $0x3d0] sm:$0xf]
  %v299 = vld [vmem:[%s1 + $0x3d4] sm:$0xf]
  %v300 = vld [vmem:[%s1 + $0x3d8] sm:$0xf]
  %v301 = vld [vmem:[%s1 + $0x3dc] sm:$0xf]
  %v302 = vld [vmem:[%s1 + $0x3e0] sm:$0xf]
  %v303 = vld [vmem:[%s1 + $0x3e4] sm:$0xf]
  %v304 = vld [vmem:[%s1 + $0x3e8] sm:$0xf]
  %v305 = vld [vmem:[%s1 + $0x3ec] sm:$0xf]
  %v306 = vld [vmem:[%s1 + $0x3f0] sm:$0xf]
  %v307 = vld [vmem:[%s1 + $0x3f4] sm:$0xf]
  %v308 = vld [vmem:[%s1 + $0x3f8] sm:$0xf]
  %v309 = vld [vmem:[%s1 + $0x3fc] sm:$0xf]
  %v310 = vld [vmem:[%s1 + $0x400] sm:$0xf]
  %v311 = vld [vmem:[%s1 + $0x404] sm:$0xf]
  %v312 = vld [vmem:[%s1 + $0x408] sm:$0xf]
  %v313 = vld [vmem:[%s1 + $0x40c] sm:$0xf]
  %v314 = vld [vmem:[%s1 + $0x410] sm:$0xf]
  %v315 = vld [vmem:[%s1 + $0x414] sm:$0xf]
  %v316 = vld [vmem:[%s1 + $0x418] sm:$0xf]
  %v317 = vld [vmem:[%s1 + $0x41c] sm:$0xf]
  %v318 = vld [vmem:[%s1 + $0x420] sm:$0xf]
  %v319 = vld [vmem:[%s1 + $0x424] sm:$0xf]
  %v320 = vld [vmem:[%s1 + $0x428] sm:$0xf]
  %v321 = vld [vmem:[%s1 + $0x42c] sm:$0xf]
  %v322 = vld [vmem:[%s1 + $0x430] sm:$0xf]
  %v323 = vld [vmem:[%s1 + $0x434] sm:$0xf]
  %v324 = vld [vmem:[%s1 + $0x438] sm:$0xf]
  %v325 = vld [vmem:[%s1 + $0x43c] sm:$0xf]
  %v326 = vld [vmem:[%s1 + $0x440] sm:$0xf]
  %v327 = vld [vmem:[%s1 + $0x444] sm:$0xf]
  %v328 = vld [vmem:[%s1 + $0x448] sm:$0xf]
  %v329 = vld [vmem:[%s1 + $0x44c] sm:$0xf]
  %v330 = vld [vmem:[%s1 + $0x450] sm:$0xf]
  %v331 = vld [vmem:[%s1 + $0x454] sm:$0xf]
  %v332 = vld [vmem:[%s1 + $0x458] sm:$0xf]
  %v333 = vld [vmem:[%s1 + $0x45c] sm:$0xf]
  %v334 = vld [vmem:[%s1 + $0x460] sm:$0xf]
  %v335 = vld [vmem:[%s1 + $0x464] sm:$0xf]
  %v336 = vld [vmem:[%s1 + $0x468] sm:$0xf]
  %v337 = vld [vmem:[%s1 + $0x46c] sm:$0xf]
  %v338 = vld [vmem:[%s1 + $0x470] sm:$0xf]
  %v339 = vld [vmem:[%s1 + $0x474] sm:$0xf]
  %v340 = vld [vmem:[%s1 + $0x478] sm:$0xf]
  %v341 = vld [vmem:[%s1 + $0x47c] sm:$0xf]
  %v342 = vld [vmem:[%s1 + $0x480] sm:$0xf]
  %v343 = vld [vmem:[%s1 + $0x484] sm:$0xf]
  %v344 = vld [vmem:[%s1 + $0x488] sm:$0xf]
  %v345 = vld [vmem:[%s1 + $0x48c] sm:$0xf]
  %v346 = vld [vmem:[%s1 + $0x490] sm:$0xf]
  %v347 = vld [vmem:[%s1 + $0x494] sm:$0xf]
  %v348 = vld [vmem:[%s1 + $0x498] sm:$0xf]
  %v349 = vld [vmem:[%s1 + $0x49c] sm:$0xf]
  %v350 = vld [vmem:[%s1 + $0x4a0] sm:$0xf]
  %v351 = vld [vmem:[%s1 + $0x4a4] sm:$0xf]
  %v352 = vld [vmem:[%s1 + $0x4a8] sm:$0xf]
  %v353 = vld [vmem:[%s1 + $0x4ac] sm:$0xf]
  %v354 = vld [vmem:[%s1 + $0x4b0] sm:$0xf]
  %v355 = vld [vmem:[%s1 + $0x4b4] sm:$0xf]
  %v356 = vld [vmem:[%s1 + $0x4b8] sm:$0xf]
  %v357 = vld [vmem:[%s1 + $0x4bc] sm:$0xf]
  %v358 = vld [vmem:[%s1 + $0x4c0] sm:$0xf]
  %v359 = vld [vmem:[%s1 + $0x4c4] sm:$0xf]
  %v360 = vld [vmem:[%s1 + $0x4c8] sm:$0xf]
  %v361 = vld [vmem:[%s1 + $0x4cc] sm:$0xf]
  %v362 = vld [vmem:[%s1 + $0x4d0] sm:$0xf]
  %v363 = vld [vmem:[%s1 + $0x4d4] sm:$0xf]
  %v364 = vld [vmem:[%s1 + $0x4d8] sm:$0xf]
  %v365 = vld [vmem:[%s1 + $0x4dc] sm:$0xf]
  %v366 = vld [vmem:[%s1 + $0x4e0] sm:$0xf]
  %v367 = vld [vmem:[%s1 + $0x4e4] sm:$0xf]
  %v368 = vld [vmem:[%s1 + $0x4e8] sm:$0xf]
  %v369 = vld [vmem:[%s1 + $0x4ec] sm:$0xf]
  %v370 = vld [vmem:[%s1 + $0x4f0] sm:$0xf]
  %v371 = vld [vmem:[%s1 + $0x4f4] sm:$0xf]
  %v372 = vld [vmem:[%s1 + $0x4f8] sm:$0xf]
  %v373 = vld [vmem:[%s1 + $0x4fc] sm:$0xf]
  %v374 = vld [vmem:[%s1 + $0x500] sm:$0xf]
  %v375 = vld [vmem:[%s1 + $0x504] sm:$0xf]
  %v376 = vld [vmem:[%s1 + $0x508] sm:$0xf]
  %v377 = vld [vmem:[%s1 + $0x50c] sm:$0xf]
  %v378 = vld [vmem:[%s1 + $0x510] sm:$0xf]
  %v379 = vld [vmem:[%s1 + $0x514] sm:$0xf]
  %v380 = vld [vmem:[%s1 + $0x518] sm:$0xf]
  %v381 = vld [vmem:[%s1 + $0x51c] sm:$0xf]
  %v382 = vld [vmem:[%s1 + $0x520] sm:$0xf]
  %v383 = vld [vmem:[%s1 + $0x524] sm:$0xf]
  %v384 = vld [vmem:[%s1 + $0x528] sm:$0xf]
  %v385 = vld [vmem:[%s1 + $0x52c] sm:$0xf]
  %v386 = vld [vmem:[%s1 + $0x530] sm:$0xf]
  %v387 = vld [vmem:[%s1 + $0x534] sm:$0xf]
  %v388 = vld [vmem:[%s1 + $0x538] sm:$0xf]
  %v389 = vld [vmem:[%s1 + $0x53c] sm:$0xf]
  %v390 = vld [vmem:[%s1 + $0x540] sm:$0xf]
  %v391 = vld [vmem:[%s1 + $0x544] sm:$0xf]
  %v392 = vld [vmem:[%s1 + $0x548] sm:$0xf]
  %v393 = vld [vmem:[%s1 + $0x54c] sm:$0xf]
  %v394 = vld [vmem:[%s1 + $0x550] sm:$0xf]
  %v395 = vld [vmem:[%s1 + $0x554] sm:$0xf]
  %v396 = vld [vmem:[%s1 + $0x558] sm:$0xf]
  %v397 = vld [vmem:[%s1 + $0x55c] sm:$0xf]
  %v398 = vld [vmem:[%s1 + $0x560] sm:$0xf]
  %v399 = vld [vmem:[%s1 + $0x564] sm:$0xf]
  %v400 = vld [vmem:[%s1 + $0x568] sm:$0xf]
  %v401 = vld [vmem:[%s1 + $0x56c] sm:$0xf]
  %v402 = vld [vmem:[%s1 + $0x570] sm:$0xf]
  %v403 = vld [vmem:[%s1 + $0x574] sm:$0xf]
  %v404 = vld [vmem:[%s1 + $0x578] sm:$0xf]
  %v405 = vld [vmem:[%s1 + $0x57c] sm:$0xf]
  %v406 = vld [vmem:[%s1 + $0x580] sm:$0xf]
  %v407 = vld [vmem:[%s1 + $0x584] sm:$0xf]
  %v408 = vld [vmem:[%s1 + $0x588] sm:$0xf]
  %v409 = vld [vmem:[%s1 + $0x58c] sm:$0xf]
  %v410 = vld [vmem:[%s1 + $0x590] sm:$0xf]
  %v411 = vld [vmem:[%s1 + $0x594] sm:$0xf]
  %v412 = vld [vmem:[%s1 + $0x598] sm:$0xf]
  %v413 = vld [vmem:[%s1 + $0x59c] sm:$0xf]
  %v414 = vld [vmem:[%s1 + $0x5a0] sm:$0xf]
  %v415 = vld [vmem:[%s1 + $0x5a4] sm:$0xf]
  %v416 = vld [vmem:[%s1 + $0x5a8] sm:$0xf]
  %v417 = vld [vmem:[%s1 + $0x5ac] sm:$0xf]
  %v418 = vld [vmem:[%s1 + $0x5b0] sm:$0xf]
  %v419 = vld [vmem:[%s1 + $0x5b4] sm:$0xf]
  %v420 = vld [vmem:[%s1 + $0x5b8] sm:$0xf]
  %v421 = vld [vmem:[%s1 + $0x5bc] sm:$0xf]
  %v422 = vld [vmem:[%s1 + $0x5c0] sm:$0xf]
  %v423 = vld [vmem:[%s1 + $0x5c4] sm:$0xf]
  %v424 = vld [vmem:[%s1 + $0x5c8] sm:$0xf]
  %v425 = vld [vmem:[%s1 + $0x5cc] sm:$0xf]
  %v426 = vld [vmem:[%s1 + $0x5d0] sm:$0xf]
  %v427 = vld [vmem:[%s1 + $0x5d4] sm:$0xf]
  %v428 = vld [vmem:[%s1 + $0x5d8] sm:$0xf]
  %v429 = vld [vmem:[%s1 + $0x5dc] sm:$0xf]
  %v430 = vld [vmem:[%s1 + $0x5e0] sm:$0xf]
  %v431 = vld [vmem:[%s1 + $0x5e4] sm:$0xf]
  %v432 = vld [vmem:[%s1 + $0x5e8] sm:$0xf]
  %v433 = vld [vmem:[%s1 + $0x5ec] sm:$0xf]
  %v434 = vld [vmem:[%s1 + $0x5f0] sm:$0xf]
  %v435 = vld [vmem:[%s1 + $0x5f4] sm:$0xf]
  %v436 = vld [vmem:[%s1 + $0x5f8] sm:$0xf]
  %v437 = vld [vmem:[%s1 + $0x5fc] sm:$0xf]
  %v438 = vld [vmem:[%s1 + $0x600] sm:$0xf]
  %v439 = vld [vmem:[%s1 + $0x604] sm:$0xf]
  %v440 = vld [vmem:[%s1 + $0x608] sm:$0xf]
  %v441 = vld [vmem:[%s1 + $0x60c] sm:$0xf]
  %v442 = vld [vmem:[%s1 + $0x610] sm:$0xf]
  %v443 = vld [vmem:[%s1 + $0x614] sm:$0xf]
  %v444 = vld [vmem:[%s1 + $0x618] sm:$0xf]
  %v445 = vld [vmem:[%s1 + $0x61c] sm:$0xf]
  %v446 = vld [vmem:[%s1 + $0x620] sm:$0xf]
  %v447 = vld [vmem:[%s1 + $0x624] sm:$0xf]
  %v448 = vld [vmem:[%s1 + $0x628] sm:$0xf]
  %v449 = vld [vmem:[%s1 + $0x62c] sm:$0xf]
  %v450 = vld [vmem:[%s1 + $0x630] sm:$0xf]
  %v451 = vld [vmem:[%s1 + $0x634] sm:$0xf]
  %v452 = vld [vmem:[%s1 + $0x638] sm:$0xf]
  %v453 = vld [vmem:[%s1 + $0x63c] sm:$0xf]
  %v454 = vld [vmem:[%s1 + $0x640] sm:$0xf]
  %v455 = vld [vmem:[%s1 + $0x644] sm:$0xf]
  %v456 = vld [vmem:[%s1 + $0x648] sm:$0xf]
  %v457 = vld [vmem:[%s1 + $0x64c] sm:$0xf]
  %v458 = vld [vmem:[%s1 + $0x650] sm:$0xf]
  %v459 = vld [vmem:[%s1 + $0x654] sm:$0xf]
  %v460 = vld [vmem:[%s1 + $0x658] sm:$0xf]
  %v461 = vld [vmem:[%s1 + $0x65c] sm:$0xf]
  %v462 = vld [vmem:[%s1 + $0x660] sm:$0xf]
  %v463 = vld [vmem:[%s1 + $0x664] sm:$0xf]
  %v464 = vld [vmem:[%s1 + $0x668] sm:$0xf]
  %v465 = vld [vmem:[%s1 + $0x66c] sm:$0xf]
  %v466 = vld [vmem:[%s1 + $0x670] sm:$0xf]
  %v467 = vld [vmem:[%s1 + $0x674] sm:$0xf]
  %v468 = vld [vmem:[%s1 + $0x678] sm:$0xf]
  %v469 = vld [vmem:[%s1 + $0x67c] sm:$0xf]
  %v470 = vld [vmem:[%s1 + $0x680] sm:$0xf]
  %v471 = vld [vmem:[%s1 + $0x684] sm:$0xf]
  %v472 = vld [vmem:[%s1 + $0x688] sm:$0xf]
  %v473 = vld [vmem:[%s1 + $0x68c] sm:$0xf]
  %v474 = vld [vmem:[%s1 + $0x690] sm:$0xf]
  %v475 = vld [vmem:[%s1 + $0x694] sm:$0xf]
  %v476 = vld [vmem:[%s1 + $0x698] sm:$0xf]
  %v477 = vld [vmem:[%s1 + $0x69c] sm:$0xf]
  %v478 = vld [vmem:[%s1 + $0x6a0] sm:$0xf]
  %v479 = vld [vmem:[%s1 + $0x6a4] sm:$0xf]
  %v480 = vld [vmem:[%s1 + $0x6a8] sm:$0xf]
  %v481 = vld [vmem:[%s1 + $0x6ac] sm:$0xf]
  %v482 = vld [vmem:[%s1 + $0x6b0] sm:$0xf]
  %v483 = vld [vmem:[%s1 + $0x6b4] sm:$0xf]
  %v484 = vld [vmem:[%s1 + $0x6b8] sm:$0xf]
  %v485 = vld [vmem:[%s1 + $0x6bc] sm:$0xf]
  %v486 = vld [vmem:[%s1 + $0x6c0] sm:$0xf]
  %v487 = vld [vmem:[%s1 + $0x6c4] sm:$0xf]
  %v488 = vld [vmem:[%s1 + $0x6c8] sm:$0xf]
  %v489 = vld [vmem:[%s1 + $0x6cc] sm:$0xf]
  %v490 = vld [vmem:[%s1 + $0x6d0] sm:$0xf]
  %v491 = vld [vmem:[%s1 + $0x6d4] sm:$0xf]
  %v492 = vld [vmem:[%s1 + $0x6d8] sm:$0xf]
  %v493 = vld [vmem:[%s1 + $0x6dc] sm:$0xf]
  %v494 = vld [vmem:[%s1 + $0x6e0] sm:$0xf]
  %v495 = vld [vmem:[%s1 + $0x6e4] sm:$0xf]
  %v496 = vld [vmem:[%s1 + $0x6e8] sm:$0xf]
  %v497 = vld [vmem:[%s1 + $0x6ec] sm:$0xf]
  %v498 = vld [vmem:[%s1 + $0x6f0] sm:$0xf]
  %v499 = vld [vmem:[%s1 + $0x6f4] sm:$0xf]
  %v500 = vld [vmem:[%s1 + $0x6f8] sm:$0xf]
  %v501 = vld [vmem:[%s1 + $0x6fc] sm:$0xf]
  %v502 = vld [vmem:[%s1 + $0x700] sm:$0xf]
  %v503 = vld [vmem:[%s1 + $0x704] sm:$0xf]
  %v504 = vld [vmem:[%s1 + $0x708] sm:$0xf]
  %v505 = vld [vmem:[%s1 + $0x70c] sm:$0xf]
  %v506 = vld [vmem:[%s1 + $0x710] sm:$0xf]
  %v507 = vld [vmem:[%s1 + $0x714] sm:$0xf]
  %v508 = vld [vmem:[%s1 + $0x718] sm:$0xf]
  %v509 = vld [vmem:[%s1 + $0x71c] sm:$0xf]
  %v510 = vld [vmem:[%s1 + $0x720] sm:$0xf]
  %v511 = vld [vmem:[%s1 + $0x724] sm:$0xf]
  %v512 = vld [vmem:[%s1 + $0x728] sm:$0xf]
  %v513 = vld [vmem:[%s1 + $0x72c] sm:$0xf]
  %v514 = vld [vmem:[%s1 + $0x730] sm:$0xf]
  %v515 = vld [vmem:[%s1 + $0x734] sm:$0xf]
  %v516 = vld [vmem:[%s1 + $0x738] sm:$0xf]
  %v517 = vld [vmem:[%s1 + $0x73c] sm:$0xf]
  %v518 = vld [vmem:[%s1 + $0x740] sm:$0xf]
  %v519 = vld [vmem:[%s1 + $0x744] sm:$0xf]
  %v520 = vld [vmem:[%s1 + $0x748] sm:$0xf]
  %v521 = vld [vmem:[%s1 + $0x74c] sm:$0xf]
  %v522 = vld [vmem:[%s1 + $0x750] sm:$0xf]
  %v523 = vld [vmem:[%s1 + $0x754] sm:$0xf]
  %v524 = vld [vmem:[%s1 + $0x758] sm:$0xf]
  %v525 = vld [vmem:[%s1 + $0x75c] sm:$0xf]
  %v526 = vld [vmem:[%s1 + $0x760] sm:$0xf]
  %v527 = vld [vmem:[%s1 + $0x764] sm:$0xf]
  %v528 = vld [vmem:[%s1 + $0x768] sm:$0xf]
  %v529 = vld [vmem:[%s1 + $0x76c] sm:$0xf]
  %v530 = vld [vmem:[%s1 + $0x770] sm:$0xf]
  %v531 = vld [vmem:[%s1 + $0x774] sm:$0xf]
  %v532 = vld [vmem:[%s1 + $0x778] sm:$0xf]
  %v533 = vld [vmem:[%s1 + $0x77c] sm:$0xf]
  %v534 = vld [vmem:[%s1 + $0x780] sm:$0xf]
  %v535 = vld [vmem:[%s1 + $0x784] sm:$0xf]
  %v536 = vld [vmem:[%s1 + $0x788] sm:$0xf]
  %v537 = vld [vmem:[%s1 + $0x78c] sm:$0xf]
  %v538 = vld [vmem:[%s1 + $0x790] sm:$0xf]
  %v539 = vld [vmem:[%s1 + $0x794] sm:$0xf]
  %v540 = vld [vmem:[%s1 + $0x798] sm:$0xf]
  %v541 = vld [vmem:[%s1 + $0x79c] sm:$0xf]
  %v542 = vld [vmem:[%s1 + $0x7a0] sm:$0xf]
  %v543 = vld [vmem:[%s1 + $0x7a4] sm:$0xf]
  %v544 = vld [vmem:[%s1 + $0x7a8] sm:$0xf]
  %v545 = vld [vmem:[%s1 + $0x7ac] sm:$0xf]
  %v546 = vld [vmem:[%s1 + $0x7b0] sm:$0xf]
  %v547 = vld [vmem:[%s1 + $0x7b4] sm:$0xf]
  %v548 = vld [vmem:[%s1 + $0x7b8] sm:$0xf]
  %v549 = vld [vmem:[%s1 + $0x7bc] sm:$0xf]
  %v550 = vld [vmem:[%s1 + $0x7c0] sm:$0xf]
  %v551 = vld [vmem:[%s1 + $0x7c4] sm:$0xf]
  %v552 = vld [vmem:[%s1 + $0x7c8] sm:$0xf]
  %v553 = vld [vmem:[%s1 + $0x7cc] sm:$0xf]
  %v554 = vld [vmem:[%s1 + $0x7d0] sm:$0xf]
  %v555 = vld [vmem:[%s1 + $0x7d4] sm:$0xf]
  %v556 = vld [vmem:[%s1 + $0x7d8] sm:$0xf]
  %v557 = vld [vmem:[%s1 + $0x7dc] sm:$0xf]
  %v558 = vld [vmem:[%s1 + $0x7e0] sm:$0xf]
  %v559 = vld [vmem:[%s1 + $0x7e4] sm:$0xf]
  %v560 = vld [vmem:[%s1 + $0x7e8] sm:$0xf]
  %v561 = vld [vmem:[%s1 + $0x7ec] sm:$0xf]
  %v562 = vld [vmem:[%s1 + $0x7f0] sm:$0xf]
  %v563 = vld [vmem:[%s1 + $0x7f4] sm:$0xf]
  %v564 = vld [vmem:[%s1 + $0x7f8] sm:$0xf]
  %v565 = vld [vmem:[%s1 + $0x7fc] sm:$0xf]
  %v566 = vld [vmem:[%s1 + $0x800] sm:$0xf]
  %v567 = vld [vmem:[%s1 + $0x804] sm:$0xf]
  %v568 = vld [vmem:[%s1 + $0x808] sm:$0xf]
  %v569 = vld [vmem:[%s1 + $0x80c] sm:$0xf]
  %v570 = vld [vmem:[%s1 + $0x810] sm:$0xf]
  %v571 = vld [vmem:[%s1 + $0x814] sm:$0xf]
  %v572 = vld [vmem:[%s1 + $0x818] sm:$0xf]
  %v573 = vld [vmem:[%s1 + $0x81c] sm:$0xf]
  %v574 = vld [vmem:[%s1 + $0x820] sm:$0xf]
  %v575 = vld [vmem:[%s1 + $0x824] sm:$0xf]
  %v576 = vld [vmem:[%s1 + $0x828] sm:$0xf]
  %v577 = vld [vmem:[%s1 + $0x82c] sm:$0xf]
  %v578 = vld [vmem:[%s1 + $0x830] sm:$0xf]
  %v579 = vld [vmem:[%s1 + $0x834] sm:$0xf]
  %v580 = vld [vmem:[%s1 + $0x838] sm:$0xf]
  %v581 = vld [vmem:[%s1 + $0x83c] sm:$0xf]
  %v582 = vld [vmem:[%s1 + $0x840] sm:$0xf]
  %v583 = vld [vmem:[%s1 + $0x844] sm:$0xf]
  %v584 = vld [vmem:[%s1 + $0x848] sm:$0xf]
  %v585 = vld [vmem:[%s1 + $0x84c] sm:$0xf]
  %v586 = vld [vmem:[%s1 + $0x850] sm:$0xf]
  %v587 = vld [vmem:[%s1 + $0x854] sm:$0xf]
  %v588 = vld [vmem:[%s1 + $0x858] sm:$0xf]
  %v589 = vld [vmem:[%s1 + $0x85c] sm:$0xf]
  %v590 = vld [vmem:[%s1 + $0x860] sm:$0xf]
  %v591 = vld [vmem:[%s1 + $0x864] sm:$0xf]
  %v592 = vld [vmem:[%s1 + $0x868] sm:$0xf]
  %v593 = vld [vmem:[%s1 + $0x86c] sm:$0xf]
  %v594 = vld [vmem:[%s1 + $0x870] sm:$0xf]
  %v595 = vld [vmem:[%s1 + $0x874] sm:$0xf]
  %v596 = vld [vmem:[%s1 + $0x878] sm:$0xf]
  %v597 = vld [vmem:[%s1 + $0x87c] sm:$0xf]
  %v598 = vld [vmem:[%s1 + $0x880] sm:$0xf]
  %v599 = vld [vmem:[%s1 + $0x884] sm:$0xf]
  %v600 = vld [vmem:[%s1 + $0x888] sm:$0xf]
  %v601 = vld [vmem:[%s1 + $0x88c] sm:$0xf]
  %v602 = vld [vmem:[%s1 + $0x890] sm:$0xf]
  %v603 = vld [vmem:[%s1 + $0x894] sm:$0xf]
  %v604 = vld [vmem:[%s1 + $0x898] sm:$0xf]
  %v605 = vld [vmem:[%s1 + $0x89c] sm:$0xf]
  %v606 = vld [vmem:[%s1 + $0x8a0] sm:$0xf]
  %v607 = vld [vmem:[%s1 + $0x8a4] sm:$0xf]
  %v608 = vld [vmem:[%s1 + $0x8a8] sm:$0xf]
  %v609 = vld [vmem:[%s1 + $0x8ac] sm:$0xf]
  %v610 = vld [vmem:[%s1 + $0x8b0] sm:$0xf]
  %v611 = vld [vmem:[%s1 + $0x8b4] sm:$0xf]
  %v612 = vld [vmem:[%s1 + $0x8b8] sm:$0xf]
  %v613 = vld [vmem:[%s1 + $0x8bc] sm:$0xf]
  %v614 = vld [vmem:[%s1 + $0x8c0] sm:$0xf]
  %v615 = vld [vmem:[%s1 + $0x8c4] sm:$0xf]
  %v616 = vld [vmem:[%s1 + $0x8c8] sm:$0xf]
  %v617 = vld [vmem:[%s1 + $0x8cc] sm:$0xf]
  %v618 = vld [vmem:[%s1 + $0x8d0] sm:$0xf]
  %v619 = vld [vmem:[%s1 + $0x8d4] sm:$0xf]
  %v620 = vld [vmem:[%s1 + $0x8d8] sm:$0xf]
  %v621 = vld [vmem:[%s1 + $0x8dc] sm:$0xf]
  %v622 = vld [vmem:[%s1 + $0x8e0] sm:$0xf]
  %v623 = vld [vmem:[%s1 + $0x8e4] sm:$0xf]
  %v624 = vld [vmem:[%s1 + $0x8e8] sm:$0xf]
  %v625 = vld [vmem:[%s1 + $0x8ec] sm:$0xf]
  %v626 = vld [vmem:[%s1 + $0x8f0] sm:$0xf]
  %v627 = vld [vmem:[%s1 + $0x8f4] sm:$0xf]
  %v628 = vld [vmem:[%s1 + $0x8f8] sm:$0xf]
  %v629 = vld [vmem:[%s1 + $0x8fc] sm:$0xf]
  %v630 = vld [vmem:[%s1 + $0x900] sm:$0xf]
  %v631 = vld [vmem:[%s1 + $0x904] sm:$0xf]
  %v632 = vld [vmem:[%s1 + $0x908] sm:$0xf]
  %v633 = vld [vmem:[%s1 + $0x90c] sm:$0xf]
  %v634 = vld [vmem:[%s1 + $0x910] sm:$0xf]
  %v635 = vld [vmem:[%s1 + $0x914] sm:$0xf]
  %v636 = vld [vmem:[%s1 + $0x918] sm:$0xf]
  %v637 = vld [vmem:[%s1 + $0x91c] sm:$0xf]
  %v638 = vld [vmem:[%s1 + $0x920] sm:$0xf]
  %v639 = vld [vmem:[%s1 + $0x924] sm:$0xf]
  %v640 = vld [vmem:[%s1 + $0x928] sm:$0xf]
  %v641 = vld [vmem:[%s1 + $0x92c] sm:$0xf]
  %v642 = vld [vmem:[%s1 + $0x930] sm:$0xf]
  %v643 = vld [vmem:[%s1 + $0x934] sm:$0xf]
  %v644 = vld [vmem:[%s1 + $0x938] sm:$0xf]
  %v645 = vld [vmem:[%s1 + $0x93c] sm:$0xf]
  %v646 = vld [vmem:[%s1 + $0x940] sm:$0xf]
  %v647 = vld [vmem:[%s1 + $0x944] sm:$0xf]
  %v648 = vld [vmem:[%s1 + $0x948] sm:$0xf]
  %v649 = vld [vmem:[%s1 + $0x94c] sm:$0xf]
  %v650 = vld [vmem:[%s1 + $0x950] sm:$0xf]
  %v651 = vld [vmem:[%s1 + $0x954] sm:$0xf]
  %v652 = vld [vmem:[%s1 + $0x958] sm:$0xf]
  %v653 = vld [vmem:[%s1 + $0x95c] sm:$0xf]
  %v654 = vld [vmem:[%s1 + $0x960] sm:$0xf]
  %v655 = vld [vmem:[%s1 + $0x964] sm:$0xf]
  %v656 = vld [vmem:[%s1 + $0x968] sm:$0xf]
  %v657 = vld [vmem:[%s1 + $0x96c] sm:$0xf]
  %v658 = vld [vmem:[%s1 + $0x970] sm:$0xf]
  %v659 = vld [vmem:[%s1 + $0x974] sm:$0xf]
  %v660 = vld [vmem:[%s1 + $0x978] sm:$0xf]
  %v661 = vld [vmem:[%s1 + $0x97c] sm:$0xf]
  %v662 = vld [vmem:[%s1 + $0x980] sm:$0xf]
  %v663 = vld [vmem:[%s1 + $0x984] sm:$0xf]
  %v664 = vld [vmem:[%s1 + $0x988] sm:$0xf]
  %v665 = vld [vmem:[%s1 + $0x98c] sm:$0xf]
  %v666 = vld [vmem:[%s1 + $0x990] sm:$0xf]
  %v667 = vld [vmem:[%s1 + $0x994] sm:$0xf]
  %v668 = vld [vmem:[%s1 + $0x998] sm:$0xf]
  %v669 = vld [vmem:[%s1 + $0x99c] sm:$0xf]
  %v670 = vld [vmem:[%s1 + $0x9a0] sm:$0xf]
  %v671 = vld [vmem:[%s1 + $0x9a4] sm:$0xf]
  %v672 = vld [vmem:[%s1 + $0x9a8] sm:$0xf]
  %v673 = vld [vmem:[%s1 + $0x9ac] sm:$0xf]
  %v674 = vld [vmem:[%s1 + $0x9b0] sm:$0xf]
  %v675 = vld [vmem:[%s1 + $0x9b4] sm:$0xf]
  %v676 = vld [vmem:[%s1 + $0x9b8] sm:$0xf]
  %v677 = vld [vmem:[%s1 + $0x9bc] sm:$0xf]
  %v678 = vld [vmem:[%s1 + $0x9c0] sm:$0xf]
  %v679 = vld [vmem:[%s1 + $0x9c4] sm:$0xf]
  %v680 = vld [vmem:[%s1 + $0x9c8] sm:$0xf]
  %v681 = vld [vmem:[%s1 + $0x9cc] sm:$0xf]
  %v682 = vld [vmem:[%s1 + $0x9d0] sm:$0xf]
  %v683 = vld [vmem:[%s1 + $0x9d4] sm:$0xf]
  %v684 = vld [vmem:[%s1 + $0x9d8] sm:$0xf]
  %v685 = vld [vmem:[%s1 + $0x9dc] sm:$0xf]
  %v686 = vld [vmem:[%s1 + $0x9e0] sm:$0xf]
  %v687 = vld [vmem:[%s1 + $0x9e4] sm:$0xf]
  %v688 = vld [vmem:[%s1 + $0x9e8] sm:$0xf]
  %v689 = vld [vmem:[%s1 + $0x9ec] sm:$0xf]
  %v690 = vld [vmem:[%s1 + $0x9f0] sm:$0xf]
  %v691 = vld [vmem:[%s1 + $0x9f4] sm:$0xf]
  %v692 = vld [vmem:[%s1 + $0x9f8] sm:$0xf]
  %v693 = vld [vmem:[%s1 + $0x9fc] sm:$0xf]
  %v694 = vld [vmem:[%s1 + $0xa00] sm:$0xf]
  %v695 = vld [vmem:[%s1 + $0xa04] sm:$0xf]
  %v696 = vld [vmem:[%s1 + $0xa08] sm:$0xf]
  %v697 = vld [vmem:[%s1 + $0xa0c] sm:$0xf]
  %v698 = vld [vmem:[%s1 + $0xa10] sm:$0xf]
  %v699 = vld [vmem:[%s1 + $0xa14] sm:$0xf]
  %v700 = vld [vmem:[%s1 + $0xa18] sm:$0xf]
  %v701 = vld [vmem:[%s1 + $0xa1c] sm:$0xf]
  %v702 = vld [vmem:[%s1 + $0xa20] sm:$0xf]
  %v703 = vld [vmem:[%s1 + $0xa24] sm:$0xf]
  %v704 = vld [vmem:[%s1 + $0xa28] sm:$0xf]
  %v705 = vld [vmem:[%s1 + $0xa2c] sm:$0xf]
  %v706 = vld [vmem:[%s1 + $0xa30] sm:$0xf]
  %v707 = vld [vmem:[%s1 + $0xa34] sm:$0xf]
  %v708 = vld [vmem:[%s1 + $0xa38] sm:$0xf]
  %v709 = vld [vmem:[%s1 + $0xa3c] sm:$0xf]
  %v710 = vld [vmem:[%s1 + $0xa40] sm:$0xf]
  %v711 = vld [vmem:[%s1 + $0xa44] sm:$0xf]
  %v712 = vld [vmem:[%s1 + $0xa48] sm:$0xf]
  %v713 = vld [vmem:[%s1 + $0xa4c] sm:$0xf]
  %v714 = vld [vmem:[%s1 + $0xa50] sm:$0xf]
  %v715 = vld [vmem:[%s1 + $0xa54] sm:$0xf]
  %v716 = vld [vmem:[%s1 + $0xa58] sm:$0xf]
  %v717 = vld [vmem:[%s1 + $0xa5c] sm:$0xf]
  %v718 = vld [vmem:[%s1 + $0xa60] sm:$0xf]
  %v719 = vld [vmem:[%s1 + $0xa64] sm:$0xf]
  %v720 = vld [vmem:[%s1 + $0xa68] sm:$0xf]
  %v721 = vld [vmem:[%s1 + $0xa6c] sm:$0xf]
  %v722 = vld [vmem:[%s1 + $0xa70] sm:$0xf]
  %v723 = vld [vmem:[%s1 + $0xa74] sm:$0xf]
  %v724 = vld [vmem:[%s1 + $0xa78] sm:$0xf]
  %v725 = vld [vmem:[%s1 + $0xa7c] sm:$0xf]
  %v726 = vld [vmem:[%s1 + $0xa80] sm:$0xf]
  %v727 = vld [vmem:[%s1 + $0xa84] sm:$0xf]
  %v728 = vld [vmem:[%s1 + $0xa88] sm:$0xf]
  %v729 = vld [vmem:[%s1 + $0xa8c] sm:$0xf]
  %v730 = vld [vmem:[%s1 + $0xa90] sm:$0xf]
  %v731 = vld [vmem:[%s1 + $0xa94] sm:$0xf]
  %v732 = vld [vmem:[%s1 + $0xa98] sm:$0xf]
  %v733 = vld [vmem:[%s1 + $0xa9c] sm:$0xf]
  %v734 = vld [vmem:[%s1 + $0xaa0] sm:$0xf]
  %v735 = vld [vmem:[%s1 + $0xaa4] sm:$0xf]
  %v736 = vld [vmem:[%s1 + $0xaa8] sm:$0xf]
  %v737 = vld [vmem:[%s1 + $0xaac] sm:$0xf]
  %v738 = vld [vmem:[%s1 + $0xab0] sm:$0xf]
  %v739 = vld [vmem:[%s1 + $0xab4] sm:$0xf]
  %v740 = vld [vmem:[%s1 + $0xab8] sm:$0xf]
  %v741 = vld [vmem:[%s1 + $0xabc] sm:$0xf]
  %v742 = vld [vmem:[%s1 + $0xac0] sm:$0xf]
  %v743 = vld [vmem:[%s1 + $0xac4] sm:$0xf]
  %v744 = vld [vmem:[%s1 + $0xac8] sm:$0xf]
  %v745 = vld [vmem:[%s1 + $0xacc] sm:$0xf]
  %v746 = vld [vmem:[%s1 + $0xad0] sm:$0xf]
  %v747 = vld [vmem:[%s1 + $0xad4] sm:$0xf]
  %v748 = vld [vmem:[%s1 + $0xad8] sm:$0xf]
  %v749 = vld [vmem:[%s1 + $0xadc] sm:$0xf]
  %v750 = vld [vmem:[%s1 + $0xae0] sm:$0xf]
  %v751 = vld [vmem:[%s1 + $0xae4] sm:$0xf]
  %v752 = vld [vmem:[%s1 + $0xae8] sm:$0xf]
  %v753 = vld [vmem:[%s1 + $0xaec] sm:$0xf]
  %v754 = vld [vmem:[%s1 + $0xaf0] sm:$0xf]
  %v755 = vld [vmem:[%s1 + $0xaf4] sm:$0xf]
  %v756 = vld [vmem:[%s1 + $0xaf8] sm:$0xf]
  %v757 = vld [vmem:[%s1 + $0xafc] sm:$0xf]
  %v758 = vld [vmem:[%s1 + $0xb00] sm:$0xf]
  %v759 = vld [vmem:[%s1 + $0xb04] sm:$0xf]
  %v760 = vld [vmem:[%s1 + $0xb08] sm:$0xf]
  %v761 = vld [vmem:[%s1 + $0xb0c] sm:$0xf]
  %v762 = vld [vmem:[%s1 + $0xb10] sm:$0xf]
  %v763 = vld [vmem:[%s1 + $0xb14] sm:$0xf]
  %v764 = vld [vmem:[%s1 + $0xb18] sm:$0xf]
  %v765 = vld [vmem:[%s1 + $0xb1c] sm:$0xf]
  %v766 = vld [vmem:[%s1 + $0xb20] sm:$0xf]
  %v767 = vld [vmem:[%s1 + $0xb24] sm:$0xf]
  %v768 = vld [vmem:[%s1 + $0xb28] sm:$0xf]
  %v769 = vld [vmem:[%s1 + $0xb2c] sm:$0xf]
  %v770 = vld [vmem:[%s1 + $0xb30] sm:$0xf]
  %v771 = vld [vmem:[%s1 + $0xb34] sm:$0xf]
  %v772 = vld [vmem:[%s1 + $0xb38] sm:$0xf]
  %v773 = vld [vmem:[%s1 + $0xb3c] sm:$0xf]
  %v774 = vld [vmem:[%s1 + $0xb40] sm:$0xf]
  %v775 = vld [vmem:[%s1 + $0xb44] sm:$0xf]
  %v776 = vld [vmem:[%s1 + $0xb48] sm:$0xf]
  %v777 = vld [vmem:[%s1 + $0xb4c] sm:$0xf]
  %v778 = vld [vmem:[%s1 + $0xb50] sm:$0xf]
  %v779 = vld [vmem:[%s1 + $0xb54] sm:$0xf]
  %v780 = vld [vmem:[%s1 + $0xb58] sm:$0xf]
  %v781 = vld [vmem:[%s1 + $0xb5c] sm:$0xf]
  %v782 = vld [vmem:[%s1 + $0xb60] sm:$0xf]
  %v783 = vld [vmem:[%s1 + $0xb64] sm:$0xf]
  %v784 = vld [vmem:[%s1 + $0xb68] sm:$0xf]
  %v785 = vld [vmem:[%s1 + $0xb6c] sm:$0xf]
  %v786 = vld [vmem:[%s1 + $0xb70] sm:$0xf]
  %v787 = vld [vmem:[%s1 + $0xb74] sm:$0xf]
  %v788 = vld [vmem:[%s1 + $0xb78] sm:$0xf]
  %v789 = vld [vmem:[%s1 + $0xb7c] sm:$0xf]
  %v790 = vld [vmem:[%s1 + $0xb80] sm:$0xf]
  %v791 = vld [vmem:[%s1 + $0xb84] sm:$0xf]
  %v792 = vld [vmem:[%s1 + $0xb88] sm:$0xf]
  %v793 = vld [vmem:[%s1 + $0xb8c] sm:$0xf]
  %v794 = vld [vmem:[%s1 + $0xb90] sm:$0xf]
  %v795 = vld [vmem:[%s1 + $0xb94] sm:$0xf]
  %v796 = vld [vmem:[%s1 + $0xb98] sm:$0xf]
  %v797 = vld [vmem:[%s1 + $0xb9c] sm:$0xf]
  %v798 = vld [vmem:[%s1 + $0xba0] sm:$0xf]
  %v799 = vld [vmem:[%s1 + $0xba4] sm:$0xf]
  %v800 = vld [vmem:[%s1 + $0xba8] sm:$0xf]
  %v801 = vld [vmem:[%s1 + $0xbac] sm:$0xf]
  %v802 = vld [vmem:[%s1 + $0xbb0] sm:$0xf]
  %v803 = vld [vmem:[%s1 + $0xbb4] sm:$0xf]
  %v804 = vld [vmem:[%s1 + $0xbb8] sm:$0xf]
  %v805 = vld [vmem:[%s1 + $0xbbc] sm:$0xf]
  %v806 = vld [vmem:[%s1 + $0xbc0] sm:$0xf]
  %v807 = vld [vmem:[%s1 + $0xbc4] sm:$0xf]
  %v808 = vld [vmem:[%s1 + $0xbc8] sm:$0xf]
  %v809 = vld [vmem:[%s1 + $0xbcc] sm:$0xf]
  %v810 = vld [vmem:[%s1 + $0xbd0] sm:$0xf]
  %v811 = vld [vmem:[%s1 + $0xbd4] sm:$0xf]
  %v812 = vld [vmem:[%s1 + $0xbd8] sm:$0xf]
  %v813 = vld [vmem:[%s1 + $0xbdc] sm:$0xf]
  %v814 = vld [vmem:[%s1 + $0xbe0] sm:$0xf]
  %v815 = vld [vmem:[%s1 + $0xbe4] sm:$0xf]
  %v816 = vld [vmem:[%s1 + $0xbe8] sm:$0xf]
  %v817 = vld [vmem:[%s1 + $0xbec] sm:$0xf]
  %v818 = vld [vmem:[%s1 + $0xbf0] sm:$0xf]
  %v819 = vld [vmem:[%s1 + $0xbf4] sm:$0xf]
  %v820 = vld [vmem:[%s1 + $0xbf8] sm:$0xf]
  %v821 = vld [vmem:[%s1 + $0xbfc] sm:$0xf]
  %v822 = vld [vmem:[%s1 + $0xc00] sm:$0xf]
  %v823 = vld [vmem:[%s1 + $0xc04] sm:$0xf]
  %v824 = vld [vmem:[%s1 + $0xc08] sm:$0xf]
  %v825 = vld [vmem:[%s1 + $0xc0c] sm:$0xf]
  %v826 = vld [vmem:[%s1 + $0xc10] sm:$0xf]
  %v827 = vld [vmem:[%s1 + $0xc14] sm:$0xf]
  %v828 = vld [vmem:[%s1 + $0xc18] sm:$0xf]
  %v829 = vld [vmem:[%s1 + $0xc1c] sm:$0xf]
  %v830 = vld [vmem:[%s1 + $0xc20] sm:$0xf]
  %v831 = vld [vmem:[%s1 + $0xc24] sm:$0xf]
  %v832 = vld [vmem:[%s1 + $0xc28] sm:$0xf]
  %v833 = vld [vmem:[%s1 + $0xc2c] sm:$0xf]
  %v834 = vld [vmem:[%s1 + $0xc30] sm:$0xf]
  %v835 = vld [vmem:[%s1 + $0xc34] sm:$0xf]
  %v836 = vld [vmem:[%s1 + $0xc38] sm:$0xf]
  %v837 = vld [vmem:[%s1 + $0xc3c] sm:$0xf]
  %v838 = vld [vmem:[%s1 + $0xc40] sm:$0xf]
  %v839 = vld [vmem:[%s1 + $0xc44] sm:$0xf]
  %v840 = vld [vmem:[%s1 + $0xc48] sm:$0xf]
  %v841 = vld [vmem:[%s1 + $0xc4c] sm:$0xf]
  %v842 = vld [vmem:[%s1 + $0xc50] sm:$0xf]
  %v843 = vld [vmem:[%s1 + $0xc54] sm:$0xf]
  %v844 = vld [vmem:[%s1 + $0xc58] sm:$0xf]
  %v845 = vld [vmem:[%s1 + $0xc5c] sm:$0xf]
  %v846 = vld [vmem:[%s1 + $0xc60] sm:$0xf]
  %v847 = vld [vmem:[%s1 + $0xc64] sm:$0xf]
  %v848 = vld [vmem:[%s1 + $0xc68] sm:$0xf]
  %v849 = vld [vmem:[%s1 + $0xc6c] sm:$0xf]
  %v850 = vld [vmem:[%s1 + $0xc70] sm:$0xf]
  %v851 = vld [vmem:[%s1 + $0xc74] sm:$0xf]
  %v852 = vld [vmem:[%s1 + $0xc78] sm:$0xf]
  %v853 = vld [vmem:[%s1 + $0xc7c] sm:$0xf]
  %v854 = vld [vmem:[%s1 + $0xc80] sm:$0xf]
  %v855 = vld [vmem:[%s1 + $0xc84] sm:$0xf]
  %v856 = vld [vmem:[%s1 + $0xc88] sm:$0xf]
  %v857 = vld [vmem:[%s1 + $0xc8c] sm:$0xf]
  %v858 = vld [vmem:[%s1 + $0xc90] sm:$0xf]
  %v859 = vld [vmem:[%s1 + $0xc94] sm:$0xf]
  %v860 = vld [vmem:[%s1 + $0xc98] sm:$0xf]
  %v861 = vld [vmem:[%s1 + $0xc9c] sm:$0xf]
  %v862 = vld [vmem:[%s1 + $0xca0] sm:$0xf]
  %v863 = vld [vmem:[%s1 + $0xca4] sm:$0xf]
  %v864 = vld [vmem:[%s1 + $0xca8] sm:$0xf]
  %v865 = vld [vmem:[%s1 + $0xcac] sm:$0xf]
  %v866 = vld [vmem:[%s1 + $0xcb0] sm:$0xf]
  %v867 = vld [vmem:[%s1 + $0xcb4] sm:$0xf]
  %v868 = vld [vmem:[%s1 + $0xcb8] sm:$0xf]
  %v869 = vld [vmem:[%s1 + $0xcbc] sm:$0xf]
  %v870 = vld [vmem:[%s1 + $0xcc0] sm:$0xf]
  %v871 = vld [vmem:[%s1 + $0xcc4] sm:$0xf]
  %v872 = vld [vmem:[%s1 + $0xcc8] sm:$0xf]
  %v873 = vld [vmem:[%s1 + $0xccc] sm:$0xf]
  %v874 = vld [vmem:[%s1 + $0xcd0] sm:$0xf]
  %v875 = vld [vmem:[%s1 + $0xcd4] sm:$0xf]
  %v876 = vld [vmem:[%s1 + $0xcd8] sm:$0xf]
  %v877 = vld [vmem:[%s1 + $0xcdc] sm:$0xf]
  %v878 = vld [vmem:[%s1 + $0xce0] sm:$0xf]
  %v879 = vld [vmem:[%s1 + $0xce4] sm:$0xf]
  %v880 = vld [vmem:[%s1 + $0xce8] sm:$0xf]
  %v881 = vld [vmem:[%s1 + $0xcec] sm:$0xf]
  %v882 = vld [vmem:[%s1 + $0xcf0] sm:$0xf]
  %v883 = vld [vmem:[%s1 + $0xcf4] sm:$0xf]
  %v884 = vld [vmem:[%s1 + $0xcf8] sm:$0xf]
  %v885 = vld [vmem:[%s1 + $0xcfc] sm:$0xf]
  %v886 = vld [vmem:[%s1 + $0xd00] sm:$0xf]
  %v887 = vld [vmem:[%s1 + $0xd04] sm:$0xf]
  %v888 = vld [vmem:[%s1 + $0xd08] sm:$0xf]
  %v889 = vld [vmem:[%s1 + $0xd0c] sm:$0xf]
  %v890 = vld [vmem:[%s1 + $0xd10] sm:$0xf]
  %v891 = vld [vmem:[%s1 + $0xd14] sm:$0xf]
  %v892 = vld [vmem:[%s1 + $0xd18] sm:$0xf]
  %v893 = vld [vmem:[%s1 + $0xd1c] sm:$0xf]
  %v894 = vld [vmem:[%s2] sm:$0x1]
  %v896 = vlaneseq
  %v897 = vshrl.u32 %v896, 7
  %v898 = vsub.s32 0, %v897
  %v899 = vrot.slane %v894, %v898
  %v928 = vunpack.c.l.b16 %v27
  %v929 = vunpack.c.h.b16 %v27
  %v930 = vunpack.c.l.b16 %v28
  %v931 = vunpack.c.h.b16 %v28
  %v932 = vunpack.c.l.b16 %v29
  %v933 = vunpack.c.h.b16 %v29
  %v934 = vunpack.c.l.b16 %v30
  %v935 = vunpack.c.h.b16 %v30
  %v936 = vunpack.c.l.b16 %v31
  %v937 = vunpack.c.h.b16 %v31
  %v938 = vunpack.c.l.b16 %v32
  %v939 = vunpack.c.h.b16 %v32
  %v940 = vunpack.c.l.b16 %v33
  %v941 = vunpack.c.h.b16 %v33
  %v942 = vunpack.c.l.b16 %v34
  %v943 = vunpack.c.h.b16 %v34
  %v944 = vunpack.c.l.b16 %v35
  %v945 = vunpack.c.h.b16 %v35
  %v946 = vunpack.c.l.b16 %v36
  %v947 = vunpack.c.h.b16 %v36
  %v948 = vunpack.c.l.b16 %v37
  %v949 = vunpack.c.h.b16 %v37
  %v950 = vunpack.c.l.b16 %v38
  %v951 = vunpack.c.h.b16 %v38
  %v952 = vunpack.c.l.b16 %v39
  %v953 = vunpack.c.h.b16 %v39
  %v954 = vunpack.c.l.b16 %v40
  %v955 = vunpack.c.h.b16 %v40
  %v956 = vunpack.c.l.b16 %v41
  %v957 = vunpack.c.h.b16 %v41
  %v958 = vunpack.c.l.b16 %v42
  %v959 = vunpack.c.h.b16 %v42
  %v960 = vunpack.c.l.b16 %v43
  %v961 = vunpack.c.h.b16 %v43
  %v962 = vunpack.c.l.b16 %v44
  %v963 = vunpack.c.h.b16 %v44
  %v964 = vunpack.c.l.b16 %v45
  %v965 = vunpack.c.h.b16 %v45
  %v966 = vunpack.c.l.b16 %v46
  %v967 = vunpack.c.h.b16 %v46
  %v968 = vunpack.c.l.b16 %v47
  %v969 = vunpack.c.h.b16 %v47
  %v970 = vunpack.c.l.b16 %v48
  %v971 = vunpack.c.h.b16 %v48
  %v972 = vunpack.c.l.b16 %v49
  %v973 = vunpack.c.h.b16 %v49
  %v974 = vunpack.c.l.b16 %v50
  %v975 = vunpack.c.h.b16 %v50
  %v976 = vunpack.c.l.b16 %v51
  %v977 = vunpack.c.h.b16 %v51
  %v978 = vunpack.c.l.b16 %v52
  %v979 = vunpack.c.h.b16 %v52
  %v980 = vunpack.c.l.b16 %v53
  %v981 = vpack.c.b16 %v928, %v928
  %v982 = vpack.c.b16 %v929, %v929
  %v983 = vpack.c.b16 %v930, %v930
  %v984 = vpack.c.b16 %v931, %v931
  %v985 = vpack.c.b16 %v932, %v932
  %v986 = vpack.c.b16 %v933, %v933
  %v987 = vpack.c.b16 %v934, %v934
  %v988 = vpack.c.b16 %v935, %v935
  %v989 = vpack.c.b16 %v936, %v936
  %v990 = vpack.c.b16 %v937, %v937
  %v991 = vpack.c.b16 %v938, %v938
  %v992 = vpack.c.b16 %v939, %v939
  %v993 = vpack.c.b16 %v940, %v940
  %v994 = vpack.c.b16 %v941, %v941
  %v995 = vpack.c.b16 %v942, %v942
  %v996 = vpack.c.b16 %v943, %v943
  %v997 = vpack.c.b16 %v944, %v944
  %v998 = vpack.c.b16 %v945, %v945
  %v999 = vpack.c.b16 %v946, %v946
  %v1000 = vpack.c.b16 %v947, %v947
  %v1001 = vpack.c.b16 %v948, %v948
  %v1002 = vpack.c.b16 %v949, %v949
  %v1003 = vpack.c.b16 %v950, %v950
  %v1004 = vpack.c.b16 %v951, %v951
  %v1005 = vpack.c.b16 %v952, %v952
  %v1006 = vpack.c.b16 %v953, %v953
  %v1007 = vpack.c.b16 %v954, %v954
  %v1008 = vpack.c.b16 %v955, %v955
  %v1009 = vpack.c.b16 %v956, %v956
  %v1010 = vpack.c.b16 %v957, %v957
  %v1011 = vpack.c.b16 %v958, %v958
  %v1012 = vpack.c.b16 %v959, %v959
  %v1013 = vpack.c.b16 %v960, %v960
  %v1014 = vpack.c.b16 %v961, %v961
  %v1015 = vpack.c.b16 %v962, %v962
  %v1016 = vpack.c.b16 %v963, %v963
  %v1017 = vpack.c.b16 %v964, %v964
  %v1018 = vpack.c.b16 %v965, %v965
  %v1019 = vpack.c.b16 %v966, %v966
  %v1020 = vpack.c.b16 %v967, %v967
  %v1021 = vpack.c.b16 %v968, %v968
  %v1022 = vpack.c.b16 %v969, %v969
  %v1023 = vpack.c.b16 %v970, %v970
  %v1024 = vpack.c.b16 %v971, %v971
  %v1025 = vpack.c.b16 %v972, %v972
  %v1026 = vpack.c.b16 %v973, %v973
  %v1027 = vpack.c.b16 %v974, %v974
  %v1028 = vpack.c.b16 %v975, %v975
  %v1029 = vpack.c.b16 %v976, %v976
  %v1030 = vpack.c.b16 %v977, %v977
  %v1031 = vpack.c.b16 %v978, %v978
  %v1032 = vpack.c.b16 %v979, %v979
  %v1033 = vpack.c.b16 %v980, %v980
  %v1926 = vunpack.c.l.b16 %v54
  %v1927 = vunpack.c.l.b16 %v55
  %v1928 = vunpack.c.l.b16 %v56
  %v1929 = vunpack.c.l.b16 %v57
  %v1930 = vunpack.c.l.b16 %v58
  %v1931 = vunpack.c.l.b16 %v59
  %v1932 = vunpack.c.l.b16 %v60
  %v1933 = vunpack.c.l.b16 %v61
  %v1934 = vunpack.c.l.b16 %v62
  %v1935 = vunpack.c.l.b16 %v63
  %v1936 = vunpack.c.l.b16 %v64
  %v1937 = vunpack.c.l.b16 %v65
  %v1938 = vunpack.c.l.b16 %v66
  %v1939 = vunpack.c.l.b16 %v67
  %v1940 = vunpack.c.l.b16 %v68
  %v1941 = vunpack.c.l.b16 %v69
  %v1942 = vunpack.c.l.b16 %v70
  %v1943 = vunpack.c.l.b16 %v71
  %v1944 = vunpack.c.l.b16 %v72
  %v1945 = vunpack.c.l.b16 %v73
  %v1946 = vunpack.c.l.b16 %v74
  %v1947 = vunpack.c.l.b16 %v75
  %v1948 = vunpack.c.l.b16 %v76
  %v1949 = vunpack.c.l.b16 %v77
  %v1950 = vunpack.c.l.b16 %v78
  %v1951 = vunpack.c.l.b16 %v79
  %v1952 = vunpack.c.l.b16 %v80
  %v1953 = vunpack.c.l.b16 %v81
  %v1954 = vunpack.c.l.b16 %v82
  %v1955 = vunpack.c.l.b16 %v83
  %v1956 = vunpack.c.l.b16 %v84
  %v1957 = vunpack.c.l.b16 %v85
  %v1958 = vunpack.c.l.b16 %v86
  %v1959 = vunpack.c.l.b16 %v87
  %v1960 = vunpack.c.l.b16 %v88
  %v1961 = vunpack.c.l.b16 %v89
  %v1962 = vunpack.c.l.b16 %v90
  %v1963 = vunpack.c.l.b16 %v91
  %v1964 = vunpack.c.l.b16 %v92
  %v1965 = vunpack.c.l.b16 %v93
  %v1966 = vunpack.c.l.b16 %v94
  %v1967 = vunpack.c.l.b16 %v95
  %v1968 = vunpack.c.l.b16 %v96
  %v1969 = vunpack.c.l.b16 %v97
  %v1970 = vunpack.c.l.b16 %v98
  %v1971 = vunpack.c.l.b16 %v99
  %v1972 = vunpack.c.l.b16 %v100
  %v1973 = vunpack.c.l.b16 %v101
  %v1974 = vunpack.c.l.b16 %v102
  %v1975 = vunpack.c.l.b16 %v103
  %v1976 = vunpack.c.l.b16 %v104
  %v1977 = vunpack.c.l.b16 %v105
  %v1978 = vunpack.c.l.b16 %v106
  %v1979 = vunpack.c.l.b16 %v107
  %v1980 = vunpack.c.l.b16 %v108
  %v1981 = vunpack.c.l.b16 %v109
  %v1982 = vunpack.c.l.b16 %v110
  %v1983 = vunpack.c.l.b16 %v111
  %v1984 = vunpack.c.l.b16 %v112
  %v1985 = vunpack.c.l.b16 %v113
  %v1986 = vunpack.c.l.b16 %v114
  %v1987 = vunpack.c.l.b16 %v115
  %v1988 = vunpack.c.l.b16 %v116
  %v1989 = vunpack.c.l.b16 %v117
  %v1990 = vunpack.c.l.b16 %v118
  %v1991 = vunpack.c.l.b16 %v119
  %v1992 = vunpack.c.l.b16 %v120
  %v1993 = vunpack.c.l.b16 %v121
  %v1994 = vunpack.c.l.b16 %v122
  %v1995 = vunpack.c.l.b16 %v123
  %v1996 = vunpack.c.l.b16 %v124
  %v1997 = vunpack.c.l.b16 %v125
  %v1998 = vunpack.c.l.b16 %v126
  %v1999 = vunpack.c.l.b16 %v127
  %v2000 = vunpack.c.l.b16 %v128
  %v2001 = vunpack.c.l.b16 %v129
  %v2002 = vunpack.c.l.b16 %v130
  %v2003 = vunpack.c.l.b16 %v131
  %v2004 = vunpack.c.l.b16 %v132
  %v2005 = vunpack.c.l.b16 %v133
  %v2006 = vunpack.c.l.b16 %v134
  %v2007 = vunpack.c.l.b16 %v135
  %v2008 = vunpack.c.l.b16 %v136
  %v2009 = vunpack.c.l.b16 %v137
  %v2010 = vunpack.c.l.b16 %v138
  %v2011 = vunpack.c.l.b16 %v139
  %v2012 = vunpack.c.l.b16 %v140
  %v2013 = vunpack.c.l.b16 %v141
  %v2014 = vunpack.c.l.b16 %v142
  %v2015 = vunpack.c.l.b16 %v143
  %v2016 = vunpack.c.l.b16 %v144
  %v2017 = vunpack.c.l.b16 %v145
  %v2018 = vunpack.c.l.b16 %v146
  %v2019 = vunpack.c.l.b16 %v147
  %v2020 = vunpack.c.l.b16 %v148
  %v2021 = vunpack.c.l.b16 %v149
  %v2022 = vunpack.c.l.b16 %v150
  %v2023 = vunpack.c.l.b16 %v151
  %v2024 = vunpack.c.l.b16 %v152
  %v2025 = vunpack.c.l.b16 %v153
  %v2026 = vunpack.c.l.b16 %v154
  %v2027 = vunpack.c.l.b16 %v155
  %v2028 = vunpack.c.l.b16 %v156
  %v2029 = vunpack.c.l.b16 %v157
  %v2030 = vunpack.c.l.b16 %v158
  %v2031 = vunpack.c.l.b16 %v159
  %v2032 = vunpack.c.l.b16 %v160
  %v2033 = vunpack.c.l.b16 %v161
  %v2034 = vunpack.c.l.b16 %v162
  %v2035 = vunpack.c.l.b16 %v163
  %v2036 = vunpack.c.l.b16 %v164
  %v2037 = vunpack.c.l.b16 %v165
  %v2038 = vunpack.c.l.b16 %v166
  %v2039 = vunpack.c.l.b16 %v167
  %v2040 = vunpack.c.l.b16 %v168
  %v2041 = vunpack.c.l.b16 %v169
  %v2042 = vunpack.c.l.b16 %v170
  %v2043 = vunpack.c.l.b16 %v171
  %v2044 = vunpack.c.l.b16 %v172
  %v2045 = vunpack.c.l.b16 %v173
  %v2046 = vunpack.c.l.b16 %v174
  %v2047 = vunpack.c.l.b16 %v175
  %v2048 = vunpack.c.l.b16 %v176
  %v2049 = vunpack.c.l.b16 %v177
  %v2050 = vunpack.c.l.b16 %v178
  %v2051 = vunpack.c.l.b16 %v179
  %v2052 = vunpack.c.l.b16 %v180
  %v2053 = vunpack.c.l.b16 %v181
  %v2054 = vunpack.c.l.b16 %v182
  %v2055 = vunpack.c.l.b16 %v183
  %v2056 = vunpack.c.l.b16 %v184
  %v2057 = vunpack.c.l.b16 %v185
  %v2058 = vunpack.c.l.b16 %v186
  %v2059 = vunpack.c.l.b16 %v187
  %v2060 = vunpack.c.l.b16 %v188
  %v2061 = vunpack.c.l.b16 %v189
  %v2062 = vunpack.c.l.b16 %v190
  %v2063 = vunpack.c.l.b16 %v191
  %v2064 = vunpack.c.l.b16 %v192
  %v2065 = vunpack.c.l.b16 %v193
  %v2066 = vunpack.c.l.b16 %v194
  %v2067 = vunpack.c.l.b16 %v195
  %v2068 = vunpack.c.l.b16 %v196
  %v2069 = vunpack.c.l.b16 %v197
  %v2070 = vunpack.c.l.b16 %v198
  %v2071 = vunpack.c.l.b16 %v199
  %v2072 = vunpack.c.l.b16 %v200
  %v2073 = vunpack.c.l.b16 %v201
  %v2074 = vunpack.c.l.b16 %v202
  %v2075 = vunpack.c.l.b16 %v203
  %v2076 = vunpack.c.l.b16 %v204
  %v2077 = vunpack.c.l.b16 %v205
  %v2078 = vunpack.c.l.b16 %v206
  %v2079 = vunpack.c.l.b16 %v207
  %v2080 = vunpack.c.l.b16 %v208
  %v2081 = vunpack.c.l.b16 %v209
  %v2082 = vunpack.c.l.b16 %v210
  %v2083 = vunpack.c.l.b16 %v211
  %v2084 = vunpack.c.l.b16 %v212
  %v2085 = vunpack.c.l.b16 %v213
  %v2086 = vunpack.c.l.b16 %v214
  %v2087 = vunpack.c.l.b16 %v215
  %v2088 = vunpack.c.l.b16 %v216
  %v2089 = vunpack.c.l.b16 %v217
  %v2090 = vunpack.c.l.b16 %v218
  %v2091 = vunpack.c.l.b16 %v219
  %v2092 = vunpack.c.l.b16 %v220
  %v2093 = vunpack.c.l.b16 %v221
  %v2094 = vunpack.c.l.b16 %v222
  %v2095 = vunpack.c.l.b16 %v223
  %v2096 = vunpack.c.l.b16 %v224
  %v2097 = vunpack.c.l.b16 %v225
  %v2098 = vunpack.c.l.b16 %v226
  %v2099 = vunpack.c.l.b16 %v227
  %v2100 = vunpack.c.l.b16 %v228
  %v2101 = vunpack.c.l.b16 %v229
  %v2102 = vunpack.c.l.b16 %v230
  %v2103 = vunpack.c.l.b16 %v231
  %v2104 = vunpack.c.l.b16 %v232
  %v2105 = vunpack.c.l.b16 %v233
  %v2106 = vunpack.c.l.b16 %v234
  %v2107 = vunpack.c.l.b16 %v235
  %v2108 = vunpack.c.l.b16 %v236
  %v2109 = vunpack.c.l.b16 %v237
  %v2110 = vunpack.c.l.b16 %v238
  %v2111 = vunpack.c.l.b16 %v239
  %v2112 = vunpack.c.l.b16 %v240
  %v2113 = vunpack.c.l.b16 %v241
  %v2114 = vunpack.c.l.b16 %v242
  %v2115 = vunpack.c.l.b16 %v243
  %v2116 = vunpack.c.l.b16 %v244
  %v2117 = vunpack.c.l.b16 %v245
  %v2118 = vunpack.c.l.b16 %v246
  %v2119 = vunpack.c.l.b16 %v247
  %v2120 = vunpack.c.l.b16 %v248
  %v2121 = vunpack.c.l.b16 %v249
  %v2122 = vunpack.c.l.b16 %v250
  %v2123 = vunpack.c.l.b16 %v251
  %v2124 = vunpack.c.l.b16 %v252
  %v2125 = vunpack.c.l.b16 %v253
  %v2126 = vunpack.c.l.b16 %v254
  %v2127 = vunpack.c.l.b16 %v255
  %v2128 = vunpack.c.l.b16 %v256
  %v2129 = vunpack.c.l.b16 %v257
  %v2130 = vunpack.c.l.b16 %v258
  %v2131 = vunpack.c.l.b16 %v259
  %v2132 = vunpack.c.l.b16 %v260
  %v2133 = vunpack.c.l.b16 %v261
  %v2134 = vunpack.c.l.b16 %v262
  %v2135 = vunpack.c.l.b16 %v263
  %v2136 = vunpack.c.l.b16 %v264
  %v2137 = vunpack.c.l.b16 %v265
  %v2138 = vunpack.c.l.b16 %v266
  %v2139 = vunpack.c.l.b16 %v267
  %v2140 = vunpack.c.l.b16 %v268
  %v2141 = vunpack.c.l.b16 %v269
  %v2142 = vunpack.c.l.b16 %v270
  %v2143 = vunpack.c.l.b16 %v271
  %v2144 = vunpack.c.l.b16 %v272
  %v2145 = vunpack.c.l.b16 %v273
  %v2146 = vunpack.c.l.b16 %v274
  %v2147 = vunpack.c.l.b16 %v275
  %v2148 = vunpack.c.l.b16 %v276
  %v2149 = vunpack.c.l.b16 %v277
  %v2150 = vunpack.c.l.b16 %v278
  %v2151 = vunpack.c.l.b16 %v279
  %v2152 = vunpack.c.l.b16 %v280
  %v2153 = vunpack.c.l.b16 %v281
  %v2154 = vunpack.c.l.b16 %v282
  %v2155 = vunpack.c.l.b16 %v283
  %v2156 = vunpack.c.l.b16 %v284
  %v2157 = vunpack.c.l.b16 %v285
  %v2158 = vunpack.c.l.b16 %v286
  %v2159 = vunpack.c.l.b16 %v287
  %v2160 = vunpack.c.l.b16 %v288
  %v2161 = vunpack.c.l.b16 %v289
  %v2162 = vunpack.c.l.b16 %v290
  %v2163 = vunpack.c.l.b16 %v291
  %v2164 = vunpack.c.l.b16 %v292
  %v2165 = vunpack.c.l.b16 %v293
  %v2166 = vunpack.c.l.b16 %v294
  %v2167 = vunpack.c.l.b16 %v295
  %v2168 = vunpack.c.l.b16 %v296
  %v2169 = vunpack.c.l.b16 %v297
  %v2170 = vunpack.c.l.b16 %v298
  %v2171 = vunpack.c.l.b16 %v299
  %v2172 = vunpack.c.l.b16 %v300
  %v2173 = vunpack.c.l.b16 %v301
  %v2174 = vunpack.c.l.b16 %v302
  %v2175 = vunpack.c.l.b16 %v303
  %v2176 = vunpack.c.l.b16 %v304
  %v2177 = vunpack.c.l.b16 %v305
  %v2178 = vunpack.c.l.b16 %v306
  %v2179 = vunpack.c.l.b16 %v307
  %v2180 = vunpack.c.l.b16 %v308
  %v2181 = vunpack.c.l.b16 %v309
  %v2182 = vunpack.c.l.b16 %v310
  %v2183 = vunpack.c.l.b16 %v311
  %v2184 = vunpack.c.l.b16 %v312
  %v2185 = vunpack.c.l.b16 %v313
  %v2186 = vunpack.c.l.b16 %v314
  %v2187 = vunpack.c.l.b16 %v315
  %v2188 = vunpack.c.l.b16 %v316
  %v2189 = vunpack.c.l.b16 %v317
  %v2190 = vunpack.c.l.b16 %v318
  %v2191 = vunpack.c.l.b16 %v319
  %v2192 = vunpack.c.l.b16 %v320
  %v2193 = vunpack.c.l.b16 %v321
  %v2194 = vunpack.c.l.b16 %v322
  %v2195 = vunpack.c.l.b16 %v323
  %v2196 = vunpack.c.l.b16 %v324
  %v2197 = vunpack.c.l.b16 %v325
  %v2198 = vunpack.c.l.b16 %v326
  %v2199 = vunpack.c.l.b16 %v327
  %v2200 = vunpack.c.l.b16 %v328
  %v2201 = vunpack.c.l.b16 %v329
  %v2202 = vunpack.c.l.b16 %v330
  %v2203 = vunpack.c.l.b16 %v331
  %v2204 = vunpack.c.l.b16 %v332
  %v2205 = vunpack.c.l.b16 %v333
  %v2206 = vunpack.c.l.b16 %v334
  %v2207 = vunpack.c.l.b16 %v335
  %v2208 = vunpack.c.l.b16 %v336
  %v2209 = vunpack.c.l.b16 %v337
  %v2210 = vunpack.c.l.b16 %v338
  %v2211 = vunpack.c.l.b16 %v339
  %v2212 = vunpack.c.l.b16 %v340
  %v2213 = vunpack.c.l.b16 %v341
  %v2214 = vunpack.c.l.b16 %v342
  %v2215 = vunpack.c.l.b16 %v343
  %v2216 = vunpack.c.l.b16 %v344
  %v2217 = vunpack.c.l.b16 %v345
  %v2218 = vunpack.c.l.b16 %v346
  %v2219 = vunpack.c.l.b16 %v347
  %v2220 = vunpack.c.l.b16 %v348
  %v2221 = vunpack.c.l.b16 %v349
  %v2222 = vunpack.c.l.b16 %v350
  %v2223 = vunpack.c.l.b16 %v351
  %v2224 = vunpack.c.l.b16 %v352
  %v2225 = vunpack.c.l.b16 %v353
  %v2226 = vunpack.c.l.b16 %v354
  %v2227 = vunpack.c.l.b16 %v355
  %v2228 = vunpack.c.l.b16 %v356
  %v2229 = vunpack.c.l.b16 %v357
  %v2230 = vunpack.c.l.b16 %v358
  %v2231 = vunpack.c.l.b16 %v359
  %v2232 = vunpack.c.l.b16 %v360
  %v2233 = vunpack.c.l.b16 %v361
  %v2234 = vunpack.c.l.b16 %v362
  %v2235 = vunpack.c.l.b16 %v363
  %v2236 = vunpack.c.l.b16 %v364
  %v2237 = vunpack.c.l.b16 %v365
  %v2238 = vunpack.c.l.b16 %v366
  %v2239 = vunpack.c.l.b16 %v367
  %v2240 = vunpack.c.l.b16 %v368
  %v2241 = vunpack.c.l.b16 %v369
  %v2242 = vunpack.c.l.b16 %v370
  %v2243 = vunpack.c.l.b16 %v371
  %v2244 = vunpack.c.l.b16 %v372
  %v2245 = vunpack.c.l.b16 %v373
  %v2246 = vunpack.c.l.b16 %v374
  %v2247 = vunpack.c.l.b16 %v375
  %v2248 = vunpack.c.l.b16 %v376
  %v2249 = vunpack.c.l.b16 %v377
  %v2250 = vunpack.c.l.b16 %v378
  %v2251 = vunpack.c.l.b16 %v379
  %v2252 = vunpack.c.l.b16 %v380
  %v2253 = vunpack.c.l.b16 %v381
  %v2254 = vunpack.c.l.b16 %v382
  %v2255 = vunpack.c.l.b16 %v383
  %v2256 = vunpack.c.l.b16 %v384
  %v2257 = vunpack.c.l.b16 %v385
  %v2258 = vunpack.c.l.b16 %v386
  %v2259 = vunpack.c.l.b16 %v387
  %v2260 = vunpack.c.l.b16 %v388
  %v2261 = vunpack.c.l.b16 %v389
  %v2262 = vunpack.c.l.b16 %v390
  %v2263 = vunpack.c.l.b16 %v391
  %v2264 = vunpack.c.l.b16 %v392
  %v2265 = vunpack.c.l.b16 %v393
  %v2266 = vunpack.c.l.b16 %v394
  %v2267 = vunpack.c.l.b16 %v395
  %v2268 = vunpack.c.l.b16 %v396
  %v2269 = vunpack.c.l.b16 %v397
  %v2270 = vunpack.c.l.b16 %v398
  %v2271 = vunpack.c.l.b16 %v399
  %v2272 = vunpack.c.l.b16 %v400
  %v2273 = vunpack.c.l.b16 %v401
  %v2274 = vunpack.c.l.b16 %v402
  %v2275 = vunpack.c.l.b16 %v403
  %v2276 = vunpack.c.l.b16 %v404
  %v2277 = vunpack.c.l.b16 %v405
  %v2278 = vunpack.c.l.b16 %v406
  %v2279 = vunpack.c.l.b16 %v407
  %v2280 = vunpack.c.l.b16 %v408
  %v2281 = vunpack.c.l.b16 %v409
  %v2282 = vunpack.c.l.b16 %v410
  %v2283 = vunpack.c.l.b16 %v411
  %v2284 = vunpack.c.l.b16 %v412
  %v2285 = vunpack.c.l.b16 %v413
  %v2286 = vunpack.c.l.b16 %v414
  %v2287 = vunpack.c.l.b16 %v415
  %v2288 = vunpack.c.l.b16 %v416
  %v2289 = vunpack.c.l.b16 %v417
  %v2290 = vunpack.c.l.b16 %v418
  %v2291 = vunpack.c.l.b16 %v419
  %v2292 = vunpack.c.l.b16 %v420
  %v2293 = vunpack.c.l.b16 %v421
  %v2294 = vunpack.c.l.b16 %v422
  %v2295 = vunpack.c.l.b16 %v423
  %v2296 = vunpack.c.l.b16 %v424
  %v2297 = vunpack.c.l.b16 %v425
  %v2298 = vunpack.c.l.b16 %v426
  %v2299 = vunpack.c.l.b16 %v427
  %v2300 = vunpack.c.l.b16 %v428
  %v2301 = vunpack.c.l.b16 %v429
  %v2302 = vunpack.c.l.b16 %v430
  %v2303 = vunpack.c.l.b16 %v431
  %v2304 = vunpack.c.l.b16 %v432
  %v2305 = vunpack.c.l.b16 %v433
  %v2306 = vunpack.c.l.b16 %v434
  %v2307 = vunpack.c.l.b16 %v435
  %v2308 = vunpack.c.l.b16 %v436
  %v2309 = vunpack.c.l.b16 %v437
  %v2310 = vunpack.c.l.b16 %v438
  %v2311 = vunpack.c.l.b16 %v439
  %v2312 = vunpack.c.l.b16 %v440
  %v2313 = vunpack.c.l.b16 %v441
  %v2314 = vunpack.c.l.b16 %v442
  %v2315 = vunpack.c.l.b16 %v443
  %v2316 = vunpack.c.l.b16 %v444
  %v2317 = vunpack.c.l.b16 %v445
  %v2318 = vunpack.c.l.b16 %v446
  %v2319 = vunpack.c.l.b16 %v447
  %v2320 = vunpack.c.l.b16 %v448
  %v2321 = vunpack.c.l.b16 %v449
  %v2322 = vunpack.c.l.b16 %v450
  %v2323 = vunpack.c.l.b16 %v451
  %v2324 = vunpack.c.l.b16 %v452
  %v2325 = vunpack.c.l.b16 %v453
  %v2326 = vunpack.c.l.b16 %v454
  %v2327 = vunpack.c.l.b16 %v455
  %v2328 = vunpack.c.l.b16 %v456
  %v2329 = vunpack.c.l.b16 %v457
  %v2330 = vunpack.c.l.b16 %v458
  %v2331 = vunpack.c.l.b16 %v459
  %v2332 = vunpack.c.l.b16 %v460
  %v2333 = vunpack.c.l.b16 %v461
  %v2334 = vunpack.c.l.b16 %v462
  %v2335 = vunpack.c.l.b16 %v463
  %v2336 = vunpack.c.l.b16 %v464
  %v2337 = vunpack.c.l.b16 %v465
  %v2338 = vunpack.c.l.b16 %v466
  %v2339 = vunpack.c.l.b16 %v467
  %v2340 = vunpack.c.l.b16 %v468
  %v2341 = vunpack.c.l.b16 %v469
  %v2342 = vunpack.c.l.b16 %v470
  %v2343 = vunpack.c.l.b16 %v471
  %v2344 = vunpack.c.l.b16 %v472
  %v2345 = vunpack.c.l.b16 %v473
  %v2346 = vunpack.c.l.b16 %v474
  %v2347 = vunpack.c.l.b16 %v475
  %v2348 = vunpack.c.l.b16 %v476
  %v2349 = vunpack.c.l.b16 %v477
  %v2350 = vunpack.c.l.b16 %v478
  %v2351 = vunpack.c.l.b16 %v479
  %v2352 = vunpack.c.l.b16 %v480
  %v2353 = vunpack.c.l.b16 %v481
  %v2354 = vunpack.c.l.b16 %v482
  %v2355 = vunpack.c.l.b16 %v483
  %v2356 = vunpack.c.l.b16 %v484
  %v2357 = vunpack.c.l.b16 %v485
  %v2358 = vunpack.c.l.b16 %v486
  %v2359 = vunpack.c.l.b16 %v487
  %v2360 = vunpack.c.l.b16 %v488
  %v2361 = vunpack.c.l.b16 %v489
  %v2362 = vunpack.c.l.b16 %v490
  %v2363 = vunpack.c.l.b16 %v491
  %v2364 = vunpack.c.l.b16 %v492
  %v2365 = vunpack.c.l.b16 %v493
  %v2366 = vunpack.c.l.b16 %v494
  %v2367 = vunpack.c.l.b16 %v495
  %v2368 = vunpack.c.l.b16 %v496
  %v2369 = vunpack.c.l.b16 %v497
  %v2370 = vunpack.c.l.b16 %v498
  %v2371 = vunpack.c.l.b16 %v499
  %v2372 = vunpack.c.l.b16 %v500
  %v2373 = vunpack.c.l.b16 %v501
  %v2374 = vunpack.c.l.b16 %v502
  %v2375 = vunpack.c.l.b16 %v503
  %v2376 = vunpack.c.l.b16 %v504
  %v2377 = vunpack.c.l.b16 %v505
  %v2378 = vunpack.c.l.b16 %v506
  %v2379 = vunpack.c.l.b16 %v507
  %v2380 = vunpack.c.l.b16 %v508
  %v2381 = vunpack.c.l.b16 %v509
  %v2382 = vunpack.c.l.b16 %v510
  %v2383 = vunpack.c.l.b16 %v511
  %v2384 = vunpack.c.l.b16 %v512
  %v2385 = vunpack.c.l.b16 %v513
  %v2386 = vunpack.c.l.b16 %v514
  %v2387 = vunpack.c.l.b16 %v515
  %v2388 = vunpack.c.l.b16 %v516
  %v2389 = vunpack.c.l.b16 %v517
  %v2390 = vunpack.c.l.b16 %v518
  %v2391 = vunpack.c.l.b16 %v519
  %v2392 = vunpack.c.l.b16 %v520
  %v2393 = vunpack.c.l.b16 %v521
  %v2394 = vunpack.c.l.b16 %v522
  %v2395 = vunpack.c.l.b16 %v523
  %v2396 = vunpack.c.l.b16 %v524
  %v2397 = vunpack.c.l.b16 %v525
  %v2398 = vunpack.c.l.b16 %v526
  %v2399 = vunpack.c.l.b16 %v527
  %v2400 = vunpack.c.l.b16 %v528
  %v2401 = vunpack.c.l.b16 %v529
  %v2402 = vunpack.c.l.b16 %v530
  %v2403 = vunpack.c.l.b16 %v531
  %v2404 = vunpack.c.l.b16 %v532
  %v2405 = vunpack.c.l.b16 %v533
  %v2406 = vunpack.c.l.b16 %v534
  %v2407 = vunpack.c.l.b16 %v535
  %v2408 = vunpack.c.l.b16 %v536
  %v2409 = vunpack.c.l.b16 %v537
  %v2410 = vunpack.c.l.b16 %v538
  %v2411 = vunpack.c.l.b16 %v539
  %v2412 = vunpack.c.l.b16 %v540
  %v2413 = vunpack.c.l.b16 %v541
  %v2414 = vunpack.c.l.b16 %v542
  %v2415 = vunpack.c.l.b16 %v543
  %v2416 = vunpack.c.l.b16 %v544
  %v2417 = vunpack.c.l.b16 %v545
  %v2418 = vunpack.c.l.b16 %v546
  %v2419 = vunpack.c.l.b16 %v547
  %v2420 = vunpack.c.l.b16 %v548
  %v2421 = vunpack.c.l.b16 %v549
  %v2422 = vunpack.c.l.b16 %v550
  %v2423 = vunpack.c.l.b16 %v551
  %v2424 = vunpack.c.l.b16 %v552
  %v2425 = vunpack.c.l.b16 %v553
  %v2426 = vunpack.c.l.b16 %v554
  %v2427 = vunpack.c.l.b16 %v555
  %v2428 = vunpack.c.l.b16 %v556
  %v2429 = vunpack.c.l.b16 %v557
  %v2430 = vunpack.c.l.b16 %v558
  %v2431 = vunpack.c.l.b16 %v559
  %v2432 = vunpack.c.l.b16 %v560
  %v2433 = vunpack.c.l.b16 %v561
  %v2434 = vunpack.c.l.b16 %v562
  %v2435 = vunpack.c.l.b16 %v563
  %v2436 = vunpack.c.l.b16 %v564
  %v2437 = vunpack.c.l.b16 %v565
  %v2438 = vunpack.c.l.b16 %v566
  %v2439 = vunpack.c.l.b16 %v567
  %v2440 = vunpack.c.l.b16 %v568
  %v2441 = vunpack.c.l.b16 %v569
  %v2442 = vunpack.c.l.b16 %v570
  %v2443 = vunpack.c.l.b16 %v571
  %v2444 = vunpack.c.l.b16 %v572
  %v2445 = vunpack.c.l.b16 %v573
  %v2446 = vunpack.c.l.b16 %v574
  %v2447 = vunpack.c.l.b16 %v575
  %v2448 = vunpack.c.l.b16 %v576
  %v2449 = vunpack.c.l.b16 %v577
  %v2450 = vunpack.c.l.b16 %v578
  %v2451 = vunpack.c.l.b16 %v579
  %v2452 = vunpack.c.l.b16 %v580
  %v2453 = vunpack.c.l.b16 %v581
  %v2454 = vunpack.c.l.b16 %v582
  %v2455 = vunpack.c.l.b16 %v583
  %v2456 = vunpack.c.l.b16 %v584
  %v2457 = vunpack.c.l.b16 %v585
  %v2458 = vunpack.c.l.b16 %v586
  %v2459 = vunpack.c.l.b16 %v587
  %v2460 = vunpack.c.l.b16 %v588
  %v2461 = vunpack.c.l.b16 %v589
  %v2462 = vunpack.c.l.b16 %v590
  %v2463 = vunpack.c.l.b16 %v591
  %v2464 = vunpack.c.l.b16 %v592
  %v2465 = vunpack.c.l.b16 %v593
  %v2466 = vunpack.c.l.b16 %v594
  %v2467 = vunpack.c.l.b16 %v595
  %v2468 = vunpack.c.l.b16 %v596
  %v2469 = vunpack.c.l.b16 %v597
  %v2470 = vunpack.c.l.b16 %v598
  %v2471 = vunpack.c.l.b16 %v599
  %v2472 = vunpack.c.l.b16 %v600
  %v2473 = vunpack.c.l.b16 %v601
  %v2474 = vunpack.c.l.b16 %v602
  %v2475 = vunpack.c.l.b16 %v603
  %v2476 = vunpack.c.l.b16 %v604
  %v2477 = vunpack.c.l.b16 %v605
  %v2478 = vunpack.c.l.b16 %v606
  %v2479 = vunpack.c.l.b16 %v607
  %v2480 = vunpack.c.l.b16 %v608
  %v2481 = vunpack.c.l.b16 %v609
  %v2482 = vunpack.c.l.b16 %v610
  %v2483 = vunpack.c.l.b16 %v611
  %v2484 = vunpack.c.l.b16 %v612
  %v2485 = vunpack.c.l.b16 %v613
  %v2486 = vunpack.c.l.b16 %v614
  %v2487 = vunpack.c.l.b16 %v615
  %v2488 = vunpack.c.l.b16 %v616
  %v2489 = vunpack.c.l.b16 %v617
  %v2490 = vunpack.c.l.b16 %v618
  %v2491 = vunpack.c.l.b16 %v619
  %v2492 = vunpack.c.l.b16 %v620
  %v2493 = vunpack.c.l.b16 %v621
  %v2494 = vunpack.c.l.b16 %v622
  %v2495 = vunpack.c.l.b16 %v623
  %v2496 = vunpack.c.l.b16 %v624
  %v2497 = vunpack.c.l.b16 %v625
  %v2498 = vunpack.c.l.b16 %v626
  %v2499 = vunpack.c.l.b16 %v627
  %v2500 = vunpack.c.l.b16 %v628
  %v2501 = vunpack.c.l.b16 %v629
  %v2502 = vunpack.c.l.b16 %v630
  %v2503 = vunpack.c.l.b16 %v631
  %v2504 = vunpack.c.l.b16 %v632
  %v2505 = vunpack.c.l.b16 %v633
  %v2506 = vunpack.c.l.b16 %v634
  %v2507 = vunpack.c.l.b16 %v635
  %v2508 = vunpack.c.l.b16 %v636
  %v2509 = vunpack.c.l.b16 %v637
  %v2510 = vunpack.c.l.b16 %v638
  %v2511 = vunpack.c.l.b16 %v639
  %v2512 = vunpack.c.l.b16 %v640
  %v2513 = vunpack.c.l.b16 %v641
  %v2514 = vunpack.c.l.b16 %v642
  %v2515 = vunpack.c.l.b16 %v643
  %v2516 = vunpack.c.l.b16 %v644
  %v2517 = vunpack.c.l.b16 %v645
  %v2518 = vunpack.c.l.b16 %v646
  %v2519 = vunpack.c.l.b16 %v647
  %v2520 = vunpack.c.l.b16 %v648
  %v2521 = vunpack.c.l.b16 %v649
  %v2522 = vunpack.c.l.b16 %v650
  %v2523 = vunpack.c.l.b16 %v651
  %v2524 = vunpack.c.l.b16 %v652
  %v2525 = vunpack.c.l.b16 %v653
  %v2526 = vunpack.c.l.b16 %v654
  %v2527 = vunpack.c.l.b16 %v655
  %v2528 = vunpack.c.l.b16 %v656
  %v2529 = vunpack.c.l.b16 %v657
  %v2530 = vunpack.c.l.b16 %v658
  %v2531 = vunpack.c.l.b16 %v659
  %v2532 = vunpack.c.l.b16 %v660
  %v2533 = vunpack.c.l.b16 %v661
  %v2534 = vunpack.c.l.b16 %v662
  %v2535 = vunpack.c.l.b16 %v663
  %v2536 = vunpack.c.l.b16 %v664
  %v2537 = vunpack.c.l.b16 %v665
  %v2538 = vunpack.c.l.b16 %v666
  %v2539 = vunpack.c.l.b16 %v667
  %v2540 = vunpack.c.l.b16 %v668
  %v2541 = vunpack.c.l.b16 %v669
  %v2542 = vunpack.c.l.b16 %v670
  %v2543 = vunpack.c.l.b16 %v671
  %v2544 = vunpack.c.l.b16 %v672
  %v2545 = vunpack.c.l.b16 %v673
  %v2546 = vunpack.c.l.b16 %v674
  %v2547 = vunpack.c.l.b16 %v675
  %v2548 = vunpack.c.l.b16 %v676
  %v2549 = vunpack.c.l.b16 %v677
  %v2550 = vunpack.c.l.b16 %v678
  %v2551 = vunpack.c.l.b16 %v679
  %v2552 = vunpack.c.l.b16 %v680
  %v2553 = vunpack.c.l.b16 %v681
  %v2554 = vunpack.c.l.b16 %v682
  %v2555 = vunpack.c.l.b16 %v683
  %v2556 = vunpack.c.l.b16 %v684
  %v2557 = vunpack.c.l.b16 %v685
  %v2558 = vunpack.c.l.b16 %v686
  %v2559 = vunpack.c.l.b16 %v687
  %v2560 = vunpack.c.l.b16 %v688
  %v2561 = vunpack.c.l.b16 %v689
  %v2562 = vunpack.c.l.b16 %v690
  %v2563 = vunpack.c.l.b16 %v691
  %v2564 = vunpack.c.l.b16 %v692
  %v2565 = vunpack.c.l.b16 %v693
  %v2566 = vunpack.c.l.b16 %v694
  %v2567 = vunpack.c.l.b16 %v695
  %v2568 = vunpack.c.l.b16 %v696
  %v2569 = vunpack.c.l.b16 %v697
  %v2570 = vunpack.c.l.b16 %v698
  %v2571 = vunpack.c.l.b16 %v699
  %v2572 = vunpack.c.l.b16 %v700
  %v2573 = vunpack.c.l.b16 %v701
  %v2574 = vunpack.c.l.b16 %v702
  %v2575 = vunpack.c.l.b16 %v703
  %v2576 = vunpack.c.l.b16 %v704
  %v2577 = vunpack.c.l.b16 %v705
  %v2578 = vunpack.c.l.b16 %v706
  %v2579 = vunpack.c.l.b16 %v707
  %v2580 = vunpack.c.l.b16 %v708
  %v2581 = vunpack.c.l.b16 %v709
  %v2582 = vunpack.c.l.b16 %v710
  %v2583 = vunpack.c.l.b16 %v711
  %v2584 = vunpack.c.l.b16 %v712
  %v2585 = vunpack.c.l.b16 %v713
  %v2586 = vunpack.c.l.b16 %v714
  %v2587 = vunpack.c.l.b16 %v715
  %v2588 = vunpack.c.l.b16 %v716
  %v2589 = vunpack.c.l.b16 %v717
  %v2590 = vunpack.c.l.b16 %v718
  %v2591 = vunpack.c.l.b16 %v719
  %v2592 = vunpack.c.l.b16 %v720
  %v2593 = vunpack.c.l.b16 %v721
  %v2594 = vunpack.c.l.b16 %v722
  %v2595 = vunpack.c.l.b16 %v723
  %v2596 = vunpack.c.l.b16 %v724
  %v2597 = vunpack.c.l.b16 %v725
  %v2598 = vunpack.c.l.b16 %v726
  %v2599 = vunpack.c.l.b16 %v727
  %v2600 = vunpack.c.l.b16 %v728
  %v2601 = vunpack.c.l.b16 %v729
  %v2602 = vunpack.c.l.b16 %v730
  %v2603 = vunpack.c.l.b16 %v731
  %v2604 = vunpack.c.l.b16 %v732
  %v2605 = vunpack.c.l.b16 %v733
  %v2606 = vunpack.c.l.b16 %v734
  %v2607 = vunpack.c.l.b16 %v735
  %v2608 = vunpack.c.l.b16 %v736
  %v2609 = vunpack.c.l.b16 %v737
  %v2610 = vunpack.c.l.b16 %v738
  %v2611 = vunpack.c.l.b16 %v739
  %v2612 = vunpack.c.l.b16 %v740
  %v2613 = vunpack.c.l.b16 %v741
  %v2614 = vunpack.c.l.b16 %v742
  %v2615 = vunpack.c.l.b16 %v743
  %v2616 = vunpack.c.l.b16 %v744
  %v2617 = vunpack.c.l.b16 %v745
  %v2618 = vunpack.c.l.b16 %v746
  %v2619 = vunpack.c.l.b16 %v747
  %v2620 = vunpack.c.l.b16 %v748
  %v2621 = vunpack.c.l.b16 %v749
  %v2622 = vunpack.c.l.b16 %v750
  %v2623 = vunpack.c.l.b16 %v751
  %v2624 = vunpack.c.l.b16 %v752
  %v2625 = vunpack.c.l.b16 %v753
  %v2626 = vunpack.c.l.b16 %v754
  %v2627 = vunpack.c.l.b16 %v755
  %v2628 = vunpack.c.l.b16 %v756
  %v2629 = vunpack.c.l.b16 %v757
  %v2630 = vunpack.c.l.b16 %v758
  %v2631 = vunpack.c.l.b16 %v759
  %v2632 = vunpack.c.l.b16 %v760
  %v2633 = vunpack.c.l.b16 %v761
  %v2634 = vunpack.c.l.b16 %v762
  %v2635 = vunpack.c.l.b16 %v763
  %v2636 = vunpack.c.l.b16 %v764
  %v2637 = vunpack.c.l.b16 %v765
  %v2638 = vunpack.c.l.b16 %v766
  %v2639 = vunpack.c.l.b16 %v767
  %v2640 = vunpack.c.l.b16 %v768
  %v2641 = vunpack.c.l.b16 %v769
  %v2642 = vunpack.c.l.b16 %v770
  %v2643 = vunpack.c.l.b16 %v771
  %v2644 = vunpack.c.l.b16 %v772
  %v2645 = vunpack.c.l.b16 %v773
  %v2646 = vunpack.c.l.b16 %v774
  %v2647 = vunpack.c.l.b16 %v775
  %v2648 = vunpack.c.l.b16 %v776
  %v2649 = vunpack.c.l.b16 %v777
  %v2650 = vunpack.c.l.b16 %v778
  %v2651 = vunpack.c.l.b16 %v779
  %v2652 = vunpack.c.l.b16 %v780
  %v2653 = vunpack.c.l.b16 %v781
  %v2654 = vunpack.c.l.b16 %v782
  %v2655 = vunpack.c.l.b16 %v783
  %v2656 = vunpack.c.l.b16 %v784
  %v2657 = vunpack.c.l.b16 %v785
  %v2658 = vunpack.c.l.b16 %v786
  %v2659 = vunpack.c.l.b16 %v787
  %v2660 = vunpack.c.l.b16 %v788
  %v2661 = vunpack.c.l.b16 %v789
  %v2662 = vunpack.c.l.b16 %v790
  %v2663 = vunpack.c.l.b16 %v791
  %v2664 = vunpack.c.l.b16 %v792
  %v2665 = vunpack.c.l.b16 %v793
  %v2666 = vunpack.c.l.b16 %v794
  %v2667 = vunpack.c.l.b16 %v795
  %v2668 = vunpack.c.l.b16 %v796
  %v2669 = vunpack.c.l.b16 %v797
  %v2670 = vunpack.c.l.b16 %v798
  %v2671 = vunpack.c.l.b16 %v799
  %v2672 = vunpack.c.l.b16 %v800
  %v2673 = vunpack.c.l.b16 %v801
  %v2674 = vunpack.c.l.b16 %v802
  %v2675 = vunpack.c.l.b16 %v803
  %v2676 = vunpack.c.l.b16 %v804
  %v2677 = vunpack.c.l.b16 %v805
  %v2678 = vunpack.c.l.b16 %v806
  %v2679 = vunpack.c.l.b16 %v807
  %v2680 = vunpack.c.l.b16 %v808
  %v2681 = vunpack.c.l.b16 %v809
  %v2682 = vunpack.c.l.b16 %v810
  %v2683 = vunpack.c.l.b16 %v811
  %v2684 = vunpack.c.l.b16 %v812
  %v2685 = vunpack.c.l.b16 %v813
  %v2686 = vunpack.c.l.b16 %v814
  %v2687 = vunpack.c.l.b16 %v815
  %v2688 = vunpack.c.l.b16 %v816
  %v2689 = vunpack.c.l.b16 %v817
  %v2690 = vunpack.c.l.b16 %v818
  %v2691 = vunpack.c.l.b16 %v819
  %v2692 = vunpack.c.l.b16 %v820
  %v2693 = vunpack.c.l.b16 %v821
  %v2694 = vunpack.c.l.b16 %v822
  %v2695 = vunpack.c.l.b16 %v823
  %v2696 = vunpack.c.l.b16 %v824
  %v2697 = vunpack.c.l.b16 %v825
  %v2698 = vunpack.c.l.b16 %v826
  %v2699 = vunpack.c.l.b16 %v827
  %v2700 = vunpack.c.l.b16 %v828
  %v2701 = vunpack.c.l.b16 %v829
  %v2702 = vunpack.c.l.b16 %v830
  %v2703 = vunpack.c.l.b16 %v831
  %v2704 = vunpack.c.l.b16 %v832
  %v2705 = vunpack.c.l.b16 %v833
  %v2706 = vunpack.c.l.b16 %v834
  %v2707 = vunpack.c.l.b16 %v835
  %v2708 = vunpack.c.l.b16 %v836
  %v2709 = vunpack.c.l.b16 %v837
  %v2710 = vunpack.c.l.b16 %v838
  %v2711 = vunpack.c.l.b16 %v839
  %v2712 = vunpack.c.l.b16 %v840
  %v2713 = vunpack.c.l.b16 %v841
  %v2714 = vunpack.c.l.b16 %v842
  %v2715 = vunpack.c.l.b16 %v843
  %v2716 = vunpack.c.l.b16 %v844
  %v2717 = vunpack.c.l.b16 %v845
  %v2718 = vunpack.c.l.b16 %v846
  %v2719 = vunpack.c.l.b16 %v847
  %v2720 = vunpack.c.l.b16 %v848
  %v2721 = vunpack.c.l.b16 %v849
  %v2722 = vunpack.c.l.b16 %v850
  %v2723 = vunpack.c.l.b16 %v851
  %v2724 = vunpack.c.l.b16 %v852
  %v2725 = vunpack.c.l.b16 %v853
  %v2726 = vunpack.c.l.b16 %v854
  %v2727 = vunpack.c.l.b16 %v855
  %v2728 = vunpack.c.l.b16 %v856
  %v2729 = vunpack.c.l.b16 %v857
  %v2730 = vunpack.c.l.b16 %v858
  %v2731 = vunpack.c.l.b16 %v859
  %v2732 = vunpack.c.l.b16 %v860
  %v2733 = vunpack.c.l.b16 %v861
  %v2734 = vunpack.c.l.b16 %v862
  %v2735 = vunpack.c.l.b16 %v863
  %v2736 = vunpack.c.l.b16 %v864
  %v2737 = vunpack.c.l.b16 %v865
  %v2738 = vunpack.c.l.b16 %v866
  %v2739 = vunpack.c.l.b16 %v867
  %v2740 = vunpack.c.l.b16 %v868
  %v2741 = vunpack.c.l.b16 %v869
  %v2742 = vunpack.c.l.b16 %v870
  %v2743 = vunpack.c.l.b16 %v871
  %v2744 = vunpack.c.l.b16 %v872
  %v2745 = vunpack.c.l.b16 %v873
  %v2746 = vunpack.c.l.b16 %v874
  %v2747 = vunpack.c.l.b16 %v875
  %v2748 = vunpack.c.l.b16 %v876
  %v2749 = vunpack.c.l.b16 %v877
  %v2750 = vunpack.c.l.b16 %v878
  %v2751 = vunpack.c.l.b16 %v879
  %v2752 = vunpack.c.l.b16 %v880
  %v2753 = vunpack.c.l.b16 %v881
  %v2754 = vunpack.c.l.b16 %v882
  %v2755 = vunpack.c.l.b16 %v883
  %v2756 = vunpack.c.l.b16 %v884
  %v2757 = vunpack.c.l.b16 %v885
  %v2758 = vunpack.c.l.b16 %v886
  %v2759 = vunpack.c.l.b16 %v887
  %v2760 = vunpack.c.l.b16 %v888
  %v2761 = vunpack.c.l.b16 %v889
  %v2762 = vunpack.c.l.b16 %v890
  %v2763 = vunpack.c.l.b16 %v891
  %v2764 = vunpack.c.l.b16 %v892
  %v2765 = vunpack.c.l.b16 %v893
  %v2766 = vpack.c.b16 %v1927, %v1926
  %v2767 = vpack.c.b16 %v1929, %v1928
  %v2768 = vpack.c.b16 %v1931, %v1930
  %v2769 = vpack.c.b16 %v1933, %v1932
  %v2770 = vpack.c.b16 %v1935, %v1934
  %v2771 = vpack.c.b16 %v1937, %v1936
  %v2772 = vpack.c.b16 %v1939, %v1938
  %v2773 = vpack.c.b16 %v1941, %v1940
  %v2774 = vpack.c.b16 %v1943, %v1942
  %v2775 = vpack.c.b16 %v1945, %v1944
  %v2776 = vpack.c.b16 %v1947, %v1946
  %v2777 = vpack.c.b16 %v1949, %v1948
  %v2778 = vpack.c.b16 %v1951, %v1950
  %v2779 = vpack.c.b16 %v1953, %v1952
  %v2780 = vpack.c.b16 %v1955, %v1954
  %v2781 = vpack.c.b16 %v1957, %v1956
  %v2782 = vpack.c.b16 %v1959, %v1958
  %v2783 = vpack.c.b16 %v1961, %v1960
  %v2784 = vpack.c.b16 %v1963, %v1962
  %v2785 = vpack.c.b16 %v1965, %v1964
  %v2786 = vpack.c.b16 %v1967, %v1966
  %v2787 = vpack.c.b16 %v1969, %v1968
  %v2788 = vpack.c.b16 %v1971, %v1970
  %v2789 = vpack.c.b16 %v1973, %v1972
  %v2790 = vpack.c.b16 %v1975, %v1974
  %v2791 = vpack.c.b16 %v1977, %v1976
  %v2792 = vpack.c.b16 %v1979, %v1978
  %v2793 = vpack.c.b16 %v1981, %v1980
  %v2794 = vpack.c.b16 %v1983, %v1982
  %v2795 = vpack.c.b16 %v1985, %v1984
  %v2796 = vpack.c.b16 %v1987, %v1986
  %v2797 = vpack.c.b16 %v1989, %v1988
  %v2798 = vpack.c.b16 %v1991, %v1990
  %v2799 = vpack.c.b16 %v1993, %v1992
  %v2800 = vpack.c.b16 %v1995, %v1994
  %v2801 = vpack.c.b16 %v1997, %v1996
  %v2802 = vpack.c.b16 %v1999, %v1998
  %v2803 = vpack.c.b16 %v2001, %v2000
  %v2804 = vpack.c.b16 %v2003, %v2002
  %v2805 = vpack.c.b16 %v2005, %v2004
  %v2806 = vpack.c.b16 %v2007, %v2006
  %v2807 = vpack.c.b16 %v2009, %v2008
  %v2808 = vpack.c.b16 %v2011, %v2010
  %v2809 = vpack.c.b16 %v2013, %v2012
  %v2810 = vpack.c.b16 %v2015, %v2014
  %v2811 = vpack.c.b16 %v2017, %v2016
  %v2812 = vpack.c.b16 %v2019, %v2018
  %v2813 = vpack.c.b16 %v2021, %v2020
  %v2814 = vpack.c.b16 %v2023, %v2022
  %v2815 = vpack.c.b16 %v2025, %v2024
  %v2816 = vpack.c.b16 %v2027, %v2026
  %v2817 = vpack.c.b16 %v2029, %v2028
  %v2818 = vpack.c.b16 %v2031, %v2030
  %v2819 = vpack.c.b16 %v2033, %v2032
  %v2820 = vpack.c.b16 %v2035, %v2034
  %v2821 = vpack.c.b16 %v2037, %v2036
  %v2822 = vpack.c.b16 %v2039, %v2038
  %v2823 = vpack.c.b16 %v2041, %v2040
  %v2824 = vpack.c.b16 %v2043, %v2042
  %v2825 = vpack.c.b16 %v2045, %v2044
  %v2826 = vpack.c.b16 %v2047, %v2046
  %v2827 = vpack.c.b16 %v2049, %v2048
  %v2828 = vpack.c.b16 %v2051, %v2050
  %v2829 = vpack.c.b16 %v2053, %v2052
  %v2830 = vpack.c.b16 %v2055, %v2054
  %v2831 = vpack.c.b16 %v2057, %v2056
  %v2832 = vpack.c.b16 %v2059, %v2058
  %v2833 = vpack.c.b16 %v2061, %v2060
  %v2834 = vpack.c.b16 %v2063, %v2062
  %v2835 = vpack.c.b16 %v2065, %v2064
  %v2836 = vpack.c.b16 %v2067, %v2066
  %v2837 = vpack.c.b16 %v2069, %v2068
  %v2838 = vpack.c.b16 %v2071, %v2070
  %v2839 = vpack.c.b16 %v2073, %v2072
  %v2840 = vpack.c.b16 %v2075, %v2074
  %v2841 = vpack.c.b16 %v2077, %v2076
  %v2842 = vpack.c.b16 %v2079, %v2078
  %v2843 = vpack.c.b16 %v2081, %v2080
  %v2844 = vpack.c.b16 %v2083, %v2082
  %v2845 = vpack.c.b16 %v2085, %v2084
  %v2846 = vpack.c.b16 %v2087, %v2086
  %v2847 = vpack.c.b16 %v2089, %v2088
  %v2848 = vpack.c.b16 %v2091, %v2090
  %v2849 = vpack.c.b16 %v2093, %v2092
  %v2850 = vpack.c.b16 %v2095, %v2094
  %v2851 = vpack.c.b16 %v2097, %v2096
  %v2852 = vpack.c.b16 %v2099, %v2098
  %v2853 = vpack.c.b16 %v2101, %v2100
  %v2854 = vpack.c.b16 %v2103, %v2102
  %v2855 = vpack.c.b16 %v2105, %v2104
  %v2856 = vpack.c.b16 %v2107, %v2106
  %v2857 = vpack.c.b16 %v2109, %v2108
  %v2858 = vpack.c.b16 %v2111, %v2110
  %v2859 = vpack.c.b16 %v2113, %v2112
  %v2860 = vpack.c.b16 %v2115, %v2114
  %v2861 = vpack.c.b16 %v2117, %v2116
  %v2862 = vpack.c.b16 %v2119, %v2118
  %v2863 = vpack.c.b16 %v2121, %v2120
  %v2864 = vpack.c.b16 %v2123, %v2122
  %v2865 = vpack.c.b16 %v2125, %v2124
  %v2866 = vpack.c.b16 %v2127, %v2126
  %v2867 = vpack.c.b16 %v2129, %v2128
  %v2868 = vpack.c.b16 %v2131, %v2130
  %v2869 = vpack.c.b16 %v2133, %v2132
  %v2870 = vpack.c.b16 %v2135, %v2134
  %v2871 = vpack.c.b16 %v2137, %v2136
  %v2872 = vpack.c.b16 %v2139, %v2138
  %v2873 = vpack.c.b16 %v2141, %v2140
  %v2874 = vpack.c.b16 %v2143, %v2142
  %v2875 = vpack.c.b16 %v2145, %v2144
  %v2876 = vpack.c.b16 %v2147, %v2146
  %v2877 = vpack.c.b16 %v2149, %v2148
  %v2878 = vpack.c.b16 %v2151, %v2150
  %v2879 = vpack.c.b16 %v2153, %v2152
  %v2880 = vpack.c.b16 %v2155, %v2154
  %v2881 = vpack.c.b16 %v2157, %v2156
  %v2882 = vpack.c.b16 %v2159, %v2158
  %v2883 = vpack.c.b16 %v2161, %v2160
  %v2884 = vpack.c.b16 %v2163, %v2162
  %v2885 = vpack.c.b16 %v2165, %v2164
  %v2886 = vpack.c.b16 %v2167, %v2166
  %v2887 = vpack.c.b16 %v2169, %v2168
  %v2888 = vpack.c.b16 %v2171, %v2170
  %v2889 = vpack.c.b16 %v2173, %v2172
  %v2890 = vpack.c.b16 %v2175, %v2174
  %v2891 = vpack.c.b16 %v2177, %v2176
  %v2892 = vpack.c.b16 %v2179, %v2178
  %v2893 = vpack.c.b16 %v2181, %v2180
  %v2894 = vpack.c.b16 %v2183, %v2182
  %v2895 = vpack.c.b16 %v2185, %v2184
  %v2896 = vpack.c.b16 %v2187, %v2186
  %v2897 = vpack.c.b16 %v2189, %v2188
  %v2898 = vpack.c.b16 %v2191, %v2190
  %v2899 = vpack.c.b16 %v2193, %v2192
  %v2900 = vpack.c.b16 %v2195, %v2194
  %v2901 = vpack.c.b16 %v2197, %v2196
  %v2902 = vpack.c.b16 %v2199, %v2198
  %v2903 = vpack.c.b16 %v2201, %v2200
  %v2904 = vpack.c.b16 %v2203, %v2202
  %v2905 = vpack.c.b16 %v2205, %v2204
  %v2906 = vpack.c.b16 %v2207, %v2206
  %v2907 = vpack.c.b16 %v2209, %v2208
  %v2908 = vpack.c.b16 %v2211, %v2210
  %v2909 = vpack.c.b16 %v2213, %v2212
  %v2910 = vpack.c.b16 %v2215, %v2214
  %v2911 = vpack.c.b16 %v2217, %v2216
  %v2912 = vpack.c.b16 %v2219, %v2218
  %v2913 = vpack.c.b16 %v2221, %v2220
  %v2914 = vpack.c.b16 %v2223, %v2222
  %v2915 = vpack.c.b16 %v2225, %v2224
  %v2916 = vpack.c.b16 %v2227, %v2226
  %v2917 = vpack.c.b16 %v2229, %v2228
  %v2918 = vpack.c.b16 %v2231, %v2230
  %v2919 = vpack.c.b16 %v2233, %v2232
  %v2920 = vpack.c.b16 %v2235, %v2234
  %v2921 = vpack.c.b16 %v2237, %v2236
  %v2922 = vpack.c.b16 %v2239, %v2238
  %v2923 = vpack.c.b16 %v2241, %v2240
  %v2924 = vpack.c.b16 %v2243, %v2242
  %v2925 = vpack.c.b16 %v2245, %v2244
  %v2926 = vpack.c.b16 %v2247, %v2246
  %v2927 = vpack.c.b16 %v2249, %v2248
  %v2928 = vpack.c.b16 %v2251, %v2250
  %v2929 = vpack.c.b16 %v2253, %v2252
  %v2930 = vpack.c.b16 %v2255, %v2254
  %v2931 = vpack.c.b16 %v2257, %v2256
  %v2932 = vpack.c.b16 %v2259, %v2258
  %v2933 = vpack.c.b16 %v2261, %v2260
  %v2934 = vpack.c.b16 %v2263, %v2262
  %v2935 = vpack.c.b16 %v2265, %v2264
  %v2936 = vpack.c.b16 %v2267, %v2266
  %v2937 = vpack.c.b16 %v2269, %v2268
  %v2938 = vpack.c.b16 %v2271, %v2270
  %v2939 = vpack.c.b16 %v2273, %v2272
  %v2940 = vpack.c.b16 %v2275, %v2274
  %v2941 = vpack.c.b16 %v2277, %v2276
  %v2942 = vpack.c.b16 %v2279, %v2278
  %v2943 = vpack.c.b16 %v2281, %v2280
  %v2944 = vpack.c.b16 %v2283, %v2282
  %v2945 = vpack.c.b16 %v2285, %v2284
  %v2946 = vpack.c.b16 %v2287, %v2286
  %v2947 = vpack.c.b16 %v2289, %v2288
  %v2948 = vpack.c.b16 %v2291, %v2290
  %v2949 = vpack.c.b16 %v2293, %v2292
  %v2950 = vpack.c.b16 %v2295, %v2294
  %v2951 = vpack.c.b16 %v2297, %v2296
  %v2952 = vpack.c.b16 %v2299, %v2298
  %v2953 = vpack.c.b16 %v2301, %v2300
  %v2954 = vpack.c.b16 %v2303, %v2302
  %v2955 = vpack.c.b16 %v2305, %v2304
  %v2956 = vpack.c.b16 %v2307, %v2306
  %v2957 = vpack.c.b16 %v2309, %v2308
  %v2958 = vpack.c.b16 %v2311, %v2310
  %v2959 = vpack.c.b16 %v2313, %v2312
  %v2960 = vpack.c.b16 %v2315, %v2314
  %v2961 = vpack.c.b16 %v2317, %v2316
  %v2962 = vpack.c.b16 %v2319, %v2318
  %v2963 = vpack.c.b16 %v2321, %v2320
  %v2964 = vpack.c.b16 %v2323, %v2322
  %v2965 = vpack.c.b16 %v2325, %v2324
  %v2966 = vpack.c.b16 %v2327, %v2326
  %v2967 = vpack.c.b16 %v2329, %v2328
  %v2968 = vpack.c.b16 %v2331, %v2330
  %v2969 = vpack.c.b16 %v2333, %v2332
  %v2970 = vpack.c.b16 %v2335, %v2334
  %v2971 = vpack.c.b16 %v2337, %v2336
  %v2972 = vpack.c.b16 %v2339, %v2338
  %v2973 = vpack.c.b16 %v2341, %v2340
  %v2974 = vpack.c.b16 %v2343, %v2342
  %v2975 = vpack.c.b16 %v2345, %v2344
  %v2976 = vpack.c.b16 %v2347, %v2346
  %v2977 = vpack.c.b16 %v2349, %v2348
  %v2978 = vpack.c.b16 %v2351, %v2350
  %v2979 = vpack.c.b16 %v2353, %v2352
  %v2980 = vpack.c.b16 %v2355, %v2354
  %v2981 = vpack.c.b16 %v2357, %v2356
  %v2982 = vpack.c.b16 %v2359, %v2358
  %v2983 = vpack.c.b16 %v2361, %v2360
  %v2984 = vpack.c.b16 %v2363, %v2362
  %v2985 = vpack.c.b16 %v2365, %v2364
  %v2986 = vpack.c.b16 %v2367, %v2366
  %v2987 = vpack.c.b16 %v2369, %v2368
  %v2988 = vpack.c.b16 %v2371, %v2370
  %v2989 = vpack.c.b16 %v2373, %v2372
  %v2990 = vpack.c.b16 %v2375, %v2374
  %v2991 = vpack.c.b16 %v2377, %v2376
  %v2992 = vpack.c.b16 %v2379, %v2378
  %v2993 = vpack.c.b16 %v2381, %v2380
  %v2994 = vpack.c.b16 %v2383, %v2382
  %v2995 = vpack.c.b16 %v2385, %v2384
  %v2996 = vpack.c.b16 %v2387, %v2386
  %v2997 = vpack.c.b16 %v2389, %v2388
  %v2998 = vpack.c.b16 %v2391, %v2390
  %v2999 = vpack.c.b16 %v2393, %v2392
  %v3000 = vpack.c.b16 %v2395, %v2394
  %v3001 = vpack.c.b16 %v2397, %v2396
  %v3002 = vpack.c.b16 %v2399, %v2398
  %v3003 = vpack.c.b16 %v2401, %v2400
  %v3004 = vpack.c.b16 %v2403, %v2402
  %v3005 = vpack.c.b16 %v2405, %v2404
  %v3006 = vpack.c.b16 %v2407, %v2406
  %v3007 = vpack.c.b16 %v2409, %v2408
  %v3008 = vpack.c.b16 %v2411, %v2410
  %v3009 = vpack.c.b16 %v2413, %v2412
  %v3010 = vpack.c.b16 %v2415, %v2414
  %v3011 = vpack.c.b16 %v2417, %v2416
  %v3012 = vpack.c.b16 %v2419, %v2418
  %v3013 = vpack.c.b16 %v2421, %v2420
  %v3014 = vpack.c.b16 %v2423, %v2422
  %v3015 = vpack.c.b16 %v2425, %v2424
  %v3016 = vpack.c.b16 %v2427, %v2426
  %v3017 = vpack.c.b16 %v2429, %v2428
  %v3018 = vpack.c.b16 %v2431, %v2430
  %v3019 = vpack.c.b16 %v2433, %v2432
  %v3020 = vpack.c.b16 %v2435, %v2434
  %v3021 = vpack.c.b16 %v2437, %v2436
  %v3022 = vpack.c.b16 %v2439, %v2438
  %v3023 = vpack.c.b16 %v2441, %v2440
  %v3024 = vpack.c.b16 %v2443, %v2442
  %v3025 = vpack.c.b16 %v2445, %v2444
  %v3026 = vpack.c.b16 %v2447, %v2446
  %v3027 = vpack.c.b16 %v2449, %v2448
  %v3028 = vpack.c.b16 %v2451, %v2450
  %v3029 = vpack.c.b16 %v2453, %v2452
  %v3030 = vpack.c.b16 %v2455, %v2454
  %v3031 = vpack.c.b16 %v2457, %v2456
  %v3032 = vpack.c.b16 %v2459, %v2458
  %v3033 = vpack.c.b16 %v2461, %v2460
  %v3034 = vpack.c.b16 %v2463, %v2462
  %v3035 = vpack.c.b16 %v2465, %v2464
  %v3036 = vpack.c.b16 %v2467, %v2466
  %v3037 = vpack.c.b16 %v2469, %v2468
  %v3038 = vpack.c.b16 %v2471, %v2470
  %v3039 = vpack.c.b16 %v2473, %v2472
  %v3040 = vpack.c.b16 %v2475, %v2474
  %v3041 = vpack.c.b16 %v2477, %v2476
  %v3042 = vpack.c.b16 %v2479, %v2478
  %v3043 = vpack.c.b16 %v2481, %v2480
  %v3044 = vpack.c.b16 %v2483, %v2482
  %v3045 = vpack.c.b16 %v2485, %v2484
  %v3046 = vpack.c.b16 %v2487, %v2486
  %v3047 = vpack.c.b16 %v2489, %v2488
  %v3048 = vpack.c.b16 %v2491, %v2490
  %v3049 = vpack.c.b16 %v2493, %v2492
  %v3050 = vpack.c.b16 %v2495, %v2494
  %v3051 = vpack.c.b16 %v2497, %v2496
  %v3052 = vpack.c.b16 %v2499, %v2498
  %v3053 = vpack.c.b16 %v2501, %v2500
  %v3054 = vpack.c.b16 %v2503, %v2502
  %v3055 = vpack.c.b16 %v2505, %v2504
  %v3056 = vpack.c.b16 %v2507, %v2506
  %v3057 = vpack.c.b16 %v2509, %v2508
  %v3058 = vpack.c.b16 %v2511, %v2510
  %v3059 = vpack.c.b16 %v2513, %v2512
  %v3060 = vpack.c.b16 %v2515, %v2514
  %v3061 = vpack.c.b16 %v2517, %v2516
  %v3062 = vpack.c.b16 %v2519, %v2518
  %v3063 = vpack.c.b16 %v2521, %v2520
  %v3064 = vpack.c.b16 %v2523, %v2522
  %v3065 = vpack.c.b16 %v2525, %v2524
  %v3066 = vpack.c.b16 %v2527, %v2526
  %v3067 = vpack.c.b16 %v2529, %v2528
  %v3068 = vpack.c.b16 %v2531, %v2530
  %v3069 = vpack.c.b16 %v2533, %v2532
  %v3070 = vpack.c.b16 %v2535, %v2534
  %v3071 = vpack.c.b16 %v2537, %v2536
  %v3072 = vpack.c.b16 %v2539, %v2538
  %v3073 = vpack.c.b16 %v2541, %v2540
  %v3074 = vpack.c.b16 %v2543, %v2542
  %v3075 = vpack.c.b16 %v2545, %v2544
  %v3076 = vpack.c.b16 %v2547, %v2546
  %v3077 = vpack.c.b16 %v2549, %v2548
  %v3078 = vpack.c.b16 %v2551, %v2550
  %v3079 = vpack.c.b16 %v2553, %v2552
  %v3080 = vpack.c.b16 %v2555, %v2554
  %v3081 = vpack.c.b16 %v2557, %v2556
  %v3082 = vpack.c.b16 %v2559, %v2558
  %v3083 = vpack.c.b16 %v2561, %v2560
  %v3084 = vpack.c.b16 %v2563, %v2562
  %v3085 = vpack.c.b16 %v2565, %v2564
  %v3086 = vpack.c.b16 %v2567, %v2566
  %v3087 = vpack.c.b16 %v2569, %v2568
  %v3088 = vpack.c.b16 %v2571, %v2570
  %v3089 = vpack.c.b16 %v2573, %v2572
  %v3090 = vpack.c.b16 %v2575, %v2574
  %v3091 = vpack.c.b16 %v2577, %v2576
  %v3092 = vpack.c.b16 %v2579, %v2578
  %v3093 = vpack.c.b16 %v2581, %v2580
  %v3094 = vpack.c.b16 %v2583, %v2582
  %v3095 = vpack.c.b16 %v2585, %v2584
  %v3096 = vpack.c.b16 %v2587, %v2586
  %v3097 = vpack.c.b16 %v2589, %v2588
  %v3098 = vpack.c.b16 %v2591, %v2590
  %v3099 = vpack.c.b16 %v2593, %v2592
  %v3100 = vpack.c.b16 %v2595, %v2594
  %v3101 = vpack.c.b16 %v2597, %v2596
  %v3102 = vpack.c.b16 %v2599, %v2598
  %v3103 = vpack.c.b16 %v2601, %v2600
  %v3104 = vpack.c.b16 %v2603, %v2602
  %v3105 = vpack.c.b16 %v2605, %v2604
  %v3106 = vpack.c.b16 %v2607, %v2606
  %v3107 = vpack.c.b16 %v2609, %v2608
  %v3108 = vpack.c.b16 %v2611, %v2610
  %v3109 = vpack.c.b16 %v2613, %v2612
  %v3110 = vpack.c.b16 %v2615, %v2614
  %v3111 = vpack.c.b16 %v2617, %v2616
  %v3112 = vpack.c.b16 %v2619, %v2618
  %v3113 = vpack.c.b16 %v2621, %v2620
  %v3114 = vpack.c.b16 %v2623, %v2622
  %v3115 = vpack.c.b16 %v2625, %v2624
  %v3116 = vpack.c.b16 %v2627, %v2626
  %v3117 = vpack.c.b16 %v2629, %v2628
  %v3118 = vpack.c.b16 %v2631, %v2630
  %v3119 = vpack.c.b16 %v2633, %v2632
  %v3120 = vpack.c.b16 %v2635, %v2634
  %v3121 = vpack.c.b16 %v2637, %v2636
  %v3122 = vpack.c.b16 %v2639, %v2638
  %v3123 = vpack.c.b16 %v2641, %v2640
  %v3124 = vpack.c.b16 %v2643, %v2642
  %v3125 = vpack.c.b16 %v2645, %v2644
  %v3126 = vpack.c.b16 %v2647, %v2646
  %v3127 = vpack.c.b16 %v2649, %v2648
  %v3128 = vpack.c.b16 %v2651, %v2650
  %v3129 = vpack.c.b16 %v2653, %v2652
  %v3130 = vpack.c.b16 %v2655, %v2654
  %v3131 = vpack.c.b16 %v2657, %v2656
  %v3132 = vpack.c.b16 %v2659, %v2658
  %v3133 = vpack.c.b16 %v2661, %v2660
  %v3134 = vpack.c.b16 %v2663, %v2662
  %v3135 = vpack.c.b16 %v2665, %v2664
  %v3136 = vpack.c.b16 %v2667, %v2666
  %v3137 = vpack.c.b16 %v2669, %v2668
  %v3138 = vpack.c.b16 %v2671, %v2670
  %v3139 = vpack.c.b16 %v2673, %v2672
  %v3140 = vpack.c.b16 %v2675, %v2674
  %v3141 = vpack.c.b16 %v2677, %v2676
  %v3142 = vpack.c.b16 %v2679, %v2678
  %v3143 = vpack.c.b16 %v2681, %v2680
  %v3144 = vpack.c.b16 %v2683, %v2682
  %v3145 = vpack.c.b16 %v2685, %v2684
  %v3146 = vpack.c.b16 %v2687, %v2686
  %v3147 = vpack.c.b16 %v2689, %v2688
  %v3148 = vpack.c.b16 %v2691, %v2690
  %v3149 = vpack.c.b16 %v2693, %v2692
  %v3150 = vpack.c.b16 %v2695, %v2694
  %v3151 = vpack.c.b16 %v2697, %v2696
  %v3152 = vpack.c.b16 %v2699, %v2698
  %v3153 = vpack.c.b16 %v2701, %v2700
  %v3154 = vpack.c.b16 %v2703, %v2702
  %v3155 = vpack.c.b16 %v2705, %v2704
  %v3156 = vpack.c.b16 %v2707, %v2706
  %v3157 = vpack.c.b16 %v2709, %v2708
  %v3158 = vpack.c.b16 %v2711, %v2710
  %v3159 = vpack.c.b16 %v2713, %v2712
  %v3160 = vpack.c.b16 %v2715, %v2714
  %v3161 = vpack.c.b16 %v2717, %v2716
  %v3162 = vpack.c.b16 %v2719, %v2718
  %v3163 = vpack.c.b16 %v2721, %v2720
  %v3164 = vpack.c.b16 %v2723, %v2722
  %v3165 = vpack.c.b16 %v2725, %v2724
  %v3166 = vpack.c.b16 %v2727, %v2726
  %v3167 = vpack.c.b16 %v2729, %v2728
  %v3168 = vpack.c.b16 %v2731, %v2730
  %v3169 = vpack.c.b16 %v2733, %v2732
  %v3170 = vpack.c.b16 %v2735, %v2734
  %v3171 = vpack.c.b16 %v2737, %v2736
  %v3172 = vpack.c.b16 %v2739, %v2738
  %v3173 = vpack.c.b16 %v2741, %v2740
  %v3174 = vpack.c.b16 %v2743, %v2742
  %v3175 = vpack.c.b16 %v2745, %v2744
  %v3176 = vpack.c.b16 %v2747, %v2746
  %v3177 = vpack.c.b16 %v2749, %v2748
  %v3178 = vpack.c.b16 %v2751, %v2750
  %v3179 = vpack.c.b16 %v2753, %v2752
  %v3180 = vpack.c.b16 %v2755, %v2754
  %v3181 = vpack.c.b16 %v2757, %v2756
  %v3182 = vpack.c.b16 %v2759, %v2758
  %v3183 = vpack.c.b16 %v2761, %v2760
  %v3184 = vpack.c.b16 %v2763, %v2762
  %v3185 = vpack.c.b16 %v2765, %v2764
  %vm3606 = vcmask 523264
  %v3608 = vsel %vm3606, %v1033, 0
  %3610 = vmatprep.subr.bf16.mxu0 0
  %3611 = vmatpush1.bf16.msra.mxu0 %v2766
  %3612 = vmatprep.subr.bf16.mxu0 0
  %3613 = vmatpush1.bf16.msra.mxu0 %v2767
  %3614 = vmatprep.subr.bf16.mxu0 0
  %3615 = vmatpush1.bf16.msra.mxu0 %v2768
  %3616 = vmatprep.subr.bf16.mxu0 0
  %3617 = vmatpush1.bf16.msra.mxu0 %v2769
  %3618 = vmatprep.subr.bf16.mxu0 0
  %3619 = vmatpush1.bf16.msra.mxu0 %v2770
  %3620 = vmatprep.subr.bf16.mxu0 0
  %3621 = vmatpush1.bf16.msra.mxu0 %v2771
  %3622 = vmatprep.subr.bf16.mxu0 0
  %3623 = vmatpush1.bf16.msra.mxu0 %v2772
  %3624 = vmatprep.subr.bf16.mxu0 0
  %3625 = vmatpush1.bf16.msra.mxu0 %v2773
  %3626 = vmatprep.subr.bf16.mxu0 0
  %3627 = vmatpush1.bf16.msra.mxu0 %v2774
  %3628 = vmatprep.subr.bf16.mxu0 0
  %3629 = vmatpush1.bf16.msra.mxu0 %v2775
  %3630 = vmatprep.subr.bf16.mxu0 0
  %3631 = vmatpush1.bf16.msra.mxu0 %v2776
  %3632 = vmatprep.subr.bf16.mxu0 0
  %3633 = vmatpush1.bf16.msra.mxu0 %v2777
  %3634 = vmatprep.subr.bf16.mxu0 0
  %3635 = vmatpush1.bf16.msra.mxu0 %v2778
  %3636 = vmatprep.subr.bf16.mxu0 0
  %3637 = vmatpush1.bf16.msra.mxu0 %v2779
  %3638 = vmatprep.subr.bf16.mxu0 0
  %3639 = vmatpush1.bf16.msra.mxu0 %v2780
  %3640 = vmatprep.subr.bf16.mxu0 0
  %3641 = vmatpush1.bf16.msra.mxu0 %v2781
  %3642 = vmatprep.mubr.bf16.mxu0 %v982
  %3643 = vmatmul.mubr.bf16.gmra.mrb[0].mxu0 %v981
  %v3644 = vpop.f32.mrb[0].mxu0
  %v3645 = vadd.f32 %v899, %v3644
  %v3646 = vpop.f32.mrb[0].mxu0
  %v3647 = vpop.f32.mrb[0].mxu0
  %v3648 = vpop.f32.mrb[0].mxu0
  %3649 = vdwg.mxu0
  %3650 = vmatprep.subr.bf16.mxu0 0
  %3651 = vmatpush1.bf16.msra.mxu0 %v2782
  %3652 = vmatprep.subr.bf16.mxu0 0
  %3653 = vmatpush1.bf16.msra.mxu0 %v2783
  %3654 = vmatprep.subr.bf16.mxu0 0
  %3655 = vmatpush1.bf16.msra.mxu0 %v2784
  %3656 = vmatprep.subr.bf16.mxu0 0
  %3657 = vmatpush1.bf16.msra.mxu0 %v2785
  %3658 = vmatprep.subr.bf16.mxu0 0
  %3659 = vmatpush1.bf16.msra.mxu0 %v2786
  %3660 = vmatprep.subr.bf16.mxu0 0
  %3661 = vmatpush1.bf16.msra.mxu0 %v2787
  %3662 = vmatprep.subr.bf16.mxu0 0
  %3663 = vmatpush1.bf16.msra.mxu0 %v2788
  %3664 = vmatprep.subr.bf16.mxu0 0
  %3665 = vmatpush1.bf16.msra.mxu0 %v2789
  %3666 = vmatprep.subr.bf16.mxu0 0
  %3667 = vmatpush1.bf16.msra.mxu0 %v2790
  %3668 = vmatprep.subr.bf16.mxu0 0
  %3669 = vmatpush1.bf16.msra.mxu0 %v2791
  %3670 = vmatprep.subr.bf16.mxu0 0
  %3671 = vmatpush1.bf16.msra.mxu0 %v2792
  %3672 = vmatprep.subr.bf16.mxu0 0
  %3673 = vmatpush1.bf16.msra.mxu0 %v2793
  %3674 = vmatprep.subr.bf16.mxu0 0
  %3675 = vmatpush1.bf16.msra.mxu0 %v2794
  %3676 = vmatprep.subr.bf16.mxu0 0
  %3677 = vmatpush1.bf16.msra.mxu0 %v2795
  %3678 = vmatprep.subr.bf16.mxu0 0
  %3679 = vmatpush1.bf16.msra.mxu0 %v2796
  %3680 = vmatprep.subr.bf16.mxu0 0
  %3681 = vmatpush1.bf16.msra.mxu0 %v2797
  %3682 = vmatprep.mubr.bf16.mxu0 %v984
  %3683 = vmatmul.mubr.bf16.gmra.mrb[0].mxu0 %v983
  %v3684 = vpop.f32.mrb[0].mxu0
  %v3685 = vadd.f32 %v3645, %v3684
  %v3686 = vpop.f32.mrb[0].mxu0
  %v3687 = vpop.f32.mrb[0].mxu0
  %v3688 = vpop.f32.mrb[0].mxu0
  %3689 = vdwg.mxu0
  %3690 = vmatprep.subr.bf16.mxu0 0
  %3691 = vmatpush1.bf16.msra.mxu0 %v2798
  %3692 = vmatprep.subr.bf16.mxu0 0
  %3693 = vmatpush1.bf16.msra.mxu0 %v2799
  %3694 = vmatprep.subr.bf16.mxu0 0
  %3695 = vmatpush1.bf16.msra.mxu0 %v2800
  %3696 = vmatprep.subr.bf16.mxu0 0
  %3697 = vmatpush1.bf16.msra.mxu0 %v2801
  %3698 = vmatprep.subr.bf16.mxu0 0
  %3699 = vmatpush1.bf16.msra.mxu0 %v2802
  %3700 = vmatprep.subr.bf16.mxu0 0
  %3701 = vmatpush1.bf16.msra.mxu0 %v2803
  %3702 = vmatprep.subr.bf16.mxu0 0
  %3703 = vmatpush1.bf16.msra.mxu0 %v2804
  %3704 = vmatprep.subr.bf16.mxu0 0
  %3705 = vmatpush1.bf16.msra.mxu0 %v2805
  %3706 = vmatprep.subr.bf16.mxu0 0
  %3707 = vmatpush1.bf16.msra.mxu0 %v2806
  %3708 = vmatprep.subr.bf16.mxu0 0
  %3709 = vmatpush1.bf16.msra.mxu0 %v2807
  %3710 = vmatprep.subr.bf16.mxu0 0
  %3711 = vmatpush1.bf16.msra.mxu0 %v2808
  %3712 = vmatprep.subr.bf16.mxu0 0
  %3713 = vmatpush1.bf16.msra.mxu0 %v2809
  %3714 = vmatprep.subr.bf16.mxu0 0
  %3715 = vmatpush1.bf16.msra.mxu0 %v2810
  %3716 = vmatprep.subr.bf16.mxu0 0
  %3717 = vmatpush1.bf16.msra.mxu0 %v2811
  %3718 = vmatprep.subr.bf16.mxu0 0
  %3719 = vmatpush1.bf16.msra.mxu0 %v2812
  %3720 = vmatprep.subr.bf16.mxu0 0
  %3721 = vmatpush1.bf16.msra.mxu0 %v2813
  %3722 = vmatprep.mubr.bf16.mxu0 %v986
  %3723 = vmatmul.mubr.bf16.gmra.mrb[0].mxu0 %v985
  %v3724 = vpop.f32.mrb[0].mxu0
  %v3725 = vadd.f32 %v3685, %v3724
  %v3726 = vpop.f32.mrb[0].mxu0
  %v3727 = vpop.f32.mrb[0].mxu0
  %v3728 = vpop.f32.mrb[0].mxu0
  %3729 = vdwg.mxu0
  %3730 = vmatprep.subr.bf16.mxu0 0
  %3731 = vmatpush1.bf16.msra.mxu0 %v2814
  %3732 = vmatprep.subr.bf16.mxu0 0
  %3733 = vmatpush1.bf16.msra.mxu0 %v2815
  %3734 = vmatprep.subr.bf16.mxu0 0
  %3735 = vmatpush1.bf16.msra.mxu0 %v2816
  %3736 = vmatprep.subr.bf16.mxu0 0
  %3737 = vmatpush1.bf16.msra.mxu0 %v2817
  %3738 = vmatprep.subr.bf16.mxu0 0
  %3739 = vmatpush1.bf16.msra.mxu0 %v2818
  %3740 = vmatprep.subr.bf16.mxu0 0
  %3741 = vmatpush1.bf16.msra.mxu0 %v2819
  %3742 = vmatprep.subr.bf16.mxu0 0
  %3743 = vmatpush1.bf16.msra.mxu0 %v2820
  %3744 = vmatprep.subr.bf16.mxu0 0
  %3745 = vmatpush1.bf16.msra.mxu0 %v2821
  %3746 = vmatprep.subr.bf16.mxu0 0
  %3747 = vmatpush1.bf16.msra.mxu0 %v2822
  %3748 = vmatprep.subr.bf16.mxu0 0
  %3749 = vmatpush1.bf16.msra.mxu0 %v2823
  %3750 = vmatprep.subr.bf16.mxu0 0
  %3751 = vmatpush1.bf16.msra.mxu0 %v2824
  %3752 = vmatprep.subr.bf16.mxu0 0
  %3753 = vmatpush1.bf16.msra.mxu0 %v2825
  %3754 = vmatprep.subr.bf16.mxu0 0
  %3755 = vmatpush1.bf16.msra.mxu0 %v2826
  %3756 = vmatprep.subr.bf16.mxu0 0
  %3757 = vmatpush1.bf16.msra.mxu0 %v2827
  %3758 = vmatprep.subr.bf16.mxu0 0
  %3759 = vmatpush1.bf16.msra.mxu0 %v2828
  %3760 = vmatprep.subr.bf16.mxu0 0
  %3761 = vmatpush1.bf16.msra.mxu0 %v2829
  %3762 = vmatprep.mubr.bf16.mxu0 %v988
  %3763 = vmatmul.mubr.bf16.gmra.mrb[0].mxu0 %v987
  %v3764 = vpop.f32.mrb[0].mxu0
  %v3765 = vadd.f32 %v3725, %v3764
  %v3766 = vpop.f32.mrb[0].mxu0
  %v3767 = vpop.f32.mrb[0].mxu0
  %v3768 = vpop.f32.mrb[0].mxu0
  %3769 = vdwg.mxu0
  %3770 = vmatprep.subr.bf16.mxu0 0
  %3771 = vmatpush1.bf16.msra.mxu0 %v2830
  %3772 = vmatprep.subr.bf16.mxu0 0
  %3773 = vmatpush1.bf16.msra.mxu0 %v2831
  %3774 = vmatprep.subr.bf16.mxu0 0
  %3775 = vmatpush1.bf16.msra.mxu0 %v2832
  %3776 = vmatprep.subr.bf16.mxu0 0
  %3777 = vmatpush1.bf16.msra.mxu0 %v2833
  %3778 = vmatprep.subr.bf16.mxu0 0
  %3779 = vmatpush1.bf16.msra.mxu0 %v2834
  %3780 = vmatprep.subr.bf16.mxu0 0
  %3781 = vmatpush1.bf16.msra.mxu0 %v2835
  %3782 = vmatprep.subr.bf16.mxu0 0
  %3783 = vmatpush1.bf16.msra.mxu0 %v2836
  %3784 = vmatprep.subr.bf16.mxu0 0
  %3785 = vmatpush1.bf16.msra.mxu0 %v2837
  %3786 = vmatprep.subr.bf16.mxu0 0
  %3787 = vmatpush1.bf16.msra.mxu0 %v2838
  %3788 = vmatprep.subr.bf16.mxu0 0
  %3789 = vmatpush1.bf16.msra.mxu0 %v2839
  %3790 = vmatprep.subr.bf16.mxu0 0
  %3791 = vmatpush1.bf16.msra.mxu0 %v2840
  %3792 = vmatprep.subr.bf16.mxu0 0
  %3793 = vmatpush1.bf16.msra.mxu0 %v2841
  %3794 = vmatprep.subr.bf16.mxu0 0
  %3795 = vmatpush1.bf16.msra.mxu0 %v2842
  %3796 = vmatprep.subr.bf16.mxu0 0
  %3797 = vmatpush1.bf16.msra.mxu0 %v2843
  %3798 = vmatprep.subr.bf16.mxu0 0
  %3799 = vmatpush1.bf16.msra.mxu0 %v2844
  %3800 = vmatprep.subr.bf16.mxu0 0
  %3801 = vmatpush1.bf16.msra.mxu0 %v2845
  %3802 = vmatprep.mubr.bf16.mxu0 %v990
  %3803 = vmatmul.mubr.bf16.gmra.mrb[0].mxu0 %v989
  %v3804 = vpop.f32.mrb[0].mxu0
  %v3805 = vadd.f32 %v3765, %v3804
  %v3806 = vpop.f32.mrb[0].mxu0
  %v3807 = vpop.f32.mrb[0].mxu0
  %v3808 = vpop.f32.mrb[0].mxu0
  %3809 = vdwg.mxu0
  %3810 = vmatprep.subr.bf16.mxu0 0
  %3811 = vmatpush1.bf16.msra.mxu0 %v2846
  %3812 = vmatprep.subr.bf16.mxu0 0
  %3813 = vmatpush1.bf16.msra.mxu0 %v2847
  %3814 = vmatprep.subr.bf16.mxu0 0
  %3815 = vmatpush1.bf16.msra.mxu0 %v2848
  %3816 = vmatprep.subr.bf16.mxu0 0
  %3817 = vmatpush1.bf16.msra.mxu0 %v2849
  %3818 = vmatprep.subr.bf16.mxu0 0
  %3819 = vmatpush1.bf16.msra.mxu0 %v2850
  %3820 = vmatprep.subr.bf16.mxu0 0
  %3821 = vmatpush1.bf16.msra.mxu0 %v2851
  %3822 = vmatprep.subr.bf16.mxu0 0
  %3823 = vmatpush1.bf16.msra.mxu0 %v2852
  %3824 = vmatprep.subr.bf16.mxu0 0
  %3825 = vmatpush1.bf16.msra.mxu0 %v2853
  %3826 = vmatprep.subr.bf16.mxu0 0
  %3827 = vmatpush1.bf16.msra.mxu0 %v2854
  %3828 = vmatprep.subr.bf16.mxu0 0
  %3829 = vmatpush1.bf16.msra.mxu0 %v2855
  %3830 = vmatprep.subr.bf16.mxu0 0
  %3831 = vmatpush1.bf16.msra.mxu0 %v2856
  %3832 = vmatprep.subr.bf16.mxu0 0
  %3833 = vmatpush1.bf16.msra.mxu0 %v2857
  %3834 = vmatprep.subr.bf16.mxu0 0
  %3835 = vmatpush1.bf16.msra.mxu0 %v2858
  %3836 = vmatprep.subr.bf16.mxu0 0
  %3837 = vmatpush1.bf16.msra.mxu0 %v2859
  %3838 = vmatprep.subr.bf16.mxu0 0
  %3839 = vmatpush1.bf16.msra.mxu0 %v2860
  %3840 = vmatprep.subr.bf16.mxu0 0
  %3841 = vmatpush1.bf16.msra.mxu0 %v2861
  %3842 = vmatprep.mubr.bf16.mxu0 %v992
  %3843 = vmatmul.mubr.bf16.gmra.mrb[0].mxu0 %v991
  %v3844 = vpop.f32.mrb[0].mxu0
  %v3845 = vadd.f32 %v3805, %v3844
  %v3846 = vpop.f32.mrb[0].mxu0
  %v3847 = vpop.f32.mrb[0].mxu0
  %v3848 = vpop.f32.mrb[0].mxu0
  %3849 = vdwg.mxu0
  %3850 = vmatprep.subr.bf16.mxu0 0
  %3851 = vmatpush1.bf16.msra.mxu0 %v2862
  %3852 = vmatprep.subr.bf16.mxu0 0
  %3853 = vmatpush1.bf16.msra.mxu0 %v2863
  %3854 = vmatprep.subr.bf16.mxu0 0
  %3855 = vmatpush1.bf16.msra.mxu0 %v2864
  %3856 = vmatprep.subr.bf16.mxu0 0
  %3857 = vmatpush1.bf16.msra.mxu0 %v2865
  %3858 = vmatprep.subr.bf16.mxu0 0
  %3859 = vmatpush1.bf16.msra.mxu0 %v2866
  %3860 = vmatprep.subr.bf16.mxu0 0
  %3861 = vmatpush1.bf16.msra.mxu0 %v2867
  %3862 = vmatprep.subr.bf16.mxu0 0
  %3863 = vmatpush1.bf16.msra.mxu0 %v2868
  %3864 = vmatprep.subr.bf16.mxu0 0
  %3865 = vmatpush1.bf16.msra.mxu0 %v2869
  %3866 = vmatprep.subr.bf16.mxu0 0
  %3867 = vmatpush1.bf16.msra.mxu0 %v2870
  %3868 = vmatprep.subr.bf16.mxu0 0
  %3869 = vmatpush1.bf16.msra.mxu0 %v2871
  %3870 = vmatprep.subr.bf16.mxu0 0
  %3871 = vmatpush1.bf16.msra.mxu0 %v2872
  %3872 = vmatprep.subr.bf16.mxu0 0
  %3873 = vmatpush1.bf16.msra.mxu0 %v2873
  %3874 = vmatprep.subr.bf16.mxu0 0
  %3875 = vmatpush1.bf16.msra.mxu0 %v2874
  %3876 = vmatprep.subr.bf16.mxu0 0
  %3877 = vmatpush1.bf16.msra.mxu0 %v2875
  %3878 = vmatprep.subr.bf16.mxu0 0
  %3879 = vmatpush1.bf16.msra.mxu0 %v2876
  %3880 = vmatprep.subr.bf16.mxu0 0
  %3881 = vmatpush1.bf16.msra.mxu0 %v2877
  %3882 = vmatprep.mubr.bf16.mxu0 %v994
  %3883 = vmatmul.mubr.bf16.gmra.mrb[0].mxu0 %v993
  %v3884 = vpop.f32.mrb[0].mxu0
  %v3885 = vadd.f32 %v3845, %v3884
  %v3886 = vpop.f32.mrb[0].mxu0
  %v3887 = vpop.f32.mrb[0].mxu0
  %v3888 = vpop.f32.mrb[0].mxu0
  %3889 = vdwg.mxu0
  %3890 = vmatprep.subr.bf16.mxu0 0
  %3891 = vmatpush1.bf16.msra.mxu0 %v2878
  %3892 = vmatprep.subr.bf16.mxu0 0
  %3893 = vmatpush1.bf16.msra.mxu0 %v2879
  %3894 = vmatprep.subr.bf16.mxu0 0
  %3895 = vmatpush1.bf16.msra.mxu0 %v2880
  %3896 = vmatprep.subr.bf16.mxu0 0
  %3897 = vmatpush1.bf16.msra.mxu0 %v2881
  %3898 = vmatprep.subr.bf16.mxu0 0
  %3899 = vmatpush1.bf16.msra.mxu0 %v2882
  %3900 = vmatprep.subr.bf16.mxu0 0
  %3901 = vmatpush1.bf16.msra.mxu0 %v2883
  %3902 = vmatprep.subr.bf16.mxu0 0
  %3903 = vmatpush1.bf16.msra.mxu0 %v2884
  %3904 = vmatprep.subr.bf16.mxu0 0
  %3905 = vmatpush1.bf16.msra.mxu0 %v2885
  %3906 = vmatprep.subr.bf16.mxu0 0
  %3907 = vmatpush1.bf16.msra.mxu0 %v2886
  %3908 = vmatprep.subr.bf16.mxu0 0
  %3909 = vmatpush1.bf16.msra.mxu0 %v2887
  %3910 = vmatprep.subr.bf16.mxu0 0
  %3911 = vmatpush1.bf16.msra.mxu0 %v2888
  %3912 = vmatprep.subr.bf16.mxu0 0
  %3913 = vmatpush1.bf16.msra.mxu0 %v2889
  %3914 = vmatprep.subr.bf16.mxu0 0
  %3915 = vmatpush1.bf16.msra.mxu0 %v2890
  %3916 = vmatprep.subr.bf16.mxu0 0
  %3917 = vmatpush1.bf16.msra.mxu0 %v2891
  %3918 = vmatprep.subr.bf16.mxu0 0
  %3919 = vmatpush1.bf16.msra.mxu0 %v2892
  %3920 = vmatprep.subr.bf16.mxu0 0
  %3921 = vmatpush1.bf16.msra.mxu0 %v2893
  %3922 = vmatprep.mubr.bf16.mxu0 %v996
  %3923 = vmatmul.mubr.bf16.gmra.mrb[0].mxu0 %v995
  %v3924 = vpop.f32.mrb[0].mxu0
  %v3925 = vadd.f32 %v3885, %v3924
  %v3926 = vpop.f32.mrb[0].mxu0
  %v3927 = vpop.f32.mrb[0].mxu0
  %v3928 = vpop.f32.mrb[0].mxu0
  %3929 = vdwg.mxu0
  %3930 = vmatprep.subr.bf16.mxu0 0
  %3931 = vmatpush1.bf16.msra.mxu0 %v2894
  %3932 = vmatprep.subr.bf16.mxu0 0
  %3933 = vmatpush1.bf16.msra.mxu0 %v2895
  %3934 = vmatprep.subr.bf16.mxu0 0
  %3935 = vmatpush1.bf16.msra.mxu0 %v2896
  %3936 = vmatprep.subr.bf16.mxu0 0
  %3937 = vmatpush1.bf16.msra.mxu0 %v2897
  %3938 = vmatprep.subr.bf16.mxu0 0
  %3939 = vmatpush1.bf16.msra.mxu0 %v2898
  %3940 = vmatprep.subr.bf16.mxu0 0
  %3941 = vmatpush1.bf16.msra.mxu0 %v2899
  %3942 = vmatprep.subr.bf16.mxu0 0
  %3943 = vmatpush1.bf16.msra.mxu0 %v2900
  %3944 = vmatprep.subr.bf16.mxu0 0
  %3945 = vmatpush1.bf16.msra.mxu0 %v2901
  %3946 = vmatprep.subr.bf16.mxu0 0
  %3947 = vmatpush1.bf16.msra.mxu0 %v2902
  %3948 = vmatprep.subr.bf16.mxu0 0
  %3949 = vmatpush1.bf16.msra.mxu0 %v2903
  %3950 = vmatprep.subr.bf16.mxu0 0
  %3951 = vmatpush1.bf16.msra.mxu0 %v2904
  %3952 = vmatprep.subr.bf16.mxu0 0
  %3953 = vmatpush1.bf16.msra.mxu0 %v2905
  %3954 = vmatprep.subr.bf16.mxu0 0
  %3955 = vmatpush1.bf16.msra.mxu0 %v2906
  %3956 = vmatprep.subr.bf16.mxu0 0
  %3957 = vmatpush1.bf16.msra.mxu0 %v2907
  %3958 = vmatprep.subr.bf16.mxu0 0
  %3959 = vmatpush1.bf16.msra.mxu0 %v2908
  %3960 = vmatprep.subr.bf16.mxu0 0
  %3961 = vmatpush1.bf16.msra.mxu0 %v2909
  %3962 = vmatprep.mubr.bf16.mxu0 %v998
  %3963 = vmatmul.mubr.bf16.gmra.mrb[0].mxu0 %v997
  %v3964 = vpop.f32.mrb[0].mxu0
  %v3965 = vadd.f32 %v3925, %v3964
  %v3966 = vpop.f32.mrb[0].mxu0
  %v3967 = vpop.f32.mrb[0].mxu0
  %v3968 = vpop.f32.mrb[0].mxu0
  %3969 = vdwg.mxu0
  %3970 = vmatprep.subr.bf16.mxu0 0
  %3971 = vmatpush1.bf16.msra.mxu0 %v2910
  %3972 = vmatprep.subr.bf16.mxu0 0
  %3973 = vmatpush1.bf16.msra.mxu0 %v2911
  %3974 = vmatprep.subr.bf16.mxu0 0
  %3975 = vmatpush1.bf16.msra.mxu0 %v2912
  %3976 = vmatprep.subr.bf16.mxu0 0
  %3977 = vmatpush1.bf16.msra.mxu0 %v2913
  %3978 = vmatprep.subr.bf16.mxu0 0
  %3979 = vmatpush1.bf16.msra.mxu0 %v2914
  %3980 = vmatprep.subr.bf16.mxu0 0
  %3981 = vmatpush1.bf16.msra.mxu0 %v2915
  %3982 = vmatprep.subr.bf16.mxu0 0
  %3983 = vmatpush1.bf16.msra.mxu0 %v2916
  %3984 = vmatprep.subr.bf16.mxu0 0
  %3985 = vmatpush1.bf16.msra.mxu0 %v2917
  %3986 = vmatprep.subr.bf16.mxu0 0
  %3987 = vmatpush1.bf16.msra.mxu0 %v2918
  %3988 = vmatprep.subr.bf16.mxu0 0
  %3989 = vmatpush1.bf16.msra.mxu0 %v2919
  %3990 = vmatprep.subr.bf16.mxu0 0
  %3991 = vmatpush1.bf16.msra.mxu0 %v2920
  %3992 = vmatprep.subr.bf16.mxu0 0
  %3993 = vmatpush1.bf16.msra.mxu0 %v2921
  %3994 = vmatprep.subr.bf16.mxu0 0
  %3995 = vmatpush1.bf16.msra.mxu0 %v2922
  %3996 = vmatprep.subr.bf16.mxu0 0
  %3997 = vmatpush1.bf16.msra.mxu0 %v2923
  %3998 = vmatprep.subr.bf16.mxu0 0
  %3999 = vmatpush1.bf16.msra.mxu0 %v2924
  %4000 = vmatprep.subr.bf16.mxu0 0
  %4001 = vmatpush1.bf16.msra.mxu0 %v2925
  %4002 = vmatprep.mubr.bf16.mxu0 %v1000
  %4003 = vmatmul.mubr.bf16.gmra.mrb[0].mxu0 %v999
  %v4004 = vpop.f32.mrb[0].mxu0
  %v4005 = vadd.f32 %v3965, %v4004
  %v4006 = vpop.f32.mrb[0].mxu0
  %v4007 = vpop.f32.mrb[0].mxu0
  %v4008 = vpop.f32.mrb[0].mxu0
  %4009 = vdwg.mxu0
  %4010 = vmatprep.subr.bf16.mxu0 0
  %4011 = vmatpush1.bf16.msra.mxu0 %v2926
  %4012 = vmatprep.subr.bf16.mxu0 0
  %4013 = vmatpush1.bf16.msra.mxu0 %v2927
  %4014 = vmatprep.subr.bf16.mxu0 0
  %4015 = vmatpush1.bf16.msra.mxu0 %v2928
  %4016 = vmatprep.subr.bf16.mxu0 0
  %4017 = vmatpush1.bf16.msra.mxu0 %v2929
  %4018 = vmatprep.subr.bf16.mxu0 0
  %4019 = vmatpush1.bf16.msra.mxu0 %v2930
  %4020 = vmatprep.subr.bf16.mxu0 0
  %4021 = vmatpush1.bf16.msra.mxu0 %v2931
  %4022 = vmatprep.subr.bf16.mxu0 0
  %4023 = vmatpush1.bf16.msra.mxu0 %v2932
  %4024 = vmatprep.subr.bf16.mxu0 0
  %4025 = vmatpush1.bf16.msra.mxu0 %v2933
  %4026 = vmatprep.subr.bf16.mxu0 0
  %4027 = vmatpush1.bf16.msra.mxu0 %v2934
  %4028 = vmatprep.subr.bf16.mxu0 0
  %4029 = vmatpush1.bf16.msra.mxu0 %v2935
  %4030 = vmatprep.subr.bf16.mxu0 0
  %4031 = vmatpush1.bf16.msra.mxu0 %v2936
  %4032 = vmatprep.subr.bf16.mxu0 0
  %4033 = vmatpush1.bf16.msra.mxu0 %v2937
  %4034 = vmatprep.subr.bf16.mxu0 0
  %4035 = vmatpush1.bf16.msra.mxu0 %v2938
  %4036 = vmatprep.subr.bf16.mxu0 0
  %4037 = vmatpush1.bf16.msra.mxu0 %v2939
  %4038 = vmatprep.subr.bf16.mxu0 0
  %4039 = vmatpush1.bf16.msra.mxu0 %v2940
  %4040 = vmatprep.subr.bf16.mxu0 0
  %4041 = vmatpush1.bf16.msra.mxu0 %v2941
  %4042 = vmatprep.mubr.bf16.mxu0 %v1002
  %4043 = vmatmul.mubr.bf16.gmra.mrb[0].mxu0 %v1001
  %v4044 = vpop.f32.mrb[0].mxu0
  %v4045 = vadd.f32 %v4005, %v4044
  %v4046 = vpop.f32.mrb[0].mxu0
  %v4047 = vpop.f32.mrb[0].mxu0
  %v4048 = vpop.f32.mrb[0].mxu0
  %4049 = vdwg.mxu0
  %4050 = vmatprep.subr.bf16.mxu0 0
  %4051 = vmatpush1.bf16.msra.mxu0 %v2942
  %4052 = vmatprep.subr.bf16.mxu0 0
  %4053 = vmatpush1.bf16.msra.mxu0 %v2943
  %4054 = vmatprep.subr.bf16.mxu0 0
  %4055 = vmatpush1.bf16.msra.mxu0 %v2944
  %4056 = vmatprep.subr.bf16.mxu0 0
  %4057 = vmatpush1.bf16.msra.mxu0 %v2945
  %4058 = vmatprep.subr.bf16.mxu0 0
  %4059 = vmatpush1.bf16.msra.mxu0 %v2946
  %4060 = vmatprep.subr.bf16.mxu0 0
  %4061 = vmatpush1.bf16.msra.mxu0 %v2947
  %4062 = vmatprep.subr.bf16.mxu0 0
  %4063 = vmatpush1.bf16.msra.mxu0 %v2948
  %4064 = vmatprep.subr.bf16.mxu0 0
  %4065 = vmatpush1.bf16.msra.mxu0 %v2949
  %4066 = vmatprep.subr.bf16.mxu0 0
  %4067 = vmatpush1.bf16.msra.mxu0 %v2950
  %4068 = vmatprep.subr.bf16.mxu0 0
  %4069 = vmatpush1.bf16.msra.mxu0 %v2951
  %4070 = vmatprep.subr.bf16.mxu0 0
  %4071 = vmatpush1.bf16.msra.mxu0 %v2952
  %4072 = vmatprep.subr.bf16.mxu0 0
  %4073 = vmatpush1.bf16.msra.mxu0 %v2953
  %4074 = vmatprep.subr.bf16.mxu0 0
  %4075 = vmatpush1.bf16.msra.mxu0 %v2954
  %4076 = vmatprep.subr.bf16.mxu0 0
  %4077 = vmatpush1.bf16.msra.mxu0 %v2955
  %4078 = vmatprep.subr.bf16.mxu0 0
  %4079 = vmatpush1.bf16.msra.mxu0 %v2956
  %4080 = vmatprep.subr.bf16.mxu0 0
  %4081 = vmatpush1.bf16.msra.mxu0 %v2957
  %4082 = vmatprep.mubr.bf16.mxu0 %v1004
  %4083 = vmatmul.mubr.bf16.gmra.mrb[0].mxu0 %v1003
  %v4084 = vpop.f32.mrb[0].mxu0
  %v4085 = vadd.f32 %v4045, %v4084
  %v4086 = vpop.f32.mrb[0].mxu0
  %v4087 = vpop.f32.mrb[0].mxu0
  %v4088 = vpop.f32.mrb[0].mxu0
  %4089 = vdwg.mxu0
  %4090 = vmatprep.subr.bf16.mxu0 0
  %4091 = vmatpush1.bf16.msra.mxu0 %v2958
  %4092 = vmatprep.subr.bf16.mxu0 0
  %4093 = vmatpush1.bf16.msra.mxu0 %v2959
  %4094 = vmatprep.subr.bf16.mxu0 0
  %4095 = vmatpush1.bf16.msra.mxu0 %v2960
  %4096 = vmatprep.subr.bf16.mxu0 0
  %4097 = vmatpush1.bf16.msra.mxu0 %v2961
  %4098 = vmatprep.subr.bf16.mxu0 0
  %4099 = vmatpush1.bf16.msra.mxu0 %v2962
  %4100 = vmatprep.subr.bf16.mxu0 0
  %4101 = vmatpush1.bf16.msra.mxu0 %v2963
  %4102 = vmatprep.subr.bf16.mxu0 0
  %4103 = vmatpush1.bf16.msra.mxu0 %v2964
  %4104 = vmatprep.subr.bf16.mxu0 0
  %4105 = vmatpush1.bf16.msra.mxu0 %v2965
  %4106 = vmatprep.subr.bf16.mxu0 0
  %4107 = vmatpush1.bf16.msra.mxu0 %v2966
  %4108 = vmatprep.subr.bf16.mxu0 0
  %4109 = vmatpush1.bf16.msra.mxu0 %v2967
  %4110 = vmatprep.subr.bf16.mxu0 0
  %4111 = vmatpush1.bf16.msra.mxu0 %v2968
  %4112 = vmatprep.subr.bf16.mxu0 0
  %4113 = vmatpush1.bf16.msra.mxu0 %v2969
  %4114 = vmatprep.subr.bf16.mxu0 0
  %4115 = vmatpush1.bf16.msra.mxu0 %v2970
  %4116 = vmatprep.subr.bf16.mxu0 0
  %4117 = vmatpush1.bf16.msra.mxu0 %v2971
  %4118 = vmatprep.subr.bf16.mxu0 0
  %4119 = vmatpush1.bf16.msra.mxu0 %v2972
  %4120 = vmatprep.subr.bf16.mxu0 0
  %4121 = vmatpush1.bf16.msra.mxu0 %v2973
  %4122 = vmatprep.mubr.bf16.mxu0 %v1006
  %4123 = vmatmul.mubr.bf16.gmra.mrb[0].mxu0 %v1005
  %v4124 = vpop.f32.mrb[0].mxu0
  %v4125 = vadd.f32 %v4085, %v4124
  %v4126 = vpop.f32.mrb[0].mxu0
  %v4127 = vpop.f32.mrb[0].mxu0
  %v4128 = vpop.f32.mrb[0].mxu0
  %4129 = vdwg.mxu0
  %4130 = vmatprep.subr.bf16.mxu0 0
  %4131 = vmatpush1.bf16.msra.mxu0 %v2974
  %4132 = vmatprep.subr.bf16.mxu0 0
  %4133 = vmatpush1.bf16.msra.mxu0 %v2975
  %4134 = vmatprep.subr.bf16.mxu0 0
  %4135 = vmatpush1.bf16.msra.mxu0 %v2976
  %4136 = vmatprep.subr.bf16.mxu0 0
  %4137 = vmatpush1.bf16.msra.mxu0 %v2977
  %4138 = vmatprep.subr.bf16.mxu0 0
  %4139 = vmatpush1.bf16.msra.mxu0 %v2978
  %4140 = vmatprep.subr.bf16.mxu0 0
  %4141 = vmatpush1.bf16.msra.mxu0 %v2979
  %4142 = vmatprep.subr.bf16.mxu0 0
  %4143 = vmatpush1.bf16.msra.mxu0 %v2980
  %4144 = vmatprep.subr.bf16.mxu0 0
  %4145 = vmatpush1.bf16.msra.mxu0 %v2981
  %4146 = vmatprep.subr.bf16.mxu0 0
  %4147 = vmatpush1.bf16.msra.mxu0 %v2982
  %4148 = vmatprep.subr.bf16.mxu0 0
  %4149 = vmatpush1.bf16.msra.mxu0 %v2983
  %4150 = vmatprep.subr.bf16.mxu0 0
  %4151 = vmatpush1.bf16.msra.mxu0 %v2984
  %4152 = vmatprep.subr.bf16.mxu0 0
  %4153 = vmatpush1.bf16.msra.mxu0 %v2985
  %4154 = vmatprep.subr.bf16.mxu0 0
  %4155 = vmatpush1.bf16.msra.mxu0 %v2986
  %4156 = vmatprep.subr.bf16.mxu0 0
  %4157 = vmatpush1.bf16.msra.mxu0 %v2987
  %4158 = vmatprep.subr.bf16.mxu0 0
  %4159 = vmatpush1.bf16.msra.mxu0 %v2988
  %4160 = vmatprep.subr.bf16.mxu0 0
  %4161 = vmatpush1.bf16.msra.mxu0 %v2989
  %4162 = vmatprep.mubr.bf16.mxu0 %v1008
  %4163 = vmatmul.mubr.bf16.gmra.mrb[0].mxu0 %v1007
  %v4164 = vpop.f32.mrb[0].mxu0
  %v4165 = vadd.f32 %v4125, %v4164
  %v4166 = vpop.f32.mrb[0].mxu0
  %v4167 = vpop.f32.mrb[0].mxu0
  %v4168 = vpop.f32.mrb[0].mxu0
  %4169 = vdwg.mxu0
  %4170 = vmatprep.subr.bf16.mxu0 0
  %4171 = vmatpush1.bf16.msra.mxu0 %v2990
  %4172 = vmatprep.subr.bf16.mxu0 0
  %4173 = vmatpush1.bf16.msra.mxu0 %v2991
  %4174 = vmatprep.subr.bf16.mxu0 0
  %4175 = vmatpush1.bf16.msra.mxu0 %v2992
  %4176 = vmatprep.subr.bf16.mxu0 0
  %4177 = vmatpush1.bf16.msra.mxu0 %v2993
  %4178 = vmatprep.subr.bf16.mxu0 0
  %4179 = vmatpush1.bf16.msra.mxu0 %v2994
  %4180 = vmatprep.subr.bf16.mxu0 0
  %4181 = vmatpush1.bf16.msra.mxu0 %v2995
  %4182 = vmatprep.subr.bf16.mxu0 0
  %4183 = vmatpush1.bf16.msra.mxu0 %v2996
  %4184 = vmatprep.subr.bf16.mxu0 0
  %4185 = vmatpush1.bf16.msra.mxu0 %v2997
  %4186 = vmatprep.subr.bf16.mxu0 0
  %4187 = vmatpush1.bf16.msra.mxu0 %v2998
  %4188 = vmatprep.subr.bf16.mxu0 0
  %4189 = vmatpush1.bf16.msra.mxu0 %v2999
  %4190 = vmatprep.subr.bf16.mxu0 0
  %4191 = vmatpush1.bf16.msra.mxu0 %v3000
  %4192 = vmatprep.subr.bf16.mxu0 0
  %4193 = vmatpush1.bf16.msra.mxu0 %v3001
  %4194 = vmatprep.subr.bf16.mxu0 0
  %4195 = vmatpush1.bf16.msra.mxu0 %v3002
  %4196 = vmatprep.subr.bf16.mxu0 0
  %4197 = vmatpush1.bf16.msra.mxu0 %v3003
  %4198 = vmatprep.subr.bf16.mxu0 0
  %4199 = vmatpush1.bf16.msra.mxu0 %v3004
  %4200 = vmatprep.subr.bf16.mxu0 0
  %4201 = vmatpush1.bf16.msra.mxu0 %v3005
  %4202 = vmatprep.mubr.bf16.mxu0 %v1010
  %4203 = vmatmul.mubr.bf16.gmra.mrb[0].mxu0 %v1009
  %v4204 = vpop.f32.mrb[0].mxu0
  %v4205 = vadd.f32 %v4165, %v4204
  %v4206 = vpop.f32.mrb[0].mxu0
  %v4207 = vpop.f32.mrb[0].mxu0
  %v4208 = vpop.f32.mrb[0].mxu0
  %4209 = vdwg.mxu0
  %4210 = vmatprep.subr.bf16.mxu0 0
  %4211 = vmatpush1.bf16.msra.mxu0 %v3006
  %4212 = vmatprep.subr.bf16.mxu0 0
  %4213 = vmatpush1.bf16.msra.mxu0 %v3007
  %4214 = vmatprep.subr.bf16.mxu0 0
  %4215 = vmatpush1.bf16.msra.mxu0 %v3008
  %4216 = vmatprep.subr.bf16.mxu0 0
  %4217 = vmatpush1.bf16.msra.mxu0 %v3009
  %4218 = vmatprep.subr.bf16.mxu0 0
  %4219 = vmatpush1.bf16.msra.mxu0 %v3010
  %4220 = vmatprep.subr.bf16.mxu0 0
  %4221 = vmatpush1.bf16.msra.mxu0 %v3011
  %4222 = vmatprep.subr.bf16.mxu0 0
  %4223 = vmatpush1.bf16.msra.mxu0 %v3012
  %4224 = vmatprep.subr.bf16.mxu0 0
  %4225 = vmatpush1.bf16.msra.mxu0 %v3013
  %4226 = vmatprep.subr.bf16.mxu0 0
  %4227 = vmatpush1.bf16.msra.mxu0 %v3014
  %4228 = vmatprep.subr.bf16.mxu0 0
  %4229 = vmatpush1.bf16.msra.mxu0 %v3015
  %4230 = vmatprep.subr.bf16.mxu0 0
  %4231 = vmatpush1.bf16.msra.mxu0 %v3016
  %4232 = vmatprep.subr.bf16.mxu0 0
  %4233 = vmatpush1.bf16.msra.mxu0 %v3017
  %4234 = vmatprep.subr.bf16.mxu0 0
  %4235 = vmatpush1.bf16.msra.mxu0 %v3018
  %4236 = vmatprep.subr.bf16.mxu0 0
  %4237 = vmatpush1.bf16.msra.mxu0 %v3019
  %4238 = vmatprep.subr.bf16.mxu0 0
  %4239 = vmatpush1.bf16.msra.mxu0 %v3020
  %4240 = vmatprep.subr.bf16.mxu0 0
  %4241 = vmatpush1.bf16.msra.mxu0 %v3021
  %4242 = vmatprep.mubr.bf16.mxu0 %v1012
  %4243 = vmatmul.mubr.bf16.gmra.mrb[0].mxu0 %v1011
  %v4244 = vpop.f32.mrb[0].mxu0
  %v4245 = vadd.f32 %v4205, %v4244
  %v4246 = vpop.f32.mrb[0].mxu0
  %v4247 = vpop.f32.mrb[0].mxu0
  %v4248 = vpop.f32.mrb[0].mxu0
  %4249 = vdwg.mxu0
  %4250 = vmatprep.subr.bf16.mxu0 0
  %4251 = vmatpush1.bf16.msra.mxu0 %v3022
  %4252 = vmatprep.subr.bf16.mxu0 0
  %4253 = vmatpush1.bf16.msra.mxu0 %v3023
  %4254 = vmatprep.subr.bf16.mxu0 0
  %4255 = vmatpush1.bf16.msra.mxu0 %v3024
  %4256 = vmatprep.subr.bf16.mxu0 0
  %4257 = vmatpush1.bf16.msra.mxu0 %v3025
  %4258 = vmatprep.subr.bf16.mxu0 0
  %4259 = vmatpush1.bf16.msra.mxu0 %v3026
  %4260 = vmatprep.subr.bf16.mxu0 0
  %4261 = vmatpush1.bf16.msra.mxu0 %v3027
  %4262 = vmatprep.subr.bf16.mxu0 0
  %4263 = vmatpush1.bf16.msra.mxu0 %v3028
  %4264 = vmatprep.subr.bf16.mxu0 0
  %4265 = vmatpush1.bf16.msra.mxu0 %v3029
  %4266 = vmatprep.subr.bf16.mxu0 0
  %4267 = vmatpush1.bf16.msra.mxu0 %v3030
  %4268 = vmatprep.subr.bf16.mxu0 0
  %4269 = vmatpush1.bf16.msra.mxu0 %v3031
  %4270 = vmatprep.subr.bf16.mxu0 0
  %4271 = vmatpush1.bf16.msra.mxu0 %v3032
  %4272 = vmatprep.subr.bf16.mxu0 0
  %4273 = vmatpush1.bf16.msra.mxu0 %v3033
  %4274 = vmatprep.subr.bf16.mxu0 0
  %4275 = vmatpush1.bf16.msra.mxu0 %v3034
  %4276 = vmatprep.subr.bf16.mxu0 0
  %4277 = vmatpush1.bf16.msra.mxu0 %v3035
  %4278 = vmatprep.subr.bf16.mxu0 0
  %4279 = vmatpush1.bf16.msra.mxu0 %v3036
  %4280 = vmatprep.subr.bf16.mxu0 0
  %4281 = vmatpush1.bf16.msra.mxu0 %v3037
  %4282 = vmatprep.mubr.bf16.mxu0 %v1014
  %4283 = vmatmul.mubr.bf16.gmra.mrb[0].mxu0 %v1013
  %v4284 = vpop.f32.mrb[0].mxu0
  %v4285 = vadd.f32 %v4245, %v4284
  %v4286 = vpop.f32.mrb[0].mxu0
  %v4287 = vpop.f32.mrb[0].mxu0
  %v4288 = vpop.f32.mrb[0].mxu0
  %4289 = vdwg.mxu0
  %4290 = vmatprep.subr.bf16.mxu0 0
  %4291 = vmatpush1.bf16.msra.mxu0 %v3038
  %4292 = vmatprep.subr.bf16.mxu0 0
  %4293 = vmatpush1.bf16.msra.mxu0 %v3039
  %4294 = vmatprep.subr.bf16.mxu0 0
  %4295 = vmatpush1.bf16.msra.mxu0 %v3040
  %4296 = vmatprep.subr.bf16.mxu0 0
  %4297 = vmatpush1.bf16.msra.mxu0 %v3041
  %4298 = vmatprep.subr.bf16.mxu0 0
  %4299 = vmatpush1.bf16.msra.mxu0 %v3042
  %4300 = vmatprep.subr.bf16.mxu0 0
  %4301 = vmatpush1.bf16.msra.mxu0 %v3043
  %4302 = vmatprep.subr.bf16.mxu0 0
  %4303 = vmatpush1.bf16.msra.mxu0 %v3044
  %4304 = vmatprep.subr.bf16.mxu0 0
  %4305 = vmatpush1.bf16.msra.mxu0 %v3045
  %4306 = vmatprep.subr.bf16.mxu0 0
  %4307 = vmatpush1.bf16.msra.mxu0 %v3046
  %4308 = vmatprep.subr.bf16.mxu0 0
  %4309 = vmatpush1.bf16.msra.mxu0 %v3047
  %4310 = vmatprep.subr.bf16.mxu0 0
  %4311 = vmatpush1.bf16.msra.mxu0 %v3048
  %4312 = vmatprep.subr.bf16.mxu0 0
  %4313 = vmatpush1.bf16.msra.mxu0 %v3049
  %4314 = vmatprep.subr.bf16.mxu0 0
  %4315 = vmatpush1.bf16.msra.mxu0 %v3050
  %4316 = vmatprep.subr.bf16.mxu0 0
  %4317 = vmatpush1.bf16.msra.mxu0 %v3051
  %4318 = vmatprep.subr.bf16.mxu0 0
  %4319 = vmatpush1.bf16.msra.mxu0 %v3052
  %4320 = vmatprep.subr.bf16.mxu0 0
  %4321 = vmatpush1.bf16.msra.mxu0 %v3053
  %4322 = vmatprep.mubr.bf16.mxu0 %v1016
  %4323 = vmatmul.mubr.bf16.gmra.mrb[0].mxu0 %v1015
  %v4324 = vpop.f32.mrb[0].mxu0
  %v4325 = vadd.f32 %v4285, %v4324
  %v4326 = vpop.f32.mrb[0].mxu0
  %v4327 = vpop.f32.mrb[0].mxu0
  %v4328 = vpop.f32.mrb[0].mxu0
  %4329 = vdwg.mxu0
  %4330 = vmatprep.subr.bf16.mxu0 0
  %4331 = vmatpush1.bf16.msra.mxu0 %v3054
  %4332 = vmatprep.subr.bf16.mxu0 0
  %4333 = vmatpush1.bf16.msra.mxu0 %v3055
  %4334 = vmatprep.subr.bf16.mxu0 0
  %4335 = vmatpush1.bf16.msra.mxu0 %v3056
  %4336 = vmatprep.subr.bf16.mxu0 0
  %4337 = vmatpush1.bf16.msra.mxu0 %v3057
  %4338 = vmatprep.subr.bf16.mxu0 0
  %4339 = vmatpush1.bf16.msra.mxu0 %v3058
  %4340 = vmatprep.subr.bf16.mxu0 0
  %4341 = vmatpush1.bf16.msra.mxu0 %v3059
  %4342 = vmatprep.subr.bf16.mxu0 0
  %4343 = vmatpush1.bf16.msra.mxu0 %v3060
  %4344 = vmatprep.subr.bf16.mxu0 0
  %4345 = vmatpush1.bf16.msra.mxu0 %v3061
  %4346 = vmatprep.subr.bf16.mxu0 0
  %4347 = vmatpush1.bf16.msra.mxu0 %v3062
  %4348 = vmatprep.subr.bf16.mxu0 0
  %4349 = vmatpush1.bf16.msra.mxu0 %v3063
  %4350 = vmatprep.subr.bf16.mxu0 0
  %4351 = vmatpush1.bf16.msra.mxu0 %v3064
  %4352 = vmatprep.subr.bf16.mxu0 0
  %4353 = vmatpush1.bf16.msra.mxu0 %v3065
  %4354 = vmatprep.subr.bf16.mxu0 0
  %4355 = vmatpush1.bf16.msra.mxu0 %v3066
  %4356 = vmatprep.subr.bf16.mxu0 0
  %4357 = vmatpush1.bf16.msra.mxu0 %v3067
  %4358 = vmatprep.subr.bf16.mxu0 0
  %4359 = vmatpush1.bf16.msra.mxu0 %v3068
  %4360 = vmatprep.subr.bf16.mxu0 0
  %4361 = vmatpush1.bf16.msra.mxu0 %v3069
  %4362 = vmatprep.mubr.bf16.mxu0 %v1018
  %4363 = vmatmul.mubr.bf16.gmra.mrb[0].mxu0 %v1017
  %v4364 = vpop.f32.mrb[0].mxu0
  %v4365 = vadd.f32 %v4325, %v4364
  %v4366 = vpop.f32.mrb[0].mxu0
  %v4367 = vpop.f32.mrb[0].mxu0
  %v4368 = vpop.f32.mrb[0].mxu0
  %4369 = vdwg.mxu0
  %4370 = vmatprep.subr.bf16.mxu0 0
  %4371 = vmatpush1.bf16.msra.mxu0 %v3070
  %4372 = vmatprep.subr.bf16.mxu0 0
  %4373 = vmatpush1.bf16.msra.mxu0 %v3071
  %4374 = vmatprep.subr.bf16.mxu0 0
  %4375 = vmatpush1.bf16.msra.mxu0 %v3072
  %4376 = vmatprep.subr.bf16.mxu0 0
  %4377 = vmatpush1.bf16.msra.mxu0 %v3073
  %4378 = vmatprep.subr.bf16.mxu0 0
  %4379 = vmatpush1.bf16.msra.mxu0 %v3074
  %4380 = vmatprep.subr.bf16.mxu0 0
  %4381 = vmatpush1.bf16.msra.mxu0 %v3075
  %4382 = vmatprep.subr.bf16.mxu0 0
  %4383 = vmatpush1.bf16.msra.mxu0 %v3076
  %4384 = vmatprep.subr.bf16.mxu0 0
  %4385 = vmatpush1.bf16.msra.mxu0 %v3077
  %4386 = vmatprep.subr.bf16.mxu0 0
  %4387 = vmatpush1.bf16.msra.mxu0 %v3078
  %4388 = vmatprep.subr.bf16.mxu0 0
  %4389 = vmatpush1.bf16.msra.mxu0 %v3079
  %4390 = vmatprep.subr.bf16.mxu0 0
  %4391 = vmatpush1.bf16.msra.mxu0 %v3080
  %4392 = vmatprep.subr.bf16.mxu0 0
  %4393 = vmatpush1.bf16.msra.mxu0 %v3081
  %4394 = vmatprep.subr.bf16.mxu0 0
  %4395 = vmatpush1.bf16.msra.mxu0 %v3082
  %4396 = vmatprep.subr.bf16.mxu0 0
  %4397 = vmatpush1.bf16.msra.mxu0 %v3083
  %4398 = vmatprep.subr.bf16.mxu0 0
  %4399 = vmatpush1.bf16.msra.mxu0 %v3084
  %4400 = vmatprep.subr.bf16.mxu0 0
  %4401 = vmatpush1.bf16.msra.mxu0 %v3085
  %4402 = vmatprep.mubr.bf16.mxu0 %v1020
  %4403 = vmatmul.mubr.bf16.gmra.mrb[0].mxu0 %v1019
  %v4404 = vpop.f32.mrb[0].mxu0
  %v4405 = vadd.f32 %v4365, %v4404
  %v4406 = vpop.f32.mrb[0].mxu0
  %v4407 = vpop.f32.mrb[0].mxu0
  %v4408 = vpop.f32.mrb[0].mxu0
  %4409 = vdwg.mxu0
  %4410 = vmatprep.subr.bf16.mxu0 0
  %4411 = vmatpush1.bf16.msra.mxu0 %v3086
  %4412 = vmatprep.subr.bf16.mxu0 0
  %4413 = vmatpush1.bf16.msra.mxu0 %v3087
  %4414 = vmatprep.subr.bf16.mxu0 0
  %4415 = vmatpush1.bf16.msra.mxu0 %v3088
  %4416 = vmatprep.subr.bf16.mxu0 0
  %4417 = vmatpush1.bf16.msra.mxu0 %v3089
  %4418 = vmatprep.subr.bf16.mxu0 0
  %4419 = vmatpush1.bf16.msra.mxu0 %v3090
  %4420 = vmatprep.subr.bf16.mxu0 0
  %4421 = vmatpush1.bf16.msra.mxu0 %v3091
  %4422 = vmatprep.subr.bf16.mxu0 0
  %4423 = vmatpush1.bf16.msra.mxu0 %v3092
  %4424 = vmatprep.subr.bf16.mxu0 0
  %4425 = vmatpush1.bf16.msra.mxu0 %v3093
  %4426 = vmatprep.subr.bf16.mxu0 0
  %4427 = vmatpush1.bf16.msra.mxu0 %v3094
  %4428 = vmatprep.subr.bf16.mxu0 0
  %4429 = vmatpush1.bf16.msra.mxu0 %v3095
  %4430 = vmatprep.subr.bf16.mxu0 0
  %4431 = vmatpush1.bf16.msra.mxu0 %v3096
  %4432 = vmatprep.subr.bf16.mxu0 0
  %4433 = vmatpush1.bf16.msra.mxu0 %v3097
  %4434 = vmatprep.subr.bf16.mxu0 0
  %4435 = vmatpush1.bf16.msra.mxu0 %v3098
  %4436 = vmatprep.subr.bf16.mxu0 0
  %4437 = vmatpush1.bf16.msra.mxu0 %v3099
  %4438 = vmatprep.subr.bf16.mxu0 0
  %4439 = vmatpush1.bf16.msra.mxu0 %v3100
  %4440 = vmatprep.subr.bf16.mxu0 0
  %4441 = vmatpush1.bf16.msra.mxu0 %v3101
  %4442 = vmatprep.mubr.bf16.mxu0 %v1022
  %4443 = vmatmul.mubr.bf16.gmra.mrb[0].mxu0 %v1021
  %v4444 = vpop.f32.mrb[0].mxu0
  %v4445 = vadd.f32 %v4405, %v4444
  %v4446 = vpop.f32.mrb[0].mxu0
  %v4447 = vpop.f32.mrb[0].mxu0
  %v4448 = vpop.f32.mrb[0].mxu0
  %4449 = vdwg.mxu0
  %4450 = vmatprep.subr.bf16.mxu0 0
  %4451 = vmatpush1.bf16.msra.mxu0 %v3102
  %4452 = vmatprep.subr.bf16.mxu0 0
  %4453 = vmatpush1.bf16.msra.mxu0 %v3103
  %4454 = vmatprep.subr.bf16.mxu0 0
  %4455 = vmatpush1.bf16.msra.mxu0 %v3104
  %4456 = vmatprep.subr.bf16.mxu0 0
  %4457 = vmatpush1.bf16.msra.mxu0 %v3105
  %4458 = vmatprep.subr.bf16.mxu0 0
  %4459 = vmatpush1.bf16.msra.mxu0 %v3106
  %4460 = vmatprep.subr.bf16.mxu0 0
  %4461 = vmatpush1.bf16.msra.mxu0 %v3107
  %4462 = vmatprep.subr.bf16.mxu0 0
  %4463 = vmatpush1.bf16.msra.mxu0 %v3108
  %4464 = vmatprep.subr.bf16.mxu0 0
  %4465 = vmatpush1.bf16.msra.mxu0 %v3109
  %4466 = vmatprep.subr.bf16.mxu0 0
  %4467 = vmatpush1.bf16.msra.mxu0 %v3110
  %4468 = vmatprep.subr.bf16.mxu0 0
  %4469 = vmatpush1.bf16.msra.mxu0 %v3111
  %4470 = vmatprep.subr.bf16.mxu0 0
  %4471 = vmatpush1.bf16.msra.mxu0 %v3112
  %4472 = vmatprep.subr.bf16.mxu0 0
  %4473 = vmatpush1.bf16.msra.mxu0 %v3113
  %4474 = vmatprep.subr.bf16.mxu0 0
  %4475 = vmatpush1.bf16.msra.mxu0 %v3114
  %4476 = vmatprep.subr.bf16.mxu0 0
  %4477 = vmatpush1.bf16.msra.mxu0 %v3115
  %4478 = vmatprep.subr.bf16.mxu0 0
  %4479 = vmatpush1.bf16.msra.mxu0 %v3116
  %4480 = vmatprep.subr.bf16.mxu0 0
  %4481 = vmatpush1.bf16.msra.mxu0 %v3117
  %4482 = vmatprep.mubr.bf16.mxu0 %v1024
  %4483 = vmatmul.mubr.bf16.gmra.mrb[0].mxu0 %v1023
  %v4484 = vpop.f32.mrb[0].mxu0
  %v4485 = vadd.f32 %v4445, %v4484
  %v4486 = vpop.f32.mrb[0].mxu0
  %v4487 = vpop.f32.mrb[0].mxu0
  %v4488 = vpop.f32.mrb[0].mxu0
  %4489 = vdwg.mxu0
  %4490 = vmatprep.subr.bf16.mxu0 0
  %4491 = vmatpush1.bf16.msra.mxu0 %v3118
  %4492 = vmatprep.subr.bf16.mxu0 0
  %4493 = vmatpush1.bf16.msra.mxu0 %v3119
  %4494 = vmatprep.subr.bf16.mxu0 0
  %4495 = vmatpush1.bf16.msra.mxu0 %v3120
  %4496 = vmatprep.subr.bf16.mxu0 0
  %4497 = vmatpush1.bf16.msra.mxu0 %v3121
  %4498 = vmatprep.subr.bf16.mxu0 0
  %4499 = vmatpush1.bf16.msra.mxu0 %v3122
  %4500 = vmatprep.subr.bf16.mxu0 0
  %4501 = vmatpush1.bf16.msra.mxu0 %v3123
  %4502 = vmatprep.subr.bf16.mxu0 0
  %4503 = vmatpush1.bf16.msra.mxu0 %v3124
  %4504 = vmatprep.subr.bf16.mxu0 0
  %4505 = vmatpush1.bf16.msra.mxu0 %v3125
  %4506 = vmatprep.subr.bf16.mxu0 0
  %4507 = vmatpush1.bf16.msra.mxu0 %v3126
  %4508 = vmatprep.subr.bf16.mxu0 0
  %4509 = vmatpush1.bf16.msra.mxu0 %v3127
  %4510 = vmatprep.subr.bf16.mxu0 0
  %4511 = vmatpush1.bf16.msra.mxu0 %v3128
  %4512 = vmatprep.subr.bf16.mxu0 0
  %4513 = vmatpush1.bf16.msra.mxu0 %v3129
  %4514 = vmatprep.subr.bf16.mxu0 0
  %4515 = vmatpush1.bf16.msra.mxu0 %v3130
  %4516 = vmatprep.subr.bf16.mxu0 0
  %4517 = vmatpush1.bf16.msra.mxu0 %v3131
  %4518 = vmatprep.subr.bf16.mxu0 0
  %4519 = vmatpush1.bf16.msra.mxu0 %v3132
  %4520 = vmatprep.subr.bf16.mxu0 0
  %4521 = vmatpush1.bf16.msra.mxu0 %v3133
  %4522 = vmatprep.mubr.bf16.mxu0 %v1026
  %4523 = vmatmul.mubr.bf16.gmra.mrb[0].mxu0 %v1025
  %v4524 = vpop.f32.mrb[0].mxu0
  %v4525 = vadd.f32 %v4485, %v4524
  %v4526 = vpop.f32.mrb[0].mxu0
  %v4527 = vpop.f32.mrb[0].mxu0
  %v4528 = vpop.f32.mrb[0].mxu0
  %4529 = vdwg.mxu0
  %4530 = vmatprep.subr.bf16.mxu0 0
  %4531 = vmatpush1.bf16.msra.mxu0 %v3134
  %4532 = vmatprep.subr.bf16.mxu0 0
  %4533 = vmatpush1.bf16.msra.mxu0 %v3135
  %4534 = vmatprep.subr.bf16.mxu0 0
  %4535 = vmatpush1.bf16.msra.mxu0 %v3136
  %4536 = vmatprep.subr.bf16.mxu0 0
  %4537 = vmatpush1.bf16.msra.mxu0 %v3137
  %4538 = vmatprep.subr.bf16.mxu0 0
  %4539 = vmatpush1.bf16.msra.mxu0 %v3138
  %4540 = vmatprep.subr.bf16.mxu0 0
  %4541 = vmatpush1.bf16.msra.mxu0 %v3139
  %4542 = vmatprep.subr.bf16.mxu0 0
  %4543 = vmatpush1.bf16.msra.mxu0 %v3140
  %4544 = vmatprep.subr.bf16.mxu0 0
  %4545 = vmatpush1.bf16.msra.mxu0 %v3141
  %4546 = vmatprep.subr.bf16.mxu0 0
  %4547 = vmatpush1.bf16.msra.mxu0 %v3142
  %4548 = vmatprep.subr.bf16.mxu0 0
  %4549 = vmatpush1.bf16.msra.mxu0 %v3143
  %4550 = vmatprep.subr.bf16.mxu0 0
  %4551 = vmatpush1.bf16.msra.mxu0 %v3144
  %4552 = vmatprep.subr.bf16.mxu0 0
  %4553 = vmatpush1.bf16.msra.mxu0 %v3145
  %4554 = vmatprep.subr.bf16.mxu0 0
  %4555 = vmatpush1.bf16.msra.mxu0 %v3146
  %4556 = vmatprep.subr.bf16.mxu0 0
  %4557 = vmatpush1.bf16.msra.mxu0 %v3147
  %4558 = vmatprep.subr.bf16.mxu0 0
  %4559 = vmatpush1.bf16.msra.mxu0 %v3148
  %4560 = vmatprep.subr.bf16.mxu0 0
  %4561 = vmatpush1.bf16.msra.mxu0 %v3149
  %4562 = vmatprep.mubr.bf16.mxu0 %v1028
  %4563 = vmatmul.mubr.bf16.gmra.mrb[0].mxu0 %v1027
  %v4564 = vpop.f32.mrb[0].mxu0
  %v4565 = vadd.f32 %v4525, %v4564
  %v4566 = vpop.f32.mrb[0].mxu0
  %v4567 = vpop.f32.mrb[0].mxu0
  %v4568 = vpop.f32.mrb[0].mxu0
  %4569 = vdwg.mxu0
  %4570 = vmatprep.subr.bf16.mxu0 0
  %4571 = vmatpush1.bf16.msra.mxu0 %v3150
  %4572 = vmatprep.subr.bf16.mxu0 0
  %4573 = vmatpush1.bf16.msra.mxu0 %v3151
  %4574 = vmatprep.subr.bf16.mxu0 0
  %4575 = vmatpush1.bf16.msra.mxu0 %v3152
  %4576 = vmatprep.subr.bf16.mxu0 0
  %4577 = vmatpush1.bf16.msra.mxu0 %v3153
  %4578 = vmatprep.subr.bf16.mxu0 0
  %4579 = vmatpush1.bf16.msra.mxu0 %v3154
  %4580 = vmatprep.subr.bf16.mxu0 0
  %4581 = vmatpush1.bf16.msra.mxu0 %v3155
  %4582 = vmatprep.subr.bf16.mxu0 0
  %4583 = vmatpush1.bf16.msra.mxu0 %v3156
  %4584 = vmatprep.subr.bf16.mxu0 0
  %4585 = vmatpush1.bf16.msra.mxu0 %v3157
  %4586 = vmatprep.subr.bf16.mxu0 0
  %4587 = vmatpush1.bf16.msra.mxu0 %v3158
  %4588 = vmatprep.subr.bf16.mxu0 0
  %4589 = vmatpush1.bf16.msra.mxu0 %v3159
  %4590 = vmatprep.subr.bf16.mxu0 0
  %4591 = vmatpush1.bf16.msra.mxu0 %v3160
  %4592 = vmatprep.subr.bf16.mxu0 0
  %4593 = vmatpush1.bf16.msra.mxu0 %v3161
  %4594 = vmatprep.subr.bf16.mxu0 0
  %4595 = vmatpush1.bf16.msra.mxu0 %v3162
  %4596 = vmatprep.subr.bf16.mxu0 0
  %4597 = vmatpush1.bf16.msra.mxu0 %v3163
  %4598 = vmatprep.subr.bf16.mxu0 0
  %4599 = vmatpush1.bf16.msra.mxu0 %v3164
  %4600 = vmatprep.subr.bf16.mxu0 0
  %4601 = vmatpush1.bf16.msra.mxu0 %v3165
  %4602 = vmatprep.mubr.bf16.mxu0 %v1030
  %4603 = vmatmul.mubr.bf16.gmra.mrb[0].mxu0 %v1029
  %v4604 = vpop.f32.mrb[0].mxu0
  %v4605 = vadd.f32 %v4565, %v4604
  %v4606 = vpop.f32.mrb[0].mxu0
  %v4607 = vpop.f32.mrb[0].mxu0
  %v4608 = vpop.f32.mrb[0].mxu0
  %4609 = vdwg.mxu0
  %4610 = vmatprep.subr.bf16.mxu0 0
  %4611 = vmatpush1.bf16.msra.mxu0 %v3166
  %4612 = vmatprep.subr.bf16.mxu0 0
  %4613 = vmatpush1.bf16.msra.mxu0 %v3167
  %4614 = vmatprep.subr.bf16.mxu0 0
  %4615 = vmatpush1.bf16.msra.mxu0 %v3168
  %4616 = vmatprep.subr.bf16.mxu0 0
  %4617 = vmatpush1.bf16.msra.mxu0 %v3169
  %4618 = vmatprep.subr.bf16.mxu0 0
  %4619 = vmatpush1.bf16.msra.mxu0 %v3170
  %4620 = vmatprep.subr.bf16.mxu0 0
  %4621 = vmatpush1.bf16.msra.mxu0 %v3171
  %4622 = vmatprep.subr.bf16.mxu0 0
  %4623 = vmatpush1.bf16.msra.mxu0 %v3172
  %4624 = vmatprep.subr.bf16.mxu0 0
  %4625 = vmatpush1.bf16.msra.mxu0 %v3173
  %4626 = vmatprep.subr.bf16.mxu0 0
  %4627 = vmatpush1.bf16.msra.mxu0 %v3174
  %4628 = vmatprep.subr.bf16.mxu0 0
  %4629 = vmatpush1.bf16.msra.mxu0 %v3175
  %4630 = vmatprep.subr.bf16.mxu0 0
  %4631 = vmatpush1.bf16.msra.mxu0 %v3176
  %4632 = vmatprep.subr.bf16.mxu0 0
  %4633 = vmatpush1.bf16.msra.mxu0 %v3177
  %4634 = vmatprep.subr.bf16.mxu0 0
  %4635 = vmatpush1.bf16.msra.mxu0 %v3178
  %4636 = vmatprep.subr.bf16.mxu0 0
  %4637 = vmatpush1.bf16.msra.mxu0 %v3179
  %4638 = vmatprep.subr.bf16.mxu0 0
  %4639 = vmatpush1.bf16.msra.mxu0 %v3180
  %4640 = vmatprep.subr.bf16.mxu0 0
  %4641 = vmatpush1.bf16.msra.mxu0 %v3181
  %4642 = vmatprep.mubr.bf16.mxu0 %v1032
  %4643 = vmatmul.mubr.bf16.gmra.mrb[0].mxu0 %v1031
  %v4644 = vpop.f32.mrb[0].mxu0
  %v4645 = vadd.f32 %v4605, %v4644
  %v4646 = vpop.f32.mrb[0].mxu0
  %v4647 = vpop.f32.mrb[0].mxu0
  %v4648 = vpop.f32.mrb[0].mxu0
  %4649 = vdwg.mxu0
  %4650 = vmatprep.subr.bf16.mxu0 0
  %4651 = vmatpush1.bf16.msra.mxu0 %v3182
  %4652 = vmatprep.subr.bf16.mxu0 0
  %4653 = vmatpush1.bf16.msra.mxu0 %v3183
  %4654 = vmatprep.subr.bf16.mxu0 0
  %4655 = vmatpush1.bf16.msra.mxu0 %v3184
  %4656 = vmatprep.subr.bf16.mxu0 0
  %4657 = vmatpush1.bf16.msra.mxu0 %v3185
  %4658 = vmatprep.subr.bf16.mxu0 0
  %4659 = vmatpush1.bf16.msra.mxu0 0
  %4660 = vmatprep.subr.bf16.mxu0 0
  %4661 = vmatpush1.bf16.msra.mxu0 0
  %4662 = vmatprep.subr.bf16.mxu0 0
  %4663 = vmatpush1.bf16.msra.mxu0 0
  %4664 = vmatprep.subr.bf16.mxu0 0
  %4665 = vmatpush1.bf16.msra.mxu0 0
  %4666 = vmatprep.subr.bf16.mxu0 0
  %4667 = vmatpush1.bf16.msra.mxu0 0
  %4668 = vmatprep.subr.bf16.mxu0 0
  %4669 = vmatpush1.bf16.msra.mxu0 0
  %4670 = vmatprep.subr.bf16.mxu0 0
  %4671 = vmatpush1.bf16.msra.mxu0 0
  %4672 = vmatprep.subr.bf16.mxu0 0
  %4673 = vmatpush1.bf16.msra.mxu0 0
  %4674 = vmatprep.subr.bf16.mxu0 0
  %4675 = vmatpush1.bf16.msra.mxu0 0
  %4676 = vmatprep.subr.bf16.mxu0 0
  %4677 = vmatpush1.bf16.msra.mxu0 0
  %4678 = vmatprep.subr.bf16.mxu0 0
  %4679 = vmatpush1.bf16.msra.mxu0 0
  %4680 = vmatprep.subr.bf16.mxu0 0
  %4681 = vmatpush1.bf16.msra.mxu0 0
  %4682 = vmatprep.mubr.bf16.mxu0 0
  %4683 = vmatmul.mubr.bf16.gmra.mrb[0].mxu0 %v3608
  %v4684 = vpop.f32.mrb[0].mxu0
  %v4685 = vadd.f32 %v4645, %v4684
  %v4686 = vpop.f32.mrb[0].mxu0
  %v4687 = vpop.f32.mrb[0].mxu0
  %v4688 = vpop.f32.mrb[0].mxu0
  %4689 = vdwg.mxu0
  %v4690 = vmax.f32 %v4685, 0.0
  %v4691 = vpack.c.bf16 %v4690, %v4690
  %v4692 = vld [vmem:[%s3] sm:$0xf]
  %v4693 = vld [vmem:[%s3 + $0x4] sm:$0xf]
  %v4694 = vld [vmem:[%s3 + $0x8] sm:$0xf]
  %v4695 = vld [vmem:[%s3 + $0xc] sm:$0xf]
  %v4696 = vld [vmem:[%s3 + $0x10] sm:$0xf]
  %v4697 = vld [vmem:[%s3 + $0x14] sm:$0xf]
  %v4698 = vld [vmem:[%s3 + $0x18] sm:$0xf]
  %v4699 = vld [vmem:[%s3 + $0x1c] sm:$0xf]
  %v4700 = vld [vmem:[%s3 + $0x20] sm:$0xf]
  %v4701 = vld [vmem:[%s3 + $0x24] sm:$0xf]
  %v4702 = vld [vmem:[%s3 + $0x28] sm:$0xf]
  %v4703 = vld [vmem:[%s3 + $0x2c] sm:$0xf]
  %v4704 = vld [vmem:[%s3 + $0x30] sm:$0xf]
  %v4705 = vld [vmem:[%s3 + $0x34] sm:$0xf]
  %v4706 = vld [vmem:[%s3 + $0x38] sm:$0xf]
  %v4707 = vld [vmem:[%s3 + $0x3c] sm:$0xf]
  %v4708 = vld [vmem:[%s4] sm:$0x1]
  %v4710 = vlaneseq
  %v4711 = vshrl.u32 %v4710, 7
  %v4712 = vsub.s32 0, %v4711
  %v4713 = vrot.slane %v4708, %v4712
  %v4731 = vunpack.c.l.b16 %v4692
  %v4732 = vunpack.c.l.b16 %v4693
  %v4733 = vunpack.c.l.b16 %v4694
  %v4734 = vunpack.c.l.b16 %v4695
  %v4735 = vunpack.c.l.b16 %v4696
  %v4736 = vunpack.c.l.b16 %v4697
  %v4737 = vunpack.c.l.b16 %v4698
  %v4738 = vunpack.c.l.b16 %v4699
  %v4739 = vunpack.c.l.b16 %v4700
  %v4740 = vunpack.c.l.b16 %v4701
  %v4741 = vunpack.c.l.b16 %v4702
  %v4742 = vunpack.c.l.b16 %v4703
  %v4743 = vunpack.c.l.b16 %v4704
  %v4744 = vunpack.c.l.b16 %v4705
  %v4745 = vunpack.c.l.b16 %v4706
  %v4746 = vunpack.c.l.b16 %v4707
  %v4747 = vpack.c.b16 %v4732, %v4731
  %v4748 = vpack.c.b16 %v4734, %v4733
  %v4749 = vpack.c.b16 %v4736, %v4735
  %v4750 = vpack.c.b16 %v4738, %v4737
  %v4751 = vpack.c.b16 %v4740, %v4739
  %v4752 = vpack.c.b16 %v4742, %v4741
  %v4753 = vpack.c.b16 %v4744, %v4743
  %v4754 = vpack.c.b16 %v4746, %v4745
  %4763 = vmatprep.subr.bf16.mxu0 0
  %4764 = vmatpush1.bf16.msra.mxu0 %v4747
  %4765 = vmatprep.subr.bf16.mxu0 0
  %4766 = vmatpush1.bf16.msra.mxu0 %v4748
  %4767 = vmatprep.subr.bf16.mxu0 0
  %4768 = vmatpush1.bf16.msra.mxu0 %v4749
  %4769 = vmatprep.subr.bf16.mxu0 0
  %4770 = vmatpush1.bf16.msra.mxu0 %v4750
  %4771 = vmatprep.subr.bf16.mxu0 0
  %4772 = vmatpush1.bf16.msra.mxu0 %v4751
  %4773 = vmatprep.subr.bf16.mxu0 0
  %4774 = vmatpush1.bf16.msra.mxu0 %v4752
  %4775 = vmatprep.subr.bf16.mxu0 0
  %4776 = vmatpush1.bf16.msra.mxu0 %v4753
  %4777 = vmatprep.subr.bf16.mxu0 0
  %4778 = vmatpush1.bf16.msra.mxu0 %v4754
  %4779 = vmatprep.subr.bf16.mxu0 0
  %4780 = vmatpush1.bf16.msra.mxu0 0
  %4781 = vmatprep.subr.bf16.mxu0 0
  %4782 = vmatpush1.bf16.msra.mxu0 0
  %4783 = vmatprep.subr.bf16.mxu0 0
  %4784 = vmatpush1.bf16.msra.mxu0 0
  %4785 = vmatprep.subr.bf16.mxu0 0
  %4786 = vmatpush1.bf16.msra.mxu0 0
  %4787 = vmatprep.subr.bf16.mxu0 0
  %4788 = vmatpush1.bf16.msra.mxu0 0
  %4789 = vmatprep.subr.bf16.mxu0 0
  %4790 = vmatpush1.bf16.msra.mxu0 0
  %4791 = vmatprep.subr.bf16.mxu0 0
  %4792 = vmatpush1.bf16.msra.mxu0 0
  %4793 = vmatprep.subr.bf16.mxu0 0
  %4794 = vmatpush1.bf16.msra.mxu0 0
  %4795 = vmatprep.mubr.bf16.mxu0 0
  %4796 = vmatmul.mubr.bf16.gmra.mrb[0].mxu0 %v4691
  %v4797 = vpop.f32.mrb[0].mxu0
  %v4798 = vadd.f32 %v4713, %v4797
  %v4799 = vpop.f32.mrb[0].mxu0
  %v4800 = vpop.f32.mrb[0].mxu0
  %v4801 = vpop.f32.mrb[0].mxu0
  %4802 = vdwg.mxu0
  %v4803 = vmax.f32 %v4798, 0.0
  %v4804 = vpack.c.bf16 %v4803, %v4803
  %v4805 = vld [vmem:[%s5] sm:$0xf]
  %v4806 = vld [vmem:[%s5 + $0x4] sm:$0xf]
  %v4807 = vld [vmem:[%s5 + $0x8] sm:$0xf]
  %v4808 = vld [vmem:[%s5 + $0xc] sm:$0xf]
  %v4809 = vld [vmem:[%s5 + $0x10] sm:$0xf]
  %v4810 = vld [vmem:[%s5 + $0x14] sm:$0xf]
  %v4811 = vld [vmem:[%s5 + $0x18] sm:$0xf]
  %v4812 = vld [vmem:[%s5 + $0x1c] sm:$0xf]
  %v4813 = vld [vmem:[%s5 + $0x20] sm:$0xf]
  %v4814 = vld [vmem:[%s5 + $0x24] sm:$0xf]
  %v4815 = vld [vmem:[%s5 + $0x28] sm:$0xf]
  %v4816 = vld [vmem:[%s5 + $0x2c] sm:$0xf]
  %v4817 = vld [vmem:[%s5 + $0x30] sm:$0xf]
  %v4818 = vld [vmem:[%s5 + $0x34] sm:$0xf]
  %v4819 = vld [vmem:[%s5 + $0x38] sm:$0xf]
  %v4820 = vld [vmem:[%s5 + $0x3c] sm:$0xf]
  %v4821 = vld [vmem:[%s6] sm:$0x1]
  %v4823 = vlaneseq
  %v4824 = vshrl.u32 %v4823, 7
  %v4825 = vsub.s32 0, %v4824
  %v4826 = vrot.slane %v4821, %v4825
  %v4844 = vunpack.c.l.b16 %v4805
  %v4845 = vunpack.c.l.b16 %v4806
  %v4846 = vunpack.c.l.b16 %v4807
  %v4847 = vunpack.c.l.b16 %v4808
  %v4848 = vunpack.c.l.b16 %v4809
  %v4849 = vunpack.c.l.b16 %v4810
  %v4850 = vunpack.c.l.b16 %v4811
  %v4851 = vunpack.c.l.b16 %v4812
  %v4852 = vunpack.c.l.b16 %v4813
  %v4853 = vunpack.c.l.b16 %v4814
  %v4854 = vunpack.c.l.b16 %v4815
  %v4855 = vunpack.c.l.b16 %v4816
  %v4856 = vunpack.c.l.b16 %v4817
  %v4857 = vunpack.c.l.b16 %v4818
  %v4858 = vunpack.c.l.b16 %v4819
  %v4859 = vunpack.c.l.b16 %v4820
  %v4860 = vpack.c.b16 %v4845, %v4844
  %v4861 = vpack.c.b16 %v4847, %v4846
  %v4862 = vpack.c.b16 %v4849, %v4848
  %v4863 = vpack.c.b16 %v4851, %v4850
  %v4864 = vpack.c.b16 %v4853, %v4852
  %v4865 = vpack.c.b16 %v4855, %v4854
  %v4866 = vpack.c.b16 %v4857, %v4856
  %v4867 = vpack.c.b16 %v4859, %v4858
  %4876 = vmatprep.subr.bf16.mxu0 0
  %4877 = vmatpush1.bf16.msra.mxu0 %v4860
  %4878 = vmatprep.subr.bf16.mxu0 0
  %4879 = vmatpush1.bf16.msra.mxu0 %v4861
  %4880 = vmatprep.subr.bf16.mxu0 0
  %4881 = vmatpush1.bf16.msra.mxu0 %v4862
  %4882 = vmatprep.subr.bf16.mxu0 0
  %4883 = vmatpush1.bf16.msra.mxu0 %v4863
  %4884 = vmatprep.subr.bf16.mxu0 0
  %4885 = vmatpush1.bf16.msra.mxu0 %v4864
  %4886 = vmatprep.subr.bf16.mxu0 0
  %4887 = vmatpush1.bf16.msra.mxu0 %v4865
  %4888 = vmatprep.subr.bf16.mxu0 0
  %4889 = vmatpush1.bf16.msra.mxu0 %v4866
  %4890 = vmatprep.subr.bf16.mxu0 0
  %4891 = vmatpush1.bf16.msra.mxu0 %v4867
  %4892 = vmatprep.subr.bf16.mxu0 0
  %4893 = vmatpush1.bf16.msra.mxu0 0
  %4894 = vmatprep.subr.bf16.mxu0 0
  %4895 = vmatpush1.bf16.msra.mxu0 0
  %4896 = vmatprep.subr.bf16.mxu0 0
  %4897 = vmatpush1.bf16.msra.mxu0 0
  %4898 = vmatprep.subr.bf16.mxu0 0
  %4899 = vmatpush1.bf16.msra.mxu0 0
  %4900 = vmatprep.subr.bf16.mxu0 0
  %4901 = vmatpush1.bf16.msra.mxu0 0
  %4902 = vmatprep.subr.bf16.mxu0 0
  %4903 = vmatpush1.bf16.msra.mxu0 0
  %4904 = vmatprep.subr.bf16.mxu0 0
  %4905 = vmatpush1.bf16.msra.mxu0 0
  %4906 = vmatprep.subr.bf16.mxu0 0
  %4907 = vmatpush1.bf16.msra.mxu0 0
  %4908 = vmatprep.mubr.bf16.mxu0 0
  %4909 = vmatmul.mubr.bf16.gmra.mrb[0].mxu0 %v4804
  %v4910 = vpop.f32.mrb[0].mxu0
  %v4911 = vadd.f32 %v4826, %v4910
  %v4912 = vpop.f32.mrb[0].mxu0
  %v4913 = vpop.f32.mrb[0].mxu0
  %v4914 = vpop.f32.mrb[0].mxu0
  %4915 = vdwg.mxu0
  %4916 = vst [vmem:[%s7] sm:$0xff] %v4911
  // Predicated region
  $region30: #{forward.9} parent=0 // pred_check
    _
  $region31: #{forward.9} parent=0 // pred_check_branch
    %4918 = sbr.rel (0) target = $region33
  $region32: #{forward.9} parent=0 // pred_region
    _
  $region33: #{forward.9} parent=0 // pred_fallthru
    _
  // Predicated region
  $region34: #{forward.9} parent=0 // pred_check
    _
  $region35: #{forward.9} parent=0 // pred_check_branch
    %4920 = sbr.rel (0) target = $region37
  $region36: #{forward.9} parent=0 // pred_region
    _
  $region37: #{forward.9} parent=0 // pred_fallthru
    _

</llo_original>
